<compile_context>
chip_gen: v7x
topology: tpu7x:2x2x1
jax: 0.10.0
libtpu: 0.0.40
codegen_flags: <defaults>
</compile_context>

<pallas_src>
import math

import jax
import jax.numpy as jnp
from jax.experimental import pallas as pl
from jax.experimental.pallas import tpu as pltpu

K = 7            # kernel size
PAD = 3          # padding (same-size output for stride 1)
NEG_SLOPE = 0.1  # LeakyReLU slope


def _vmem_limit_bytes():
    """Generation-aware VMEM budget with headroom for Mosaic-internal scratch."""
    cap = 64 * 1024 * 1024  # conservative fallback (v7x per-TC capacity)
    try:
        cap = int(pltpu.get_tpu_info().vmem_capacity_bytes)
    except Exception:
        pass
    # ~60% of per-core capacity: v7x (64 MiB) -> ~38 MiB, v5e/v6e (128 MiB) -> ~76 MiB.
    return max(16 * 1024 * 1024, min(int(cap * 0.6), 100 * 1024 * 1024))


def _pick_tile_h(H, W, target):
    """Row-tile height: full H for small images, otherwise a multiple of
    (128 // gcd(W, 128)) so the tiled output block's lane width (tH*W) is 128-aligned."""
    if H <= target:
        return H
    step = 128 // math.gcd(W, 128)
    return max(step, (target // step) * step)


def _conv7_lrelu_kernel(x_ref, w_ref, o_ref):
    # x_ref: (1, Cin, Hpad+6, Wp)  bf16  full padded input slab for batch b
    #                                    (resident across row tiles of the same batch)
    # w_ref: (Cout, 49*Cin)        bf16  w[co, (kh*7 + kw)*Cin + ci]
    # o_ref: (1, Cout, tH*W)             lane-dense, row-major-flattened NCHW row tile
    cin = x_ref.shape[1]
    wp = x_ref.shape[3]
    w_out = wp - 2 * PAD
    t_h = o_ref.shape[2] // w_out
    hwin = t_h + 2 * PAD

    if x_ref.shape[2] == hwin:
        # Single row tile per batch: static full read of the slab.
        xwin = x_ref[0]                                   # (Cin, tH+6, Wp)
    else:
        row0 = pl.program_id(1) * t_h
        if t_h % 8 == 0:
            row0 = pl.multiple_of(row0, 8)
        xwin = x_ref[0, :, pl.ds(row0, hwin), :]          # (Cin, tH+6, Wp)

    # Fold the kw taps along the channel (leading) axis via lane-window slices.
    big = jnp.concatenate(
        [xwin[:, :, kw:kw + w_out] for kw in range(K)], axis=0
    )                                                     # (7*Cin, tH+6, W)

    # Fold the kh taps along the channel axis via sublane-window slices.
    big2 = jnp.concatenate(
        [big[:, kh:kh + t_h, :] for kh in range(K)], axis=0
    )                                                     # (49*Cin, tH, W)

    # Flatten the tH output rows onto the lane axis so the dot stays 2-D and the
    # result / store are lane-dense:  rhs[d, h*W + w] = big2[d, h, w].
    rhs = jnp.concatenate(
        [big2[:, h, :] for h in range(t_h)], axis=1
    )                                                     # (49*Cin, tH*W)

    # Single MXU dot per row tile: weights as LHS, im2col patch as RHS, f32 accumulate.
    acc = jax.lax.dot_general(
        w_ref[...], rhs,
        dimension_numbers=(((1,), (0,)), ((), ())),
        preferred_element_type=jnp.float32,
    )                                                     # (Cout, tH*W) f32

    o_ref[0] = jnp.where(acc >= 0, acc, NEG_SLOPE * acc).astype(o_ref.dtype)


def conv7_block_1_forward(x_nchw, weight_oihw, *, tile_h_target=64, out_dtype=None):
    """NCHW-native forward: x (B, Cin, H, W), weight (Cout, Cin, 7, 7) -> (B, Cout, H, W)."""
    B, Cin, H, W = x_nchw.shape
    Cout = weight_oihw.shape[0]
    if out_dtype is None:
        out_dtype = x_nchw.dtype  # pass out_dtype=jnp.bfloat16 to halve output HBM traffic

    t_h = _pick_tile_h(H, W, tile_h_target)
    n_h = pl.cdiv(H, t_h)
    h_pad = n_h * t_h
    Hp, Wp = h_pad + 2 * PAD, W + 2 * PAD

    # Single wrapper pass: spatial zero-pad (incl. cdiv row padding) + bf16 cast.
    x_pad = jnp.pad(
        x_nchw, ((0, 0), (0, 0), (PAD, PAD + (h_pad - H)), (PAD, PAD))
    ).astype(jnp.bfloat16)
    # (Cout, Cin, kh, kw) -> (Cout, kh, kw, Cin) -> (Cout, 49*Cin): matches the kernel's
    # (kh-major, kw, ci) fold order.
    w_r = jnp.transpose(weight_oihw, (0, 2, 3, 1)).reshape(
        Cout, K * K * Cin).astype(jnp.bfloat16)

    out_flat = pl.pallas_call(
        _conv7_lrelu_kernel,
        out_shape=jax.ShapeDtypeStruct((B, Cout, h_pad * W), out_dtype),
        grid_spec=pltpu.PrefetchScalarGridSpec(
            num_scalar_prefetch=0,
            grid=(B, n_h),
            in_specs=[
                # Full padded slab per batch; constant over the row-tile axis -> resident.
                pl.BlockSpec((1, Cin, Hp, Wp), lambda b, i: (b, 0, 0, 0)),
                pl.BlockSpec((Cout, K * K * Cin), lambda b, i: (0, 0)),
            ],
            # Lane-dense output block: last dim is tH*W (full H*W, or a multiple of 128).
            out_specs=pl.BlockSpec((1, Cout, t_h * W), lambda b, i: (b, 0, i)),
        ),
        compiler_params=pltpu.CompilerParams(
            dimension_semantics=("parallel", "parallel"),
            vmem_limit_bytes=_vmem_limit_bytes(),
        ),
    )(x_pad, w_r)

    out = out_flat.reshape(B, Cout, h_pad, W)   # contiguous split -> free reshape
    if h_pad != H:
        out = out[:, :, :H, :]
    return out


def _reference_forward(x_nchw, weight_oihw):
    """Pure-JAX reference (f32 conv + LeakyReLU) for correctness checking."""
    y = jax.lax.conv_general_dilated(
        x_nchw.astype(jnp.float32),
        weight_oihw.astype(jnp.float32),
        window_strides=(1, 1),
        padding=((PAD, PAD), (PAD, PAD)),
        dimension_numbers=("NCHW", "OIHW", "NCHW"),
        precision=jax.lax.Precision.HIGHEST,
    )
    return jnp.where(y >= 0, y, NEG_SLOPE * y)


if __name__ == "__main__":
    key = jax.random.PRNGKey(0)
    kx, kw_key = jax.random.split(key)

    B, CH_IN, CH_OUT, H, W = 2, 4, 8, 16, 16

    x = jax.random.normal(kx, (B, CH_IN, H, W), dtype=jnp.float32)
    fan_in = CH_IN * K * K
    bound = 1.0 / (fan_in ** 0.5)
    weight = jax.random.uniform(
        kw_key, (CH_OUT, CH_IN, K, K), minval=-bound, maxval=bound, dtype=jnp.float32
    )

    # Kernel uses bf16 operands + f32 accumulation: tight check vs. a reference with the
    # same operand quantization, loose check vs. the full-f32 module semantics.
    xq = x.astype(jnp.bfloat16).astype(jnp.float32)
    wq = weight.astype(jnp.bfloat16).astype(jnp.float32)
    ref_q = _reference_forward(xq, wq)
    ref = _reference_forward(x, weight)

    # 1) Default config: single row tile per batch (tH = H).
    fwd = jax.jit(conv7_block_1_forward)
    out = jax.block_until_ready(fwd(x, weight))
    assert out.shape == (B, CH_OUT, H, W), out.shape
    assert jnp.allclose(out, ref_q, atol=2e-3, rtol=2e-3), "mismatch vs bf16-quantized reference"
    assert jnp.allclose(out, ref, atol=5e-2, rtol=5e-2), "mismatch vs f32 reference"

    # 2) Multi-row-tile config: exercises the dynamic halo window and tiled lane-dense output.
    fwd_tiled = jax.jit(lambda a, b: conv7_block_1_forward(a, b, tile_h_target=8))
    out_t = jax.block_until_ready(fwd_tiled(x, weight))
    assert out_t.shape == (B, CH_OUT, H, W), out_t.shape
    assert jnp.allclose(out_t, ref_q, atol=2e-3, rtol=2e-3), "tiled path mismatch"

    print("KERNEL_OK")
</pallas_src>

<mosaic_0001>
module attributes {stable_mosaic.version = 11 : i64} {
  func.func @_conv7_lrelu_kernel(%arg0: i32, %arg1: i32, %arg2: memref<1x4x22x22xbf16, #tpu.memory_space<vmem>>, %arg3: memref<8x196xbf16, #tpu.memory_space<vmem>>, %arg4: memref<1x8x256xf32, #tpu.memory_space<vmem>>) attributes {dimension_semantics = [#tpu.dimension_semantics<parallel>, #tpu.dimension_semantics<parallel>], iteration_bounds = array<i64: 2, 1>, scalar_prefetch = 0 : i64, scratch_operands = 0 : i64, tpu.core_type = #tpu.core_type<tc>, window_params = [{transform_indices = @transform_0, window_bounds = array<i64: 1, 4, 22, 22>}, {pipeline_mode = #tpu.pipeline_mode<synchronous>, transform_indices = @transform_1, window_bounds = array<i64: 8, 196>}, {transform_indices = @transform_2, window_bounds = array<i64: 1, 8, 256>}]} {
    %c0 = arith.constant 0 : index
    %c0_0 = arith.constant 0 : index
    %c0_1 = arith.constant 0 : index
    %c0_2 = arith.constant 0 : index
    %0 = vector.load %arg2[%c0, %c0_0, %c0_1, %c0_2] : memref<1x4x22x22xbf16, #tpu.memory_space<vmem>>, vector<1x4x22x22xbf16>
    %1 = vector.shape_cast %0 : vector<1x4x22x22xbf16> to vector<4x22x22xbf16>
    %2 = vector.extract_strided_slice %1 {offsets = [0, 0, 0], sizes = [4, 22, 16], strides = [1, 1, 1]} : vector<4x22x22xbf16> to vector<4x22x16xbf16>
    %3 = vector.extract_strided_slice %1 {offsets = [0, 0, 1], sizes = [4, 22, 16], strides = [1, 1, 1]} : vector<4x22x22xbf16> to vector<4x22x16xbf16>
    %4 = vector.extract_strided_slice %1 {offsets = [0, 0, 2], sizes = [4, 22, 16], strides = [1, 1, 1]} : vector<4x22x22xbf16> to vector<4x22x16xbf16>
    %5 = vector.extract_strided_slice %1 {offsets = [0, 0, 3], sizes = [4, 22, 16], strides = [1, 1, 1]} : vector<4x22x22xbf16> to vector<4x22x16xbf16>
    %6 = vector.extract_strided_slice %1 {offsets = [0, 0, 4], sizes = [4, 22, 16], strides = [1, 1, 1]} : vector<4x22x22xbf16> to vector<4x22x16xbf16>
    %7 = vector.extract_strided_slice %1 {offsets = [0, 0, 5], sizes = [4, 22, 16], strides = [1, 1, 1]} : vector<4x22x22xbf16> to vector<4x22x16xbf16>
    %8 = vector.extract_strided_slice %1 {offsets = [0, 0, 6], sizes = [4, 22, 16], strides = [1, 1, 1]} : vector<4x22x22xbf16> to vector<4x22x16xbf16>
    %9 = tpu.concatenate %2, %3, %4, %5, %6, %7, %8 in 0 : vector<4x22x16xbf16>, vector<4x22x16xbf16>, vector<4x22x16xbf16>, vector<4x22x16xbf16>, vector<4x22x16xbf16>, vector<4x22x16xbf16>, vector<4x22x16xbf16> -> vector<28x22x16xbf16>
    %10 = vector.extract_strided_slice %9 {offsets = [0, 0, 0], sizes = [28, 16, 16], strides = [1, 1, 1]} : vector<28x22x16xbf16> to vector<28x16x16xbf16>
    %11 = vector.extract_strided_slice %9 {offsets = [0, 1, 0], sizes = [28, 16, 16], strides = [1, 1, 1]} : vector<28x22x16xbf16> to vector<28x16x16xbf16>
    %12 = vector.extract_strided_slice %9 {offsets = [0, 2, 0], sizes = [28, 16, 16], strides = [1, 1, 1]} : vector<28x22x16xbf16> to vector<28x16x16xbf16>
    %13 = vector.extract_strided_slice %9 {offsets = [0, 3, 0], sizes = [28, 16, 16], strides = [1, 1, 1]} : vector<28x22x16xbf16> to vector<28x16x16xbf16>
    %14 = vector.extract_strided_slice %9 {offsets = [0, 4, 0], sizes = [28, 16, 16], strides = [1, 1, 1]} : vector<28x22x16xbf16> to vector<28x16x16xbf16>
    %15 = vector.extract_strided_slice %9 {offsets = [0, 5, 0], sizes = [28, 16, 16], strides = [1, 1, 1]} : vector<28x22x16xbf16> to vector<28x16x16xbf16>
    %16 = vector.extract_strided_slice %9 {offsets = [0, 6, 0], sizes = [28, 16, 16], strides = [1, 1, 1]} : vector<28x22x16xbf16> to vector<28x16x16xbf16>
    %17 = tpu.concatenate %10, %11, %12, %13, %14, %15, %16 in 0 : vector<28x16x16xbf16>, vector<28x16x16xbf16>, vector<28x16x16xbf16>, vector<28x16x16xbf16>, vector<28x16x16xbf16>, vector<28x16x16xbf16>, vector<28x16x16xbf16> -> vector<196x16x16xbf16>
    %18 = vector.extract_strided_slice %17 {offsets = [0, 0, 0], sizes = [196, 1, 16], strides = [1, 1, 1]} : vector<196x16x16xbf16> to vector<196x1x16xbf16>
    %19 = vector.shape_cast %18 : vector<196x1x16xbf16> to vector<196x16xbf16>
    %20 = vector.extract_strided_slice %17 {offsets = [0, 1, 0], sizes = [196, 1, 16], strides = [1, 1, 1]} : vector<196x16x16xbf16> to vector<196x1x16xbf16>
    %21 = vector.shape_cast %20 : vector<196x1x16xbf16> to vector<196x16xbf16>
    %22 = vector.extract_strided_slice %17 {offsets = [0, 2, 0], sizes = [196, 1, 16], strides = [1, 1, 1]} : vector<196x16x16xbf16> to vector<196x1x16xbf16>
    %23 = vector.shape_cast %22 : vector<196x1x16xbf16> to vector<196x16xbf16>
    %24 = vector.extract_strided_slice %17 {offsets = [0, 3, 0], sizes = [196, 1, 16], strides = [1, 1, 1]} : vector<196x16x16xbf16> to vector<196x1x16xbf16>
    %25 = vector.shape_cast %24 : vector<196x1x16xbf16> to vector<196x16xbf16>
    %26 = vector.extract_strided_slice %17 {offsets = [0, 4, 0], sizes = [196, 1, 16], strides = [1, 1, 1]} : vector<196x16x16xbf16> to vector<196x1x16xbf16>
    %27 = vector.shape_cast %26 : vector<196x1x16xbf16> to vector<196x16xbf16>
    %28 = vector.extract_strided_slice %17 {offsets = [0, 5, 0], sizes = [196, 1, 16], strides = [1, 1, 1]} : vector<196x16x16xbf16> to vector<196x1x16xbf16>
    %29 = vector.shape_cast %28 : vector<196x1x16xbf16> to vector<196x16xbf16>
    %30 = vector.extract_strided_slice %17 {offsets = [0, 6, 0], sizes = [196, 1, 16], strides = [1, 1, 1]} : vector<196x16x16xbf16> to vector<196x1x16xbf16>
    %31 = vector.shape_cast %30 : vector<196x1x16xbf16> to vector<196x16xbf16>
    %32 = vector.extract_strided_slice %17 {offsets = [0, 7, 0], sizes = [196, 1, 16], strides = [1, 1, 1]} : vector<196x16x16xbf16> to vector<196x1x16xbf16>
    %33 = vector.shape_cast %32 : vector<196x1x16xbf16> to vector<196x16xbf16>
    %34 = vector.extract_strided_slice %17 {offsets = [0, 8, 0], sizes = [196, 1, 16], strides = [1, 1, 1]} : vector<196x16x16xbf16> to vector<196x1x16xbf16>
    %35 = vector.shape_cast %34 : vector<196x1x16xbf16> to vector<196x16xbf16>
    %36 = vector.extract_strided_slice %17 {offsets = [0, 9, 0], sizes = [196, 1, 16], strides = [1, 1, 1]} : vector<196x16x16xbf16> to vector<196x1x16xbf16>
    %37 = vector.shape_cast %36 : vector<196x1x16xbf16> to vector<196x16xbf16>
    %38 = vector.extract_strided_slice %17 {offsets = [0, 10, 0], sizes = [196, 1, 16], strides = [1, 1, 1]} : vector<196x16x16xbf16> to vector<196x1x16xbf16>
    %39 = vector.shape_cast %38 : vector<196x1x16xbf16> to vector<196x16xbf16>
    %40 = vector.extract_strided_slice %17 {offsets = [0, 11, 0], sizes = [196, 1, 16], strides = [1, 1, 1]} : vector<196x16x16xbf16> to vector<196x1x16xbf16>
    %41 = vector.shape_cast %40 : vector<196x1x16xbf16> to vector<196x16xbf16>
    %42 = vector.extract_strided_slice %17 {offsets = [0, 12, 0], sizes = [196, 1, 16], strides = [1, 1, 1]} : vector<196x16x16xbf16> to vector<196x1x16xbf16>
    %43 = vector.shape_cast %42 : vector<196x1x16xbf16> to vector<196x16xbf16>
    %44 = vector.extract_strided_slice %17 {offsets = [0, 13, 0], sizes = [196, 1, 16], strides = [1, 1, 1]} : vector<196x16x16xbf16> to vector<196x1x16xbf16>
    %45 = vector.shape_cast %44 : vector<196x1x16xbf16> to vector<196x16xbf16>
    %46 = vector.extract_strided_slice %17 {offsets = [0, 14, 0], sizes = [196, 1, 16], strides = [1, 1, 1]} : vector<196x16x16xbf16> to vector<196x1x16xbf16>
    %47 = vector.shape_cast %46 : vector<196x1x16xbf16> to vector<196x16xbf16>
    %48 = vector.extract_strided_slice %17 {offsets = [0, 15, 0], sizes = [196, 1, 16], strides = [1, 1, 1]} : vector<196x16x16xbf16> to vector<196x1x16xbf16>
    %49 = vector.shape_cast %48 : vector<196x1x16xbf16> to vector<196x16xbf16>
    %50 = tpu.concatenate %19, %21, %23, %25, %27, %29, %31, %33, %35, %37, %39, %41, %43, %45, %47, %49 in 1 : vector<196x16xbf16>, vector<196x16xbf16>, vector<196x16xbf16>, vector<196x16xbf16>, vector<196x16xbf16>, vector<196x16xbf16>, vector<196x16xbf16>, vector<196x16xbf16>, vector<196x16xbf16>, vector<196x16xbf16>, vector<196x16xbf16>, vector<196x16xbf16>, vector<196x16xbf16>, vector<196x16xbf16>, vector<196x16xbf16>, vector<196x16xbf16> -> vector<196x256xbf16>
    %c0_3 = arith.constant 0 : index
    %c0_4 = arith.constant 0 : index
    %51 = vector.load %arg3[%c0_3, %c0_4] : memref<8x196xbf16, #tpu.memory_space<vmem>>, vector<8x196xbf16>
    %cst = arith.constant dense<0.000000e+00> : vector<8x256xf32>
    %52 = tpu.matmul %51, %50, %cst {dimension_numbers = #tpu.dot_dimension_numbers<[1], [0], [0], [1], [0, 0, 1, 1], [], []>} : vector<8x196xbf16>, vector<196x256xbf16>, vector<8x256xf32> -> vector<8x256xf32>
    %cst_5 = arith.constant 0.000000e+00 : f32
    %53 = vector.broadcast %cst_5 : f32 to vector<8x256xf32>
    %54 = arith.cmpf oge, %52, %53 : vector<8x256xf32>
    %cst_6 = arith.constant 1.000000e-01 : f32
    %55 = vector.broadcast %cst_6 : f32 to vector<8x256xf32>
    %56 = arith.mulf %55, %52 : vector<8x256xf32>
    %57 = arith.select %54, %52, %56 : vector<8x256xi1>, vector<8x256xf32>
    %c0_7 = arith.constant 0 : index
    %c0_8 = arith.constant 0 : index
    %c0_9 = arith.constant 0 : index
    %58 = vector.load %arg4[%c0_7, %c0_8, %c0_9] : memref<1x8x256xf32, #tpu.memory_space<vmem>>, vector<1x8x256xf32>
    %59 = vector.shape_cast %58 : vector<1x8x256xf32> to vector<8x256xf32>
    %60 = vector.shape_cast %57 : vector<8x256xf32> to vector<1x8x256xf32>
    tpu.vector_store %arg4[%c0_7, %c0_8, %c0_9], %60 {strides = array<i32>} : memref<1x8x256xf32, #tpu.memory_space<vmem>>, vector<1x8x256xf32>,
    return
  }
  func.func @transform_0(%arg0: i32, %arg1: i32) -> (i32, i32, i32, i32) {
    %c0_i32 = arith.constant 0 : i32
    %c0_i32_0 = arith.constant 0 : i32
    %c0_i32_1 = arith.constant 0 : i32
    %c0_i32_2 = arith.constant 0 : i32
    return %arg0, %c0_i32, %c0_i32_0, %c0_i32_1 : i32, i32, i32, i32
  }
  func.func @transform_1(%arg0: i32, %arg1: i32) -> (i32, i32) {
    %c0_i32 = arith.constant 0 : i32
    %c0_i32_0 = arith.constant 0 : i32
    %c0_i32_1 = arith.constant 0 : i32
    return %c0_i32, %c0_i32_0 : i32, i32
  }
  func.func @transform_2(%arg0: i32, %arg1: i32) -> (i32, i32, i32) {
    %c0_i32 = arith.constant 0 : i32
    %c0_i32_0 = arith.constant 0 : i32
    return %arg0, %c0_i32, %arg1 : i32, i32, i32
  }
}

</mosaic_0001>

<llo_original>
// kernel: conv7_block_1_forward.1
$region0: #{conv7_block_1_forward.1}
  #allocation0 [shape = 'u32[]', space=smem, size = 0x4, offset = 0x4, fixed_abs, tag = 'smem constant byte address 0x4 - core index']
  #allocation1 [shape = 'u32[144,128]{1,0:T(1,128)}', space=vmem, size = 0x12000, scoped, tag = 'internal scratch']
  %s0 = inlined_call_operand.vmem [shape: bf16[2,4,22,22], index: 0, kind: input, shape index: {}]
  %s1 = inlined_call_operand.vmem [shape: bf16[8,196], index: 1, kind: input, shape index: {}]
  %s2 = inlined_call_operand.vmem [shape: f32[2,8,256], index: 2, kind: output, shape index: {}]
  %s3 = sld [smem:[#allocation0]]
  $region41: #{conv7_block_1_forward.1} parent=0
    _
  %s5 = ssub.s32 1, %s3
  %s6 = scalar_select 0, %s5, %s3
  loop: start=0, step=1, limit=4
  $region2: #{conv7_block_1_forward.1} parent=0 // loop_pre_header
    _
  $region3: #{conv7_block_1_forward.1} parent=0 // loop_header
    %s8 = sphi 0, %s12
    %p9 = scmp.ge.s32.totalorder %s8, 4
    %s15 = sphi 0, %s27
    %s16 = sphi 0, %s23
    %s17 = sphi 0, %s15
    %s18 = sphi 0, %s16
    %s19 = sphi 0, %s17
    %s20 = sphi 0, %s18
    %s30 = sphi 0, %s32
    %s33 = sphi 0, %s30
    %s34 = sphi 0, %s33
    %s50 = sphi 0, %s34
    %s54 = sphi 0, %s54
    %s56 = sphi 0, %s54
    %s57 = sphi 0, %s56
    %s71 = sphi 0, %s57
    %s79 = sphi 0, %s81
    %s82 = sphi 0, %s79
    %s83 = sphi 0, %s82
    %s99 = sphi 0, %s83
  $region4: #{conv7_block_1_forward.1} parent=0 // loop_header_branch
    %11 = sbr.rel (%p9) target = $region8
  $region5: #{conv7_block_1_forward.1} parent=0 // loop_body
    %s13 = ssub.s32 %s8, 1
    %s14 = ssub.s32 %s8, 2
    %s21 = sadd.s32 1, %s16
    %p22 = scmp.ge.s32.totalorder %s21, 1
    %s23 = scalar_select %p22, 0, %s21
    %s24 = sadd.s32 1, %s15
    %s25 = scalar_select %p22, %s24, %s15
    %p26 = scmp.ge.s32.totalorder %s25, 2
    %s27 = scalar_select %p26, 0, %s25
    %s28 = ssub.s32 %s15, %s27
    %p29 = scmp.eq.s32.totalorder %s28, 0
    %s31 = sadd.s32 %s30, 1
    %s32 = scalar_select %p29, %s30, %s31
    %p35 = pneg %p29
    %p36 = scmp.eq.s32.totalorder %s8, 1
    %p37 = por %p35, %p36
    %p38 = scmp.ne.s32.totalorder %s30, %s33
    %p39 = scmp.eq.s32.totalorder %s8, 0
    %p40 = por %p38, %p39
    %p41 = scmp.ne.s32.totalorder %s30, %s33
    %p42 = scmp.eq.s32.totalorder %s13, 1
    %p43 = por %p41, %p42
    %p44 = scmp.ne.s32.totalorder %s33, %s34
    %p45 = scmp.eq.s32.totalorder %s13, 0
    %p46 = por %p44, %p45
    %p47 = scmp.ne.s32.totalorder %s33, %s34
    %p48 = scmp.eq.s32.totalorder %s14, 1
    %p49 = por %p47, %p48
    %p51 = scmp.ne.s32.totalorder %s34, %s50
    %p52 = scmp.eq.s32.totalorder %s14, 0
    %p53 = por %p51, %p52
    %s55 = sadd.s32 %s54, 1
    %p58 = scmp.eq.s32.totalorder %s8, 1
    %p59 = scmp.ne.s32.totalorder %s54, %s56
    %p60 = scmp.eq.s32.totalorder %s8, 0
    %p61 = por %p59, %p60
    %p62 = scmp.ne.s32.totalorder %s54, %s56
    %p63 = scmp.eq.s32.totalorder %s13, 1
    %p64 = por %p62, %p63
    %p65 = scmp.ne.s32.totalorder %s56, %s57
    %p66 = scmp.eq.s32.totalorder %s13, 0
    %p67 = por %p65, %p66
    %p68 = scmp.ne.s32.totalorder %s56, %s57
    %p69 = scmp.eq.s32.totalorder %s14, 1
    %p70 = por %p68, %p69
    %p72 = scmp.ne.s32.totalorder %s57, %s71
    %p73 = scmp.eq.s32.totalorder %s14, 0
    %p74 = por %p72, %p73
    %s75 = ssub.s32 %s15, %s27
    %s76 = ssub.s32 %s16, %s23
    %s77 = sor.u32 %s75, %s76
    %p78 = scmp.eq.s32.totalorder %s77, 0
    %s80 = sadd.s32 %s79, 1
    %s81 = scalar_select %p78, %s79, %s80
    %p84 = pneg %p78
    %p85 = scmp.eq.s32.totalorder %s8, 1
    %p86 = por %p84, %p85
    %p87 = scmp.ne.s32.totalorder %s79, %s82
    %p88 = scmp.eq.s32.totalorder %s8, 0
    %p89 = por %p87, %p88
    %p90 = scmp.ne.s32.totalorder %s79, %s82
    %p91 = scmp.eq.s32.totalorder %s13, 1
    %p92 = por %p90, %p91
    %p93 = scmp.ne.s32.totalorder %s82, %s83
    %p94 = scmp.eq.s32.totalorder %s13, 0
    %p95 = por %p93, %p94
    %p96 = scmp.ne.s32.totalorder %s82, %s83
    %p97 = scmp.eq.s32.totalorder %s14, 1
    %p98 = por %p96, %p97
    %p100 = scmp.ne.s32.totalorder %s83, %s99
    %p101 = scmp.eq.s32.totalorder %s14, 0
    %p102 = por %p100, %p101
    %p103 = scmp.le.s32.totalorder 1, %s8
    %p104 = scmp.lt.s32.totalorder %s8, 3
    %p105 = pnand %p103, %p104
    %p106 = pneg %p105
    // Predicated region
    $region9: #{conv7_block_1_forward.1} parent=5 // pred_check
      _
    $region10: #{conv7_block_1_forward.1} parent=5 // pred_check_branch
      %108 = sbr.rel (%p105) target = $region12
    $region11: #{conv7_block_1_forward.1} parent=5 // pred_region
      %s109 = ssub.s32 %s8, 1
      // Predicated region
      $region13: #{conv7_block_1_forward.1} parent=11 // pred_check
        %p110 = pneg %p67
      $region14: #{conv7_block_1_forward.1} parent=11 // pred_check_branch
        %112 = sbr.rel (%p110) target = $region16
      $region15: #{conv7_block_1_forward.1} parent=11 // pred_region
        _
      $region16: #{conv7_block_1_forward.1} parent=11 // pred_fallthru
        _
    $region12: #{conv7_block_1_forward.1} parent=5 // pred_fallthru
      _
    %p113 = scmp.lt.s32.totalorder %s8, 2
    // Predicated region
    $region17: #{conv7_block_1_forward.1} parent=5 // pred_check
      %p114 = pneg %p113
    $region18: #{conv7_block_1_forward.1} parent=5 // pred_check_branch
      %116 = sbr.rel (%p114) target = $region20
    $region19: #{conv7_block_1_forward.1} parent=5 // pred_region
      // Predicated region
      $region21: #{conv7_block_1_forward.1} parent=19 // pred_check
        %p117 = pneg %p40
      $region22: #{conv7_block_1_forward.1} parent=19 // pred_check_branch
        %119 = sbr.rel (%p117) target = $region24
      $region23: #{conv7_block_1_forward.1} parent=19 // pred_region
        %p120 = scmp.lt.s32.totalorder %s15, 1
        %s121 = scalar_select %p120, %s15, 1
        %s122 = smul.addr %s121, 12
        %s123 = smul.addr %s122, 4
        %s124 = scalar_lea.vmem %s0, %s123
      $region24: #{conv7_block_1_forward.1} parent=19 // pred_fallthru
        _
    $region20: #{conv7_block_1_forward.1} parent=5 // pred_fallthru
      _
    %p125 = scmp.le.s32.totalorder 1, %s8
    %p126 = scmp.lt.s32.totalorder %s8, 3
    %p127 = pnand %p125, %p126
    %p128 = pneg %p127
    // Predicated region
    $region25: #{conv7_block_1_forward.1} parent=5 // pred_check
      _
    $region26: #{conv7_block_1_forward.1} parent=5 // pred_check_branch
      %130 = sbr.rel (%p127) target = $region28
    $region27: #{conv7_block_1_forward.1} parent=5 // pred_region
      %s131 = ssub.s32 %s8, 1
      %p132 = scmp.lt.s32.totalorder %s17, 1
      %s133 = scalar_select %p132, %s17, 1
      %s134 = smul.addr %s133, 12
      %s135 = smul.addr %s134, 4
      %s136 = scalar_lea.vmem %s0, %s135
      %p137 = pneg %p46
      %p138 = pneg %p43
      %p139 = pneg %p67
      %p140 = pneg %p64
      %p141 = pneg %p95
      %p142 = pneg %p92
      %s143 = smul.u32 2, %s18
      %p144 = scmp.lt.s32.totalorder %s17, 1
      %s145 = scalar_select %p144, %s17, 1
      %p146 = scmp.lt.s32.totalorder %s143, 1
      %s147 = scalar_select %p146, %s143, 1
      %s148 = smul.addr %s145, 2
      %s149 = sadd.s32 %s147, %s148
      %s150 = smul.addr %s149, 8
      %s151 = scalar_lea.vmem %s2, %s150
      %p152 = scmp.lt.s32.totalorder %s17, 1
      %s153 = scalar_select %p152, %s17, 1
      %s154 = smul.addr %s153, 12
      %s155 = smul.addr %s154, 4
      %s156 = scalar_lea.vmem %s0, %s155
      %s157 = smul.u32 2, %s18
      %p158 = scmp.lt.s32.totalorder %s17, 1
      %s159 = scalar_select %p158, %s17, 1
      %p160 = scmp.lt.s32.totalorder %s157, 1
      %s161 = scalar_select %p160, %s157, 1
      %s162 = smul.addr %s159, 2
      %s163 = sadd.s32 %s161, %s162
      %s164 = smul.addr %s163, 8
      %s165 = scalar_lea.vmem %s2, %s164
      %s166 = smul.u32 2, %s18
      %v168 = vld [vmem:[%s156] sm:$0xf]
      %v169 = vld [vmem:[%s156 + $0x4] sm:$0xf]
      %v170 = vld [vmem:[%s156 + $0x8] sm:$0x7]
      %v171 = vld [vmem:[%s156 + $0xc] sm:$0xf]
      %v172 = vld [vmem:[%s156 + $0x10] sm:$0xf]
      %v173 = vld [vmem:[%s156 + $0x14] sm:$0x7]
      %v174 = vld [vmem:[%s156 + $0x18] sm:$0xf]
      %v175 = vld [vmem:[%s156 + $0x1c] sm:$0xf]
      %v176 = vld [vmem:[%s156 + $0x20] sm:$0x7]
      %v177 = vld [vmem:[%s156 + $0x24] sm:$0xf]
      %v178 = vld [vmem:[%s156 + $0x28] sm:$0xf]
      %v179 = vld [vmem:[%s156 + $0x2c] sm:$0x7]
      %192 = vrot.lane.b32.xlu0 %v168, 127
      %v193 = vpop.permute.xlu0 %192
      %194 = vrot.lane.b32.xlu0 %v169, 127
      %v195 = vpop.permute.xlu0 %194
      %196 = vrot.lane.b32.xlu0 %v170, 127
      %v197 = vpop.permute.xlu0 %196
      %198 = vrot.lane.b32.xlu0 %v171, 127
      %v199 = vpop.permute.xlu0 %198
      %200 = vrot.lane.b32.xlu0 %v172, 127
      %v201 = vpop.permute.xlu0 %200
      %202 = vrot.lane.b32.xlu0 %v173, 127
      %v203 = vpop.permute.xlu0 %202
      %204 = vrot.lane.b32.xlu0 %v174, 127
      %v205 = vpop.permute.xlu0 %204
      %206 = vrot.lane.b32.xlu0 %v175, 127
      %v207 = vpop.permute.xlu0 %206
      %208 = vrot.lane.b32.xlu0 %v176, 127
      %v209 = vpop.permute.xlu0 %208
      %210 = vrot.lane.b32.xlu0 %v177, 127
      %v211 = vpop.permute.xlu0 %210
      %212 = vrot.lane.b32.xlu0 %v178, 127
      %v213 = vpop.permute.xlu0 %212
      %214 = vrot.lane.b32.xlu0 %v179, 127
      %v215 = vpop.permute.xlu0 %214
      %216 = vrot.lane.b32.xlu0 %v168, 126
      %v217 = vpop.permute.xlu0 %216
      %218 = vrot.lane.b32.xlu0 %v169, 126
      %v219 = vpop.permute.xlu0 %218
      %220 = vrot.lane.b32.xlu0 %v170, 126
      %v221 = vpop.permute.xlu0 %220
      %222 = vrot.lane.b32.xlu0 %v171, 126
      %v223 = vpop.permute.xlu0 %222
      %224 = vrot.lane.b32.xlu0 %v172, 126
      %v225 = vpop.permute.xlu0 %224
      %226 = vrot.lane.b32.xlu0 %v173, 126
      %v227 = vpop.permute.xlu0 %226
      %228 = vrot.lane.b32.xlu0 %v174, 126
      %v229 = vpop.permute.xlu0 %228
      %230 = vrot.lane.b32.xlu0 %v175, 126
      %v231 = vpop.permute.xlu0 %230
      %232 = vrot.lane.b32.xlu0 %v176, 126
      %v233 = vpop.permute.xlu0 %232
      %234 = vrot.lane.b32.xlu0 %v177, 126
      %v235 = vpop.permute.xlu0 %234
      %236 = vrot.lane.b32.xlu0 %v178, 126
      %v237 = vpop.permute.xlu0 %236
      %238 = vrot.lane.b32.xlu0 %v179, 126
      %v239 = vpop.permute.xlu0 %238
      %240 = vrot.lane.b32.xlu0 %v168, 125
      %v241 = vpop.permute.xlu0 %240
      %242 = vrot.lane.b32.xlu0 %v169, 125
      %v243 = vpop.permute.xlu0 %242
      %244 = vrot.lane.b32.xlu0 %v170, 125
      %v245 = vpop.permute.xlu0 %244
      %246 = vrot.lane.b32.xlu0 %v171, 125
      %v247 = vpop.permute.xlu0 %246
      %248 = vrot.lane.b32.xlu0 %v172, 125
      %v249 = vpop.permute.xlu0 %248
      %250 = vrot.lane.b32.xlu0 %v173, 125
      %v251 = vpop.permute.xlu0 %250
      %252 = vrot.lane.b32.xlu0 %v174, 125
      %v253 = vpop.permute.xlu0 %252
      %254 = vrot.lane.b32.xlu0 %v175, 125
      %v255 = vpop.permute.xlu0 %254
      %256 = vrot.lane.b32.xlu0 %v176, 125
      %v257 = vpop.permute.xlu0 %256
      %258 = vrot.lane.b32.xlu0 %v177, 125
      %v259 = vpop.permute.xlu0 %258
      %260 = vrot.lane.b32.xlu0 %v178, 125
      %v261 = vpop.permute.xlu0 %260
      %262 = vrot.lane.b32.xlu0 %v179, 125
      %v263 = vpop.permute.xlu0 %262
      %264 = vrot.lane.b32.xlu0 %v168, 124
      %v265 = vpop.permute.xlu0 %264
      %266 = vrot.lane.b32.xlu0 %v169, 124
      %v267 = vpop.permute.xlu0 %266
      %268 = vrot.lane.b32.xlu0 %v170, 124
      %v269 = vpop.permute.xlu0 %268
      %270 = vrot.lane.b32.xlu0 %v171, 124
      %v271 = vpop.permute.xlu0 %270
      %272 = vrot.lane.b32.xlu0 %v172, 124
      %v273 = vpop.permute.xlu0 %272
      %274 = vrot.lane.b32.xlu0 %v173, 124
      %v275 = vpop.permute.xlu0 %274
      %276 = vrot.lane.b32.xlu0 %v174, 124
      %v277 = vpop.permute.xlu0 %276
      %278 = vrot.lane.b32.xlu0 %v175, 124
      %v279 = vpop.permute.xlu0 %278
      %280 = vrot.lane.b32.xlu0 %v176, 124
      %v281 = vpop.permute.xlu0 %280
      %282 = vrot.lane.b32.xlu0 %v177, 124
      %v283 = vpop.permute.xlu0 %282
      %284 = vrot.lane.b32.xlu0 %v178, 124
      %v285 = vpop.permute.xlu0 %284
      %286 = vrot.lane.b32.xlu0 %v179, 124
      %v287 = vpop.permute.xlu0 %286
      %288 = vrot.lane.b32.xlu0 %v168, 123
      %v289 = vpop.permute.xlu0 %288
      %290 = vrot.lane.b32.xlu0 %v169, 123
      %v291 = vpop.permute.xlu0 %290
      %292 = vrot.lane.b32.xlu0 %v170, 123
      %v293 = vpop.permute.xlu0 %292
      %294 = vrot.lane.b32.xlu0 %v171, 123
      %v295 = vpop.permute.xlu0 %294
      %296 = vrot.lane.b32.xlu0 %v172, 123
      %v297 = vpop.permute.xlu0 %296
      %298 = vrot.lane.b32.xlu0 %v173, 123
      %v299 = vpop.permute.xlu0 %298
      %300 = vrot.lane.b32.xlu0 %v174, 123
      %v301 = vpop.permute.xlu0 %300
      %302 = vrot.lane.b32.xlu0 %v175, 123
      %v303 = vpop.permute.xlu0 %302
      %304 = vrot.lane.b32.xlu0 %v176, 123
      %v305 = vpop.permute.xlu0 %304
      %306 = vrot.lane.b32.xlu0 %v177, 123
      %v307 = vpop.permute.xlu0 %306
      %308 = vrot.lane.b32.xlu0 %v178, 123
      %v309 = vpop.permute.xlu0 %308
      %310 = vrot.lane.b32.xlu0 %v179, 123
      %v311 = vpop.permute.xlu0 %310
      %312 = vrot.lane.b32.xlu0 %v168, 122
      %v313 = vpop.permute.xlu0 %312
      %314 = vrot.lane.b32.xlu0 %v169, 122
      %v315 = vpop.permute.xlu0 %314
      %316 = vrot.lane.b32.xlu0 %v170, 122
      %v317 = vpop.permute.xlu0 %316
      %318 = vrot.lane.b32.xlu0 %v171, 122
      %v319 = vpop.permute.xlu0 %318
      %320 = vrot.lane.b32.xlu0 %v172, 122
      %v321 = vpop.permute.xlu0 %320
      %322 = vrot.lane.b32.xlu0 %v173, 122
      %v323 = vpop.permute.xlu0 %322
      %324 = vrot.lane.b32.xlu0 %v174, 122
      %v325 = vpop.permute.xlu0 %324
      %326 = vrot.lane.b32.xlu0 %v175, 122
      %v327 = vpop.permute.xlu0 %326
      %328 = vrot.lane.b32.xlu0 %v176, 122
      %v329 = vpop.permute.xlu0 %328
      %330 = vrot.lane.b32.xlu0 %v177, 122
      %v331 = vpop.permute.xlu0 %330
      %332 = vrot.lane.b32.xlu0 %v178, 122
      %v333 = vpop.permute.xlu0 %332
      %334 = vrot.lane.b32.xlu0 %v179, 122
      %v335 = vpop.permute.xlu0 %334
      %vm336 = vsmask.f32 3328
      %vm337 = vsmask.f32 7440
      %vm338 = vmor %vm336, %vm337
      %v340 = vshrl.u32 %v168, 16
      %v342 = vrot.slane %v340, 4
      %v343 = vshll.u32 %v168, 16
      %v345 = vrot.slane %v343, 5
      %v346 = vor.u32 %v342, %v345
      %v347 = vrot.slane %v346, 4
      %v349 = vshll.u32 %v169, 16
      %v351 = vrot.slane %v349, 5
      %v352 = vsel %vm338, %v347, %v351
      %v353 = vshrl.u32 %v169, 16
      %v355 = vrot.slane %v353, 4
      %v356 = vor.u32 %v355, %v351
      %v357 = vrot.slane %v356, 4
      %v359 = vshll.u32 %v170, 16
      %v361 = vrot.slane %v359, 5
      %v362 = vsel %vm338, %v357, %v361
      %v364 = vshrl.u32 %v171, 16
      %v366 = vrot.slane %v364, 4
      %v367 = vshll.u32 %v171, 16
      %v369 = vrot.slane %v367, 5
      %v370 = vor.u32 %v366, %v369
      %v371 = vrot.slane %v370, 4
      %v373 = vshll.u32 %v172, 16
      %v375 = vrot.slane %v373, 5
      %v376 = vsel %vm338, %v371, %v375
      %v377 = vshrl.u32 %v172, 16
      %v379 = vrot.slane %v377, 4
      %v380 = vor.u32 %v379, %v375
      %v381 = vrot.slane %v380, 4
      %v383 = vshll.u32 %v173, 16
      %v385 = vrot.slane %v383, 5
      %v386 = vsel %vm338, %v381, %v385
      %v388 = vshrl.u32 %v174, 16
      %v390 = vrot.slane %v388, 4
      %v391 = vshll.u32 %v174, 16
      %v393 = vrot.slane %v391, 5
      %v394 = vor.u32 %v390, %v393
      %v395 = vrot.slane %v394, 4
      %v397 = vshll.u32 %v175, 16
      %v399 = vrot.slane %v397, 5
      %v400 = vsel %vm338, %v395, %v399
      %v401 = vshrl.u32 %v175, 16
      %v403 = vrot.slane %v401, 4
      %v404 = vor.u32 %v403, %v399
      %v405 = vrot.slane %v404, 4
      %v407 = vshll.u32 %v176, 16
      %v409 = vrot.slane %v407, 5
      %v410 = vsel %vm338, %v405, %v409
      %v412 = vshrl.u32 %v177, 16
      %v414 = vrot.slane %v412, 4
      %v415 = vshll.u32 %v177, 16
      %v417 = vrot.slane %v415, 5
      %v418 = vor.u32 %v414, %v417
      %v419 = vrot.slane %v418, 4
      %v421 = vshll.u32 %v178, 16
      %v423 = vrot.slane %v421, 5
      %v424 = vsel %vm338, %v419, %v423
      %v425 = vshrl.u32 %v178, 16
      %v427 = vrot.slane %v425, 4
      %v428 = vor.u32 %v427, %v423
      %v429 = vrot.slane %v428, 4
      %v431 = vshll.u32 %v179, 16
      %v433 = vrot.slane %v431, 5
      %v434 = vsel %vm338, %v429, %v433
      %v436 = vshrl.u32 %v193, 16
      %v438 = vrot.slane %v436, 4
      %v439 = vshll.u32 %v193, 16
      %v441 = vrot.slane %v439, 5
      %v442 = vor.u32 %v438, %v441
      %v443 = vrot.slane %v442, 4
      %v445 = vshll.u32 %v195, 16
      %v447 = vrot.slane %v445, 5
      %v448 = vsel %vm338, %v443, %v447
      %v449 = vshrl.u32 %v195, 16
      %v451 = vrot.slane %v449, 4
      %v452 = vor.u32 %v451, %v447
      %v453 = vrot.slane %v452, 4
      %v455 = vshll.u32 %v197, 16
      %v457 = vrot.slane %v455, 5
      %v458 = vsel %vm338, %v453, %v457
      %v460 = vshrl.u32 %v199, 16
      %v462 = vrot.slane %v460, 4
      %v463 = vshll.u32 %v199, 16
      %v465 = vrot.slane %v463, 5
      %v466 = vor.u32 %v462, %v465
      %v467 = vrot.slane %v466, 4
      %v469 = vshll.u32 %v201, 16
      %v471 = vrot.slane %v469, 5
      %v472 = vsel %vm338, %v467, %v471
      %v473 = vshrl.u32 %v201, 16
      %v475 = vrot.slane %v473, 4
      %v476 = vor.u32 %v475, %v471
      %v477 = vrot.slane %v476, 4
      %v479 = vshll.u32 %v203, 16
      %v481 = vrot.slane %v479, 5
      %v482 = vsel %vm338, %v477, %v481
      %v484 = vshrl.u32 %v205, 16
      %v486 = vrot.slane %v484, 4
      %v487 = vshll.u32 %v205, 16
      %v489 = vrot.slane %v487, 5
      %v490 = vor.u32 %v486, %v489
      %v491 = vrot.slane %v490, 4
      %v493 = vshll.u32 %v207, 16
      %v495 = vrot.slane %v493, 5
      %v496 = vsel %vm338, %v491, %v495
      %v497 = vshrl.u32 %v207, 16
      %v499 = vrot.slane %v497, 4
      %v500 = vor.u32 %v499, %v495
      %v501 = vrot.slane %v500, 4
      %v503 = vshll.u32 %v209, 16
      %v505 = vrot.slane %v503, 5
      %v506 = vsel %vm338, %v501, %v505
      %v508 = vshrl.u32 %v211, 16
      %v510 = vrot.slane %v508, 4
      %v511 = vshll.u32 %v211, 16
      %v513 = vrot.slane %v511, 5
      %v514 = vor.u32 %v510, %v513
      %v515 = vrot.slane %v514, 4
      %v517 = vshll.u32 %v213, 16
      %v519 = vrot.slane %v517, 5
      %v520 = vsel %vm338, %v515, %v519
      %v521 = vshrl.u32 %v213, 16
      %v523 = vrot.slane %v521, 4
      %v524 = vor.u32 %v523, %v519
      %v525 = vrot.slane %v524, 4
      %v527 = vshll.u32 %v215, 16
      %v529 = vrot.slane %v527, 5
      %v530 = vsel %vm338, %v525, %v529
      %v532 = vshrl.u32 %v217, 16
      %v534 = vrot.slane %v532, 4
      %v535 = vshll.u32 %v217, 16
      %v537 = vrot.slane %v535, 5
      %v538 = vor.u32 %v534, %v537
      %v539 = vrot.slane %v538, 4
      %v541 = vshll.u32 %v219, 16
      %v543 = vrot.slane %v541, 5
      %v544 = vsel %vm338, %v539, %v543
      %v545 = vshrl.u32 %v219, 16
      %v547 = vrot.slane %v545, 4
      %v548 = vor.u32 %v547, %v543
      %v549 = vrot.slane %v548, 4
      %v551 = vshll.u32 %v221, 16
      %v553 = vrot.slane %v551, 5
      %v554 = vsel %vm338, %v549, %v553
      %v556 = vshrl.u32 %v223, 16
      %v558 = vrot.slane %v556, 4
      %v559 = vshll.u32 %v223, 16
      %v561 = vrot.slane %v559, 5
      %v562 = vor.u32 %v558, %v561
      %v563 = vrot.slane %v562, 4
      %v565 = vshll.u32 %v225, 16
      %v567 = vrot.slane %v565, 5
      %v568 = vsel %vm338, %v563, %v567
      %v569 = vshrl.u32 %v225, 16
      %v571 = vrot.slane %v569, 4
      %v572 = vor.u32 %v571, %v567
      %v573 = vrot.slane %v572, 4
      %v575 = vshll.u32 %v227, 16
      %v577 = vrot.slane %v575, 5
      %v578 = vsel %vm338, %v573, %v577
      %v580 = vshrl.u32 %v229, 16
      %v582 = vrot.slane %v580, 4
      %v583 = vshll.u32 %v229, 16
      %v585 = vrot.slane %v583, 5
      %v586 = vor.u32 %v582, %v585
      %v587 = vrot.slane %v586, 4
      %v589 = vshll.u32 %v231, 16
      %v591 = vrot.slane %v589, 5
      %v592 = vsel %vm338, %v587, %v591
      %v593 = vshrl.u32 %v231, 16
      %v595 = vrot.slane %v593, 4
      %v596 = vor.u32 %v595, %v591
      %v597 = vrot.slane %v596, 4
      %v599 = vshll.u32 %v233, 16
      %v601 = vrot.slane %v599, 5
      %v602 = vsel %vm338, %v597, %v601
      %v604 = vshrl.u32 %v235, 16
      %v606 = vrot.slane %v604, 4
      %v607 = vshll.u32 %v235, 16
      %v609 = vrot.slane %v607, 5
      %v610 = vor.u32 %v606, %v609
      %v611 = vrot.slane %v610, 4
      %v613 = vshll.u32 %v237, 16
      %v615 = vrot.slane %v613, 5
      %v616 = vsel %vm338, %v611, %v615
      %v617 = vshrl.u32 %v237, 16
      %v619 = vrot.slane %v617, 4
      %v620 = vor.u32 %v619, %v615
      %v621 = vrot.slane %v620, 4
      %v623 = vshll.u32 %v239, 16
      %v625 = vrot.slane %v623, 5
      %v626 = vsel %vm338, %v621, %v625
      %v628 = vshrl.u32 %v241, 16
      %v630 = vrot.slane %v628, 4
      %v631 = vshll.u32 %v241, 16
      %v633 = vrot.slane %v631, 5
      %v634 = vor.u32 %v630, %v633
      %v635 = vrot.slane %v634, 4
      %v637 = vshll.u32 %v243, 16
      %v639 = vrot.slane %v637, 5
      %v640 = vsel %vm338, %v635, %v639
      %v641 = vshrl.u32 %v243, 16
      %v643 = vrot.slane %v641, 4
      %v644 = vor.u32 %v643, %v639
      %v645 = vrot.slane %v644, 4
      %v647 = vshll.u32 %v245, 16
      %v649 = vrot.slane %v647, 5
      %v650 = vsel %vm338, %v645, %v649
      %v652 = vshrl.u32 %v247, 16
      %v654 = vrot.slane %v652, 4
      %v655 = vshll.u32 %v247, 16
      %v657 = vrot.slane %v655, 5
      %v658 = vor.u32 %v654, %v657
      %v659 = vrot.slane %v658, 4
      %v661 = vshll.u32 %v249, 16
      %v663 = vrot.slane %v661, 5
      %v664 = vsel %vm338, %v659, %v663
      %v665 = vshrl.u32 %v249, 16
      %v667 = vrot.slane %v665, 4
      %v668 = vor.u32 %v667, %v663
      %v669 = vrot.slane %v668, 4
      %v671 = vshll.u32 %v251, 16
      %v673 = vrot.slane %v671, 5
      %v674 = vsel %vm338, %v669, %v673
      %v676 = vshrl.u32 %v253, 16
      %v678 = vrot.slane %v676, 4
      %v679 = vshll.u32 %v253, 16
      %v681 = vrot.slane %v679, 5
      %v682 = vor.u32 %v678, %v681
      %v683 = vrot.slane %v682, 4
      %v685 = vshll.u32 %v255, 16
      %v687 = vrot.slane %v685, 5
      %v688 = vsel %vm338, %v683, %v687
      %v689 = vshrl.u32 %v255, 16
      %v691 = vrot.slane %v689, 4
      %v692 = vor.u32 %v691, %v687
      %v693 = vrot.slane %v692, 4
      %v695 = vshll.u32 %v257, 16
      %v697 = vrot.slane %v695, 5
      %v698 = vsel %vm338, %v693, %v697
      %v700 = vshrl.u32 %v259, 16
      %v702 = vrot.slane %v700, 4
      %v703 = vshll.u32 %v259, 16
      %v705 = vrot.slane %v703, 5
      %v706 = vor.u32 %v702, %v705
      %v707 = vrot.slane %v706, 4
      %v709 = vshll.u32 %v261, 16
      %v711 = vrot.slane %v709, 5
      %v712 = vsel %vm338, %v707, %v711
      %v713 = vshrl.u32 %v261, 16
      %v715 = vrot.slane %v713, 4
      %v716 = vor.u32 %v715, %v711
      %v717 = vrot.slane %v716, 4
      %v719 = vshll.u32 %v263, 16
      %v721 = vrot.slane %v719, 5
      %v722 = vsel %vm338, %v717, %v721
      %v724 = vshrl.u32 %v265, 16
      %v726 = vrot.slane %v724, 4
      %v727 = vshll.u32 %v265, 16
      %v729 = vrot.slane %v727, 5
      %v730 = vor.u32 %v726, %v729
      %v731 = vrot.slane %v730, 4
      %v733 = vshll.u32 %v267, 16
      %v735 = vrot.slane %v733, 5
      %v736 = vsel %vm338, %v731, %v735
      %v737 = vshrl.u32 %v267, 16
      %v739 = vrot.slane %v737, 4
      %v740 = vor.u32 %v739, %v735
      %v741 = vrot.slane %v740, 4
      %v743 = vshll.u32 %v269, 16
      %v745 = vrot.slane %v743, 5
      %v746 = vsel %vm338, %v741, %v745
      %v748 = vshrl.u32 %v271, 16
      %v750 = vrot.slane %v748, 4
      %v751 = vshll.u32 %v271, 16
      %v753 = vrot.slane %v751, 5
      %v754 = vor.u32 %v750, %v753
      %v755 = vrot.slane %v754, 4
      %v757 = vshll.u32 %v273, 16
      %v759 = vrot.slane %v757, 5
      %v760 = vsel %vm338, %v755, %v759
      %v761 = vshrl.u32 %v273, 16
      %v763 = vrot.slane %v761, 4
      %v764 = vor.u32 %v763, %v759
      %v765 = vrot.slane %v764, 4
      %v767 = vshll.u32 %v275, 16
      %v769 = vrot.slane %v767, 5
      %v770 = vsel %vm338, %v765, %v769
      %v772 = vshrl.u32 %v277, 16
      %v774 = vrot.slane %v772, 4
      %v775 = vshll.u32 %v277, 16
      %v777 = vrot.slane %v775, 5
      %v778 = vor.u32 %v774, %v777
      %v779 = vrot.slane %v778, 4
      %v781 = vshll.u32 %v279, 16
      %v783 = vrot.slane %v781, 5
      %v784 = vsel %vm338, %v779, %v783
      %v785 = vshrl.u32 %v279, 16
      %v787 = vrot.slane %v785, 4
      %v788 = vor.u32 %v787, %v783
      %v789 = vrot.slane %v788, 4
      %v791 = vshll.u32 %v281, 16
      %v793 = vrot.slane %v791, 5
      %v794 = vsel %vm338, %v789, %v793
      %v796 = vshrl.u32 %v283, 16
      %v798 = vrot.slane %v796, 4
      %v799 = vshll.u32 %v283, 16
      %v801 = vrot.slane %v799, 5
      %v802 = vor.u32 %v798, %v801
      %v803 = vrot.slane %v802, 4
      %v805 = vshll.u32 %v285, 16
      %v807 = vrot.slane %v805, 5
      %v808 = vsel %vm338, %v803, %v807
      %v809 = vshrl.u32 %v285, 16
      %v811 = vrot.slane %v809, 4
      %v812 = vor.u32 %v811, %v807
      %v813 = vrot.slane %v812, 4
      %v815 = vshll.u32 %v287, 16
      %v817 = vrot.slane %v815, 5
      %v818 = vsel %vm338, %v813, %v817
      %v820 = vshrl.u32 %v289, 16
      %v822 = vrot.slane %v820, 4
      %v823 = vshll.u32 %v289, 16
      %v825 = vrot.slane %v823, 5
      %v826 = vor.u32 %v822, %v825
      %v827 = vrot.slane %v826, 4
      %v829 = vshll.u32 %v291, 16
      %v831 = vrot.slane %v829, 5
      %v832 = vsel %vm338, %v827, %v831
      %v833 = vshrl.u32 %v291, 16
      %v835 = vrot.slane %v833, 4
      %v836 = vor.u32 %v835, %v831
      %v837 = vrot.slane %v836, 4
      %v839 = vshll.u32 %v293, 16
      %v841 = vrot.slane %v839, 5
      %v842 = vsel %vm338, %v837, %v841
      %v844 = vshrl.u32 %v295, 16
      %v846 = vrot.slane %v844, 4
      %v847 = vshll.u32 %v295, 16
      %v849 = vrot.slane %v847, 5
      %v850 = vor.u32 %v846, %v849
      %v851 = vrot.slane %v850, 4
      %v853 = vshll.u32 %v297, 16
      %v855 = vrot.slane %v853, 5
      %v856 = vsel %vm338, %v851, %v855
      %v857 = vshrl.u32 %v297, 16
      %v859 = vrot.slane %v857, 4
      %v860 = vor.u32 %v859, %v855
      %v861 = vrot.slane %v860, 4
      %v863 = vshll.u32 %v299, 16
      %v865 = vrot.slane %v863, 5
      %v866 = vsel %vm338, %v861, %v865
      %v868 = vshrl.u32 %v301, 16
      %v870 = vrot.slane %v868, 4
      %v871 = vshll.u32 %v301, 16
      %v873 = vrot.slane %v871, 5
      %v874 = vor.u32 %v870, %v873
      %v875 = vrot.slane %v874, 4
      %v877 = vshll.u32 %v303, 16
      %v879 = vrot.slane %v877, 5
      %v880 = vsel %vm338, %v875, %v879
      %v881 = vshrl.u32 %v303, 16
      %v883 = vrot.slane %v881, 4
      %v884 = vor.u32 %v883, %v879
      %v885 = vrot.slane %v884, 4
      %v887 = vshll.u32 %v305, 16
      %v889 = vrot.slane %v887, 5
      %v890 = vsel %vm338, %v885, %v889
      %v892 = vshrl.u32 %v307, 16
      %v894 = vrot.slane %v892, 4
      %v895 = vshll.u32 %v307, 16
      %v897 = vrot.slane %v895, 5
      %v898 = vor.u32 %v894, %v897
      %v899 = vrot.slane %v898, 4
      %v901 = vshll.u32 %v309, 16
      %v903 = vrot.slane %v901, 5
      %v904 = vsel %vm338, %v899, %v903
      %v905 = vshrl.u32 %v309, 16
      %v907 = vrot.slane %v905, 4
      %v908 = vor.u32 %v907, %v903
      %v909 = vrot.slane %v908, 4
      %v911 = vshll.u32 %v311, 16
      %v913 = vrot.slane %v911, 5
      %v914 = vsel %vm338, %v909, %v913
      %v916 = vshrl.u32 %v313, 16
      %v918 = vrot.slane %v916, 4
      %v919 = vshll.u32 %v313, 16
      %v921 = vrot.slane %v919, 5
      %v922 = vor.u32 %v918, %v921
      %v923 = vrot.slane %v922, 4
      %v925 = vshll.u32 %v315, 16
      %v927 = vrot.slane %v925, 5
      %v928 = vsel %vm338, %v923, %v927
      %v929 = vshrl.u32 %v315, 16
      %v931 = vrot.slane %v929, 4
      %v932 = vor.u32 %v931, %v927
      %v933 = vrot.slane %v932, 4
      %v935 = vshll.u32 %v317, 16
      %v937 = vrot.slane %v935, 5
      %v938 = vsel %vm338, %v933, %v937
      %v940 = vshrl.u32 %v319, 16
      %v942 = vrot.slane %v940, 4
      %v943 = vshll.u32 %v319, 16
      %v945 = vrot.slane %v943, 5
      %v946 = vor.u32 %v942, %v945
      %v947 = vrot.slane %v946, 4
      %v949 = vshll.u32 %v321, 16
      %v951 = vrot.slane %v949, 5
      %v952 = vsel %vm338, %v947, %v951
      %v953 = vshrl.u32 %v321, 16
      %v955 = vrot.slane %v953, 4
      %v956 = vor.u32 %v955, %v951
      %v957 = vrot.slane %v956, 4
      %v959 = vshll.u32 %v323, 16
      %v961 = vrot.slane %v959, 5
      %v962 = vsel %vm338, %v957, %v961
      %v964 = vshrl.u32 %v325, 16
      %v966 = vrot.slane %v964, 4
      %v967 = vshll.u32 %v325, 16
      %v969 = vrot.slane %v967, 5
      %v970 = vor.u32 %v966, %v969
      %v971 = vrot.slane %v970, 4
      %v973 = vshll.u32 %v327, 16
      %v975 = vrot.slane %v973, 5
      %v976 = vsel %vm338, %v971, %v975
      %v977 = vshrl.u32 %v327, 16
      %v979 = vrot.slane %v977, 4
      %v980 = vor.u32 %v979, %v975
      %v981 = vrot.slane %v980, 4
      %v983 = vshll.u32 %v329, 16
      %v985 = vrot.slane %v983, 5
      %v986 = vsel %vm338, %v981, %v985
      %v988 = vshrl.u32 %v331, 16
      %v990 = vrot.slane %v988, 4
      %v991 = vshll.u32 %v331, 16
      %v993 = vrot.slane %v991, 5
      %v994 = vor.u32 %v990, %v993
      %v995 = vrot.slane %v994, 4
      %v997 = vshll.u32 %v333, 16
      %v999 = vrot.slane %v997, 5
      %v1000 = vsel %vm338, %v995, %v999
      %v1001 = vshrl.u32 %v333, 16
      %v1003 = vrot.slane %v1001, 4
      %v1004 = vor.u32 %v1003, %v999
      %v1005 = vrot.slane %v1004, 4
      %v1007 = vshll.u32 %v335, 16
      %v1009 = vrot.slane %v1007, 5
      %v1010 = vsel %vm338, %v1005, %v1009
      %vm1011 = vcmask 1042432
      %vm1012 = vcmask 1046532
      %vm1013 = vmor %vm1011, %vm1012
      %v1014 = vrot.slane %v168, 5
      %v1015 = vrot.slane %v1014, 4
      %v1016 = vrot.slane %v169, 5
      %v1017 = vsel %vm1013, %v1015, %v1016
      %v1018 = vrot.slane %v1016, 4
      %v1019 = vrot.slane %v170, 5
      %v1020 = vsel %vm1013, %v1018, %v1019
      %v1021 = vrot.slane %v171, 5
      %v1022 = vrot.slane %v1021, 4
      %v1023 = vrot.slane %v172, 5
      %v1024 = vsel %vm1013, %v1022, %v1023
      %v1025 = vrot.slane %v1023, 4
      %v1026 = vrot.slane %v173, 5
      %v1027 = vsel %vm1013, %v1025, %v1026
      %v1028 = vrot.slane %v174, 5
      %v1029 = vrot.slane %v1028, 4
      %v1030 = vrot.slane %v175, 5
      %v1031 = vsel %vm1013, %v1029, %v1030
      %v1032 = vrot.slane %v1030, 4
      %v1033 = vrot.slane %v176, 5
      %v1034 = vsel %vm1013, %v1032, %v1033
      %v1035 = vrot.slane %v177, 5
      %v1036 = vrot.slane %v1035, 4
      %v1037 = vrot.slane %v178, 5
      %v1038 = vsel %vm1013, %v1036, %v1037
      %v1039 = vrot.slane %v1037, 4
      %v1040 = vrot.slane %v179, 5
      %v1041 = vsel %vm1013, %v1039, %v1040
      %v1042 = vrot.slane %v193, 5
      %v1043 = vrot.slane %v1042, 4
      %v1044 = vrot.slane %v195, 5
      %v1045 = vsel %vm1013, %v1043, %v1044
      %v1046 = vrot.slane %v1044, 4
      %v1047 = vrot.slane %v197, 5
      %v1048 = vsel %vm1013, %v1046, %v1047
      %v1049 = vrot.slane %v199, 5
      %v1050 = vrot.slane %v1049, 4
      %v1051 = vrot.slane %v201, 5
      %v1052 = vsel %vm1013, %v1050, %v1051
      %v1053 = vrot.slane %v1051, 4
      %v1054 = vrot.slane %v203, 5
      %v1055 = vsel %vm1013, %v1053, %v1054
      %v1056 = vrot.slane %v205, 5
      %v1057 = vrot.slane %v1056, 4
      %v1058 = vrot.slane %v207, 5
      %v1059 = vsel %vm1013, %v1057, %v1058
      %v1060 = vrot.slane %v1058, 4
      %v1061 = vrot.slane %v209, 5
      %v1062 = vsel %vm1013, %v1060, %v1061
      %v1063 = vrot.slane %v211, 5
      %v1064 = vrot.slane %v1063, 4
      %v1065 = vrot.slane %v213, 5
      %v1066 = vsel %vm1013, %v1064, %v1065
      %v1067 = vrot.slane %v1065, 4
      %v1068 = vrot.slane %v215, 5
      %v1069 = vsel %vm1013, %v1067, %v1068
      %v1070 = vrot.slane %v217, 5
      %v1071 = vrot.slane %v1070, 4
      %v1072 = vrot.slane %v219, 5
      %v1073 = vsel %vm1013, %v1071, %v1072
      %v1074 = vrot.slane %v1072, 4
      %v1075 = vrot.slane %v221, 5
      %v1076 = vsel %vm1013, %v1074, %v1075
      %v1077 = vrot.slane %v223, 5
      %v1078 = vrot.slane %v1077, 4
      %v1079 = vrot.slane %v225, 5
      %v1080 = vsel %vm1013, %v1078, %v1079
      %v1081 = vrot.slane %v1079, 4
      %v1082 = vrot.slane %v227, 5
      %v1083 = vsel %vm1013, %v1081, %v1082
      %v1084 = vrot.slane %v229, 5
      %v1085 = vrot.slane %v1084, 4
      %v1086 = vrot.slane %v231, 5
      %v1087 = vsel %vm1013, %v1085, %v1086
      %v1088 = vrot.slane %v1086, 4
      %v1089 = vrot.slane %v233, 5
      %v1090 = vsel %vm1013, %v1088, %v1089
      %v1091 = vrot.slane %v235, 5
      %v1092 = vrot.slane %v1091, 4
      %v1093 = vrot.slane %v237, 5
      %v1094 = vsel %vm1013, %v1092, %v1093
      %v1095 = vrot.slane %v1093, 4
      %v1096 = vrot.slane %v239, 5
      %v1097 = vsel %vm1013, %v1095, %v1096
      %v1098 = vrot.slane %v241, 5
      %v1099 = vrot.slane %v1098, 4
      %v1100 = vrot.slane %v243, 5
      %v1101 = vsel %vm1013, %v1099, %v1100
      %v1102 = vrot.slane %v1100, 4
      %v1103 = vrot.slane %v245, 5
      %v1104 = vsel %vm1013, %v1102, %v1103
      %v1105 = vrot.slane %v247, 5
      %v1106 = vrot.slane %v1105, 4
      %v1107 = vrot.slane %v249, 5
      %v1108 = vsel %vm1013, %v1106, %v1107
      %v1109 = vrot.slane %v1107, 4
      %v1110 = vrot.slane %v251, 5
      %v1111 = vsel %vm1013, %v1109, %v1110
      %v1112 = vrot.slane %v253, 5
      %v1113 = vrot.slane %v1112, 4
      %v1114 = vrot.slane %v255, 5
      %v1115 = vsel %vm1013, %v1113, %v1114
      %v1116 = vrot.slane %v1114, 4
      %v1117 = vrot.slane %v257, 5
      %v1118 = vsel %vm1013, %v1116, %v1117
      %v1119 = vrot.slane %v259, 5
      %v1120 = vrot.slane %v1119, 4
      %v1121 = vrot.slane %v261, 5
      %v1122 = vsel %vm1013, %v1120, %v1121
      %v1123 = vrot.slane %v1121, 4
      %v1124 = vrot.slane %v263, 5
      %v1125 = vsel %vm1013, %v1123, %v1124
      %v1126 = vrot.slane %v265, 5
      %v1127 = vrot.slane %v1126, 4
      %v1128 = vrot.slane %v267, 5
      %v1129 = vsel %vm1013, %v1127, %v1128
      %v1130 = vrot.slane %v1128, 4
      %v1131 = vrot.slane %v269, 5
      %v1132 = vsel %vm1013, %v1130, %v1131
      %v1133 = vrot.slane %v271, 5
      %v1134 = vrot.slane %v1133, 4
      %v1135 = vrot.slane %v273, 5
      %v1136 = vsel %vm1013, %v1134, %v1135
      %v1137 = vrot.slane %v1135, 4
      %v1138 = vrot.slane %v275, 5
      %v1139 = vsel %vm1013, %v1137, %v1138
      %v1140 = vrot.slane %v277, 5
      %v1141 = vrot.slane %v1140, 4
      %v1142 = vrot.slane %v279, 5
      %v1143 = vsel %vm1013, %v1141, %v1142
      %v1144 = vrot.slane %v1142, 4
      %v1145 = vrot.slane %v281, 5
      %v1146 = vsel %vm1013, %v1144, %v1145
      %v1147 = vrot.slane %v283, 5
      %v1148 = vrot.slane %v1147, 4
      %v1149 = vrot.slane %v285, 5
      %v1150 = vsel %vm1013, %v1148, %v1149
      %v1151 = vrot.slane %v1149, 4
      %v1152 = vrot.slane %v287, 5
      %v1153 = vsel %vm1013, %v1151, %v1152
      %v1154 = vrot.slane %v289, 5
      %v1155 = vrot.slane %v1154, 4
      %v1156 = vrot.slane %v291, 5
      %v1157 = vsel %vm1013, %v1155, %v1156
      %v1158 = vrot.slane %v1156, 4
      %v1159 = vrot.slane %v293, 5
      %v1160 = vsel %vm1013, %v1158, %v1159
      %v1161 = vrot.slane %v295, 5
      %v1162 = vrot.slane %v1161, 4
      %v1163 = vrot.slane %v297, 5
      %v1164 = vsel %vm1013, %v1162, %v1163
      %v1165 = vrot.slane %v1163, 4
      %v1166 = vrot.slane %v299, 5
      %v1167 = vsel %vm1013, %v1165, %v1166
      %v1168 = vrot.slane %v301, 5
      %v1169 = vrot.slane %v1168, 4
      %v1170 = vrot.slane %v303, 5
      %v1171 = vsel %vm1013, %v1169, %v1170
      %v1172 = vrot.slane %v1170, 4
      %v1173 = vrot.slane %v305, 5
      %v1174 = vsel %vm1013, %v1172, %v1173
      %v1175 = vrot.slane %v307, 5
      %v1176 = vrot.slane %v1175, 4
      %v1177 = vrot.slane %v309, 5
      %v1178 = vsel %vm1013, %v1176, %v1177
      %v1179 = vrot.slane %v1177, 4
      %v1180 = vrot.slane %v311, 5
      %v1181 = vsel %vm1013, %v1179, %v1180
      %v1182 = vrot.slane %v313, 5
      %v1183 = vrot.slane %v1182, 4
      %v1184 = vrot.slane %v315, 5
      %v1185 = vsel %vm1013, %v1183, %v1184
      %v1186 = vrot.slane %v1184, 4
      %v1187 = vrot.slane %v317, 5
      %v1188 = vsel %vm1013, %v1186, %v1187
      %v1189 = vrot.slane %v319, 5
      %v1190 = vrot.slane %v1189, 4
      %v1191 = vrot.slane %v321, 5
      %v1192 = vsel %vm1013, %v1190, %v1191
      %v1193 = vrot.slane %v1191, 4
      %v1194 = vrot.slane %v323, 5
      %v1195 = vsel %vm1013, %v1193, %v1194
      %v1196 = vrot.slane %v325, 5
      %v1197 = vrot.slane %v1196, 4
      %v1198 = vrot.slane %v327, 5
      %v1199 = vsel %vm1013, %v1197, %v1198
      %v1200 = vrot.slane %v1198, 4
      %v1201 = vrot.slane %v329, 5
      %v1202 = vsel %vm1013, %v1200, %v1201
      %v1203 = vrot.slane %v331, 5
      %v1204 = vrot.slane %v1203, 4
      %v1205 = vrot.slane %v333, 5
      %v1206 = vsel %vm1013, %v1204, %v1205
      %v1207 = vrot.slane %v1205, 4
      %v1208 = vrot.slane %v335, 5
      %v1209 = vsel %vm1013, %v1207, %v1208
      %vm1210 = vsmask.f32 2304
      %vm1211 = vsmask.f32 6416
      %vm1212 = vmor %vm1210, %vm1211
      %v1213 = vrot.slane %v340, 5
      %v1214 = vrot.slane %v343, 6
      %v1215 = vor.u32 %v1213, %v1214
      %v1216 = vrot.slane %v1215, 4
      %v1217 = vrot.slane %v353, 5
      %v1218 = vrot.slane %v349, 6
      %v1219 = vor.u32 %v1217, %v1218
      %v1220 = vsel %vm1212, %v1216, %v1219
      %v1221 = vrot.slane %v1219, 4
      %v1222 = vshrl.u32 %v170, 16
      %v1224 = vrot.slane %v1222, 5
      %v1225 = vrot.slane %v359, 6
      %v1226 = vor.u32 %v1224, %v1225
      %v1227 = vsel %vm1212, %v1221, %v1226
      %v1228 = vrot.slane %v364, 5
      %v1229 = vrot.slane %v367, 6
      %v1230 = vor.u32 %v1228, %v1229
      %v1231 = vrot.slane %v1230, 4
      %v1232 = vrot.slane %v377, 5
      %v1233 = vrot.slane %v373, 6
      %v1234 = vor.u32 %v1232, %v1233
      %v1235 = vsel %vm1212, %v1231, %v1234
      %v1236 = vrot.slane %v1234, 4
      %v1237 = vshrl.u32 %v173, 16
      %v1239 = vrot.slane %v1237, 5
      %v1240 = vrot.slane %v383, 6
      %v1241 = vor.u32 %v1239, %v1240
      %v1242 = vsel %vm1212, %v1236, %v1241
      %v1243 = vrot.slane %v388, 5
      %v1244 = vrot.slane %v391, 6
      %v1245 = vor.u32 %v1243, %v1244
      %v1246 = vrot.slane %v1245, 4
      %v1247 = vrot.slane %v401, 5
      %v1248 = vrot.slane %v397, 6
      %v1249 = vor.u32 %v1247, %v1248
      %v1250 = vsel %vm1212, %v1246, %v1249
      %v1251 = vrot.slane %v1249, 4
      %v1252 = vshrl.u32 %v176, 16
      %v1254 = vrot.slane %v1252, 5
      %v1255 = vrot.slane %v407, 6
      %v1256 = vor.u32 %v1254, %v1255
      %v1257 = vsel %vm1212, %v1251, %v1256
      %v1258 = vrot.slane %v412, 5
      %v1259 = vrot.slane %v415, 6
      %v1260 = vor.u32 %v1258, %v1259
      %v1261 = vrot.slane %v1260, 4
      %v1262 = vrot.slane %v425, 5
      %v1263 = vrot.slane %v421, 6
      %v1264 = vor.u32 %v1262, %v1263
      %v1265 = vsel %vm1212, %v1261, %v1264
      %v1266 = vrot.slane %v1264, 4
      %v1267 = vshrl.u32 %v179, 16
      %v1269 = vrot.slane %v1267, 5
      %v1270 = vrot.slane %v431, 6
      %v1271 = vor.u32 %v1269, %v1270
      %v1272 = vsel %vm1212, %v1266, %v1271
      %v1273 = vrot.slane %v436, 5
      %v1274 = vrot.slane %v439, 6
      %v1275 = vor.u32 %v1273, %v1274
      %v1276 = vrot.slane %v1275, 4
      %v1277 = vrot.slane %v449, 5
      %v1278 = vrot.slane %v445, 6
      %v1279 = vor.u32 %v1277, %v1278
      %v1280 = vsel %vm1212, %v1276, %v1279
      %v1281 = vrot.slane %v1279, 4
      %v1282 = vshrl.u32 %v197, 16
      %v1284 = vrot.slane %v1282, 5
      %v1285 = vrot.slane %v455, 6
      %v1286 = vor.u32 %v1284, %v1285
      %v1287 = vsel %vm1212, %v1281, %v1286
      %v1288 = vrot.slane %v460, 5
      %v1289 = vrot.slane %v463, 6
      %v1290 = vor.u32 %v1288, %v1289
      %v1291 = vrot.slane %v1290, 4
      %v1292 = vrot.slane %v473, 5
      %v1293 = vrot.slane %v469, 6
      %v1294 = vor.u32 %v1292, %v1293
      %v1295 = vsel %vm1212, %v1291, %v1294
      %v1296 = vrot.slane %v1294, 4
      %v1297 = vshrl.u32 %v203, 16
      %v1299 = vrot.slane %v1297, 5
      %v1300 = vrot.slane %v479, 6
      %v1301 = vor.u32 %v1299, %v1300
      %v1302 = vsel %vm1212, %v1296, %v1301
      %v1303 = vrot.slane %v484, 5
      %v1304 = vrot.slane %v487, 6
      %v1305 = vor.u32 %v1303, %v1304
      %v1306 = vrot.slane %v1305, 4
      %v1307 = vrot.slane %v497, 5
      %v1308 = vrot.slane %v493, 6
      %v1309 = vor.u32 %v1307, %v1308
      %v1310 = vsel %vm1212, %v1306, %v1309
      %v1311 = vrot.slane %v1309, 4
      %v1312 = vshrl.u32 %v209, 16
      %v1314 = vrot.slane %v1312, 5
      %v1315 = vrot.slane %v503, 6
      %v1316 = vor.u32 %v1314, %v1315
      %v1317 = vsel %vm1212, %v1311, %v1316
      %v1318 = vrot.slane %v508, 5
      %v1319 = vrot.slane %v511, 6
      %v1320 = vor.u32 %v1318, %v1319
      %v1321 = vrot.slane %v1320, 4
      %v1322 = vrot.slane %v521, 5
      %v1323 = vrot.slane %v517, 6
      %v1324 = vor.u32 %v1322, %v1323
      %v1325 = vsel %vm1212, %v1321, %v1324
      %v1326 = vrot.slane %v1324, 4
      %v1327 = vshrl.u32 %v215, 16
      %v1329 = vrot.slane %v1327, 5
      %v1330 = vrot.slane %v527, 6
      %v1331 = vor.u32 %v1329, %v1330
      %v1332 = vsel %vm1212, %v1326, %v1331
      %v1333 = vrot.slane %v532, 5
      %v1334 = vrot.slane %v535, 6
      %v1335 = vor.u32 %v1333, %v1334
      %v1336 = vrot.slane %v1335, 4
      %v1337 = vrot.slane %v545, 5
      %v1338 = vrot.slane %v541, 6
      %v1339 = vor.u32 %v1337, %v1338
      %v1340 = vsel %vm1212, %v1336, %v1339
      %v1341 = vrot.slane %v1339, 4
      %v1342 = vshrl.u32 %v221, 16
      %v1344 = vrot.slane %v1342, 5
      %v1345 = vrot.slane %v551, 6
      %v1346 = vor.u32 %v1344, %v1345
      %v1347 = vsel %vm1212, %v1341, %v1346
      %v1348 = vrot.slane %v556, 5
      %v1349 = vrot.slane %v559, 6
      %v1350 = vor.u32 %v1348, %v1349
      %v1351 = vrot.slane %v1350, 4
      %v1352 = vrot.slane %v569, 5
      %v1353 = vrot.slane %v565, 6
      %v1354 = vor.u32 %v1352, %v1353
      %v1355 = vsel %vm1212, %v1351, %v1354
      %v1356 = vrot.slane %v1354, 4
      %v1357 = vshrl.u32 %v227, 16
      %v1359 = vrot.slane %v1357, 5
      %v1360 = vrot.slane %v575, 6
      %v1361 = vor.u32 %v1359, %v1360
      %v1362 = vsel %vm1212, %v1356, %v1361
      %v1363 = vrot.slane %v580, 5
      %v1364 = vrot.slane %v583, 6
      %v1365 = vor.u32 %v1363, %v1364
      %v1366 = vrot.slane %v1365, 4
      %v1367 = vrot.slane %v593, 5
      %v1368 = vrot.slane %v589, 6
      %v1369 = vor.u32 %v1367, %v1368
      %v1370 = vsel %vm1212, %v1366, %v1369
      %v1371 = vrot.slane %v1369, 4
      %v1372 = vshrl.u32 %v233, 16
      %v1374 = vrot.slane %v1372, 5
      %v1375 = vrot.slane %v599, 6
      %v1376 = vor.u32 %v1374, %v1375
      %v1377 = vsel %vm1212, %v1371, %v1376
      %v1378 = vrot.slane %v604, 5
      %v1379 = vrot.slane %v607, 6
      %v1380 = vor.u32 %v1378, %v1379
      %v1381 = vrot.slane %v1380, 4
      %v1382 = vrot.slane %v617, 5
      %v1383 = vrot.slane %v613, 6
      %v1384 = vor.u32 %v1382, %v1383
      %v1385 = vsel %vm1212, %v1381, %v1384
      %v1386 = vrot.slane %v1384, 4
      %v1387 = vshrl.u32 %v239, 16
      %v1389 = vrot.slane %v1387, 5
      %v1390 = vrot.slane %v623, 6
      %v1391 = vor.u32 %v1389, %v1390
      %v1392 = vsel %vm1212, %v1386, %v1391
      %v1393 = vrot.slane %v628, 5
      %v1394 = vrot.slane %v631, 6
      %v1395 = vor.u32 %v1393, %v1394
      %v1396 = vrot.slane %v1395, 4
      %v1397 = vrot.slane %v641, 5
      %v1398 = vrot.slane %v637, 6
      %v1399 = vor.u32 %v1397, %v1398
      %v1400 = vsel %vm1212, %v1396, %v1399
      %v1401 = vrot.slane %v1399, 4
      %v1402 = vshrl.u32 %v245, 16
      %v1404 = vrot.slane %v1402, 5
      %v1405 = vrot.slane %v647, 6
      %v1406 = vor.u32 %v1404, %v1405
      %v1407 = vsel %vm1212, %v1401, %v1406
      %v1408 = vrot.slane %v652, 5
      %v1409 = vrot.slane %v655, 6
      %v1410 = vor.u32 %v1408, %v1409
      %v1411 = vrot.slane %v1410, 4
      %v1412 = vrot.slane %v665, 5
      %v1413 = vrot.slane %v661, 6
      %v1414 = vor.u32 %v1412, %v1413
      %v1415 = vsel %vm1212, %v1411, %v1414
      %v1416 = vrot.slane %v1414, 4
      %v1417 = vshrl.u32 %v251, 16
      %v1419 = vrot.slane %v1417, 5
      %v1420 = vrot.slane %v671, 6
      %v1421 = vor.u32 %v1419, %v1420
      %v1422 = vsel %vm1212, %v1416, %v1421
      %v1423 = vrot.slane %v676, 5
      %v1424 = vrot.slane %v679, 6
      %v1425 = vor.u32 %v1423, %v1424
      %v1426 = vrot.slane %v1425, 4
      %v1427 = vrot.slane %v689, 5
      %v1428 = vrot.slane %v685, 6
      %v1429 = vor.u32 %v1427, %v1428
      %v1430 = vsel %vm1212, %v1426, %v1429
      %v1431 = vrot.slane %v1429, 4
      %v1432 = vshrl.u32 %v257, 16
      %v1434 = vrot.slane %v1432, 5
      %v1435 = vrot.slane %v695, 6
      %v1436 = vor.u32 %v1434, %v1435
      %v1437 = vsel %vm1212, %v1431, %v1436
      %v1438 = vrot.slane %v700, 5
      %v1439 = vrot.slane %v703, 6
      %v1440 = vor.u32 %v1438, %v1439
      %v1441 = vrot.slane %v1440, 4
      %v1442 = vrot.slane %v713, 5
      %v1443 = vrot.slane %v709, 6
      %v1444 = vor.u32 %v1442, %v1443
      %v1445 = vsel %vm1212, %v1441, %v1444
      %v1446 = vrot.slane %v1444, 4
      %v1447 = vshrl.u32 %v263, 16
      %v1449 = vrot.slane %v1447, 5
      %v1450 = vrot.slane %v719, 6
      %v1451 = vor.u32 %v1449, %v1450
      %v1452 = vsel %vm1212, %v1446, %v1451
      %v1453 = vrot.slane %v724, 5
      %v1454 = vrot.slane %v727, 6
      %v1455 = vor.u32 %v1453, %v1454
      %v1456 = vrot.slane %v1455, 4
      %v1457 = vrot.slane %v737, 5
      %v1458 = vrot.slane %v733, 6
      %v1459 = vor.u32 %v1457, %v1458
      %v1460 = vsel %vm1212, %v1456, %v1459
      %v1461 = vrot.slane %v1459, 4
      %v1462 = vshrl.u32 %v269, 16
      %v1464 = vrot.slane %v1462, 5
      %v1465 = vrot.slane %v743, 6
      %v1466 = vor.u32 %v1464, %v1465
      %v1467 = vsel %vm1212, %v1461, %v1466
      %v1468 = vrot.slane %v748, 5
      %v1469 = vrot.slane %v751, 6
      %v1470 = vor.u32 %v1468, %v1469
      %v1471 = vrot.slane %v1470, 4
      %v1472 = vrot.slane %v761, 5
      %v1473 = vrot.slane %v757, 6
      %v1474 = vor.u32 %v1472, %v1473
      %v1475 = vsel %vm1212, %v1471, %v1474
      %v1476 = vrot.slane %v1474, 4
      %v1477 = vshrl.u32 %v275, 16
      %v1479 = vrot.slane %v1477, 5
      %v1480 = vrot.slane %v767, 6
      %v1481 = vor.u32 %v1479, %v1480
      %v1482 = vsel %vm1212, %v1476, %v1481
      %v1483 = vrot.slane %v772, 5
      %v1484 = vrot.slane %v775, 6
      %v1485 = vor.u32 %v1483, %v1484
      %v1486 = vrot.slane %v1485, 4
      %v1487 = vrot.slane %v785, 5
      %v1488 = vrot.slane %v781, 6
      %v1489 = vor.u32 %v1487, %v1488
      %v1490 = vsel %vm1212, %v1486, %v1489
      %v1491 = vrot.slane %v1489, 4
      %v1492 = vshrl.u32 %v281, 16
      %v1494 = vrot.slane %v1492, 5
      %v1495 = vrot.slane %v791, 6
      %v1496 = vor.u32 %v1494, %v1495
      %v1497 = vsel %vm1212, %v1491, %v1496
      %v1498 = vrot.slane %v796, 5
      %v1499 = vrot.slane %v799, 6
      %v1500 = vor.u32 %v1498, %v1499
      %v1501 = vrot.slane %v1500, 4
      %v1502 = vrot.slane %v809, 5
      %v1503 = vrot.slane %v805, 6
      %v1504 = vor.u32 %v1502, %v1503
      %v1505 = vsel %vm1212, %v1501, %v1504
      %v1506 = vrot.slane %v1504, 4
      %v1507 = vshrl.u32 %v287, 16
      %v1509 = vrot.slane %v1507, 5
      %v1510 = vrot.slane %v815, 6
      %v1511 = vor.u32 %v1509, %v1510
      %v1512 = vsel %vm1212, %v1506, %v1511
      %v1513 = vrot.slane %v820, 5
      %v1514 = vrot.slane %v823, 6
      %v1515 = vor.u32 %v1513, %v1514
      %v1516 = vrot.slane %v1515, 4
      %v1517 = vrot.slane %v833, 5
      %v1518 = vrot.slane %v829, 6
      %v1519 = vor.u32 %v1517, %v1518
      %v1520 = vsel %vm1212, %v1516, %v1519
      %v1521 = vrot.slane %v1519, 4
      %v1522 = vshrl.u32 %v293, 16
      %v1524 = vrot.slane %v1522, 5
      %v1525 = vrot.slane %v839, 6
      %v1526 = vor.u32 %v1524, %v1525
      %v1527 = vsel %vm1212, %v1521, %v1526
      %v1528 = vrot.slane %v844, 5
      %v1529 = vrot.slane %v847, 6
      %v1530 = vor.u32 %v1528, %v1529
      %v1531 = vrot.slane %v1530, 4
      %v1532 = vrot.slane %v857, 5
      %v1533 = vrot.slane %v853, 6
      %v1534 = vor.u32 %v1532, %v1533
      %v1535 = vsel %vm1212, %v1531, %v1534
      %v1536 = vrot.slane %v1534, 4
      %v1537 = vshrl.u32 %v299, 16
      %v1539 = vrot.slane %v1537, 5
      %v1540 = vrot.slane %v863, 6
      %v1541 = vor.u32 %v1539, %v1540
      %v1542 = vsel %vm1212, %v1536, %v1541
      %v1543 = vrot.slane %v868, 5
      %v1544 = vrot.slane %v871, 6
      %v1545 = vor.u32 %v1543, %v1544
      %v1546 = vrot.slane %v1545, 4
      %v1547 = vrot.slane %v881, 5
      %v1548 = vrot.slane %v877, 6
      %v1549 = vor.u32 %v1547, %v1548
      %v1550 = vsel %vm1212, %v1546, %v1549
      %v1551 = vrot.slane %v1549, 4
      %v1552 = vshrl.u32 %v305, 16
      %v1554 = vrot.slane %v1552, 5
      %v1555 = vrot.slane %v887, 6
      %v1556 = vor.u32 %v1554, %v1555
      %v1557 = vsel %vm1212, %v1551, %v1556
      %v1558 = vrot.slane %v892, 5
      %v1559 = vrot.slane %v895, 6
      %v1560 = vor.u32 %v1558, %v1559
      %v1561 = vrot.slane %v1560, 4
      %v1562 = vrot.slane %v905, 5
      %v1563 = vrot.slane %v901, 6
      %v1564 = vor.u32 %v1562, %v1563
      %v1565 = vsel %vm1212, %v1561, %v1564
      %v1566 = vrot.slane %v1564, 4
      %v1567 = vshrl.u32 %v311, 16
      %v1569 = vrot.slane %v1567, 5
      %v1570 = vrot.slane %v911, 6
      %v1571 = vor.u32 %v1569, %v1570
      %v1572 = vsel %vm1212, %v1566, %v1571
      %v1573 = vrot.slane %v916, 5
      %v1574 = vrot.slane %v919, 6
      %v1575 = vor.u32 %v1573, %v1574
      %v1576 = vrot.slane %v1575, 4
      %v1577 = vrot.slane %v929, 5
      %v1578 = vrot.slane %v925, 6
      %v1579 = vor.u32 %v1577, %v1578
      %v1580 = vsel %vm1212, %v1576, %v1579
      %v1581 = vrot.slane %v1579, 4
      %v1582 = vshrl.u32 %v317, 16
      %v1584 = vrot.slane %v1582, 5
      %v1585 = vrot.slane %v935, 6
      %v1586 = vor.u32 %v1584, %v1585
      %v1587 = vsel %vm1212, %v1581, %v1586
      %v1588 = vrot.slane %v940, 5
      %v1589 = vrot.slane %v943, 6
      %v1590 = vor.u32 %v1588, %v1589
      %v1591 = vrot.slane %v1590, 4
      %v1592 = vrot.slane %v953, 5
      %v1593 = vrot.slane %v949, 6
      %v1594 = vor.u32 %v1592, %v1593
      %v1595 = vsel %vm1212, %v1591, %v1594
      %v1596 = vrot.slane %v1594, 4
      %v1597 = vshrl.u32 %v323, 16
      %v1599 = vrot.slane %v1597, 5
      %v1600 = vrot.slane %v959, 6
      %v1601 = vor.u32 %v1599, %v1600
      %v1602 = vsel %vm1212, %v1596, %v1601
      %v1603 = vrot.slane %v964, 5
      %v1604 = vrot.slane %v967, 6
      %v1605 = vor.u32 %v1603, %v1604
      %v1606 = vrot.slane %v1605, 4
      %v1607 = vrot.slane %v977, 5
      %v1608 = vrot.slane %v973, 6
      %v1609 = vor.u32 %v1607, %v1608
      %v1610 = vsel %vm1212, %v1606, %v1609
      %v1611 = vrot.slane %v1609, 4
      %v1612 = vshrl.u32 %v329, 16
      %v1614 = vrot.slane %v1612, 5
      %v1615 = vrot.slane %v983, 6
      %v1616 = vor.u32 %v1614, %v1615
      %v1617 = vsel %vm1212, %v1611, %v1616
      %v1618 = vrot.slane %v988, 5
      %v1619 = vrot.slane %v991, 6
      %v1620 = vor.u32 %v1618, %v1619
      %v1621 = vrot.slane %v1620, 4
      %v1622 = vrot.slane %v1001, 5
      %v1623 = vrot.slane %v997, 6
      %v1624 = vor.u32 %v1622, %v1623
      %v1625 = vsel %vm1212, %v1621, %v1624
      %v1626 = vrot.slane %v1624, 4
      %v1627 = vshrl.u32 %v335, 16
      %v1629 = vrot.slane %v1627, 5
      %v1630 = vrot.slane %v1007, 6
      %v1631 = vor.u32 %v1629, %v1630
      %v1632 = vsel %vm1212, %v1626, %v1631
      %vm1633 = vcmask 1041408
      %vm1634 = vcmask 1045508
      %vm1635 = vmor %vm1633, %vm1634
      %v1636 = vrot.slane %v168, 6
      %v1637 = vrot.slane %v1636, 4
      %v1638 = vrot.slane %v169, 6
      %v1639 = vsel %vm1635, %v1637, %v1638
      %v1640 = vrot.slane %v1638, 4
      %v1641 = vrot.slane %v170, 6
      %v1642 = vsel %vm1635, %v1640, %v1641
      %v1643 = vrot.slane %v171, 6
      %v1644 = vrot.slane %v1643, 4
      %v1645 = vrot.slane %v172, 6
      %v1646 = vsel %vm1635, %v1644, %v1645
      %v1647 = vrot.slane %v1645, 4
      %v1648 = vrot.slane %v173, 6
      %v1649 = vsel %vm1635, %v1647, %v1648
      %v1650 = vrot.slane %v174, 6
      %v1651 = vrot.slane %v1650, 4
      %v1652 = vrot.slane %v175, 6
      %v1653 = vsel %vm1635, %v1651, %v1652
      %v1654 = vrot.slane %v1652, 4
      %v1655 = vrot.slane %v176, 6
      %v1656 = vsel %vm1635, %v1654, %v1655
      %v1657 = vrot.slane %v177, 6
      %v1658 = vrot.slane %v1657, 4
      %v1659 = vrot.slane %v178, 6
      %v1660 = vsel %vm1635, %v1658, %v1659
      %v1661 = vrot.slane %v1659, 4
      %v1662 = vrot.slane %v179, 6
      %v1663 = vsel %vm1635, %v1661, %v1662
      %v1664 = vrot.slane %v193, 6
      %v1665 = vrot.slane %v1664, 4
      %v1666 = vrot.slane %v195, 6
      %v1667 = vsel %vm1635, %v1665, %v1666
      %v1668 = vrot.slane %v1666, 4
      %v1669 = vrot.slane %v197, 6
      %v1670 = vsel %vm1635, %v1668, %v1669
      %v1671 = vrot.slane %v199, 6
      %v1672 = vrot.slane %v1671, 4
      %v1673 = vrot.slane %v201, 6
      %v1674 = vsel %vm1635, %v1672, %v1673
      %v1675 = vrot.slane %v1673, 4
      %v1676 = vrot.slane %v203, 6
      %v1677 = vsel %vm1635, %v1675, %v1676
      %v1678 = vrot.slane %v205, 6
      %v1679 = vrot.slane %v1678, 4
      %v1680 = vrot.slane %v207, 6
      %v1681 = vsel %vm1635, %v1679, %v1680
      %v1682 = vrot.slane %v1680, 4
      %v1683 = vrot.slane %v209, 6
      %v1684 = vsel %vm1635, %v1682, %v1683
      %v1685 = vrot.slane %v211, 6
      %v1686 = vrot.slane %v1685, 4
      %v1687 = vrot.slane %v213, 6
      %v1688 = vsel %vm1635, %v1686, %v1687
      %v1689 = vrot.slane %v1687, 4
      %v1690 = vrot.slane %v215, 6
      %v1691 = vsel %vm1635, %v1689, %v1690
      %v1692 = vrot.slane %v217, 6
      %v1693 = vrot.slane %v1692, 4
      %v1694 = vrot.slane %v219, 6
      %v1695 = vsel %vm1635, %v1693, %v1694
      %v1696 = vrot.slane %v1694, 4
      %v1697 = vrot.slane %v221, 6
      %v1698 = vsel %vm1635, %v1696, %v1697
      %v1699 = vrot.slane %v223, 6
      %v1700 = vrot.slane %v1699, 4
      %v1701 = vrot.slane %v225, 6
      %v1702 = vsel %vm1635, %v1700, %v1701
      %v1703 = vrot.slane %v1701, 4
      %v1704 = vrot.slane %v227, 6
      %v1705 = vsel %vm1635, %v1703, %v1704
      %v1706 = vrot.slane %v229, 6
      %v1707 = vrot.slane %v1706, 4
      %v1708 = vrot.slane %v231, 6
      %v1709 = vsel %vm1635, %v1707, %v1708
      %v1710 = vrot.slane %v1708, 4
      %v1711 = vrot.slane %v233, 6
      %v1712 = vsel %vm1635, %v1710, %v1711
      %v1713 = vrot.slane %v235, 6
      %v1714 = vrot.slane %v1713, 4
      %v1715 = vrot.slane %v237, 6
      %v1716 = vsel %vm1635, %v1714, %v1715
      %v1717 = vrot.slane %v1715, 4
      %v1718 = vrot.slane %v239, 6
      %v1719 = vsel %vm1635, %v1717, %v1718
      %v1720 = vrot.slane %v241, 6
      %v1721 = vrot.slane %v1720, 4
      %v1722 = vrot.slane %v243, 6
      %v1723 = vsel %vm1635, %v1721, %v1722
      %v1724 = vrot.slane %v1722, 4
      %v1725 = vrot.slane %v245, 6
      %v1726 = vsel %vm1635, %v1724, %v1725
      %v1727 = vrot.slane %v247, 6
      %v1728 = vrot.slane %v1727, 4
      %v1729 = vrot.slane %v249, 6
      %v1730 = vsel %vm1635, %v1728, %v1729
      %v1731 = vrot.slane %v1729, 4
      %v1732 = vrot.slane %v251, 6
      %v1733 = vsel %vm1635, %v1731, %v1732
      %v1734 = vrot.slane %v253, 6
      %v1735 = vrot.slane %v1734, 4
      %v1736 = vrot.slane %v255, 6
      %v1737 = vsel %vm1635, %v1735, %v1736
      %v1738 = vrot.slane %v1736, 4
      %v1739 = vrot.slane %v257, 6
      %v1740 = vsel %vm1635, %v1738, %v1739
      %v1741 = vrot.slane %v259, 6
      %v1742 = vrot.slane %v1741, 4
      %v1743 = vrot.slane %v261, 6
      %v1744 = vsel %vm1635, %v1742, %v1743
      %v1745 = vrot.slane %v1743, 4
      %v1746 = vrot.slane %v263, 6
      %v1747 = vsel %vm1635, %v1745, %v1746
      %v1748 = vrot.slane %v265, 6
      %v1749 = vrot.slane %v1748, 4
      %v1750 = vrot.slane %v267, 6
      %v1751 = vsel %vm1635, %v1749, %v1750
      %v1752 = vrot.slane %v1750, 4
      %v1753 = vrot.slane %v269, 6
      %v1754 = vsel %vm1635, %v1752, %v1753
      %v1755 = vrot.slane %v271, 6
      %v1756 = vrot.slane %v1755, 4
      %v1757 = vrot.slane %v273, 6
      %v1758 = vsel %vm1635, %v1756, %v1757
      %v1759 = vrot.slane %v1757, 4
      %v1760 = vrot.slane %v275, 6
      %v1761 = vsel %vm1635, %v1759, %v1760
      %v1762 = vrot.slane %v277, 6
      %v1763 = vrot.slane %v1762, 4
      %v1764 = vrot.slane %v279, 6
      %v1765 = vsel %vm1635, %v1763, %v1764
      %v1766 = vrot.slane %v1764, 4
      %v1767 = vrot.slane %v281, 6
      %v1768 = vsel %vm1635, %v1766, %v1767
      %v1769 = vrot.slane %v283, 6
      %v1770 = vrot.slane %v1769, 4
      %v1771 = vrot.slane %v285, 6
      %v1772 = vsel %vm1635, %v1770, %v1771
      %v1773 = vrot.slane %v1771, 4
      %v1774 = vrot.slane %v287, 6
      %v1775 = vsel %vm1635, %v1773, %v1774
      %v1776 = vrot.slane %v289, 6
      %v1777 = vrot.slane %v1776, 4
      %v1778 = vrot.slane %v291, 6
      %v1779 = vsel %vm1635, %v1777, %v1778
      %v1780 = vrot.slane %v1778, 4
      %v1781 = vrot.slane %v293, 6
      %v1782 = vsel %vm1635, %v1780, %v1781
      %v1783 = vrot.slane %v295, 6
      %v1784 = vrot.slane %v1783, 4
      %v1785 = vrot.slane %v297, 6
      %v1786 = vsel %vm1635, %v1784, %v1785
      %v1787 = vrot.slane %v1785, 4
      %v1788 = vrot.slane %v299, 6
      %v1789 = vsel %vm1635, %v1787, %v1788
      %v1790 = vrot.slane %v301, 6
      %v1791 = vrot.slane %v1790, 4
      %v1792 = vrot.slane %v303, 6
      %v1793 = vsel %vm1635, %v1791, %v1792
      %v1794 = vrot.slane %v1792, 4
      %v1795 = vrot.slane %v305, 6
      %v1796 = vsel %vm1635, %v1794, %v1795
      %v1797 = vrot.slane %v307, 6
      %v1798 = vrot.slane %v1797, 4
      %v1799 = vrot.slane %v309, 6
      %v1800 = vsel %vm1635, %v1798, %v1799
      %v1801 = vrot.slane %v1799, 4
      %v1802 = vrot.slane %v311, 6
      %v1803 = vsel %vm1635, %v1801, %v1802
      %v1804 = vrot.slane %v313, 6
      %v1805 = vrot.slane %v1804, 4
      %v1806 = vrot.slane %v315, 6
      %v1807 = vsel %vm1635, %v1805, %v1806
      %v1808 = vrot.slane %v1806, 4
      %v1809 = vrot.slane %v317, 6
      %v1810 = vsel %vm1635, %v1808, %v1809
      %v1811 = vrot.slane %v319, 6
      %v1812 = vrot.slane %v1811, 4
      %v1813 = vrot.slane %v321, 6
      %v1814 = vsel %vm1635, %v1812, %v1813
      %v1815 = vrot.slane %v1813, 4
      %v1816 = vrot.slane %v323, 6
      %v1817 = vsel %vm1635, %v1815, %v1816
      %v1818 = vrot.slane %v325, 6
      %v1819 = vrot.slane %v1818, 4
      %v1820 = vrot.slane %v327, 6
      %v1821 = vsel %vm1635, %v1819, %v1820
      %v1822 = vrot.slane %v1820, 4
      %v1823 = vrot.slane %v329, 6
      %v1824 = vsel %vm1635, %v1822, %v1823
      %v1825 = vrot.slane %v331, 6
      %v1826 = vrot.slane %v1825, 4
      %v1827 = vrot.slane %v333, 6
      %v1828 = vsel %vm1635, %v1826, %v1827
      %v1829 = vrot.slane %v1827, 4
      %v1830 = vrot.slane %v335, 6
      %v1831 = vsel %vm1635, %v1829, %v1830
      %vm1832 = vsmask.f32 1280
      %vm1833 = vsmask.f32 5392
      %vm1834 = vmor %vm1832, %vm1833
      %v1835 = vrot.slane %v340, 6
      %v1836 = vrot.slane %v343, 7
      %v1837 = vor.u32 %v1835, %v1836
      %v1838 = vrot.slane %v1837, 4
      %v1839 = vrot.slane %v353, 6
      %v1840 = vrot.slane %v349, 7
      %v1841 = vor.u32 %v1839, %v1840
      %v1842 = vsel %vm1834, %v1838, %v1841
      %v1843 = vrot.slane %v1841, 4
      %v1844 = vrot.slane %v1222, 6
      %v1845 = vrot.slane %v359, 7
      %v1846 = vor.u32 %v1844, %v1845
      %v1847 = vsel %vm1834, %v1843, %v1846
      %v1848 = vrot.slane %v364, 6
      %v1849 = vrot.slane %v367, 7
      %v1850 = vor.u32 %v1848, %v1849
      %v1851 = vrot.slane %v1850, 4
      %v1852 = vrot.slane %v377, 6
      %v1853 = vrot.slane %v373, 7
      %v1854 = vor.u32 %v1852, %v1853
      %v1855 = vsel %vm1834, %v1851, %v1854
      %v1856 = vrot.slane %v1854, 4
      %v1857 = vrot.slane %v1237, 6
      %v1858 = vrot.slane %v383, 7
      %v1859 = vor.u32 %v1857, %v1858
      %v1860 = vsel %vm1834, %v1856, %v1859
      %v1861 = vrot.slane %v388, 6
      %v1862 = vrot.slane %v391, 7
      %v1863 = vor.u32 %v1861, %v1862
      %v1864 = vrot.slane %v1863, 4
      %v1865 = vrot.slane %v401, 6
      %v1866 = vrot.slane %v397, 7
      %v1867 = vor.u32 %v1865, %v1866
      %v1868 = vsel %vm1834, %v1864, %v1867
      %v1869 = vrot.slane %v1867, 4
      %v1870 = vrot.slane %v1252, 6
      %v1871 = vrot.slane %v407, 7
      %v1872 = vor.u32 %v1870, %v1871
      %v1873 = vsel %vm1834, %v1869, %v1872
      %v1874 = vrot.slane %v412, 6
      %v1875 = vrot.slane %v415, 7
      %v1876 = vor.u32 %v1874, %v1875
      %v1877 = vrot.slane %v1876, 4
      %v1878 = vrot.slane %v425, 6
      %v1879 = vrot.slane %v421, 7
      %v1880 = vor.u32 %v1878, %v1879
      %v1881 = vsel %vm1834, %v1877, %v1880
      %v1882 = vrot.slane %v1880, 4
      %v1883 = vrot.slane %v1267, 6
      %v1884 = vrot.slane %v431, 7
      %v1885 = vor.u32 %v1883, %v1884
      %v1886 = vsel %vm1834, %v1882, %v1885
      %v1887 = vrot.slane %v436, 6
      %v1888 = vrot.slane %v439, 7
      %v1889 = vor.u32 %v1887, %v1888
      %v1890 = vrot.slane %v1889, 4
      %v1891 = vrot.slane %v449, 6
      %v1892 = vrot.slane %v445, 7
      %v1893 = vor.u32 %v1891, %v1892
      %v1894 = vsel %vm1834, %v1890, %v1893
      %v1895 = vrot.slane %v1893, 4
      %v1896 = vrot.slane %v1282, 6
      %v1897 = vrot.slane %v455, 7
      %v1898 = vor.u32 %v1896, %v1897
      %v1899 = vsel %vm1834, %v1895, %v1898
      %v1900 = vrot.slane %v460, 6
      %v1901 = vrot.slane %v463, 7
      %v1902 = vor.u32 %v1900, %v1901
      %v1903 = vrot.slane %v1902, 4
      %v1904 = vrot.slane %v473, 6
      %v1905 = vrot.slane %v469, 7
      %v1906 = vor.u32 %v1904, %v1905
      %v1907 = vsel %vm1834, %v1903, %v1906
      %v1908 = vrot.slane %v1906, 4
      %v1909 = vrot.slane %v1297, 6
      %v1910 = vrot.slane %v479, 7
      %v1911 = vor.u32 %v1909, %v1910
      %v1912 = vsel %vm1834, %v1908, %v1911
      %v1913 = vrot.slane %v484, 6
      %v1914 = vrot.slane %v487, 7
      %v1915 = vor.u32 %v1913, %v1914
      %v1916 = vrot.slane %v1915, 4
      %v1917 = vrot.slane %v497, 6
      %v1918 = vrot.slane %v493, 7
      %v1919 = vor.u32 %v1917, %v1918
      %v1920 = vsel %vm1834, %v1916, %v1919
      %v1921 = vrot.slane %v1919, 4
      %v1922 = vrot.slane %v1312, 6
      %v1923 = vrot.slane %v503, 7
      %v1924 = vor.u32 %v1922, %v1923
      %v1925 = vsel %vm1834, %v1921, %v1924
      %v1926 = vrot.slane %v508, 6
      %v1927 = vrot.slane %v511, 7
      %v1928 = vor.u32 %v1926, %v1927
      %v1929 = vrot.slane %v1928, 4
      %v1930 = vrot.slane %v521, 6
      %v1931 = vrot.slane %v517, 7
      %v1932 = vor.u32 %v1930, %v1931
      %v1933 = vsel %vm1834, %v1929, %v1932
      %v1934 = vrot.slane %v1932, 4
      %v1935 = vrot.slane %v1327, 6
      %v1936 = vrot.slane %v527, 7
      %v1937 = vor.u32 %v1935, %v1936
      %v1938 = vsel %vm1834, %v1934, %v1937
      %v1939 = vrot.slane %v532, 6
      %v1940 = vrot.slane %v535, 7
      %v1941 = vor.u32 %v1939, %v1940
      %v1942 = vrot.slane %v1941, 4
      %v1943 = vrot.slane %v545, 6
      %v1944 = vrot.slane %v541, 7
      %v1945 = vor.u32 %v1943, %v1944
      %v1946 = vsel %vm1834, %v1942, %v1945
      %v1947 = vrot.slane %v1945, 4
      %v1948 = vrot.slane %v1342, 6
      %v1949 = vrot.slane %v551, 7
      %v1950 = vor.u32 %v1948, %v1949
      %v1951 = vsel %vm1834, %v1947, %v1950
      %v1952 = vrot.slane %v556, 6
      %v1953 = vrot.slane %v559, 7
      %v1954 = vor.u32 %v1952, %v1953
      %v1955 = vrot.slane %v1954, 4
      %v1956 = vrot.slane %v569, 6
      %v1957 = vrot.slane %v565, 7
      %v1958 = vor.u32 %v1956, %v1957
      %v1959 = vsel %vm1834, %v1955, %v1958
      %v1960 = vrot.slane %v1958, 4
      %v1961 = vrot.slane %v1357, 6
      %v1962 = vrot.slane %v575, 7
      %v1963 = vor.u32 %v1961, %v1962
      %v1964 = vsel %vm1834, %v1960, %v1963
      %v1965 = vrot.slane %v580, 6
      %v1966 = vrot.slane %v583, 7
      %v1967 = vor.u32 %v1965, %v1966
      %v1968 = vrot.slane %v1967, 4
      %v1969 = vrot.slane %v593, 6
      %v1970 = vrot.slane %v589, 7
      %v1971 = vor.u32 %v1969, %v1970
      %v1972 = vsel %vm1834, %v1968, %v1971
      %v1973 = vrot.slane %v1971, 4
      %v1974 = vrot.slane %v1372, 6
      %v1975 = vrot.slane %v599, 7
      %v1976 = vor.u32 %v1974, %v1975
      %v1977 = vsel %vm1834, %v1973, %v1976
      %v1978 = vrot.slane %v604, 6
      %v1979 = vrot.slane %v607, 7
      %v1980 = vor.u32 %v1978, %v1979
      %v1981 = vrot.slane %v1980, 4
      %v1982 = vrot.slane %v617, 6
      %v1983 = vrot.slane %v613, 7
      %v1984 = vor.u32 %v1982, %v1983
      %v1985 = vsel %vm1834, %v1981, %v1984
      %v1986 = vrot.slane %v1984, 4
      %v1987 = vrot.slane %v1387, 6
      %v1988 = vrot.slane %v623, 7
      %v1989 = vor.u32 %v1987, %v1988
      %v1990 = vsel %vm1834, %v1986, %v1989
      %v1991 = vrot.slane %v628, 6
      %v1992 = vrot.slane %v631, 7
      %v1993 = vor.u32 %v1991, %v1992
      %v1994 = vrot.slane %v1993, 4
      %v1995 = vrot.slane %v641, 6
      %v1996 = vrot.slane %v637, 7
      %v1997 = vor.u32 %v1995, %v1996
      %v1998 = vsel %vm1834, %v1994, %v1997
      %v1999 = vrot.slane %v1997, 4
      %v2000 = vrot.slane %v1402, 6
      %v2001 = vrot.slane %v647, 7
      %v2002 = vor.u32 %v2000, %v2001
      %v2003 = vsel %vm1834, %v1999, %v2002
      %v2004 = vrot.slane %v652, 6
      %v2005 = vrot.slane %v655, 7
      %v2006 = vor.u32 %v2004, %v2005
      %v2007 = vrot.slane %v2006, 4
      %v2008 = vrot.slane %v665, 6
      %v2009 = vrot.slane %v661, 7
      %v2010 = vor.u32 %v2008, %v2009
      %v2011 = vsel %vm1834, %v2007, %v2010
      %v2012 = vrot.slane %v2010, 4
      %v2013 = vrot.slane %v1417, 6
      %v2014 = vrot.slane %v671, 7
      %v2015 = vor.u32 %v2013, %v2014
      %v2016 = vsel %vm1834, %v2012, %v2015
      %v2017 = vrot.slane %v676, 6
      %v2018 = vrot.slane %v679, 7
      %v2019 = vor.u32 %v2017, %v2018
      %v2020 = vrot.slane %v2019, 4
      %v2021 = vrot.slane %v689, 6
      %v2022 = vrot.slane %v685, 7
      %v2023 = vor.u32 %v2021, %v2022
      %v2024 = vsel %vm1834, %v2020, %v2023
      %v2025 = vrot.slane %v2023, 4
      %v2026 = vrot.slane %v1432, 6
      %v2027 = vrot.slane %v695, 7
      %v2028 = vor.u32 %v2026, %v2027
      %v2029 = vsel %vm1834, %v2025, %v2028
      %v2030 = vrot.slane %v700, 6
      %v2031 = vrot.slane %v703, 7
      %v2032 = vor.u32 %v2030, %v2031
      %v2033 = vrot.slane %v2032, 4
      %v2034 = vrot.slane %v713, 6
      %v2035 = vrot.slane %v709, 7
      %v2036 = vor.u32 %v2034, %v2035
      %v2037 = vsel %vm1834, %v2033, %v2036
      %v2038 = vrot.slane %v2036, 4
      %v2039 = vrot.slane %v1447, 6
      %v2040 = vrot.slane %v719, 7
      %v2041 = vor.u32 %v2039, %v2040
      %v2042 = vsel %vm1834, %v2038, %v2041
      %v2043 = vrot.slane %v724, 6
      %v2044 = vrot.slane %v727, 7
      %v2045 = vor.u32 %v2043, %v2044
      %v2046 = vrot.slane %v2045, 4
      %v2047 = vrot.slane %v737, 6
      %v2048 = vrot.slane %v733, 7
      %v2049 = vor.u32 %v2047, %v2048
      %v2050 = vsel %vm1834, %v2046, %v2049
      %v2051 = vrot.slane %v2049, 4
      %v2052 = vrot.slane %v1462, 6
      %v2053 = vrot.slane %v743, 7
      %v2054 = vor.u32 %v2052, %v2053
      %v2055 = vsel %vm1834, %v2051, %v2054
      %v2056 = vrot.slane %v748, 6
      %v2057 = vrot.slane %v751, 7
      %v2058 = vor.u32 %v2056, %v2057
      %v2059 = vrot.slane %v2058, 4
      %v2060 = vrot.slane %v761, 6
      %v2061 = vrot.slane %v757, 7
      %v2062 = vor.u32 %v2060, %v2061
      %v2063 = vsel %vm1834, %v2059, %v2062
      %v2064 = vrot.slane %v2062, 4
      %v2065 = vrot.slane %v1477, 6
      %v2066 = vrot.slane %v767, 7
      %v2067 = vor.u32 %v2065, %v2066
      %v2068 = vsel %vm1834, %v2064, %v2067
      %v2069 = vrot.slane %v772, 6
      %v2070 = vrot.slane %v775, 7
      %v2071 = vor.u32 %v2069, %v2070
      %v2072 = vrot.slane %v2071, 4
      %v2073 = vrot.slane %v785, 6
      %v2074 = vrot.slane %v781, 7
      %v2075 = vor.u32 %v2073, %v2074
      %v2076 = vsel %vm1834, %v2072, %v2075
      %v2077 = vrot.slane %v2075, 4
      %v2078 = vrot.slane %v1492, 6
      %v2079 = vrot.slane %v791, 7
      %v2080 = vor.u32 %v2078, %v2079
      %v2081 = vsel %vm1834, %v2077, %v2080
      %v2082 = vrot.slane %v796, 6
      %v2083 = vrot.slane %v799, 7
      %v2084 = vor.u32 %v2082, %v2083
      %v2085 = vrot.slane %v2084, 4
      %v2086 = vrot.slane %v809, 6
      %v2087 = vrot.slane %v805, 7
      %v2088 = vor.u32 %v2086, %v2087
      %v2089 = vsel %vm1834, %v2085, %v2088
      %v2090 = vrot.slane %v2088, 4
      %v2091 = vrot.slane %v1507, 6
      %v2092 = vrot.slane %v815, 7
      %v2093 = vor.u32 %v2091, %v2092
      %v2094 = vsel %vm1834, %v2090, %v2093
      %v2095 = vrot.slane %v820, 6
      %v2096 = vrot.slane %v823, 7
      %v2097 = vor.u32 %v2095, %v2096
      %v2098 = vrot.slane %v2097, 4
      %v2099 = vrot.slane %v833, 6
      %v2100 = vrot.slane %v829, 7
      %v2101 = vor.u32 %v2099, %v2100
      %v2102 = vsel %vm1834, %v2098, %v2101
      %v2103 = vrot.slane %v2101, 4
      %v2104 = vrot.slane %v1522, 6
      %v2105 = vrot.slane %v839, 7
      %v2106 = vor.u32 %v2104, %v2105
      %v2107 = vsel %vm1834, %v2103, %v2106
      %v2108 = vrot.slane %v844, 6
      %v2109 = vrot.slane %v847, 7
      %v2110 = vor.u32 %v2108, %v2109
      %v2111 = vrot.slane %v2110, 4
      %v2112 = vrot.slane %v857, 6
      %v2113 = vrot.slane %v853, 7
      %v2114 = vor.u32 %v2112, %v2113
      %v2115 = vsel %vm1834, %v2111, %v2114
      %v2116 = vrot.slane %v2114, 4
      %v2117 = vrot.slane %v1537, 6
      %v2118 = vrot.slane %v863, 7
      %v2119 = vor.u32 %v2117, %v2118
      %v2120 = vsel %vm1834, %v2116, %v2119
      %v2121 = vrot.slane %v868, 6
      %v2122 = vrot.slane %v871, 7
      %v2123 = vor.u32 %v2121, %v2122
      %v2124 = vrot.slane %v2123, 4
      %v2125 = vrot.slane %v881, 6
      %v2126 = vrot.slane %v877, 7
      %v2127 = vor.u32 %v2125, %v2126
      %v2128 = vsel %vm1834, %v2124, %v2127
      %v2129 = vrot.slane %v2127, 4
      %v2130 = vrot.slane %v1552, 6
      %v2131 = vrot.slane %v887, 7
      %v2132 = vor.u32 %v2130, %v2131
      %v2133 = vsel %vm1834, %v2129, %v2132
      %v2134 = vrot.slane %v892, 6
      %v2135 = vrot.slane %v895, 7
      %v2136 = vor.u32 %v2134, %v2135
      %v2137 = vrot.slane %v2136, 4
      %v2138 = vrot.slane %v905, 6
      %v2139 = vrot.slane %v901, 7
      %v2140 = vor.u32 %v2138, %v2139
      %v2141 = vsel %vm1834, %v2137, %v2140
      %v2142 = vrot.slane %v2140, 4
      %v2143 = vrot.slane %v1567, 6
      %v2144 = vrot.slane %v911, 7
      %v2145 = vor.u32 %v2143, %v2144
      %v2146 = vsel %vm1834, %v2142, %v2145
      %v2147 = vrot.slane %v916, 6
      %v2148 = vrot.slane %v919, 7
      %v2149 = vor.u32 %v2147, %v2148
      %v2150 = vrot.slane %v2149, 4
      %v2151 = vrot.slane %v929, 6
      %v2152 = vrot.slane %v925, 7
      %v2153 = vor.u32 %v2151, %v2152
      %v2154 = vsel %vm1834, %v2150, %v2153
      %v2155 = vrot.slane %v2153, 4
      %v2156 = vrot.slane %v1582, 6
      %v2157 = vrot.slane %v935, 7
      %v2158 = vor.u32 %v2156, %v2157
      %v2159 = vsel %vm1834, %v2155, %v2158
      %v2160 = vrot.slane %v940, 6
      %v2161 = vrot.slane %v943, 7
      %v2162 = vor.u32 %v2160, %v2161
      %v2163 = vrot.slane %v2162, 4
      %v2164 = vrot.slane %v953, 6
      %v2165 = vrot.slane %v949, 7
      %v2166 = vor.u32 %v2164, %v2165
      %v2167 = vsel %vm1834, %v2163, %v2166
      %v2168 = vrot.slane %v2166, 4
      %v2169 = vrot.slane %v1597, 6
      %v2170 = vrot.slane %v959, 7
      %v2171 = vor.u32 %v2169, %v2170
      %v2172 = vsel %vm1834, %v2168, %v2171
      %v2173 = vrot.slane %v964, 6
      %v2174 = vrot.slane %v967, 7
      %v2175 = vor.u32 %v2173, %v2174
      %v2176 = vrot.slane %v2175, 4
      %v2177 = vrot.slane %v977, 6
      %v2178 = vrot.slane %v973, 7
      %v2179 = vor.u32 %v2177, %v2178
      %v2180 = vsel %vm1834, %v2176, %v2179
      %v2181 = vrot.slane %v2179, 4
      %v2182 = vrot.slane %v1612, 6
      %v2183 = vrot.slane %v983, 7
      %v2184 = vor.u32 %v2182, %v2183
      %v2185 = vsel %vm1834, %v2181, %v2184
      %v2186 = vrot.slane %v988, 6
      %v2187 = vrot.slane %v991, 7
      %v2188 = vor.u32 %v2186, %v2187
      %v2189 = vrot.slane %v2188, 4
      %v2190 = vrot.slane %v1001, 6
      %v2191 = vrot.slane %v997, 7
      %v2192 = vor.u32 %v2190, %v2191
      %v2193 = vsel %vm1834, %v2189, %v2192
      %v2194 = vrot.slane %v2192, 4
      %v2195 = vrot.slane %v1627, 6
      %v2196 = vrot.slane %v1007, 7
      %v2197 = vor.u32 %v2195, %v2196
      %v2198 = vsel %vm1834, %v2194, %v2197
      %vm2199 = vcmask 1040384
      %vm2200 = vcmask 1044484
      %vm2201 = vmor %vm2199, %vm2200
      %v2202 = vrot.slane %v168, 7
      %v2203 = vrot.slane %v2202, 4
      %v2204 = vrot.slane %v169, 7
      %v2205 = vsel %vm2201, %v2203, %v2204
      %v2206 = vrot.slane %v2204, 4
      %v2207 = vrot.slane %v170, 7
      %v2208 = vsel %vm2201, %v2206, %v2207
      %v2209 = vrot.slane %v171, 7
      %v2210 = vrot.slane %v2209, 4
      %v2211 = vrot.slane %v172, 7
      %v2212 = vsel %vm2201, %v2210, %v2211
      %v2213 = vrot.slane %v2211, 4
      %v2214 = vrot.slane %v173, 7
      %v2215 = vsel %vm2201, %v2213, %v2214
      %v2216 = vrot.slane %v174, 7
      %v2217 = vrot.slane %v2216, 4
      %v2218 = vrot.slane %v175, 7
      %v2219 = vsel %vm2201, %v2217, %v2218
      %v2220 = vrot.slane %v2218, 4
      %v2221 = vrot.slane %v176, 7
      %v2222 = vsel %vm2201, %v2220, %v2221
      %v2223 = vrot.slane %v177, 7
      %v2224 = vrot.slane %v2223, 4
      %v2225 = vrot.slane %v178, 7
      %v2226 = vsel %vm2201, %v2224, %v2225
      %v2227 = vrot.slane %v2225, 4
      %v2228 = vrot.slane %v179, 7
      %v2229 = vsel %vm2201, %v2227, %v2228
      %v2230 = vrot.slane %v193, 7
      %v2231 = vrot.slane %v2230, 4
      %v2232 = vrot.slane %v195, 7
      %v2233 = vsel %vm2201, %v2231, %v2232
      %v2234 = vrot.slane %v2232, 4
      %v2235 = vrot.slane %v197, 7
      %v2236 = vsel %vm2201, %v2234, %v2235
      %v2237 = vrot.slane %v199, 7
      %v2238 = vrot.slane %v2237, 4
      %v2239 = vrot.slane %v201, 7
      %v2240 = vsel %vm2201, %v2238, %v2239
      %v2241 = vrot.slane %v2239, 4
      %v2242 = vrot.slane %v203, 7
      %v2243 = vsel %vm2201, %v2241, %v2242
      %v2244 = vrot.slane %v205, 7
      %v2245 = vrot.slane %v2244, 4
      %v2246 = vrot.slane %v207, 7
      %v2247 = vsel %vm2201, %v2245, %v2246
      %v2248 = vrot.slane %v2246, 4
      %v2249 = vrot.slane %v209, 7
      %v2250 = vsel %vm2201, %v2248, %v2249
      %v2251 = vrot.slane %v211, 7
      %v2252 = vrot.slane %v2251, 4
      %v2253 = vrot.slane %v213, 7
      %v2254 = vsel %vm2201, %v2252, %v2253
      %v2255 = vrot.slane %v2253, 4
      %v2256 = vrot.slane %v215, 7
      %v2257 = vsel %vm2201, %v2255, %v2256
      %v2258 = vrot.slane %v217, 7
      %v2259 = vrot.slane %v2258, 4
      %v2260 = vrot.slane %v219, 7
      %v2261 = vsel %vm2201, %v2259, %v2260
      %v2262 = vrot.slane %v2260, 4
      %v2263 = vrot.slane %v221, 7
      %v2264 = vsel %vm2201, %v2262, %v2263
      %v2265 = vrot.slane %v223, 7
      %v2266 = vrot.slane %v2265, 4
      %v2267 = vrot.slane %v225, 7
      %v2268 = vsel %vm2201, %v2266, %v2267
      %v2269 = vrot.slane %v2267, 4
      %v2270 = vrot.slane %v227, 7
      %v2271 = vsel %vm2201, %v2269, %v2270
      %v2272 = vrot.slane %v229, 7
      %v2273 = vrot.slane %v2272, 4
      %v2274 = vrot.slane %v231, 7
      %v2275 = vsel %vm2201, %v2273, %v2274
      %v2276 = vrot.slane %v2274, 4
      %v2277 = vrot.slane %v233, 7
      %v2278 = vsel %vm2201, %v2276, %v2277
      %v2279 = vrot.slane %v235, 7
      %v2280 = vrot.slane %v2279, 4
      %v2281 = vrot.slane %v237, 7
      %v2282 = vsel %vm2201, %v2280, %v2281
      %v2283 = vrot.slane %v2281, 4
      %v2284 = vrot.slane %v239, 7
      %v2285 = vsel %vm2201, %v2283, %v2284
      %v2286 = vrot.slane %v241, 7
      %v2287 = vrot.slane %v2286, 4
      %v2288 = vrot.slane %v243, 7
      %v2289 = vsel %vm2201, %v2287, %v2288
      %v2290 = vrot.slane %v2288, 4
      %v2291 = vrot.slane %v245, 7
      %v2292 = vsel %vm2201, %v2290, %v2291
      %v2293 = vrot.slane %v247, 7
      %v2294 = vrot.slane %v2293, 4
      %v2295 = vrot.slane %v249, 7
      %v2296 = vsel %vm2201, %v2294, %v2295
      %v2297 = vrot.slane %v2295, 4
      %v2298 = vrot.slane %v251, 7
      %v2299 = vsel %vm2201, %v2297, %v2298
      %v2300 = vrot.slane %v253, 7
      %v2301 = vrot.slane %v2300, 4
      %v2302 = vrot.slane %v255, 7
      %v2303 = vsel %vm2201, %v2301, %v2302
      %v2304 = vrot.slane %v2302, 4
      %v2305 = vrot.slane %v257, 7
      %v2306 = vsel %vm2201, %v2304, %v2305
      %v2307 = vrot.slane %v259, 7
      %v2308 = vrot.slane %v2307, 4
      %v2309 = vrot.slane %v261, 7
      %v2310 = vsel %vm2201, %v2308, %v2309
      %v2311 = vrot.slane %v2309, 4
      %v2312 = vrot.slane %v263, 7
      %v2313 = vsel %vm2201, %v2311, %v2312
      %v2314 = vrot.slane %v265, 7
      %v2315 = vrot.slane %v2314, 4
      %v2316 = vrot.slane %v267, 7
      %v2317 = vsel %vm2201, %v2315, %v2316
      %v2318 = vrot.slane %v2316, 4
      %v2319 = vrot.slane %v269, 7
      %v2320 = vsel %vm2201, %v2318, %v2319
      %v2321 = vrot.slane %v271, 7
      %v2322 = vrot.slane %v2321, 4
      %v2323 = vrot.slane %v273, 7
      %v2324 = vsel %vm2201, %v2322, %v2323
      %v2325 = vrot.slane %v2323, 4
      %v2326 = vrot.slane %v275, 7
      %v2327 = vsel %vm2201, %v2325, %v2326
      %v2328 = vrot.slane %v277, 7
      %v2329 = vrot.slane %v2328, 4
      %v2330 = vrot.slane %v279, 7
      %v2331 = vsel %vm2201, %v2329, %v2330
      %v2332 = vrot.slane %v2330, 4
      %v2333 = vrot.slane %v281, 7
      %v2334 = vsel %vm2201, %v2332, %v2333
      %v2335 = vrot.slane %v283, 7
      %v2336 = vrot.slane %v2335, 4
      %v2337 = vrot.slane %v285, 7
      %v2338 = vsel %vm2201, %v2336, %v2337
      %v2339 = vrot.slane %v2337, 4
      %v2340 = vrot.slane %v287, 7
      %v2341 = vsel %vm2201, %v2339, %v2340
      %v2342 = vrot.slane %v289, 7
      %v2343 = vrot.slane %v2342, 4
      %v2344 = vrot.slane %v291, 7
      %v2345 = vsel %vm2201, %v2343, %v2344
      %v2346 = vrot.slane %v2344, 4
      %v2347 = vrot.slane %v293, 7
      %v2348 = vsel %vm2201, %v2346, %v2347
      %v2349 = vrot.slane %v295, 7
      %v2350 = vrot.slane %v2349, 4
      %v2351 = vrot.slane %v297, 7
      %v2352 = vsel %vm2201, %v2350, %v2351
      %v2353 = vrot.slane %v2351, 4
      %v2354 = vrot.slane %v299, 7
      %v2355 = vsel %vm2201, %v2353, %v2354
      %v2356 = vrot.slane %v301, 7
      %v2357 = vrot.slane %v2356, 4
      %v2358 = vrot.slane %v303, 7
      %v2359 = vsel %vm2201, %v2357, %v2358
      %v2360 = vrot.slane %v2358, 4
      %v2361 = vrot.slane %v305, 7
      %v2362 = vsel %vm2201, %v2360, %v2361
      %v2363 = vrot.slane %v307, 7
      %v2364 = vrot.slane %v2363, 4
      %v2365 = vrot.slane %v309, 7
      %v2366 = vsel %vm2201, %v2364, %v2365
      %v2367 = vrot.slane %v2365, 4
      %v2368 = vrot.slane %v311, 7
      %v2369 = vsel %vm2201, %v2367, %v2368
      %v2370 = vrot.slane %v313, 7
      %v2371 = vrot.slane %v2370, 4
      %v2372 = vrot.slane %v315, 7
      %v2373 = vsel %vm2201, %v2371, %v2372
      %v2374 = vrot.slane %v2372, 4
      %v2375 = vrot.slane %v317, 7
      %v2376 = vsel %vm2201, %v2374, %v2375
      %v2377 = vrot.slane %v319, 7
      %v2378 = vrot.slane %v2377, 4
      %v2379 = vrot.slane %v321, 7
      %v2380 = vsel %vm2201, %v2378, %v2379
      %v2381 = vrot.slane %v2379, 4
      %v2382 = vrot.slane %v323, 7
      %v2383 = vsel %vm2201, %v2381, %v2382
      %v2384 = vrot.slane %v325, 7
      %v2385 = vrot.slane %v2384, 4
      %v2386 = vrot.slane %v327, 7
      %v2387 = vsel %vm2201, %v2385, %v2386
      %v2388 = vrot.slane %v2386, 4
      %v2389 = vrot.slane %v329, 7
      %v2390 = vsel %vm2201, %v2388, %v2389
      %v2391 = vrot.slane %v331, 7
      %v2392 = vrot.slane %v2391, 4
      %v2393 = vrot.slane %v333, 7
      %v2394 = vsel %vm2201, %v2392, %v2393
      %v2395 = vrot.slane %v2393, 4
      %v2396 = vrot.slane %v335, 7
      %v2397 = vsel %vm2201, %v2395, %v2396
      %v2398 = vunpack.c.l.b16 %v168
      %v2399 = vunpack.c.l.b16 %v171
      %v2400 = vunpack.c.l.b16 %v174
      %v2401 = vunpack.c.l.b16 %v177
      %v2402 = vunpack.c.l.b16 %v193
      %v2403 = vunpack.c.l.b16 %v199
      %v2404 = vunpack.c.l.b16 %v205
      %v2405 = vunpack.c.l.b16 %v211
      %v2406 = vunpack.c.l.b16 %v217
      %v2407 = vunpack.c.l.b16 %v223
      %v2408 = vunpack.c.l.b16 %v229
      %v2409 = vunpack.c.l.b16 %v235
      %v2410 = vunpack.c.l.b16 %v241
      %v2411 = vunpack.c.l.b16 %v247
      %v2412 = vunpack.c.l.b16 %v253
      %v2413 = vunpack.c.l.b16 %v259
      %v2414 = vunpack.c.l.b16 %v265
      %v2415 = vunpack.c.l.b16 %v271
      %v2416 = vunpack.c.l.b16 %v277
      %v2417 = vunpack.c.l.b16 %v283
      %v2418 = vunpack.c.l.b16 %v289
      %v2419 = vunpack.c.l.b16 %v295
      %v2420 = vunpack.c.l.b16 %v301
      %v2421 = vunpack.c.l.b16 %v307
      %v2422 = vunpack.c.l.b16 %v313
      %v2423 = vunpack.c.l.b16 %v319
      %v2424 = vunpack.c.l.b16 %v325
      %v2425 = vunpack.c.l.b16 %v331
      %v2426 = vunpack.c.l.b16 %v352
      %v2427 = vunpack.c.l.b16 %v376
      %v2428 = vunpack.c.l.b16 %v400
      %v2429 = vunpack.c.l.b16 %v424
      %v2430 = vunpack.c.l.b16 %v448
      %v2431 = vunpack.c.l.b16 %v472
      %v2432 = vunpack.c.l.b16 %v496
      %v2433 = vunpack.c.l.b16 %v520
      %v2434 = vunpack.c.l.b16 %v544
      %v2435 = vunpack.c.l.b16 %v568
      %v2436 = vunpack.c.l.b16 %v592
      %v2437 = vunpack.c.l.b16 %v616
      %v2438 = vunpack.c.l.b16 %v640
      %v2439 = vunpack.c.l.b16 %v664
      %v2440 = vunpack.c.l.b16 %v688
      %v2441 = vunpack.c.l.b16 %v712
      %v2442 = vunpack.c.l.b16 %v736
      %v2443 = vunpack.c.l.b16 %v760
      %v2444 = vunpack.c.l.b16 %v784
      %v2445 = vunpack.c.l.b16 %v808
      %v2446 = vunpack.c.l.b16 %v832
      %v2447 = vunpack.c.l.b16 %v856
      %v2448 = vunpack.c.l.b16 %v880
      %v2449 = vunpack.c.l.b16 %v904
      %v2450 = vunpack.c.l.b16 %v928
      %v2451 = vunpack.c.l.b16 %v952
      %v2452 = vunpack.c.l.b16 %v976
      %v2453 = vunpack.c.l.b16 %v1000
      %v2454 = vunpack.c.l.b16 %v1017
      %v2455 = vunpack.c.l.b16 %v1024
      %v2456 = vunpack.c.l.b16 %v1031
      %v2457 = vunpack.c.l.b16 %v1038
      %v2458 = vunpack.c.l.b16 %v1045
      %v2459 = vunpack.c.l.b16 %v1052
      %v2460 = vunpack.c.l.b16 %v1059
      %v2461 = vunpack.c.l.b16 %v1066
      %v2462 = vunpack.c.l.b16 %v1073
      %v2463 = vunpack.c.l.b16 %v1080
      %v2464 = vunpack.c.l.b16 %v1087
      %v2465 = vunpack.c.l.b16 %v1094
      %v2466 = vunpack.c.l.b16 %v1101
      %v2467 = vunpack.c.l.b16 %v1108
      %v2468 = vunpack.c.l.b16 %v1115
      %v2469 = vunpack.c.l.b16 %v1122
      %v2470 = vunpack.c.l.b16 %v1129
      %v2471 = vunpack.c.l.b16 %v1136
      %v2472 = vunpack.c.l.b16 %v1143
      %v2473 = vunpack.c.l.b16 %v1150
      %v2474 = vunpack.c.l.b16 %v1157
      %v2475 = vunpack.c.l.b16 %v1164
      %v2476 = vunpack.c.l.b16 %v1171
      %v2477 = vunpack.c.l.b16 %v1178
      %v2478 = vunpack.c.l.b16 %v1185
      %v2479 = vunpack.c.l.b16 %v1192
      %v2480 = vunpack.c.l.b16 %v1199
      %v2481 = vunpack.c.l.b16 %v1206
      %v2482 = vunpack.c.l.b16 %v1220
      %v2483 = vunpack.c.l.b16 %v1235
      %v2484 = vunpack.c.l.b16 %v1250
      %v2485 = vunpack.c.l.b16 %v1265
      %v2486 = vunpack.c.l.b16 %v1280
      %v2487 = vunpack.c.l.b16 %v1295
      %v2488 = vunpack.c.l.b16 %v1310
      %v2489 = vunpack.c.l.b16 %v1325
      %v2490 = vunpack.c.l.b16 %v1340
      %v2491 = vunpack.c.l.b16 %v1355
      %v2492 = vunpack.c.l.b16 %v1370
      %v2493 = vunpack.c.l.b16 %v1385
      %v2494 = vunpack.c.l.b16 %v1400
      %v2495 = vunpack.c.l.b16 %v1415
      %v2496 = vunpack.c.l.b16 %v1430
      %v2497 = vunpack.c.l.b16 %v1445
      %v2498 = vunpack.c.l.b16 %v1460
      %v2499 = vunpack.c.l.b16 %v1475
      %v2500 = vunpack.c.l.b16 %v1490
      %v2501 = vunpack.c.l.b16 %v1505
      %v2502 = vunpack.c.l.b16 %v1520
      %v2503 = vunpack.c.l.b16 %v1535
      %v2504 = vunpack.c.l.b16 %v1550
      %v2505 = vunpack.c.l.b16 %v1565
      %v2506 = vunpack.c.l.b16 %v1580
      %v2507 = vunpack.c.l.b16 %v1595
      %v2508 = vunpack.c.l.b16 %v1610
      %v2509 = vunpack.c.l.b16 %v1625
      %v2510 = vunpack.c.l.b16 %v1639
      %v2511 = vunpack.c.l.b16 %v1646
      %v2512 = vunpack.c.l.b16 %v1653
      %v2513 = vunpack.c.l.b16 %v1660
      %v2514 = vunpack.c.l.b16 %v1667
      %v2515 = vunpack.c.l.b16 %v1674
      %v2516 = vunpack.c.l.b16 %v1681
      %v2517 = vunpack.c.l.b16 %v1688
      %v2518 = vunpack.c.l.b16 %v1695
      %v2519 = vunpack.c.l.b16 %v1702
      %v2520 = vunpack.c.l.b16 %v1709
      %v2521 = vunpack.c.l.b16 %v1716
      %v2522 = vunpack.c.l.b16 %v1723
      %v2523 = vunpack.c.l.b16 %v1730
      %v2524 = vunpack.c.l.b16 %v1737
      %v2525 = vunpack.c.l.b16 %v1744
      %v2526 = vunpack.c.l.b16 %v1751
      %v2527 = vunpack.c.l.b16 %v1758
      %v2528 = vunpack.c.l.b16 %v1765
      %v2529 = vunpack.c.l.b16 %v1772
      %v2530 = vunpack.c.l.b16 %v1779
      %v2531 = vunpack.c.l.b16 %v1786
      %v2532 = vunpack.c.l.b16 %v1793
      %v2533 = vunpack.c.l.b16 %v1800
      %v2534 = vunpack.c.l.b16 %v1807
      %v2535 = vunpack.c.l.b16 %v1814
      %v2536 = vunpack.c.l.b16 %v1821
      %v2537 = vunpack.c.l.b16 %v1828
      %v2538 = vunpack.c.l.b16 %v1842
      %v2539 = vunpack.c.l.b16 %v1855
      %v2540 = vunpack.c.l.b16 %v1868
      %v2541 = vunpack.c.l.b16 %v1881
      %v2542 = vunpack.c.l.b16 %v1894
      %v2543 = vunpack.c.l.b16 %v1907
      %v2544 = vunpack.c.l.b16 %v1920
      %v2545 = vunpack.c.l.b16 %v1933
      %v2546 = vunpack.c.l.b16 %v1946
      %v2547 = vunpack.c.l.b16 %v1959
      %v2548 = vunpack.c.l.b16 %v1972
      %v2549 = vunpack.c.l.b16 %v1985
      %v2550 = vunpack.c.l.b16 %v1998
      %v2551 = vunpack.c.l.b16 %v2011
      %v2552 = vunpack.c.l.b16 %v2024
      %v2553 = vunpack.c.l.b16 %v2037
      %v2554 = vunpack.c.l.b16 %v2050
      %v2555 = vunpack.c.l.b16 %v2063
      %v2556 = vunpack.c.l.b16 %v2076
      %v2557 = vunpack.c.l.b16 %v2089
      %v2558 = vunpack.c.l.b16 %v2102
      %v2559 = vunpack.c.l.b16 %v2115
      %v2560 = vunpack.c.l.b16 %v2128
      %v2561 = vunpack.c.l.b16 %v2141
      %v2562 = vunpack.c.l.b16 %v2154
      %v2563 = vunpack.c.l.b16 %v2167
      %v2564 = vunpack.c.l.b16 %v2180
      %v2565 = vunpack.c.l.b16 %v2193
      %v2566 = vunpack.c.l.b16 %v2205
      %v2567 = vunpack.c.l.b16 %v2212
      %v2568 = vunpack.c.l.b16 %v2219
      %v2569 = vunpack.c.l.b16 %v2226
      %v2570 = vunpack.c.l.b16 %v2233
      %v2571 = vunpack.c.l.b16 %v2240
      %v2572 = vunpack.c.l.b16 %v2247
      %v2573 = vunpack.c.l.b16 %v2254
      %v2574 = vunpack.c.l.b16 %v2261
      %v2575 = vunpack.c.l.b16 %v2268
      %v2576 = vunpack.c.l.b16 %v2275
      %v2577 = vunpack.c.l.b16 %v2282
      %v2578 = vunpack.c.l.b16 %v2289
      %v2579 = vunpack.c.l.b16 %v2296
      %v2580 = vunpack.c.l.b16 %v2303
      %v2581 = vunpack.c.l.b16 %v2310
      %v2582 = vunpack.c.l.b16 %v2317
      %v2583 = vunpack.c.l.b16 %v2324
      %v2584 = vunpack.c.l.b16 %v2331
      %v2585 = vunpack.c.l.b16 %v2338
      %v2586 = vunpack.c.l.b16 %v2345
      %v2587 = vunpack.c.l.b16 %v2352
      %v2588 = vunpack.c.l.b16 %v2359
      %v2589 = vunpack.c.l.b16 %v2366
      %v2590 = vunpack.c.l.b16 %v2373
      %v2591 = vunpack.c.l.b16 %v2380
      %v2592 = vunpack.c.l.b16 %v2387
      %v2593 = vunpack.c.l.b16 %v2394
      %v2594 = vpack.c.b16 %v2398, %v2398
      %v2595 = vpack.c.b16 %v2399, %v2399
      %v2596 = vpack.c.b16 %v2400, %v2400
      %v2597 = vpack.c.b16 %v2401, %v2401
      %v2598 = vpack.c.b16 %v2402, %v2402
      %v2599 = vpack.c.b16 %v2403, %v2403
      %v2600 = vpack.c.b16 %v2404, %v2404
      %v2601 = vpack.c.b16 %v2405, %v2405
      %v2602 = vpack.c.b16 %v2406, %v2406
      %v2603 = vpack.c.b16 %v2407, %v2407
      %v2604 = vpack.c.b16 %v2408, %v2408
      %v2605 = vpack.c.b16 %v2409, %v2409
      %v2606 = vpack.c.b16 %v2410, %v2410
      %v2607 = vpack.c.b16 %v2411, %v2411
      %v2608 = vpack.c.b16 %v2412, %v2412
      %v2609 = vpack.c.b16 %v2413, %v2413
      %v2610 = vpack.c.b16 %v2414, %v2414
      %v2611 = vpack.c.b16 %v2415, %v2415
      %v2612 = vpack.c.b16 %v2416, %v2416
      %v2613 = vpack.c.b16 %v2417, %v2417
      %v2614 = vpack.c.b16 %v2418, %v2418
      %v2615 = vpack.c.b16 %v2419, %v2419
      %v2616 = vpack.c.b16 %v2420, %v2420
      %v2617 = vpack.c.b16 %v2421, %v2421
      %v2618 = vpack.c.b16 %v2422, %v2422
      %v2619 = vpack.c.b16 %v2423, %v2423
      %v2620 = vpack.c.b16 %v2424, %v2424
      %v2621 = vpack.c.b16 %v2425, %v2425
      %v2622 = vpack.c.b16 %v2426, %v2426
      %v2623 = vpack.c.b16 %v2427, %v2427
      %v2624 = vpack.c.b16 %v2428, %v2428
      %v2625 = vpack.c.b16 %v2429, %v2429
      %v2626 = vpack.c.b16 %v2430, %v2430
      %v2627 = vpack.c.b16 %v2431, %v2431
      %v2628 = vpack.c.b16 %v2432, %v2432
      %v2629 = vpack.c.b16 %v2433, %v2433
      %v2630 = vpack.c.b16 %v2434, %v2434
      %v2631 = vpack.c.b16 %v2435, %v2435
      %v2632 = vpack.c.b16 %v2436, %v2436
      %v2633 = vpack.c.b16 %v2437, %v2437
      %v2634 = vpack.c.b16 %v2438, %v2438
      %v2635 = vpack.c.b16 %v2439, %v2439
      %v2636 = vpack.c.b16 %v2440, %v2440
      %v2637 = vpack.c.b16 %v2441, %v2441
      %v2638 = vpack.c.b16 %v2442, %v2442
      %v2639 = vpack.c.b16 %v2443, %v2443
      %v2640 = vpack.c.b16 %v2444, %v2444
      %v2641 = vpack.c.b16 %v2445, %v2445
      %v2642 = vpack.c.b16 %v2446, %v2446
      %v2643 = vpack.c.b16 %v2447, %v2447
      %v2644 = vpack.c.b16 %v2448, %v2448
      %v2645 = vpack.c.b16 %v2449, %v2449
      %v2646 = vpack.c.b16 %v2450, %v2450
      %v2647 = vpack.c.b16 %v2451, %v2451
      %v2648 = vpack.c.b16 %v2452, %v2452
      %v2649 = vpack.c.b16 %v2453, %v2453
      %v2650 = vpack.c.b16 %v2454, %v2454
      %v2651 = vpack.c.b16 %v2455, %v2455
      %v2652 = vpack.c.b16 %v2456, %v2456
      %v2653 = vpack.c.b16 %v2457, %v2457
      %v2654 = vpack.c.b16 %v2458, %v2458
      %v2655 = vpack.c.b16 %v2459, %v2459
      %v2656 = vpack.c.b16 %v2460, %v2460
      %v2657 = vpack.c.b16 %v2461, %v2461
      %v2658 = vpack.c.b16 %v2462, %v2462
      %v2659 = vpack.c.b16 %v2463, %v2463
      %v2660 = vpack.c.b16 %v2464, %v2464
      %v2661 = vpack.c.b16 %v2465, %v2465
      %v2662 = vpack.c.b16 %v2466, %v2466
      %v2663 = vpack.c.b16 %v2467, %v2467
      %v2664 = vpack.c.b16 %v2468, %v2468
      %v2665 = vpack.c.b16 %v2469, %v2469
      %v2666 = vpack.c.b16 %v2470, %v2470
      %v2667 = vpack.c.b16 %v2471, %v2471
      %v2668 = vpack.c.b16 %v2472, %v2472
      %v2669 = vpack.c.b16 %v2473, %v2473
      %v2670 = vpack.c.b16 %v2474, %v2474
      %v2671 = vpack.c.b16 %v2475, %v2475
      %v2672 = vpack.c.b16 %v2476, %v2476
      %v2673 = vpack.c.b16 %v2477, %v2477
      %v2674 = vpack.c.b16 %v2478, %v2478
      %v2675 = vpack.c.b16 %v2479, %v2479
      %v2676 = vpack.c.b16 %v2480, %v2480
      %v2677 = vpack.c.b16 %v2481, %v2481
      %v2678 = vpack.c.b16 %v2482, %v2482
      %v2679 = vpack.c.b16 %v2483, %v2483
      %v2680 = vpack.c.b16 %v2484, %v2484
      %v2681 = vpack.c.b16 %v2485, %v2485
      %v2682 = vpack.c.b16 %v2486, %v2486
      %v2683 = vpack.c.b16 %v2487, %v2487
      %v2684 = vpack.c.b16 %v2488, %v2488
      %v2685 = vpack.c.b16 %v2489, %v2489
      %v2686 = vpack.c.b16 %v2490, %v2490
      %v2687 = vpack.c.b16 %v2491, %v2491
      %v2688 = vpack.c.b16 %v2492, %v2492
      %v2689 = vpack.c.b16 %v2493, %v2493
      %v2690 = vpack.c.b16 %v2494, %v2494
      %v2691 = vpack.c.b16 %v2495, %v2495
      %v2692 = vpack.c.b16 %v2496, %v2496
      %v2693 = vpack.c.b16 %v2497, %v2497
      %v2694 = vpack.c.b16 %v2498, %v2498
      %v2695 = vpack.c.b16 %v2499, %v2499
      %v2696 = vpack.c.b16 %v2500, %v2500
      %v2697 = vpack.c.b16 %v2501, %v2501
      %v2698 = vpack.c.b16 %v2502, %v2502
      %v2699 = vpack.c.b16 %v2503, %v2503
      %v2700 = vpack.c.b16 %v2504, %v2504
      %v2701 = vpack.c.b16 %v2505, %v2505
      %v2702 = vpack.c.b16 %v2506, %v2506
      %v2703 = vpack.c.b16 %v2507, %v2507
      %v2704 = vpack.c.b16 %v2508, %v2508
      %v2705 = vpack.c.b16 %v2509, %v2509
      %v2706 = vpack.c.b16 %v2510, %v2510
      %v2707 = vpack.c.b16 %v2511, %v2511
      %v2708 = vpack.c.b16 %v2512, %v2512
      %v2709 = vpack.c.b16 %v2513, %v2513
      %v2710 = vpack.c.b16 %v2514, %v2514
      %v2711 = vpack.c.b16 %v2515, %v2515
      %v2712 = vpack.c.b16 %v2516, %v2516
      %v2713 = vpack.c.b16 %v2517, %v2517
      %v2714 = vpack.c.b16 %v2518, %v2518
      %v2715 = vpack.c.b16 %v2519, %v2519
      %v2716 = vpack.c.b16 %v2520, %v2520
      %v2717 = vpack.c.b16 %v2521, %v2521
      %v2718 = vpack.c.b16 %v2522, %v2522
      %v2719 = vpack.c.b16 %v2523, %v2523
      %v2720 = vpack.c.b16 %v2524, %v2524
      %v2721 = vpack.c.b16 %v2525, %v2525
      %v2722 = vpack.c.b16 %v2526, %v2526
      %v2723 = vpack.c.b16 %v2527, %v2527
      %v2724 = vpack.c.b16 %v2528, %v2528
      %v2725 = vpack.c.b16 %v2529, %v2529
      %v2726 = vpack.c.b16 %v2530, %v2530
      %v2727 = vpack.c.b16 %v2531, %v2531
      %v2728 = vpack.c.b16 %v2532, %v2532
      %v2729 = vpack.c.b16 %v2533, %v2533
      %v2730 = vpack.c.b16 %v2534, %v2534
      %v2731 = vpack.c.b16 %v2535, %v2535
      %v2732 = vpack.c.b16 %v2536, %v2536
      %v2733 = vpack.c.b16 %v2537, %v2537
      %v2734 = vpack.c.b16 %v2538, %v2538
      %v2735 = vpack.c.b16 %v2539, %v2539
      %v2736 = vpack.c.b16 %v2540, %v2540
      %v2737 = vpack.c.b16 %v2541, %v2541
      %v2738 = vpack.c.b16 %v2542, %v2542
      %v2739 = vpack.c.b16 %v2543, %v2543
      %v2740 = vpack.c.b16 %v2544, %v2544
      %v2741 = vpack.c.b16 %v2545, %v2545
      %v2742 = vpack.c.b16 %v2546, %v2546
      %v2743 = vpack.c.b16 %v2547, %v2547
      %v2744 = vpack.c.b16 %v2548, %v2548
      %v2745 = vpack.c.b16 %v2549, %v2549
      %v2746 = vpack.c.b16 %v2550, %v2550
      %v2747 = vpack.c.b16 %v2551, %v2551
      %v2748 = vpack.c.b16 %v2552, %v2552
      %v2749 = vpack.c.b16 %v2553, %v2553
      %v2750 = vpack.c.b16 %v2554, %v2554
      %v2751 = vpack.c.b16 %v2555, %v2555
      %v2752 = vpack.c.b16 %v2556, %v2556
      %v2753 = vpack.c.b16 %v2557, %v2557
      %v2754 = vpack.c.b16 %v2558, %v2558
      %v2755 = vpack.c.b16 %v2559, %v2559
      %v2756 = vpack.c.b16 %v2560, %v2560
      %v2757 = vpack.c.b16 %v2561, %v2561
      %v2758 = vpack.c.b16 %v2562, %v2562
      %v2759 = vpack.c.b16 %v2563, %v2563
      %v2760 = vpack.c.b16 %v2564, %v2564
      %v2761 = vpack.c.b16 %v2565, %v2565
      %v2762 = vpack.c.b16 %v2566, %v2566
      %v2763 = vpack.c.b16 %v2567, %v2567
      %v2764 = vpack.c.b16 %v2568, %v2568
      %v2765 = vpack.c.b16 %v2569, %v2569
      %v2766 = vpack.c.b16 %v2570, %v2570
      %v2767 = vpack.c.b16 %v2571, %v2571
      %v2768 = vpack.c.b16 %v2572, %v2572
      %v2769 = vpack.c.b16 %v2573, %v2573
      %v2770 = vpack.c.b16 %v2574, %v2574
      %v2771 = vpack.c.b16 %v2575, %v2575
      %v2772 = vpack.c.b16 %v2576, %v2576
      %v2773 = vpack.c.b16 %v2577, %v2577
      %v2774 = vpack.c.b16 %v2578, %v2578
      %v2775 = vpack.c.b16 %v2579, %v2579
      %v2776 = vpack.c.b16 %v2580, %v2580
      %v2777 = vpack.c.b16 %v2581, %v2581
      %v2778 = vpack.c.b16 %v2582, %v2582
      %v2779 = vpack.c.b16 %v2583, %v2583
      %v2780 = vpack.c.b16 %v2584, %v2584
      %v2781 = vpack.c.b16 %v2585, %v2585
      %v2782 = vpack.c.b16 %v2586, %v2586
      %v2783 = vpack.c.b16 %v2587, %v2587
      %v2784 = vpack.c.b16 %v2588, %v2588
      %v2785 = vpack.c.b16 %v2589, %v2589
      %v2786 = vpack.c.b16 %v2590, %v2590
      %v2787 = vpack.c.b16 %v2591, %v2591
      %v2788 = vpack.c.b16 %v2592, %v2592
      %v2789 = vpack.c.b16 %v2593, %v2593
      %v2790 = vunpack.c.l.b16 %v2594
      %v2791 = vunpack.c.l.b16 %v2595
      %v2792 = vunpack.c.l.b16 %v2596
      %v2793 = vunpack.c.l.b16 %v2597
      %v2794 = vunpack.c.l.b16 %v2598
      %v2795 = vunpack.c.l.b16 %v2599
      %v2796 = vunpack.c.l.b16 %v2600
      %v2797 = vunpack.c.l.b16 %v2601
      %v2798 = vunpack.c.l.b16 %v2602
      %v2799 = vunpack.c.l.b16 %v2603
      %v2800 = vunpack.c.l.b16 %v2604
      %v2801 = vunpack.c.l.b16 %v2605
      %v2802 = vunpack.c.l.b16 %v2606
      %v2803 = vunpack.c.l.b16 %v2607
      %v2804 = vunpack.c.l.b16 %v2608
      %v2805 = vunpack.c.l.b16 %v2609
      %v2806 = vunpack.c.l.b16 %v2610
      %v2807 = vunpack.c.l.b16 %v2611
      %v2808 = vunpack.c.l.b16 %v2612
      %v2809 = vunpack.c.l.b16 %v2613
      %v2810 = vunpack.c.l.b16 %v2614
      %v2811 = vunpack.c.l.b16 %v2615
      %v2812 = vunpack.c.l.b16 %v2616
      %v2813 = vunpack.c.l.b16 %v2617
      %v2814 = vunpack.c.l.b16 %v2618
      %v2815 = vunpack.c.l.b16 %v2619
      %v2816 = vunpack.c.l.b16 %v2620
      %v2817 = vunpack.c.l.b16 %v2621
      %v2818 = vunpack.c.l.b16 %v2622
      %v2819 = vunpack.c.l.b16 %v2623
      %v2820 = vunpack.c.l.b16 %v2624
      %v2821 = vunpack.c.l.b16 %v2625
      %v2822 = vunpack.c.l.b16 %v2626
      %v2823 = vunpack.c.l.b16 %v2627
      %v2824 = vunpack.c.l.b16 %v2628
      %v2825 = vunpack.c.l.b16 %v2629
      %v2826 = vunpack.c.l.b16 %v2630
      %v2827 = vunpack.c.l.b16 %v2631
      %v2828 = vunpack.c.l.b16 %v2632
      %v2829 = vunpack.c.l.b16 %v2633
      %v2830 = vunpack.c.l.b16 %v2634
      %v2831 = vunpack.c.l.b16 %v2635
      %v2832 = vunpack.c.l.b16 %v2636
      %v2833 = vunpack.c.l.b16 %v2637
      %v2834 = vunpack.c.l.b16 %v2638
      %v2835 = vunpack.c.l.b16 %v2639
      %v2836 = vunpack.c.l.b16 %v2640
      %v2837 = vunpack.c.l.b16 %v2641
      %v2838 = vunpack.c.l.b16 %v2642
      %v2839 = vunpack.c.l.b16 %v2643
      %v2840 = vunpack.c.l.b16 %v2644
      %v2841 = vunpack.c.l.b16 %v2645
      %v2842 = vunpack.c.l.b16 %v2646
      %v2843 = vunpack.c.l.b16 %v2647
      %v2844 = vunpack.c.l.b16 %v2648
      %v2845 = vunpack.c.l.b16 %v2649
      %v2846 = vunpack.c.l.b16 %v2650
      %v2847 = vunpack.c.l.b16 %v2651
      %v2848 = vunpack.c.l.b16 %v2652
      %v2849 = vunpack.c.l.b16 %v2653
      %v2850 = vunpack.c.l.b16 %v2654
      %v2851 = vunpack.c.l.b16 %v2655
      %v2852 = vunpack.c.l.b16 %v2656
      %v2853 = vunpack.c.l.b16 %v2657
      %v2854 = vunpack.c.l.b16 %v2658
      %v2855 = vunpack.c.l.b16 %v2659
      %v2856 = vunpack.c.l.b16 %v2660
      %v2857 = vunpack.c.l.b16 %v2661
      %v2858 = vunpack.c.l.b16 %v2662
      %v2859 = vunpack.c.l.b16 %v2663
      %v2860 = vunpack.c.l.b16 %v2664
      %v2861 = vunpack.c.l.b16 %v2665
      %v2862 = vunpack.c.l.b16 %v2666
      %v2863 = vunpack.c.l.b16 %v2667
      %v2864 = vunpack.c.l.b16 %v2668
      %v2865 = vunpack.c.l.b16 %v2669
      %v2866 = vunpack.c.l.b16 %v2670
      %v2867 = vunpack.c.l.b16 %v2671
      %v2868 = vunpack.c.l.b16 %v2672
      %v2869 = vunpack.c.l.b16 %v2673
      %v2870 = vunpack.c.l.b16 %v2674
      %v2871 = vunpack.c.l.b16 %v2675
      %v2872 = vunpack.c.l.b16 %v2676
      %v2873 = vunpack.c.l.b16 %v2677
      %v2874 = vunpack.c.l.b16 %v2678
      %v2875 = vunpack.c.l.b16 %v2679
      %v2876 = vunpack.c.l.b16 %v2680
      %v2877 = vunpack.c.l.b16 %v2681
      %v2878 = vunpack.c.l.b16 %v2682
      %v2879 = vunpack.c.l.b16 %v2683
      %v2880 = vunpack.c.l.b16 %v2684
      %v2881 = vunpack.c.l.b16 %v2685
      %v2882 = vunpack.c.l.b16 %v2686
      %v2883 = vunpack.c.l.b16 %v2687
      %v2884 = vunpack.c.l.b16 %v2688
      %v2885 = vunpack.c.l.b16 %v2689
      %v2886 = vunpack.c.l.b16 %v2690
      %v2887 = vunpack.c.l.b16 %v2691
      %v2888 = vunpack.c.l.b16 %v2692
      %v2889 = vunpack.c.l.b16 %v2693
      %v2890 = vunpack.c.l.b16 %v2694
      %v2891 = vunpack.c.l.b16 %v2695
      %v2892 = vunpack.c.l.b16 %v2696
      %v2893 = vunpack.c.l.b16 %v2697
      %v2894 = vunpack.c.l.b16 %v2698
      %v2895 = vunpack.c.l.b16 %v2699
      %v2896 = vunpack.c.l.b16 %v2700
      %v2897 = vunpack.c.l.b16 %v2701
      %v2898 = vunpack.c.l.b16 %v2702
      %v2899 = vunpack.c.l.b16 %v2703
      %v2900 = vunpack.c.l.b16 %v2704
      %v2901 = vunpack.c.l.b16 %v2705
      %v2902 = vunpack.c.l.b16 %v2706
      %v2903 = vunpack.c.l.b16 %v2707
      %v2904 = vunpack.c.l.b16 %v2708
      %v2905 = vunpack.c.l.b16 %v2709
      %v2906 = vunpack.c.l.b16 %v2710
      %v2907 = vunpack.c.l.b16 %v2711
      %v2908 = vunpack.c.l.b16 %v2712
      %v2909 = vunpack.c.l.b16 %v2713
      %v2910 = vunpack.c.l.b16 %v2714
      %v2911 = vunpack.c.l.b16 %v2715
      %v2912 = vunpack.c.l.b16 %v2716
      %v2913 = vunpack.c.l.b16 %v2717
      %v2914 = vunpack.c.l.b16 %v2718
      %v2915 = vunpack.c.l.b16 %v2719
      %v2916 = vunpack.c.l.b16 %v2720
      %v2917 = vunpack.c.l.b16 %v2721
      %v2918 = vunpack.c.l.b16 %v2722
      %v2919 = vunpack.c.l.b16 %v2723
      %v2920 = vunpack.c.l.b16 %v2724
      %v2921 = vunpack.c.l.b16 %v2725
      %v2922 = vunpack.c.l.b16 %v2726
      %v2923 = vunpack.c.l.b16 %v2727
      %v2924 = vunpack.c.l.b16 %v2728
      %v2925 = vunpack.c.l.b16 %v2729
      %v2926 = vunpack.c.l.b16 %v2730
      %v2927 = vunpack.c.l.b16 %v2731
      %v2928 = vunpack.c.l.b16 %v2732
      %v2929 = vunpack.c.l.b16 %v2733
      %v2930 = vunpack.c.l.b16 %v2734
      %v2931 = vunpack.c.l.b16 %v2735
      %v2932 = vunpack.c.l.b16 %v2736
      %v2933 = vunpack.c.l.b16 %v2737
      %v2934 = vunpack.c.l.b16 %v2738
      %v2935 = vunpack.c.l.b16 %v2739
      %v2936 = vunpack.c.l.b16 %v2740
      %v2937 = vunpack.c.l.b16 %v2741
      %v2938 = vunpack.c.l.b16 %v2742
      %v2939 = vunpack.c.l.b16 %v2743
      %v2940 = vunpack.c.l.b16 %v2744
      %v2941 = vunpack.c.l.b16 %v2745
      %v2942 = vunpack.c.l.b16 %v2746
      %v2943 = vunpack.c.l.b16 %v2747
      %v2944 = vunpack.c.l.b16 %v2748
      %v2945 = vunpack.c.l.b16 %v2749
      %v2946 = vunpack.c.l.b16 %v2750
      %v2947 = vunpack.c.l.b16 %v2751
      %v2948 = vunpack.c.l.b16 %v2752
      %v2949 = vunpack.c.l.b16 %v2753
      %v2950 = vunpack.c.l.b16 %v2754
      %v2951 = vunpack.c.l.b16 %v2755
      %v2952 = vunpack.c.l.b16 %v2756
      %v2953 = vunpack.c.l.b16 %v2757
      %v2954 = vunpack.c.l.b16 %v2758
      %v2955 = vunpack.c.l.b16 %v2759
      %v2956 = vunpack.c.l.b16 %v2760
      %v2957 = vunpack.c.l.b16 %v2761
      %v2958 = vunpack.c.l.b16 %v2762
      %v2959 = vunpack.c.l.b16 %v2763
      %v2960 = vunpack.c.l.b16 %v2764
      %v2961 = vunpack.c.l.b16 %v2765
      %v2962 = vunpack.c.l.b16 %v2766
      %v2963 = vunpack.c.l.b16 %v2767
      %v2964 = vunpack.c.l.b16 %v2768
      %v2965 = vunpack.c.l.b16 %v2769
      %v2966 = vunpack.c.l.b16 %v2770
      %v2967 = vunpack.c.l.b16 %v2771
      %v2968 = vunpack.c.l.b16 %v2772
      %v2969 = vunpack.c.l.b16 %v2773
      %v2970 = vunpack.c.l.b16 %v2774
      %v2971 = vunpack.c.l.b16 %v2775
      %v2972 = vunpack.c.l.b16 %v2776
      %v2973 = vunpack.c.l.b16 %v2777
      %v2974 = vunpack.c.l.b16 %v2778
      %v2975 = vunpack.c.l.b16 %v2779
      %v2976 = vunpack.c.l.b16 %v2780
      %v2977 = vunpack.c.l.b16 %v2781
      %v2978 = vunpack.c.l.b16 %v2782
      %v2979 = vunpack.c.l.b16 %v2783
      %v2980 = vunpack.c.l.b16 %v2784
      %v2981 = vunpack.c.l.b16 %v2785
      %v2982 = vunpack.c.l.b16 %v2786
      %v2983 = vunpack.c.l.b16 %v2787
      %v2984 = vunpack.c.l.b16 %v2788
      %v2985 = vunpack.c.l.b16 %v2789
      %v2986 = vrot.slane %v2791, 7
      %vm2987 = vcmask 1041409
      %v2988 = vsel %vm2987, %v2986, %v2790
      %v2989 = vrot.slane %v2792, 6
      %vm2990 = vcmask 1042434
      %v2991 = vsel %vm2990, %v2989, %v2988
      %v2992 = vrot.slane %v2793, 5
      %vm2993 = vcmask 1043459
      %v2994 = vsel %vm2993, %v2992, %v2991
      %v2995 = vrot.slane %v2794, 4
      %vm2996 = vcmask 1044484
      %v2997 = vsel %vm2996, %v2995, %v2994
      %v2998 = vrot.slane %v2795, 3
      %vm2999 = vcmask 1045509
      %v3000 = vsel %vm2999, %v2998, %v2997
      %v3001 = vrot.slane %v2796, 2
      %vm3002 = vcmask 1046534
      %v3003 = vsel %vm3002, %v3001, %v3000
      %v3004 = vrot.slane %v2797, 1
      %vm3005 = vcmask 1047559
      %v3006 = vsel %vm3005, %v3004, %v3003
      %v3007 = vrot.slane %v2799, 7
      %v3008 = vsel %vm2987, %v3007, %v2798
      %v3009 = vrot.slane %v2800, 6
      %v3010 = vsel %vm2990, %v3009, %v3008
      %v3011 = vrot.slane %v2801, 5
      %v3012 = vsel %vm2993, %v3011, %v3010
      %v3013 = vrot.slane %v2802, 4
      %v3014 = vsel %vm2996, %v3013, %v3012
      %v3015 = vrot.slane %v2803, 3
      %v3016 = vsel %vm2999, %v3015, %v3014
      %v3017 = vrot.slane %v2804, 2
      %v3018 = vsel %vm3002, %v3017, %v3016
      %v3019 = vrot.slane %v2805, 1
      %v3020 = vsel %vm3005, %v3019, %v3018
      %v3021 = vrot.slane %v2807, 7
      %v3022 = vsel %vm2987, %v3021, %v2806
      %v3023 = vrot.slane %v2808, 6
      %v3024 = vsel %vm2990, %v3023, %v3022
      %v3025 = vrot.slane %v2809, 5
      %v3026 = vsel %vm2993, %v3025, %v3024
      %v3027 = vrot.slane %v2810, 4
      %v3028 = vsel %vm2996, %v3027, %v3026
      %v3029 = vrot.slane %v2811, 3
      %v3030 = vsel %vm2999, %v3029, %v3028
      %v3031 = vrot.slane %v2812, 2
      %v3032 = vsel %vm3002, %v3031, %v3030
      %v3033 = vrot.slane %v2813, 1
      %v3034 = vsel %vm3005, %v3033, %v3032
      %v3035 = vrot.slane %v2815, 7
      %v3036 = vsel %vm2987, %v3035, %v2814
      %v3037 = vrot.slane %v2816, 6
      %v3038 = vsel %vm2990, %v3037, %v3036
      %v3039 = vrot.slane %v2817, 5
      %v3040 = vsel %vm2993, %v3039, %v3038
      %v3041 = vrot.slane %v2818, 4
      %v3042 = vsel %vm2996, %v3041, %v3040
      %v3043 = vrot.slane %v2819, 3
      %v3044 = vsel %vm2999, %v3043, %v3042
      %v3045 = vrot.slane %v2820, 2
      %v3046 = vsel %vm3002, %v3045, %v3044
      %v3047 = vrot.slane %v2821, 1
      %v3048 = vsel %vm3005, %v3047, %v3046
      %v3049 = vrot.slane %v2823, 7
      %v3050 = vsel %vm2987, %v3049, %v2822
      %v3051 = vrot.slane %v2824, 6
      %v3052 = vsel %vm2990, %v3051, %v3050
      %v3053 = vrot.slane %v2825, 5
      %v3054 = vsel %vm2993, %v3053, %v3052
      %v3055 = vrot.slane %v2826, 4
      %v3056 = vsel %vm2996, %v3055, %v3054
      %v3057 = vrot.slane %v2827, 3
      %v3058 = vsel %vm2999, %v3057, %v3056
      %v3059 = vrot.slane %v2828, 2
      %v3060 = vsel %vm3002, %v3059, %v3058
      %v3061 = vrot.slane %v2829, 1
      %v3062 = vsel %vm3005, %v3061, %v3060
      %v3063 = vrot.slane %v2831, 7
      %v3064 = vsel %vm2987, %v3063, %v2830
      %v3065 = vrot.slane %v2832, 6
      %v3066 = vsel %vm2990, %v3065, %v3064
      %v3067 = vrot.slane %v2833, 5
      %v3068 = vsel %vm2993, %v3067, %v3066
      %v3069 = vrot.slane %v2834, 4
      %v3070 = vsel %vm2996, %v3069, %v3068
      %v3071 = vrot.slane %v2835, 3
      %v3072 = vsel %vm2999, %v3071, %v3070
      %v3073 = vrot.slane %v2836, 2
      %v3074 = vsel %vm3002, %v3073, %v3072
      %v3075 = vrot.slane %v2837, 1
      %v3076 = vsel %vm3005, %v3075, %v3074
      %v3077 = vrot.slane %v2839, 7
      %v3078 = vsel %vm2987, %v3077, %v2838
      %v3079 = vrot.slane %v2840, 6
      %v3080 = vsel %vm2990, %v3079, %v3078
      %v3081 = vrot.slane %v2841, 5
      %v3082 = vsel %vm2993, %v3081, %v3080
      %v3083 = vrot.slane %v2842, 4
      %v3084 = vsel %vm2996, %v3083, %v3082
      %v3085 = vrot.slane %v2843, 3
      %v3086 = vsel %vm2999, %v3085, %v3084
      %v3087 = vrot.slane %v2844, 2
      %v3088 = vsel %vm3002, %v3087, %v3086
      %v3089 = vrot.slane %v2845, 1
      %v3090 = vsel %vm3005, %v3089, %v3088
      %v3091 = vrot.slane %v2847, 7
      %v3092 = vsel %vm2987, %v3091, %v2846
      %v3093 = vrot.slane %v2848, 6
      %v3094 = vsel %vm2990, %v3093, %v3092
      %v3095 = vrot.slane %v2849, 5
      %v3096 = vsel %vm2993, %v3095, %v3094
      %v3097 = vrot.slane %v2850, 4
      %v3098 = vsel %vm2996, %v3097, %v3096
      %v3099 = vrot.slane %v2851, 3
      %v3100 = vsel %vm2999, %v3099, %v3098
      %v3101 = vrot.slane %v2852, 2
      %v3102 = vsel %vm3002, %v3101, %v3100
      %v3103 = vrot.slane %v2853, 1
      %v3104 = vsel %vm3005, %v3103, %v3102
      %v3105 = vrot.slane %v2855, 7
      %v3106 = vsel %vm2987, %v3105, %v2854
      %v3107 = vrot.slane %v2856, 6
      %v3108 = vsel %vm2990, %v3107, %v3106
      %v3109 = vrot.slane %v2857, 5
      %v3110 = vsel %vm2993, %v3109, %v3108
      %v3111 = vrot.slane %v2858, 4
      %v3112 = vsel %vm2996, %v3111, %v3110
      %v3113 = vrot.slane %v2859, 3
      %v3114 = vsel %vm2999, %v3113, %v3112
      %v3115 = vrot.slane %v2860, 2
      %v3116 = vsel %vm3002, %v3115, %v3114
      %v3117 = vrot.slane %v2861, 1
      %v3118 = vsel %vm3005, %v3117, %v3116
      %v3119 = vrot.slane %v2863, 7
      %v3120 = vsel %vm2987, %v3119, %v2862
      %v3121 = vrot.slane %v2864, 6
      %v3122 = vsel %vm2990, %v3121, %v3120
      %v3123 = vrot.slane %v2865, 5
      %v3124 = vsel %vm2993, %v3123, %v3122
      %v3125 = vrot.slane %v2866, 4
      %v3126 = vsel %vm2996, %v3125, %v3124
      %v3127 = vrot.slane %v2867, 3
      %v3128 = vsel %vm2999, %v3127, %v3126
      %v3129 = vrot.slane %v2868, 2
      %v3130 = vsel %vm3002, %v3129, %v3128
      %v3131 = vrot.slane %v2869, 1
      %v3132 = vsel %vm3005, %v3131, %v3130
      %v3133 = vrot.slane %v2871, 7
      %v3134 = vsel %vm2987, %v3133, %v2870
      %v3135 = vrot.slane %v2872, 6
      %v3136 = vsel %vm2990, %v3135, %v3134
      %v3137 = vrot.slane %v2873, 5
      %v3138 = vsel %vm2993, %v3137, %v3136
      %v3139 = vrot.slane %v2874, 4
      %v3140 = vsel %vm2996, %v3139, %v3138
      %v3141 = vrot.slane %v2875, 3
      %v3142 = vsel %vm2999, %v3141, %v3140
      %v3143 = vrot.slane %v2876, 2
      %v3144 = vsel %vm3002, %v3143, %v3142
      %v3145 = vrot.slane %v2877, 1
      %v3146 = vsel %vm3005, %v3145, %v3144
      %v3147 = vrot.slane %v2879, 7
      %v3148 = vsel %vm2987, %v3147, %v2878
      %v3149 = vrot.slane %v2880, 6
      %v3150 = vsel %vm2990, %v3149, %v3148
      %v3151 = vrot.slane %v2881, 5
      %v3152 = vsel %vm2993, %v3151, %v3150
      %v3153 = vrot.slane %v2882, 4
      %v3154 = vsel %vm2996, %v3153, %v3152
      %v3155 = vrot.slane %v2883, 3
      %v3156 = vsel %vm2999, %v3155, %v3154
      %v3157 = vrot.slane %v2884, 2
      %v3158 = vsel %vm3002, %v3157, %v3156
      %v3159 = vrot.slane %v2885, 1
      %v3160 = vsel %vm3005, %v3159, %v3158
      %v3161 = vrot.slane %v2887, 7
      %v3162 = vsel %vm2987, %v3161, %v2886
      %v3163 = vrot.slane %v2888, 6
      %v3164 = vsel %vm2990, %v3163, %v3162
      %v3165 = vrot.slane %v2889, 5
      %v3166 = vsel %vm2993, %v3165, %v3164
      %v3167 = vrot.slane %v2890, 4
      %v3168 = vsel %vm2996, %v3167, %v3166
      %v3169 = vrot.slane %v2891, 3
      %v3170 = vsel %vm2999, %v3169, %v3168
      %v3171 = vrot.slane %v2892, 2
      %v3172 = vsel %vm3002, %v3171, %v3170
      %v3173 = vrot.slane %v2893, 1
      %v3174 = vsel %vm3005, %v3173, %v3172
      %v3175 = vrot.slane %v2895, 7
      %v3176 = vsel %vm2987, %v3175, %v2894
      %v3177 = vrot.slane %v2896, 6
      %v3178 = vsel %vm2990, %v3177, %v3176
      %v3179 = vrot.slane %v2897, 5
      %v3180 = vsel %vm2993, %v3179, %v3178
      %v3181 = vrot.slane %v2898, 4
      %v3182 = vsel %vm2996, %v3181, %v3180
      %v3183 = vrot.slane %v2899, 3
      %v3184 = vsel %vm2999, %v3183, %v3182
      %v3185 = vrot.slane %v2900, 2
      %v3186 = vsel %vm3002, %v3185, %v3184
      %v3187 = vrot.slane %v2901, 1
      %v3188 = vsel %vm3005, %v3187, %v3186
      %v3189 = vrot.slane %v2903, 7
      %v3190 = vsel %vm2987, %v3189, %v2902
      %v3191 = vrot.slane %v2904, 6
      %v3192 = vsel %vm2990, %v3191, %v3190
      %v3193 = vrot.slane %v2905, 5
      %v3194 = vsel %vm2993, %v3193, %v3192
      %v3195 = vrot.slane %v2906, 4
      %v3196 = vsel %vm2996, %v3195, %v3194
      %v3197 = vrot.slane %v2907, 3
      %v3198 = vsel %vm2999, %v3197, %v3196
      %v3199 = vrot.slane %v2908, 2
      %v3200 = vsel %vm3002, %v3199, %v3198
      %v3201 = vrot.slane %v2909, 1
      %v3202 = vsel %vm3005, %v3201, %v3200
      %v3203 = vrot.slane %v2911, 7
      %v3204 = vsel %vm2987, %v3203, %v2910
      %v3205 = vrot.slane %v2912, 6
      %v3206 = vsel %vm2990, %v3205, %v3204
      %v3207 = vrot.slane %v2913, 5
      %v3208 = vsel %vm2993, %v3207, %v3206
      %v3209 = vrot.slane %v2914, 4
      %v3210 = vsel %vm2996, %v3209, %v3208
      %v3211 = vrot.slane %v2915, 3
      %v3212 = vsel %vm2999, %v3211, %v3210
      %v3213 = vrot.slane %v2916, 2
      %v3214 = vsel %vm3002, %v3213, %v3212
      %v3215 = vrot.slane %v2917, 1
      %v3216 = vsel %vm3005, %v3215, %v3214
      %v3217 = vrot.slane %v2919, 7
      %v3218 = vsel %vm2987, %v3217, %v2918
      %v3219 = vrot.slane %v2920, 6
      %v3220 = vsel %vm2990, %v3219, %v3218
      %v3221 = vrot.slane %v2921, 5
      %v3222 = vsel %vm2993, %v3221, %v3220
      %v3223 = vrot.slane %v2922, 4
      %v3224 = vsel %vm2996, %v3223, %v3222
      %v3225 = vrot.slane %v2923, 3
      %v3226 = vsel %vm2999, %v3225, %v3224
      %v3227 = vrot.slane %v2924, 2
      %v3228 = vsel %vm3002, %v3227, %v3226
      %v3229 = vrot.slane %v2925, 1
      %v3230 = vsel %vm3005, %v3229, %v3228
      %v3231 = vrot.slane %v2927, 7
      %v3232 = vsel %vm2987, %v3231, %v2926
      %v3233 = vrot.slane %v2928, 6
      %v3234 = vsel %vm2990, %v3233, %v3232
      %v3235 = vrot.slane %v2929, 5
      %v3236 = vsel %vm2993, %v3235, %v3234
      %v3237 = vrot.slane %v2930, 4
      %v3238 = vsel %vm2996, %v3237, %v3236
      %v3239 = vrot.slane %v2931, 3
      %v3240 = vsel %vm2999, %v3239, %v3238
      %v3241 = vrot.slane %v2932, 2
      %v3242 = vsel %vm3002, %v3241, %v3240
      %v3243 = vrot.slane %v2933, 1
      %v3244 = vsel %vm3005, %v3243, %v3242
      %v3245 = vrot.slane %v2935, 7
      %v3246 = vsel %vm2987, %v3245, %v2934
      %v3247 = vrot.slane %v2936, 6
      %v3248 = vsel %vm2990, %v3247, %v3246
      %v3249 = vrot.slane %v2937, 5
      %v3250 = vsel %vm2993, %v3249, %v3248
      %v3251 = vrot.slane %v2938, 4
      %v3252 = vsel %vm2996, %v3251, %v3250
      %v3253 = vrot.slane %v2939, 3
      %v3254 = vsel %vm2999, %v3253, %v3252
      %v3255 = vrot.slane %v2940, 2
      %v3256 = vsel %vm3002, %v3255, %v3254
      %v3257 = vrot.slane %v2941, 1
      %v3258 = vsel %vm3005, %v3257, %v3256
      %v3259 = vrot.slane %v2943, 7
      %v3260 = vsel %vm2987, %v3259, %v2942
      %v3261 = vrot.slane %v2944, 6
      %v3262 = vsel %vm2990, %v3261, %v3260
      %v3263 = vrot.slane %v2945, 5
      %v3264 = vsel %vm2993, %v3263, %v3262
      %v3265 = vrot.slane %v2946, 4
      %v3266 = vsel %vm2996, %v3265, %v3264
      %v3267 = vrot.slane %v2947, 3
      %v3268 = vsel %vm2999, %v3267, %v3266
      %v3269 = vrot.slane %v2948, 2
      %v3270 = vsel %vm3002, %v3269, %v3268
      %v3271 = vrot.slane %v2949, 1
      %v3272 = vsel %vm3005, %v3271, %v3270
      %v3273 = vrot.slane %v2951, 7
      %v3274 = vsel %vm2987, %v3273, %v2950
      %v3275 = vrot.slane %v2952, 6
      %v3276 = vsel %vm2990, %v3275, %v3274
      %v3277 = vrot.slane %v2953, 5
      %v3278 = vsel %vm2993, %v3277, %v3276
      %v3279 = vrot.slane %v2954, 4
      %v3280 = vsel %vm2996, %v3279, %v3278
      %v3281 = vrot.slane %v2955, 3
      %v3282 = vsel %vm2999, %v3281, %v3280
      %v3283 = vrot.slane %v2956, 2
      %v3284 = vsel %vm3002, %v3283, %v3282
      %v3285 = vrot.slane %v2957, 1
      %v3286 = vsel %vm3005, %v3285, %v3284
      %v3287 = vrot.slane %v2959, 7
      %v3288 = vsel %vm2987, %v3287, %v2958
      %v3289 = vrot.slane %v2960, 6
      %v3290 = vsel %vm2990, %v3289, %v3288
      %v3291 = vrot.slane %v2961, 5
      %v3292 = vsel %vm2993, %v3291, %v3290
      %v3293 = vrot.slane %v2962, 4
      %v3294 = vsel %vm2996, %v3293, %v3292
      %v3295 = vrot.slane %v2963, 3
      %v3296 = vsel %vm2999, %v3295, %v3294
      %v3297 = vrot.slane %v2964, 2
      %v3298 = vsel %vm3002, %v3297, %v3296
      %v3299 = vrot.slane %v2965, 1
      %v3300 = vsel %vm3005, %v3299, %v3298
      %v3301 = vrot.slane %v2967, 7
      %v3302 = vsel %vm2987, %v3301, %v2966
      %v3303 = vrot.slane %v2968, 6
      %v3304 = vsel %vm2990, %v3303, %v3302
      %v3305 = vrot.slane %v2969, 5
      %v3306 = vsel %vm2993, %v3305, %v3304
      %v3307 = vrot.slane %v2970, 4
      %v3308 = vsel %vm2996, %v3307, %v3306
      %v3309 = vrot.slane %v2971, 3
      %v3310 = vsel %vm2999, %v3309, %v3308
      %v3311 = vrot.slane %v2972, 2
      %v3312 = vsel %vm3002, %v3311, %v3310
      %v3313 = vrot.slane %v2973, 1
      %v3314 = vsel %vm3005, %v3313, %v3312
      %v3315 = vrot.slane %v2975, 7
      %v3316 = vsel %vm2987, %v3315, %v2974
      %v3317 = vrot.slane %v2976, 6
      %v3318 = vsel %vm2990, %v3317, %v3316
      %v3319 = vrot.slane %v2977, 5
      %v3320 = vsel %vm2993, %v3319, %v3318
      %v3321 = vrot.slane %v2978, 4
      %v3322 = vsel %vm2996, %v3321, %v3320
      %v3323 = vrot.slane %v2979, 3
      %v3324 = vsel %vm2999, %v3323, %v3322
      %v3325 = vrot.slane %v2980, 2
      %v3326 = vsel %vm3002, %v3325, %v3324
      %v3327 = vrot.slane %v2981, 1
      %v3328 = vsel %vm3005, %v3327, %v3326
      %v3329 = vrot.slane %v2983, 7
      %v3330 = vsel %vm2987, %v3329, %v2982
      %v3331 = vrot.slane %v2984, 6
      %v3332 = vsel %vm2990, %v3331, %v3330
      %v3333 = vrot.slane %v2985, 5
      %v3334 = vsel %vm2993, %v3333, %v3332
      %v3335 = vpack.c.b16 %v3020, %v3006
      %v3336 = vpack.c.b16 %v3048, %v3034
      %v3337 = vpack.c.b16 %v3076, %v3062
      %v3338 = vpack.c.b16 %v3104, %v3090
      %v3339 = vpack.c.b16 %v3132, %v3118
      %v3340 = vpack.c.b16 %v3160, %v3146
      %v3341 = vpack.c.b16 %v3188, %v3174
      %v3342 = vpack.c.b16 %v3216, %v3202
      %v3343 = vpack.c.b16 %v3244, %v3230
      %v3344 = vpack.c.b16 %v3272, %v3258
      %v3345 = vpack.c.b16 %v3300, %v3286
      %v3346 = vpack.c.b16 %v3328, %v3314
      %v3347 = vpack.c.b16 %v3334, %v3334
      %v3348 = vrot.slane %v2790, 1
      %v3349 = vsel %vm2987, %v2791, %v3348
      %v3350 = vrot.slane %v2792, 7
      %v3351 = vsel %vm2990, %v3350, %v3349
      %v3352 = vrot.slane %v2793, 6
      %v3353 = vsel %vm2993, %v3352, %v3351
      %v3354 = vrot.slane %v2794, 5
      %v3355 = vsel %vm2996, %v3354, %v3353
      %v3356 = vrot.slane %v2795, 4
      %v3357 = vsel %vm2999, %v3356, %v3355
      %v3358 = vrot.slane %v2796, 3
      %v3359 = vsel %vm3002, %v3358, %v3357
      %v3360 = vrot.slane %v2797, 2
      %v3361 = vsel %vm3005, %v3360, %v3359
      %v3362 = vrot.slane %v2798, 1
      %v3363 = vsel %vm2987, %v2799, %v3362
      %v3364 = vrot.slane %v2800, 7
      %v3365 = vsel %vm2990, %v3364, %v3363
      %v3366 = vrot.slane %v2801, 6
      %v3367 = vsel %vm2993, %v3366, %v3365
      %v3368 = vrot.slane %v2802, 5
      %v3369 = vsel %vm2996, %v3368, %v3367
      %v3370 = vrot.slane %v2803, 4
      %v3371 = vsel %vm2999, %v3370, %v3369
      %v3372 = vrot.slane %v2804, 3
      %v3373 = vsel %vm3002, %v3372, %v3371
      %v3374 = vrot.slane %v2805, 2
      %v3375 = vsel %vm3005, %v3374, %v3373
      %v3376 = vrot.slane %v2806, 1
      %v3377 = vsel %vm2987, %v2807, %v3376
      %v3378 = vrot.slane %v2808, 7
      %v3379 = vsel %vm2990, %v3378, %v3377
      %v3380 = vrot.slane %v2809, 6
      %v3381 = vsel %vm2993, %v3380, %v3379
      %v3382 = vrot.slane %v2810, 5
      %v3383 = vsel %vm2996, %v3382, %v3381
      %v3384 = vrot.slane %v2811, 4
      %v3385 = vsel %vm2999, %v3384, %v3383
      %v3386 = vrot.slane %v2812, 3
      %v3387 = vsel %vm3002, %v3386, %v3385
      %v3388 = vrot.slane %v2813, 2
      %v3389 = vsel %vm3005, %v3388, %v3387
      %v3390 = vrot.slane %v2814, 1
      %v3391 = vsel %vm2987, %v2815, %v3390
      %v3392 = vrot.slane %v2816, 7
      %v3393 = vsel %vm2990, %v3392, %v3391
      %v3394 = vrot.slane %v2817, 6
      %v3395 = vsel %vm2993, %v3394, %v3393
      %v3396 = vrot.slane %v2818, 5
      %v3397 = vsel %vm2996, %v3396, %v3395
      %v3398 = vrot.slane %v2819, 4
      %v3399 = vsel %vm2999, %v3398, %v3397
      %v3400 = vrot.slane %v2820, 3
      %v3401 = vsel %vm3002, %v3400, %v3399
      %v3402 = vrot.slane %v2821, 2
      %v3403 = vsel %vm3005, %v3402, %v3401
      %v3404 = vrot.slane %v2822, 1
      %v3405 = vsel %vm2987, %v2823, %v3404
      %v3406 = vrot.slane %v2824, 7
      %v3407 = vsel %vm2990, %v3406, %v3405
      %v3408 = vrot.slane %v2825, 6
      %v3409 = vsel %vm2993, %v3408, %v3407
      %v3410 = vrot.slane %v2826, 5
      %v3411 = vsel %vm2996, %v3410, %v3409
      %v3412 = vrot.slane %v2827, 4
      %v3413 = vsel %vm2999, %v3412, %v3411
      %v3414 = vrot.slane %v2828, 3
      %v3415 = vsel %vm3002, %v3414, %v3413
      %v3416 = vrot.slane %v2829, 2
      %v3417 = vsel %vm3005, %v3416, %v3415
      %v3418 = vrot.slane %v2830, 1
      %v3419 = vsel %vm2987, %v2831, %v3418
      %v3420 = vrot.slane %v2832, 7
      %v3421 = vsel %vm2990, %v3420, %v3419
      %v3422 = vrot.slane %v2833, 6
      %v3423 = vsel %vm2993, %v3422, %v3421
      %v3424 = vrot.slane %v2834, 5
      %v3425 = vsel %vm2996, %v3424, %v3423
      %v3426 = vrot.slane %v2835, 4
      %v3427 = vsel %vm2999, %v3426, %v3425
      %v3428 = vrot.slane %v2836, 3
      %v3429 = vsel %vm3002, %v3428, %v3427
      %v3430 = vrot.slane %v2837, 2
      %v3431 = vsel %vm3005, %v3430, %v3429
      %v3432 = vrot.slane %v2838, 1
      %v3433 = vsel %vm2987, %v2839, %v3432
      %v3434 = vrot.slane %v2840, 7
      %v3435 = vsel %vm2990, %v3434, %v3433
      %v3436 = vrot.slane %v2841, 6
      %v3437 = vsel %vm2993, %v3436, %v3435
      %v3438 = vrot.slane %v2842, 5
      %v3439 = vsel %vm2996, %v3438, %v3437
      %v3440 = vrot.slane %v2843, 4
      %v3441 = vsel %vm2999, %v3440, %v3439
      %v3442 = vrot.slane %v2844, 3
      %v3443 = vsel %vm3002, %v3442, %v3441
      %v3444 = vrot.slane %v2845, 2
      %v3445 = vsel %vm3005, %v3444, %v3443
      %v3446 = vrot.slane %v2846, 1
      %v3447 = vsel %vm2987, %v2847, %v3446
      %v3448 = vrot.slane %v2848, 7
      %v3449 = vsel %vm2990, %v3448, %v3447
      %v3450 = vrot.slane %v2849, 6
      %v3451 = vsel %vm2993, %v3450, %v3449
      %v3452 = vrot.slane %v2850, 5
      %v3453 = vsel %vm2996, %v3452, %v3451
      %v3454 = vrot.slane %v2851, 4
      %v3455 = vsel %vm2999, %v3454, %v3453
      %v3456 = vrot.slane %v2852, 3
      %v3457 = vsel %vm3002, %v3456, %v3455
      %v3458 = vrot.slane %v2853, 2
      %v3459 = vsel %vm3005, %v3458, %v3457
      %v3460 = vrot.slane %v2854, 1
      %v3461 = vsel %vm2987, %v2855, %v3460
      %v3462 = vrot.slane %v2856, 7
      %v3463 = vsel %vm2990, %v3462, %v3461
      %v3464 = vrot.slane %v2857, 6
      %v3465 = vsel %vm2993, %v3464, %v3463
      %v3466 = vrot.slane %v2858, 5
      %v3467 = vsel %vm2996, %v3466, %v3465
      %v3468 = vrot.slane %v2859, 4
      %v3469 = vsel %vm2999, %v3468, %v3467
      %v3470 = vrot.slane %v2860, 3
      %v3471 = vsel %vm3002, %v3470, %v3469
      %v3472 = vrot.slane %v2861, 2
      %v3473 = vsel %vm3005, %v3472, %v3471
      %v3474 = vrot.slane %v2862, 1
      %v3475 = vsel %vm2987, %v2863, %v3474
      %v3476 = vrot.slane %v2864, 7
      %v3477 = vsel %vm2990, %v3476, %v3475
      %v3478 = vrot.slane %v2865, 6
      %v3479 = vsel %vm2993, %v3478, %v3477
      %v3480 = vrot.slane %v2866, 5
      %v3481 = vsel %vm2996, %v3480, %v3479
      %v3482 = vrot.slane %v2867, 4
      %v3483 = vsel %vm2999, %v3482, %v3481
      %v3484 = vrot.slane %v2868, 3
      %v3485 = vsel %vm3002, %v3484, %v3483
      %v3486 = vrot.slane %v2869, 2
      %v3487 = vsel %vm3005, %v3486, %v3485
      %v3488 = vrot.slane %v2870, 1
      %v3489 = vsel %vm2987, %v2871, %v3488
      %v3490 = vrot.slane %v2872, 7
      %v3491 = vsel %vm2990, %v3490, %v3489
      %v3492 = vrot.slane %v2873, 6
      %v3493 = vsel %vm2993, %v3492, %v3491
      %v3494 = vrot.slane %v2874, 5
      %v3495 = vsel %vm2996, %v3494, %v3493
      %v3496 = vrot.slane %v2875, 4
      %v3497 = vsel %vm2999, %v3496, %v3495
      %v3498 = vrot.slane %v2876, 3
      %v3499 = vsel %vm3002, %v3498, %v3497
      %v3500 = vrot.slane %v2877, 2
      %v3501 = vsel %vm3005, %v3500, %v3499
      %v3502 = vrot.slane %v2878, 1
      %v3503 = vsel %vm2987, %v2879, %v3502
      %v3504 = vrot.slane %v2880, 7
      %v3505 = vsel %vm2990, %v3504, %v3503
      %v3506 = vrot.slane %v2881, 6
      %v3507 = vsel %vm2993, %v3506, %v3505
      %v3508 = vrot.slane %v2882, 5
      %v3509 = vsel %vm2996, %v3508, %v3507
      %v3510 = vrot.slane %v2883, 4
      %v3511 = vsel %vm2999, %v3510, %v3509
      %v3512 = vrot.slane %v2884, 3
      %v3513 = vsel %vm3002, %v3512, %v3511
      %v3514 = vrot.slane %v2885, 2
      %v3515 = vsel %vm3005, %v3514, %v3513
      %v3516 = vrot.slane %v2886, 1
      %v3517 = vsel %vm2987, %v2887, %v3516
      %v3518 = vrot.slane %v2888, 7
      %v3519 = vsel %vm2990, %v3518, %v3517
      %v3520 = vrot.slane %v2889, 6
      %v3521 = vsel %vm2993, %v3520, %v3519
      %v3522 = vrot.slane %v2890, 5
      %v3523 = vsel %vm2996, %v3522, %v3521
      %v3524 = vrot.slane %v2891, 4
      %v3525 = vsel %vm2999, %v3524, %v3523
      %v3526 = vrot.slane %v2892, 3
      %v3527 = vsel %vm3002, %v3526, %v3525
      %v3528 = vrot.slane %v2893, 2
      %v3529 = vsel %vm3005, %v3528, %v3527
      %v3530 = vrot.slane %v2894, 1
      %v3531 = vsel %vm2987, %v2895, %v3530
      %v3532 = vrot.slane %v2896, 7
      %v3533 = vsel %vm2990, %v3532, %v3531
      %v3534 = vrot.slane %v2897, 6
      %v3535 = vsel %vm2993, %v3534, %v3533
      %v3536 = vrot.slane %v2898, 5
      %v3537 = vsel %vm2996, %v3536, %v3535
      %v3538 = vrot.slane %v2899, 4
      %v3539 = vsel %vm2999, %v3538, %v3537
      %v3540 = vrot.slane %v2900, 3
      %v3541 = vsel %vm3002, %v3540, %v3539
      %v3542 = vrot.slane %v2901, 2
      %v3543 = vsel %vm3005, %v3542, %v3541
      %v3544 = vrot.slane %v2902, 1
      %v3545 = vsel %vm2987, %v2903, %v3544
      %v3546 = vrot.slane %v2904, 7
      %v3547 = vsel %vm2990, %v3546, %v3545
      %v3548 = vrot.slane %v2905, 6
      %v3549 = vsel %vm2993, %v3548, %v3547
      %v3550 = vrot.slane %v2906, 5
      %v3551 = vsel %vm2996, %v3550, %v3549
      %v3552 = vrot.slane %v2907, 4
      %v3553 = vsel %vm2999, %v3552, %v3551
      %v3554 = vrot.slane %v2908, 3
      %v3555 = vsel %vm3002, %v3554, %v3553
      %v3556 = vrot.slane %v2909, 2
      %v3557 = vsel %vm3005, %v3556, %v3555
      %v3558 = vrot.slane %v2910, 1
      %v3559 = vsel %vm2987, %v2911, %v3558
      %v3560 = vrot.slane %v2912, 7
      %v3561 = vsel %vm2990, %v3560, %v3559
      %v3562 = vrot.slane %v2913, 6
      %v3563 = vsel %vm2993, %v3562, %v3561
      %v3564 = vrot.slane %v2914, 5
      %v3565 = vsel %vm2996, %v3564, %v3563
      %v3566 = vrot.slane %v2915, 4
      %v3567 = vsel %vm2999, %v3566, %v3565
      %v3568 = vrot.slane %v2916, 3
      %v3569 = vsel %vm3002, %v3568, %v3567
      %v3570 = vrot.slane %v2917, 2
      %v3571 = vsel %vm3005, %v3570, %v3569
      %v3572 = vrot.slane %v2918, 1
      %v3573 = vsel %vm2987, %v2919, %v3572
      %v3574 = vrot.slane %v2920, 7
      %v3575 = vsel %vm2990, %v3574, %v3573
      %v3576 = vrot.slane %v2921, 6
      %v3577 = vsel %vm2993, %v3576, %v3575
      %v3578 = vrot.slane %v2922, 5
      %v3579 = vsel %vm2996, %v3578, %v3577
      %v3580 = vrot.slane %v2923, 4
      %v3581 = vsel %vm2999, %v3580, %v3579
      %v3582 = vrot.slane %v2924, 3
      %v3583 = vsel %vm3002, %v3582, %v3581
      %v3584 = vrot.slane %v2925, 2
      %v3585 = vsel %vm3005, %v3584, %v3583
      %v3586 = vrot.slane %v2926, 1
      %v3587 = vsel %vm2987, %v2927, %v3586
      %v3588 = vrot.slane %v2928, 7
      %v3589 = vsel %vm2990, %v3588, %v3587
      %v3590 = vrot.slane %v2929, 6
      %v3591 = vsel %vm2993, %v3590, %v3589
      %v3592 = vrot.slane %v2930, 5
      %v3593 = vsel %vm2996, %v3592, %v3591
      %v3594 = vrot.slane %v2931, 4
      %v3595 = vsel %vm2999, %v3594, %v3593
      %v3596 = vrot.slane %v2932, 3
      %v3597 = vsel %vm3002, %v3596, %v3595
      %v3598 = vrot.slane %v2933, 2
      %v3599 = vsel %vm3005, %v3598, %v3597
      %v3600 = vrot.slane %v2934, 1
      %v3601 = vsel %vm2987, %v2935, %v3600
      %v3602 = vrot.slane %v2936, 7
      %v3603 = vsel %vm2990, %v3602, %v3601
      %v3604 = vrot.slane %v2937, 6
      %v3605 = vsel %vm2993, %v3604, %v3603
      %v3606 = vrot.slane %v2938, 5
      %v3607 = vsel %vm2996, %v3606, %v3605
      %v3608 = vrot.slane %v2939, 4
      %v3609 = vsel %vm2999, %v3608, %v3607
      %v3610 = vrot.slane %v2940, 3
      %v3611 = vsel %vm3002, %v3610, %v3609
      %v3612 = vrot.slane %v2941, 2
      %v3613 = vsel %vm3005, %v3612, %v3611
      %v3614 = vrot.slane %v2942, 1
      %v3615 = vsel %vm2987, %v2943, %v3614
      %v3616 = vrot.slane %v2944, 7
      %v3617 = vsel %vm2990, %v3616, %v3615
      %v3618 = vrot.slane %v2945, 6
      %v3619 = vsel %vm2993, %v3618, %v3617
      %v3620 = vrot.slane %v2946, 5
      %v3621 = vsel %vm2996, %v3620, %v3619
      %v3622 = vrot.slane %v2947, 4
      %v3623 = vsel %vm2999, %v3622, %v3621
      %v3624 = vrot.slane %v2948, 3
      %v3625 = vsel %vm3002, %v3624, %v3623
      %v3626 = vrot.slane %v2949, 2
      %v3627 = vsel %vm3005, %v3626, %v3625
      %v3628 = vrot.slane %v2950, 1
      %v3629 = vsel %vm2987, %v2951, %v3628
      %v3630 = vrot.slane %v2952, 7
      %v3631 = vsel %vm2990, %v3630, %v3629
      %v3632 = vrot.slane %v2953, 6
      %v3633 = vsel %vm2993, %v3632, %v3631
      %v3634 = vrot.slane %v2954, 5
      %v3635 = vsel %vm2996, %v3634, %v3633
      %v3636 = vrot.slane %v2955, 4
      %v3637 = vsel %vm2999, %v3636, %v3635
      %v3638 = vrot.slane %v2956, 3
      %v3639 = vsel %vm3002, %v3638, %v3637
      %v3640 = vrot.slane %v2957, 2
      %v3641 = vsel %vm3005, %v3640, %v3639
      %v3642 = vrot.slane %v2958, 1
      %v3643 = vsel %vm2987, %v2959, %v3642
      %v3644 = vrot.slane %v2960, 7
      %v3645 = vsel %vm2990, %v3644, %v3643
      %v3646 = vrot.slane %v2961, 6
      %v3647 = vsel %vm2993, %v3646, %v3645
      %v3648 = vrot.slane %v2962, 5
      %v3649 = vsel %vm2996, %v3648, %v3647
      %v3650 = vrot.slane %v2963, 4
      %v3651 = vsel %vm2999, %v3650, %v3649
      %v3652 = vrot.slane %v2964, 3
      %v3653 = vsel %vm3002, %v3652, %v3651
      %v3654 = vrot.slane %v2965, 2
      %v3655 = vsel %vm3005, %v3654, %v3653
      %v3656 = vrot.slane %v2966, 1
      %v3657 = vsel %vm2987, %v2967, %v3656
      %v3658 = vrot.slane %v2968, 7
      %v3659 = vsel %vm2990, %v3658, %v3657
      %v3660 = vrot.slane %v2969, 6
      %v3661 = vsel %vm2993, %v3660, %v3659
      %v3662 = vrot.slane %v2970, 5
      %v3663 = vsel %vm2996, %v3662, %v3661
      %v3664 = vrot.slane %v2971, 4
      %v3665 = vsel %vm2999, %v3664, %v3663
      %v3666 = vrot.slane %v2972, 3
      %v3667 = vsel %vm3002, %v3666, %v3665
      %v3668 = vrot.slane %v2973, 2
      %v3669 = vsel %vm3005, %v3668, %v3667
      %v3670 = vrot.slane %v2974, 1
      %v3671 = vsel %vm2987, %v2975, %v3670
      %v3672 = vrot.slane %v2976, 7
      %v3673 = vsel %vm2990, %v3672, %v3671
      %v3674 = vrot.slane %v2977, 6
      %v3675 = vsel %vm2993, %v3674, %v3673
      %v3676 = vrot.slane %v2978, 5
      %v3677 = vsel %vm2996, %v3676, %v3675
      %v3678 = vrot.slane %v2979, 4
      %v3679 = vsel %vm2999, %v3678, %v3677
      %v3680 = vrot.slane %v2980, 3
      %v3681 = vsel %vm3002, %v3680, %v3679
      %v3682 = vrot.slane %v2981, 2
      %v3683 = vsel %vm3005, %v3682, %v3681
      %v3684 = vrot.slane %v2982, 1
      %v3685 = vsel %vm2987, %v2983, %v3684
      %v3686 = vrot.slane %v2984, 7
      %v3687 = vsel %vm2990, %v3686, %v3685
      %v3688 = vrot.slane %v2985, 6
      %v3689 = vsel %vm2993, %v3688, %v3687
      %v3690 = vpack.c.b16 %v3375, %v3361
      %v3691 = vpack.c.b16 %v3403, %v3389
      %v3692 = vpack.c.b16 %v3431, %v3417
      %v3693 = vpack.c.b16 %v3459, %v3445
      %v3694 = vpack.c.b16 %v3487, %v3473
      %v3695 = vpack.c.b16 %v3515, %v3501
      %v3696 = vpack.c.b16 %v3543, %v3529
      %v3697 = vpack.c.b16 %v3571, %v3557
      %v3698 = vpack.c.b16 %v3599, %v3585
      %v3699 = vpack.c.b16 %v3627, %v3613
      %v3700 = vpack.c.b16 %v3655, %v3641
      %v3701 = vpack.c.b16 %v3683, %v3669
      %v3702 = vpack.c.b16 %v3689, %v3689
      %3703 = vrot.lane.b32.xlu0 %v3690, 16
      %v3704 = vpop.permute.xlu0 %3703
      %3705 = vrot.lane.b32.xlu0 %v3691, 16
      %v3706 = vpop.permute.xlu0 %3705
      %3707 = vrot.lane.b32.xlu0 %v3692, 16
      %v3708 = vpop.permute.xlu0 %3707
      %3709 = vrot.lane.b32.xlu0 %v3693, 16
      %v3710 = vpop.permute.xlu0 %3709
      %3711 = vrot.lane.b32.xlu0 %v3694, 16
      %v3712 = vpop.permute.xlu0 %3711
      %3713 = vrot.lane.b32.xlu0 %v3695, 16
      %v3714 = vpop.permute.xlu0 %3713
      %3715 = vrot.lane.b32.xlu0 %v3696, 16
      %v3716 = vpop.permute.xlu0 %3715
      %3717 = vrot.lane.b32.xlu0 %v3697, 16
      %v3718 = vpop.permute.xlu0 %3717
      %3719 = vrot.lane.b32.xlu0 %v3698, 16
      %v3720 = vpop.permute.xlu0 %3719
      %3721 = vrot.lane.b32.xlu0 %v3699, 16
      %v3722 = vpop.permute.xlu0 %3721
      %3723 = vrot.lane.b32.xlu0 %v3700, 16
      %v3724 = vpop.permute.xlu0 %3723
      %3725 = vrot.lane.b32.xlu0 %v3701, 16
      %v3726 = vpop.permute.xlu0 %3725
      %3727 = vrot.lane.b32.xlu0 %v3702, 16
      %v3728 = vpop.permute.xlu0 %3727
      %v3729 = vrot.slane %v2790, 2
      %v3730 = vrot.slane %v2791, 1
      %v3731 = vsel %vm2987, %v3730, %v3729
      %v3732 = vsel %vm2990, %v2792, %v3731
      %v3733 = vrot.slane %v2793, 7
      %v3734 = vsel %vm2993, %v3733, %v3732
      %v3735 = vrot.slane %v2794, 6
      %v3736 = vsel %vm2996, %v3735, %v3734
      %v3737 = vrot.slane %v2795, 5
      %v3738 = vsel %vm2999, %v3737, %v3736
      %v3739 = vrot.slane %v2796, 4
      %v3740 = vsel %vm3002, %v3739, %v3738
      %v3741 = vrot.slane %v2797, 3
      %v3742 = vsel %vm3005, %v3741, %v3740
      %v3743 = vrot.slane %v2798, 2
      %v3744 = vrot.slane %v2799, 1
      %v3745 = vsel %vm2987, %v3744, %v3743
      %v3746 = vsel %vm2990, %v2800, %v3745
      %v3747 = vrot.slane %v2801, 7
      %v3748 = vsel %vm2993, %v3747, %v3746
      %v3749 = vrot.slane %v2802, 6
      %v3750 = vsel %vm2996, %v3749, %v3748
      %v3751 = vrot.slane %v2803, 5
      %v3752 = vsel %vm2999, %v3751, %v3750
      %v3753 = vrot.slane %v2804, 4
      %v3754 = vsel %vm3002, %v3753, %v3752
      %v3755 = vrot.slane %v2805, 3
      %v3756 = vsel %vm3005, %v3755, %v3754
      %v3757 = vrot.slane %v2806, 2
      %v3758 = vrot.slane %v2807, 1
      %v3759 = vsel %vm2987, %v3758, %v3757
      %v3760 = vsel %vm2990, %v2808, %v3759
      %v3761 = vrot.slane %v2809, 7
      %v3762 = vsel %vm2993, %v3761, %v3760
      %v3763 = vrot.slane %v2810, 6
      %v3764 = vsel %vm2996, %v3763, %v3762
      %v3765 = vrot.slane %v2811, 5
      %v3766 = vsel %vm2999, %v3765, %v3764
      %v3767 = vrot.slane %v2812, 4
      %v3768 = vsel %vm3002, %v3767, %v3766
      %v3769 = vrot.slane %v2813, 3
      %v3770 = vsel %vm3005, %v3769, %v3768
      %v3771 = vrot.slane %v2814, 2
      %v3772 = vrot.slane %v2815, 1
      %v3773 = vsel %vm2987, %v3772, %v3771
      %v3774 = vsel %vm2990, %v2816, %v3773
      %v3775 = vrot.slane %v2817, 7
      %v3776 = vsel %vm2993, %v3775, %v3774
      %v3777 = vrot.slane %v2818, 6
      %v3778 = vsel %vm2996, %v3777, %v3776
      %v3779 = vrot.slane %v2819, 5
      %v3780 = vsel %vm2999, %v3779, %v3778
      %v3781 = vrot.slane %v2820, 4
      %v3782 = vsel %vm3002, %v3781, %v3780
      %v3783 = vrot.slane %v2821, 3
      %v3784 = vsel %vm3005, %v3783, %v3782
      %v3785 = vrot.slane %v2822, 2
      %v3786 = vrot.slane %v2823, 1
      %v3787 = vsel %vm2987, %v3786, %v3785
      %v3788 = vsel %vm2990, %v2824, %v3787
      %v3789 = vrot.slane %v2825, 7
      %v3790 = vsel %vm2993, %v3789, %v3788
      %v3791 = vrot.slane %v2826, 6
      %v3792 = vsel %vm2996, %v3791, %v3790
      %v3793 = vrot.slane %v2827, 5
      %v3794 = vsel %vm2999, %v3793, %v3792
      %v3795 = vrot.slane %v2828, 4
      %v3796 = vsel %vm3002, %v3795, %v3794
      %v3797 = vrot.slane %v2829, 3
      %v3798 = vsel %vm3005, %v3797, %v3796
      %v3799 = vrot.slane %v2830, 2
      %v3800 = vrot.slane %v2831, 1
      %v3801 = vsel %vm2987, %v3800, %v3799
      %v3802 = vsel %vm2990, %v2832, %v3801
      %v3803 = vrot.slane %v2833, 7
      %v3804 = vsel %vm2993, %v3803, %v3802
      %v3805 = vrot.slane %v2834, 6
      %v3806 = vsel %vm2996, %v3805, %v3804
      %v3807 = vrot.slane %v2835, 5
      %v3808 = vsel %vm2999, %v3807, %v3806
      %v3809 = vrot.slane %v2836, 4
      %v3810 = vsel %vm3002, %v3809, %v3808
      %v3811 = vrot.slane %v2837, 3
      %v3812 = vsel %vm3005, %v3811, %v3810
      %v3813 = vrot.slane %v2838, 2
      %v3814 = vrot.slane %v2839, 1
      %v3815 = vsel %vm2987, %v3814, %v3813
      %v3816 = vsel %vm2990, %v2840, %v3815
      %v3817 = vrot.slane %v2841, 7
      %v3818 = vsel %vm2993, %v3817, %v3816
      %v3819 = vrot.slane %v2842, 6
      %v3820 = vsel %vm2996, %v3819, %v3818
      %v3821 = vrot.slane %v2843, 5
      %v3822 = vsel %vm2999, %v3821, %v3820
      %v3823 = vrot.slane %v2844, 4
      %v3824 = vsel %vm3002, %v3823, %v3822
      %v3825 = vrot.slane %v2845, 3
      %v3826 = vsel %vm3005, %v3825, %v3824
      %v3827 = vrot.slane %v2846, 2
      %v3828 = vrot.slane %v2847, 1
      %v3829 = vsel %vm2987, %v3828, %v3827
      %v3830 = vsel %vm2990, %v2848, %v3829
      %v3831 = vrot.slane %v2849, 7
      %v3832 = vsel %vm2993, %v3831, %v3830
      %v3833 = vrot.slane %v2850, 6
      %v3834 = vsel %vm2996, %v3833, %v3832
      %v3835 = vrot.slane %v2851, 5
      %v3836 = vsel %vm2999, %v3835, %v3834
      %v3837 = vrot.slane %v2852, 4
      %v3838 = vsel %vm3002, %v3837, %v3836
      %v3839 = vrot.slane %v2853, 3
      %v3840 = vsel %vm3005, %v3839, %v3838
      %v3841 = vrot.slane %v2854, 2
      %v3842 = vrot.slane %v2855, 1
      %v3843 = vsel %vm2987, %v3842, %v3841
      %v3844 = vsel %vm2990, %v2856, %v3843
      %v3845 = vrot.slane %v2857, 7
      %v3846 = vsel %vm2993, %v3845, %v3844
      %v3847 = vrot.slane %v2858, 6
      %v3848 = vsel %vm2996, %v3847, %v3846
      %v3849 = vrot.slane %v2859, 5
      %v3850 = vsel %vm2999, %v3849, %v3848
      %v3851 = vrot.slane %v2860, 4
      %v3852 = vsel %vm3002, %v3851, %v3850
      %v3853 = vrot.slane %v2861, 3
      %v3854 = vsel %vm3005, %v3853, %v3852
      %v3855 = vrot.slane %v2862, 2
      %v3856 = vrot.slane %v2863, 1
      %v3857 = vsel %vm2987, %v3856, %v3855
      %v3858 = vsel %vm2990, %v2864, %v3857
      %v3859 = vrot.slane %v2865, 7
      %v3860 = vsel %vm2993, %v3859, %v3858
      %v3861 = vrot.slane %v2866, 6
      %v3862 = vsel %vm2996, %v3861, %v3860
      %v3863 = vrot.slane %v2867, 5
      %v3864 = vsel %vm2999, %v3863, %v3862
      %v3865 = vrot.slane %v2868, 4
      %v3866 = vsel %vm3002, %v3865, %v3864
      %v3867 = vrot.slane %v2869, 3
      %v3868 = vsel %vm3005, %v3867, %v3866
      %v3869 = vrot.slane %v2870, 2
      %v3870 = vrot.slane %v2871, 1
      %v3871 = vsel %vm2987, %v3870, %v3869
      %v3872 = vsel %vm2990, %v2872, %v3871
      %v3873 = vrot.slane %v2873, 7
      %v3874 = vsel %vm2993, %v3873, %v3872
      %v3875 = vrot.slane %v2874, 6
      %v3876 = vsel %vm2996, %v3875, %v3874
      %v3877 = vrot.slane %v2875, 5
      %v3878 = vsel %vm2999, %v3877, %v3876
      %v3879 = vrot.slane %v2876, 4
      %v3880 = vsel %vm3002, %v3879, %v3878
      %v3881 = vrot.slane %v2877, 3
      %v3882 = vsel %vm3005, %v3881, %v3880
      %v3883 = vrot.slane %v2878, 2
      %v3884 = vrot.slane %v2879, 1
      %v3885 = vsel %vm2987, %v3884, %v3883
      %v3886 = vsel %vm2990, %v2880, %v3885
      %v3887 = vrot.slane %v2881, 7
      %v3888 = vsel %vm2993, %v3887, %v3886
      %v3889 = vrot.slane %v2882, 6
      %v3890 = vsel %vm2996, %v3889, %v3888
      %v3891 = vrot.slane %v2883, 5
      %v3892 = vsel %vm2999, %v3891, %v3890
      %v3893 = vrot.slane %v2884, 4
      %v3894 = vsel %vm3002, %v3893, %v3892
      %v3895 = vrot.slane %v2885, 3
      %v3896 = vsel %vm3005, %v3895, %v3894
      %v3897 = vrot.slane %v2886, 2
      %v3898 = vrot.slane %v2887, 1
      %v3899 = vsel %vm2987, %v3898, %v3897
      %v3900 = vsel %vm2990, %v2888, %v3899
      %v3901 = vrot.slane %v2889, 7
      %v3902 = vsel %vm2993, %v3901, %v3900
      %v3903 = vrot.slane %v2890, 6
      %v3904 = vsel %vm2996, %v3903, %v3902
      %v3905 = vrot.slane %v2891, 5
      %v3906 = vsel %vm2999, %v3905, %v3904
      %v3907 = vrot.slane %v2892, 4
      %v3908 = vsel %vm3002, %v3907, %v3906
      %v3909 = vrot.slane %v2893, 3
      %v3910 = vsel %vm3005, %v3909, %v3908
      %v3911 = vrot.slane %v2894, 2
      %v3912 = vrot.slane %v2895, 1
      %v3913 = vsel %vm2987, %v3912, %v3911
      %v3914 = vsel %vm2990, %v2896, %v3913
      %v3915 = vrot.slane %v2897, 7
      %v3916 = vsel %vm2993, %v3915, %v3914
      %v3917 = vrot.slane %v2898, 6
      %v3918 = vsel %vm2996, %v3917, %v3916
      %v3919 = vrot.slane %v2899, 5
      %v3920 = vsel %vm2999, %v3919, %v3918
      %v3921 = vrot.slane %v2900, 4
      %v3922 = vsel %vm3002, %v3921, %v3920
      %v3923 = vrot.slane %v2901, 3
      %v3924 = vsel %vm3005, %v3923, %v3922
      %v3925 = vrot.slane %v2902, 2
      %v3926 = vrot.slane %v2903, 1
      %v3927 = vsel %vm2987, %v3926, %v3925
      %v3928 = vsel %vm2990, %v2904, %v3927
      %v3929 = vrot.slane %v2905, 7
      %v3930 = vsel %vm2993, %v3929, %v3928
      %v3931 = vrot.slane %v2906, 6
      %v3932 = vsel %vm2996, %v3931, %v3930
      %v3933 = vrot.slane %v2907, 5
      %v3934 = vsel %vm2999, %v3933, %v3932
      %v3935 = vrot.slane %v2908, 4
      %v3936 = vsel %vm3002, %v3935, %v3934
      %v3937 = vrot.slane %v2909, 3
      %v3938 = vsel %vm3005, %v3937, %v3936
      %v3939 = vrot.slane %v2910, 2
      %v3940 = vrot.slane %v2911, 1
      %v3941 = vsel %vm2987, %v3940, %v3939
      %v3942 = vsel %vm2990, %v2912, %v3941
      %v3943 = vrot.slane %v2913, 7
      %v3944 = vsel %vm2993, %v3943, %v3942
      %v3945 = vrot.slane %v2914, 6
      %v3946 = vsel %vm2996, %v3945, %v3944
      %v3947 = vrot.slane %v2915, 5
      %v3948 = vsel %vm2999, %v3947, %v3946
      %v3949 = vrot.slane %v2916, 4
      %v3950 = vsel %vm3002, %v3949, %v3948
      %v3951 = vrot.slane %v2917, 3
      %v3952 = vsel %vm3005, %v3951, %v3950
      %v3953 = vrot.slane %v2918, 2
      %v3954 = vrot.slane %v2919, 1
      %v3955 = vsel %vm2987, %v3954, %v3953
      %v3956 = vsel %vm2990, %v2920, %v3955
      %v3957 = vrot.slane %v2921, 7
      %v3958 = vsel %vm2993, %v3957, %v3956
      %v3959 = vrot.slane %v2922, 6
      %v3960 = vsel %vm2996, %v3959, %v3958
      %v3961 = vrot.slane %v2923, 5
      %v3962 = vsel %vm2999, %v3961, %v3960
      %v3963 = vrot.slane %v2924, 4
      %v3964 = vsel %vm3002, %v3963, %v3962
      %v3965 = vrot.slane %v2925, 3
      %v3966 = vsel %vm3005, %v3965, %v3964
      %v3967 = vrot.slane %v2926, 2
      %v3968 = vrot.slane %v2927, 1
      %v3969 = vsel %vm2987, %v3968, %v3967
      %v3970 = vsel %vm2990, %v2928, %v3969
      %v3971 = vrot.slane %v2929, 7
      %v3972 = vsel %vm2993, %v3971, %v3970
      %v3973 = vrot.slane %v2930, 6
      %v3974 = vsel %vm2996, %v3973, %v3972
      %v3975 = vrot.slane %v2931, 5
      %v3976 = vsel %vm2999, %v3975, %v3974
      %v3977 = vrot.slane %v2932, 4
      %v3978 = vsel %vm3002, %v3977, %v3976
      %v3979 = vrot.slane %v2933, 3
      %v3980 = vsel %vm3005, %v3979, %v3978
      %v3981 = vrot.slane %v2934, 2
      %v3982 = vrot.slane %v2935, 1
      %v3983 = vsel %vm2987, %v3982, %v3981
      %v3984 = vsel %vm2990, %v2936, %v3983
      %v3985 = vrot.slane %v2937, 7
      %v3986 = vsel %vm2993, %v3985, %v3984
      %v3987 = vrot.slane %v2938, 6
      %v3988 = vsel %vm2996, %v3987, %v3986
      %v3989 = vrot.slane %v2939, 5
      %v3990 = vsel %vm2999, %v3989, %v3988
      %v3991 = vrot.slane %v2940, 4
      %v3992 = vsel %vm3002, %v3991, %v3990
      %v3993 = vrot.slane %v2941, 3
      %v3994 = vsel %vm3005, %v3993, %v3992
      %v3995 = vrot.slane %v2942, 2
      %v3996 = vrot.slane %v2943, 1
      %v3997 = vsel %vm2987, %v3996, %v3995
      %v3998 = vsel %vm2990, %v2944, %v3997
      %v3999 = vrot.slane %v2945, 7
      %v4000 = vsel %vm2993, %v3999, %v3998
      %v4001 = vrot.slane %v2946, 6
      %v4002 = vsel %vm2996, %v4001, %v4000
      %v4003 = vrot.slane %v2947, 5
      %v4004 = vsel %vm2999, %v4003, %v4002
      %v4005 = vrot.slane %v2948, 4
      %v4006 = vsel %vm3002, %v4005, %v4004
      %v4007 = vrot.slane %v2949, 3
      %v4008 = vsel %vm3005, %v4007, %v4006
      %v4009 = vrot.slane %v2950, 2
      %v4010 = vrot.slane %v2951, 1
      %v4011 = vsel %vm2987, %v4010, %v4009
      %v4012 = vsel %vm2990, %v2952, %v4011
      %v4013 = vrot.slane %v2953, 7
      %v4014 = vsel %vm2993, %v4013, %v4012
      %v4015 = vrot.slane %v2954, 6
      %v4016 = vsel %vm2996, %v4015, %v4014
      %v4017 = vrot.slane %v2955, 5
      %v4018 = vsel %vm2999, %v4017, %v4016
      %v4019 = vrot.slane %v2956, 4
      %v4020 = vsel %vm3002, %v4019, %v4018
      %v4021 = vrot.slane %v2957, 3
      %v4022 = vsel %vm3005, %v4021, %v4020
      %v4023 = vrot.slane %v2958, 2
      %v4024 = vrot.slane %v2959, 1
      %v4025 = vsel %vm2987, %v4024, %v4023
      %v4026 = vsel %vm2990, %v2960, %v4025
      %v4027 = vrot.slane %v2961, 7
      %v4028 = vsel %vm2993, %v4027, %v4026
      %v4029 = vrot.slane %v2962, 6
      %v4030 = vsel %vm2996, %v4029, %v4028
      %v4031 = vrot.slane %v2963, 5
      %v4032 = vsel %vm2999, %v4031, %v4030
      %v4033 = vrot.slane %v2964, 4
      %v4034 = vsel %vm3002, %v4033, %v4032
      %v4035 = vrot.slane %v2965, 3
      %v4036 = vsel %vm3005, %v4035, %v4034
      %v4037 = vrot.slane %v2966, 2
      %v4038 = vrot.slane %v2967, 1
      %v4039 = vsel %vm2987, %v4038, %v4037
      %v4040 = vsel %vm2990, %v2968, %v4039
      %v4041 = vrot.slane %v2969, 7
      %v4042 = vsel %vm2993, %v4041, %v4040
      %v4043 = vrot.slane %v2970, 6
      %v4044 = vsel %vm2996, %v4043, %v4042
      %v4045 = vrot.slane %v2971, 5
      %v4046 = vsel %vm2999, %v4045, %v4044
      %v4047 = vrot.slane %v2972, 4
      %v4048 = vsel %vm3002, %v4047, %v4046
      %v4049 = vrot.slane %v2973, 3
      %v4050 = vsel %vm3005, %v4049, %v4048
      %v4051 = vrot.slane %v2974, 2
      %v4052 = vrot.slane %v2975, 1
      %v4053 = vsel %vm2987, %v4052, %v4051
      %v4054 = vsel %vm2990, %v2976, %v4053
      %v4055 = vrot.slane %v2977, 7
      %v4056 = vsel %vm2993, %v4055, %v4054
      %v4057 = vrot.slane %v2978, 6
      %v4058 = vsel %vm2996, %v4057, %v4056
      %v4059 = vrot.slane %v2979, 5
      %v4060 = vsel %vm2999, %v4059, %v4058
      %v4061 = vrot.slane %v2980, 4
      %v4062 = vsel %vm3002, %v4061, %v4060
      %v4063 = vrot.slane %v2981, 3
      %v4064 = vsel %vm3005, %v4063, %v4062
      %v4065 = vrot.slane %v2982, 2
      %v4066 = vrot.slane %v2983, 1
      %v4067 = vsel %vm2987, %v4066, %v4065
      %v4068 = vsel %vm2990, %v2984, %v4067
      %v4069 = vrot.slane %v2985, 7
      %v4070 = vsel %vm2993, %v4069, %v4068
      %v4071 = vpack.c.b16 %v3756, %v3742
      %v4072 = vpack.c.b16 %v3784, %v3770
      %v4073 = vpack.c.b16 %v3812, %v3798
      %v4074 = vpack.c.b16 %v3840, %v3826
      %v4075 = vpack.c.b16 %v3868, %v3854
      %v4076 = vpack.c.b16 %v3896, %v3882
      %v4077 = vpack.c.b16 %v3924, %v3910
      %v4078 = vpack.c.b16 %v3952, %v3938
      %v4079 = vpack.c.b16 %v3980, %v3966
      %v4080 = vpack.c.b16 %v4008, %v3994
      %v4081 = vpack.c.b16 %v4036, %v4022
      %v4082 = vpack.c.b16 %v4064, %v4050
      %v4083 = vpack.c.b16 %v4070, %v4070
      %4084 = vrot.lane.b32.xlu0 %v4071, 32
      %v4085 = vpop.permute.xlu0 %4084
      %4086 = vrot.lane.b32.xlu0 %v4072, 32
      %v4087 = vpop.permute.xlu0 %4086
      %4088 = vrot.lane.b32.xlu0 %v4073, 32
      %v4089 = vpop.permute.xlu0 %4088
      %4090 = vrot.lane.b32.xlu0 %v4074, 32
      %v4091 = vpop.permute.xlu0 %4090
      %4092 = vrot.lane.b32.xlu0 %v4075, 32
      %v4093 = vpop.permute.xlu0 %4092
      %4094 = vrot.lane.b32.xlu0 %v4076, 32
      %v4095 = vpop.permute.xlu0 %4094
      %4096 = vrot.lane.b32.xlu0 %v4077, 32
      %v4097 = vpop.permute.xlu0 %4096
      %4098 = vrot.lane.b32.xlu0 %v4078, 32
      %v4099 = vpop.permute.xlu0 %4098
      %4100 = vrot.lane.b32.xlu0 %v4079, 32
      %v4101 = vpop.permute.xlu0 %4100
      %4102 = vrot.lane.b32.xlu0 %v4080, 32
      %v4103 = vpop.permute.xlu0 %4102
      %4104 = vrot.lane.b32.xlu0 %v4081, 32
      %v4105 = vpop.permute.xlu0 %4104
      %4106 = vrot.lane.b32.xlu0 %v4082, 32
      %v4107 = vpop.permute.xlu0 %4106
      %4108 = vrot.lane.b32.xlu0 %v4083, 32
      %v4109 = vpop.permute.xlu0 %4108
      %v4110 = vrot.slane %v2790, 3
      %v4111 = vrot.slane %v2791, 2
      %v4112 = vsel %vm2987, %v4111, %v4110
      %v4113 = vrot.slane %v2792, 1
      %v4114 = vsel %vm2990, %v4113, %v4112
      %v4115 = vsel %vm2993, %v2793, %v4114
      %v4116 = vrot.slane %v2794, 7
      %v4117 = vsel %vm2996, %v4116, %v4115
      %v4118 = vrot.slane %v2795, 6
      %v4119 = vsel %vm2999, %v4118, %v4117
      %v4120 = vrot.slane %v2796, 5
      %v4121 = vsel %vm3002, %v4120, %v4119
      %v4122 = vrot.slane %v2797, 4
      %v4123 = vsel %vm3005, %v4122, %v4121
      %v4124 = vrot.slane %v2798, 3
      %v4125 = vrot.slane %v2799, 2
      %v4126 = vsel %vm2987, %v4125, %v4124
      %v4127 = vrot.slane %v2800, 1
      %v4128 = vsel %vm2990, %v4127, %v4126
      %v4129 = vsel %vm2993, %v2801, %v4128
      %v4130 = vrot.slane %v2802, 7
      %v4131 = vsel %vm2996, %v4130, %v4129
      %v4132 = vrot.slane %v2803, 6
      %v4133 = vsel %vm2999, %v4132, %v4131
      %v4134 = vrot.slane %v2804, 5
      %v4135 = vsel %vm3002, %v4134, %v4133
      %v4136 = vrot.slane %v2805, 4
      %v4137 = vsel %vm3005, %v4136, %v4135
      %v4138 = vrot.slane %v2806, 3
      %v4139 = vrot.slane %v2807, 2
      %v4140 = vsel %vm2987, %v4139, %v4138
      %v4141 = vrot.slane %v2808, 1
      %v4142 = vsel %vm2990, %v4141, %v4140
      %v4143 = vsel %vm2993, %v2809, %v4142
      %v4144 = vrot.slane %v2810, 7
      %v4145 = vsel %vm2996, %v4144, %v4143
      %v4146 = vrot.slane %v2811, 6
      %v4147 = vsel %vm2999, %v4146, %v4145
      %v4148 = vrot.slane %v2812, 5
      %v4149 = vsel %vm3002, %v4148, %v4147
      %v4150 = vrot.slane %v2813, 4
      %v4151 = vsel %vm3005, %v4150, %v4149
      %v4152 = vrot.slane %v2814, 3
      %v4153 = vrot.slane %v2815, 2
      %v4154 = vsel %vm2987, %v4153, %v4152
      %v4155 = vrot.slane %v2816, 1
      %v4156 = vsel %vm2990, %v4155, %v4154
      %v4157 = vsel %vm2993, %v2817, %v4156
      %v4158 = vrot.slane %v2818, 7
      %v4159 = vsel %vm2996, %v4158, %v4157
      %v4160 = vrot.slane %v2819, 6
      %v4161 = vsel %vm2999, %v4160, %v4159
      %v4162 = vrot.slane %v2820, 5
      %v4163 = vsel %vm3002, %v4162, %v4161
      %v4164 = vrot.slane %v2821, 4
      %v4165 = vsel %vm3005, %v4164, %v4163
      %v4166 = vrot.slane %v2822, 3
      %v4167 = vrot.slane %v2823, 2
      %v4168 = vsel %vm2987, %v4167, %v4166
      %v4169 = vrot.slane %v2824, 1
      %v4170 = vsel %vm2990, %v4169, %v4168
      %v4171 = vsel %vm2993, %v2825, %v4170
      %v4172 = vrot.slane %v2826, 7
      %v4173 = vsel %vm2996, %v4172, %v4171
      %v4174 = vrot.slane %v2827, 6
      %v4175 = vsel %vm2999, %v4174, %v4173
      %v4176 = vrot.slane %v2828, 5
      %v4177 = vsel %vm3002, %v4176, %v4175
      %v4178 = vrot.slane %v2829, 4
      %v4179 = vsel %vm3005, %v4178, %v4177
      %v4180 = vrot.slane %v2830, 3
      %v4181 = vrot.slane %v2831, 2
      %v4182 = vsel %vm2987, %v4181, %v4180
      %v4183 = vrot.slane %v2832, 1
      %v4184 = vsel %vm2990, %v4183, %v4182
      %v4185 = vsel %vm2993, %v2833, %v4184
      %v4186 = vrot.slane %v2834, 7
      %v4187 = vsel %vm2996, %v4186, %v4185
      %v4188 = vrot.slane %v2835, 6
      %v4189 = vsel %vm2999, %v4188, %v4187
      %v4190 = vrot.slane %v2836, 5
      %v4191 = vsel %vm3002, %v4190, %v4189
      %v4192 = vrot.slane %v2837, 4
      %v4193 = vsel %vm3005, %v4192, %v4191
      %v4194 = vrot.slane %v2838, 3
      %v4195 = vrot.slane %v2839, 2
      %v4196 = vsel %vm2987, %v4195, %v4194
      %v4197 = vrot.slane %v2840, 1
      %v4198 = vsel %vm2990, %v4197, %v4196
      %v4199 = vsel %vm2993, %v2841, %v4198
      %v4200 = vrot.slane %v2842, 7
      %v4201 = vsel %vm2996, %v4200, %v4199
      %v4202 = vrot.slane %v2843, 6
      %v4203 = vsel %vm2999, %v4202, %v4201
      %v4204 = vrot.slane %v2844, 5
      %v4205 = vsel %vm3002, %v4204, %v4203
      %v4206 = vrot.slane %v2845, 4
      %v4207 = vsel %vm3005, %v4206, %v4205
      %v4208 = vrot.slane %v2846, 3
      %v4209 = vrot.slane %v2847, 2
      %v4210 = vsel %vm2987, %v4209, %v4208
      %v4211 = vrot.slane %v2848, 1
      %v4212 = vsel %vm2990, %v4211, %v4210
      %v4213 = vsel %vm2993, %v2849, %v4212
      %v4214 = vrot.slane %v2850, 7
      %v4215 = vsel %vm2996, %v4214, %v4213
      %v4216 = vrot.slane %v2851, 6
      %v4217 = vsel %vm2999, %v4216, %v4215
      %v4218 = vrot.slane %v2852, 5
      %v4219 = vsel %vm3002, %v4218, %v4217
      %v4220 = vrot.slane %v2853, 4
      %v4221 = vsel %vm3005, %v4220, %v4219
      %v4222 = vrot.slane %v2854, 3
      %v4223 = vrot.slane %v2855, 2
      %v4224 = vsel %vm2987, %v4223, %v4222
      %v4225 = vrot.slane %v2856, 1
      %v4226 = vsel %vm2990, %v4225, %v4224
      %v4227 = vsel %vm2993, %v2857, %v4226
      %v4228 = vrot.slane %v2858, 7
      %v4229 = vsel %vm2996, %v4228, %v4227
      %v4230 = vrot.slane %v2859, 6
      %v4231 = vsel %vm2999, %v4230, %v4229
      %v4232 = vrot.slane %v2860, 5
      %v4233 = vsel %vm3002, %v4232, %v4231
      %v4234 = vrot.slane %v2861, 4
      %v4235 = vsel %vm3005, %v4234, %v4233
      %v4236 = vrot.slane %v2862, 3
      %v4237 = vrot.slane %v2863, 2
      %v4238 = vsel %vm2987, %v4237, %v4236
      %v4239 = vrot.slane %v2864, 1
      %v4240 = vsel %vm2990, %v4239, %v4238
      %v4241 = vsel %vm2993, %v2865, %v4240
      %v4242 = vrot.slane %v2866, 7
      %v4243 = vsel %vm2996, %v4242, %v4241
      %v4244 = vrot.slane %v2867, 6
      %v4245 = vsel %vm2999, %v4244, %v4243
      %v4246 = vrot.slane %v2868, 5
      %v4247 = vsel %vm3002, %v4246, %v4245
      %v4248 = vrot.slane %v2869, 4
      %v4249 = vsel %vm3005, %v4248, %v4247
      %v4250 = vrot.slane %v2870, 3
      %v4251 = vrot.slane %v2871, 2
      %v4252 = vsel %vm2987, %v4251, %v4250
      %v4253 = vrot.slane %v2872, 1
      %v4254 = vsel %vm2990, %v4253, %v4252
      %v4255 = vsel %vm2993, %v2873, %v4254
      %v4256 = vrot.slane %v2874, 7
      %v4257 = vsel %vm2996, %v4256, %v4255
      %v4258 = vrot.slane %v2875, 6
      %v4259 = vsel %vm2999, %v4258, %v4257
      %v4260 = vrot.slane %v2876, 5
      %v4261 = vsel %vm3002, %v4260, %v4259
      %v4262 = vrot.slane %v2877, 4
      %v4263 = vsel %vm3005, %v4262, %v4261
      %v4264 = vrot.slane %v2878, 3
      %v4265 = vrot.slane %v2879, 2
      %v4266 = vsel %vm2987, %v4265, %v4264
      %v4267 = vrot.slane %v2880, 1
      %v4268 = vsel %vm2990, %v4267, %v4266
      %v4269 = vsel %vm2993, %v2881, %v4268
      %v4270 = vrot.slane %v2882, 7
      %v4271 = vsel %vm2996, %v4270, %v4269
      %v4272 = vrot.slane %v2883, 6
      %v4273 = vsel %vm2999, %v4272, %v4271
      %v4274 = vrot.slane %v2884, 5
      %v4275 = vsel %vm3002, %v4274, %v4273
      %v4276 = vrot.slane %v2885, 4
      %v4277 = vsel %vm3005, %v4276, %v4275
      %v4278 = vrot.slane %v2886, 3
      %v4279 = vrot.slane %v2887, 2
      %v4280 = vsel %vm2987, %v4279, %v4278
      %v4281 = vrot.slane %v2888, 1
      %v4282 = vsel %vm2990, %v4281, %v4280
      %v4283 = vsel %vm2993, %v2889, %v4282
      %v4284 = vrot.slane %v2890, 7
      %v4285 = vsel %vm2996, %v4284, %v4283
      %v4286 = vrot.slane %v2891, 6
      %v4287 = vsel %vm2999, %v4286, %v4285
      %v4288 = vrot.slane %v2892, 5
      %v4289 = vsel %vm3002, %v4288, %v4287
      %v4290 = vrot.slane %v2893, 4
      %v4291 = vsel %vm3005, %v4290, %v4289
      %v4292 = vrot.slane %v2894, 3
      %v4293 = vrot.slane %v2895, 2
      %v4294 = vsel %vm2987, %v4293, %v4292
      %v4295 = vrot.slane %v2896, 1
      %v4296 = vsel %vm2990, %v4295, %v4294
      %v4297 = vsel %vm2993, %v2897, %v4296
      %v4298 = vrot.slane %v2898, 7
      %v4299 = vsel %vm2996, %v4298, %v4297
      %v4300 = vrot.slane %v2899, 6
      %v4301 = vsel %vm2999, %v4300, %v4299
      %v4302 = vrot.slane %v2900, 5
      %v4303 = vsel %vm3002, %v4302, %v4301
      %v4304 = vrot.slane %v2901, 4
      %v4305 = vsel %vm3005, %v4304, %v4303
      %v4306 = vrot.slane %v2902, 3
      %v4307 = vrot.slane %v2903, 2
      %v4308 = vsel %vm2987, %v4307, %v4306
      %v4309 = vrot.slane %v2904, 1
      %v4310 = vsel %vm2990, %v4309, %v4308
      %v4311 = vsel %vm2993, %v2905, %v4310
      %v4312 = vrot.slane %v2906, 7
      %v4313 = vsel %vm2996, %v4312, %v4311
      %v4314 = vrot.slane %v2907, 6
      %v4315 = vsel %vm2999, %v4314, %v4313
      %v4316 = vrot.slane %v2908, 5
      %v4317 = vsel %vm3002, %v4316, %v4315
      %v4318 = vrot.slane %v2909, 4
      %v4319 = vsel %vm3005, %v4318, %v4317
      %v4320 = vrot.slane %v2910, 3
      %v4321 = vrot.slane %v2911, 2
      %v4322 = vsel %vm2987, %v4321, %v4320
      %v4323 = vrot.slane %v2912, 1
      %v4324 = vsel %vm2990, %v4323, %v4322
      %v4325 = vsel %vm2993, %v2913, %v4324
      %v4326 = vrot.slane %v2914, 7
      %v4327 = vsel %vm2996, %v4326, %v4325
      %v4328 = vrot.slane %v2915, 6
      %v4329 = vsel %vm2999, %v4328, %v4327
      %v4330 = vrot.slane %v2916, 5
      %v4331 = vsel %vm3002, %v4330, %v4329
      %v4332 = vrot.slane %v2917, 4
      %v4333 = vsel %vm3005, %v4332, %v4331
      %v4334 = vrot.slane %v2918, 3
      %v4335 = vrot.slane %v2919, 2
      %v4336 = vsel %vm2987, %v4335, %v4334
      %v4337 = vrot.slane %v2920, 1
      %v4338 = vsel %vm2990, %v4337, %v4336
      %v4339 = vsel %vm2993, %v2921, %v4338
      %v4340 = vrot.slane %v2922, 7
      %v4341 = vsel %vm2996, %v4340, %v4339
      %v4342 = vrot.slane %v2923, 6
      %v4343 = vsel %vm2999, %v4342, %v4341
      %v4344 = vrot.slane %v2924, 5
      %v4345 = vsel %vm3002, %v4344, %v4343
      %v4346 = vrot.slane %v2925, 4
      %v4347 = vsel %vm3005, %v4346, %v4345
      %v4348 = vrot.slane %v2926, 3
      %v4349 = vrot.slane %v2927, 2
      %v4350 = vsel %vm2987, %v4349, %v4348
      %v4351 = vrot.slane %v2928, 1
      %v4352 = vsel %vm2990, %v4351, %v4350
      %v4353 = vsel %vm2993, %v2929, %v4352
      %v4354 = vrot.slane %v2930, 7
      %v4355 = vsel %vm2996, %v4354, %v4353
      %v4356 = vrot.slane %v2931, 6
      %v4357 = vsel %vm2999, %v4356, %v4355
      %v4358 = vrot.slane %v2932, 5
      %v4359 = vsel %vm3002, %v4358, %v4357
      %v4360 = vrot.slane %v2933, 4
      %v4361 = vsel %vm3005, %v4360, %v4359
      %v4362 = vrot.slane %v2934, 3
      %v4363 = vrot.slane %v2935, 2
      %v4364 = vsel %vm2987, %v4363, %v4362
      %v4365 = vrot.slane %v2936, 1
      %v4366 = vsel %vm2990, %v4365, %v4364
      %v4367 = vsel %vm2993, %v2937, %v4366
      %v4368 = vrot.slane %v2938, 7
      %v4369 = vsel %vm2996, %v4368, %v4367
      %v4370 = vrot.slane %v2939, 6
      %v4371 = vsel %vm2999, %v4370, %v4369
      %v4372 = vrot.slane %v2940, 5
      %v4373 = vsel %vm3002, %v4372, %v4371
      %v4374 = vrot.slane %v2941, 4
      %v4375 = vsel %vm3005, %v4374, %v4373
      %v4376 = vrot.slane %v2942, 3
      %v4377 = vrot.slane %v2943, 2
      %v4378 = vsel %vm2987, %v4377, %v4376
      %v4379 = vrot.slane %v2944, 1
      %v4380 = vsel %vm2990, %v4379, %v4378
      %v4381 = vsel %vm2993, %v2945, %v4380
      %v4382 = vrot.slane %v2946, 7
      %v4383 = vsel %vm2996, %v4382, %v4381
      %v4384 = vrot.slane %v2947, 6
      %v4385 = vsel %vm2999, %v4384, %v4383
      %v4386 = vrot.slane %v2948, 5
      %v4387 = vsel %vm3002, %v4386, %v4385
      %v4388 = vrot.slane %v2949, 4
      %v4389 = vsel %vm3005, %v4388, %v4387
      %v4390 = vrot.slane %v2950, 3
      %v4391 = vrot.slane %v2951, 2
      %v4392 = vsel %vm2987, %v4391, %v4390
      %v4393 = vrot.slane %v2952, 1
      %v4394 = vsel %vm2990, %v4393, %v4392
      %v4395 = vsel %vm2993, %v2953, %v4394
      %v4396 = vrot.slane %v2954, 7
      %v4397 = vsel %vm2996, %v4396, %v4395
      %v4398 = vrot.slane %v2955, 6
      %v4399 = vsel %vm2999, %v4398, %v4397
      %v4400 = vrot.slane %v2956, 5
      %v4401 = vsel %vm3002, %v4400, %v4399
      %v4402 = vrot.slane %v2957, 4
      %v4403 = vsel %vm3005, %v4402, %v4401
      %v4404 = vrot.slane %v2958, 3
      %v4405 = vrot.slane %v2959, 2
      %v4406 = vsel %vm2987, %v4405, %v4404
      %v4407 = vrot.slane %v2960, 1
      %v4408 = vsel %vm2990, %v4407, %v4406
      %v4409 = vsel %vm2993, %v2961, %v4408
      %v4410 = vrot.slane %v2962, 7
      %v4411 = vsel %vm2996, %v4410, %v4409
      %v4412 = vrot.slane %v2963, 6
      %v4413 = vsel %vm2999, %v4412, %v4411
      %v4414 = vrot.slane %v2964, 5
      %v4415 = vsel %vm3002, %v4414, %v4413
      %v4416 = vrot.slane %v2965, 4
      %v4417 = vsel %vm3005, %v4416, %v4415
      %v4418 = vrot.slane %v2966, 3
      %v4419 = vrot.slane %v2967, 2
      %v4420 = vsel %vm2987, %v4419, %v4418
      %v4421 = vrot.slane %v2968, 1
      %v4422 = vsel %vm2990, %v4421, %v4420
      %v4423 = vsel %vm2993, %v2969, %v4422
      %v4424 = vrot.slane %v2970, 7
      %v4425 = vsel %vm2996, %v4424, %v4423
      %v4426 = vrot.slane %v2971, 6
      %v4427 = vsel %vm2999, %v4426, %v4425
      %v4428 = vrot.slane %v2972, 5
      %v4429 = vsel %vm3002, %v4428, %v4427
      %v4430 = vrot.slane %v2973, 4
      %v4431 = vsel %vm3005, %v4430, %v4429
      %v4432 = vrot.slane %v2974, 3
      %v4433 = vrot.slane %v2975, 2
      %v4434 = vsel %vm2987, %v4433, %v4432
      %v4435 = vrot.slane %v2976, 1
      %v4436 = vsel %vm2990, %v4435, %v4434
      %v4437 = vsel %vm2993, %v2977, %v4436
      %v4438 = vrot.slane %v2978, 7
      %v4439 = vsel %vm2996, %v4438, %v4437
      %v4440 = vrot.slane %v2979, 6
      %v4441 = vsel %vm2999, %v4440, %v4439
      %v4442 = vrot.slane %v2980, 5
      %v4443 = vsel %vm3002, %v4442, %v4441
      %v4444 = vrot.slane %v2981, 4
      %v4445 = vsel %vm3005, %v4444, %v4443
      %v4446 = vrot.slane %v2982, 3
      %v4447 = vrot.slane %v2983, 2
      %v4448 = vsel %vm2987, %v4447, %v4446
      %v4449 = vrot.slane %v2984, 1
      %v4450 = vsel %vm2990, %v4449, %v4448
      %v4451 = vsel %vm2993, %v2985, %v4450
      %v4452 = vpack.c.b16 %v4137, %v4123
      %v4453 = vpack.c.b16 %v4165, %v4151
      %v4454 = vpack.c.b16 %v4193, %v4179
      %v4455 = vpack.c.b16 %v4221, %v4207
      %v4456 = vpack.c.b16 %v4249, %v4235
      %v4457 = vpack.c.b16 %v4277, %v4263
      %v4458 = vpack.c.b16 %v4305, %v4291
      %v4459 = vpack.c.b16 %v4333, %v4319
      %v4460 = vpack.c.b16 %v4361, %v4347
      %v4461 = vpack.c.b16 %v4389, %v4375
      %v4462 = vpack.c.b16 %v4417, %v4403
      %v4463 = vpack.c.b16 %v4445, %v4431
      %v4464 = vpack.c.b16 %v4451, %v4451
      %4465 = vrot.lane.b32.xlu0 %v4452, 48
      %v4466 = vpop.permute.xlu0 %4465
      %4467 = vrot.lane.b32.xlu0 %v4453, 48
      %v4468 = vpop.permute.xlu0 %4467
      %4469 = vrot.lane.b32.xlu0 %v4454, 48
      %v4470 = vpop.permute.xlu0 %4469
      %4471 = vrot.lane.b32.xlu0 %v4455, 48
      %v4472 = vpop.permute.xlu0 %4471
      %4473 = vrot.lane.b32.xlu0 %v4456, 48
      %v4474 = vpop.permute.xlu0 %4473
      %4475 = vrot.lane.b32.xlu0 %v4457, 48
      %v4476 = vpop.permute.xlu0 %4475
      %4477 = vrot.lane.b32.xlu0 %v4458, 48
      %v4478 = vpop.permute.xlu0 %4477
      %4479 = vrot.lane.b32.xlu0 %v4459, 48
      %v4480 = vpop.permute.xlu0 %4479
      %4481 = vrot.lane.b32.xlu0 %v4460, 48
      %v4482 = vpop.permute.xlu0 %4481
      %4483 = vrot.lane.b32.xlu0 %v4461, 48
      %v4484 = vpop.permute.xlu0 %4483
      %4485 = vrot.lane.b32.xlu0 %v4462, 48
      %v4486 = vpop.permute.xlu0 %4485
      %4487 = vrot.lane.b32.xlu0 %v4463, 48
      %v4488 = vpop.permute.xlu0 %4487
      %4489 = vrot.lane.b32.xlu0 %v4464, 48
      %v4490 = vpop.permute.xlu0 %4489
      %v4491 = vrot.slane %v2790, 4
      %v4492 = vrot.slane %v2791, 3
      %v4493 = vsel %vm2987, %v4492, %v4491
      %v4494 = vrot.slane %v2792, 2
      %v4495 = vsel %vm2990, %v4494, %v4493
      %v4496 = vrot.slane %v2793, 1
      %v4497 = vsel %vm2993, %v4496, %v4495
      %v4498 = vsel %vm2996, %v2794, %v4497
      %v4499 = vrot.slane %v2795, 7
      %v4500 = vsel %vm2999, %v4499, %v4498
      %v4501 = vrot.slane %v2796, 6
      %v4502 = vsel %vm3002, %v4501, %v4500
      %v4503 = vrot.slane %v2797, 5
      %v4504 = vsel %vm3005, %v4503, %v4502
      %v4505 = vrot.slane %v2798, 4
      %v4506 = vrot.slane %v2799, 3
      %v4507 = vsel %vm2987, %v4506, %v4505
      %v4508 = vrot.slane %v2800, 2
      %v4509 = vsel %vm2990, %v4508, %v4507
      %v4510 = vrot.slane %v2801, 1
      %v4511 = vsel %vm2993, %v4510, %v4509
      %v4512 = vsel %vm2996, %v2802, %v4511
      %v4513 = vrot.slane %v2803, 7
      %v4514 = vsel %vm2999, %v4513, %v4512
      %v4515 = vrot.slane %v2804, 6
      %v4516 = vsel %vm3002, %v4515, %v4514
      %v4517 = vrot.slane %v2805, 5
      %v4518 = vsel %vm3005, %v4517, %v4516
      %v4519 = vrot.slane %v2806, 4
      %v4520 = vrot.slane %v2807, 3
      %v4521 = vsel %vm2987, %v4520, %v4519
      %v4522 = vrot.slane %v2808, 2
      %v4523 = vsel %vm2990, %v4522, %v4521
      %v4524 = vrot.slane %v2809, 1
      %v4525 = vsel %vm2993, %v4524, %v4523
      %v4526 = vsel %vm2996, %v2810, %v4525
      %v4527 = vrot.slane %v2811, 7
      %v4528 = vsel %vm2999, %v4527, %v4526
      %v4529 = vrot.slane %v2812, 6
      %v4530 = vsel %vm3002, %v4529, %v4528
      %v4531 = vrot.slane %v2813, 5
      %v4532 = vsel %vm3005, %v4531, %v4530
      %v4533 = vrot.slane %v2814, 4
      %v4534 = vrot.slane %v2815, 3
      %v4535 = vsel %vm2987, %v4534, %v4533
      %v4536 = vrot.slane %v2816, 2
      %v4537 = vsel %vm2990, %v4536, %v4535
      %v4538 = vrot.slane %v2817, 1
      %v4539 = vsel %vm2993, %v4538, %v4537
      %v4540 = vsel %vm2996, %v2818, %v4539
      %v4541 = vrot.slane %v2819, 7
      %v4542 = vsel %vm2999, %v4541, %v4540
      %v4543 = vrot.slane %v2820, 6
      %v4544 = vsel %vm3002, %v4543, %v4542
      %v4545 = vrot.slane %v2821, 5
      %v4546 = vsel %vm3005, %v4545, %v4544
      %v4547 = vrot.slane %v2822, 4
      %v4548 = vrot.slane %v2823, 3
      %v4549 = vsel %vm2987, %v4548, %v4547
      %v4550 = vrot.slane %v2824, 2
      %v4551 = vsel %vm2990, %v4550, %v4549
      %v4552 = vrot.slane %v2825, 1
      %v4553 = vsel %vm2993, %v4552, %v4551
      %v4554 = vsel %vm2996, %v2826, %v4553
      %v4555 = vrot.slane %v2827, 7
      %v4556 = vsel %vm2999, %v4555, %v4554
      %v4557 = vrot.slane %v2828, 6
      %v4558 = vsel %vm3002, %v4557, %v4556
      %v4559 = vrot.slane %v2829, 5
      %v4560 = vsel %vm3005, %v4559, %v4558
      %v4561 = vrot.slane %v2830, 4
      %v4562 = vrot.slane %v2831, 3
      %v4563 = vsel %vm2987, %v4562, %v4561
      %v4564 = vrot.slane %v2832, 2
      %v4565 = vsel %vm2990, %v4564, %v4563
      %v4566 = vrot.slane %v2833, 1
      %v4567 = vsel %vm2993, %v4566, %v4565
      %v4568 = vsel %vm2996, %v2834, %v4567
      %v4569 = vrot.slane %v2835, 7
      %v4570 = vsel %vm2999, %v4569, %v4568
      %v4571 = vrot.slane %v2836, 6
      %v4572 = vsel %vm3002, %v4571, %v4570
      %v4573 = vrot.slane %v2837, 5
      %v4574 = vsel %vm3005, %v4573, %v4572
      %v4575 = vrot.slane %v2838, 4
      %v4576 = vrot.slane %v2839, 3
      %v4577 = vsel %vm2987, %v4576, %v4575
      %v4578 = vrot.slane %v2840, 2
      %v4579 = vsel %vm2990, %v4578, %v4577
      %v4580 = vrot.slane %v2841, 1
      %v4581 = vsel %vm2993, %v4580, %v4579
      %v4582 = vsel %vm2996, %v2842, %v4581
      %v4583 = vrot.slane %v2843, 7
      %v4584 = vsel %vm2999, %v4583, %v4582
      %v4585 = vrot.slane %v2844, 6
      %v4586 = vsel %vm3002, %v4585, %v4584
      %v4587 = vrot.slane %v2845, 5
      %v4588 = vsel %vm3005, %v4587, %v4586
      %v4589 = vrot.slane %v2846, 4
      %v4590 = vrot.slane %v2847, 3
      %v4591 = vsel %vm2987, %v4590, %v4589
      %v4592 = vrot.slane %v2848, 2
      %v4593 = vsel %vm2990, %v4592, %v4591
      %v4594 = vrot.slane %v2849, 1
      %v4595 = vsel %vm2993, %v4594, %v4593
      %v4596 = vsel %vm2996, %v2850, %v4595
      %v4597 = vrot.slane %v2851, 7
      %v4598 = vsel %vm2999, %v4597, %v4596
      %v4599 = vrot.slane %v2852, 6
      %v4600 = vsel %vm3002, %v4599, %v4598
      %v4601 = vrot.slane %v2853, 5
      %v4602 = vsel %vm3005, %v4601, %v4600
      %v4603 = vrot.slane %v2854, 4
      %v4604 = vrot.slane %v2855, 3
      %v4605 = vsel %vm2987, %v4604, %v4603
      %v4606 = vrot.slane %v2856, 2
      %v4607 = vsel %vm2990, %v4606, %v4605
      %v4608 = vrot.slane %v2857, 1
      %v4609 = vsel %vm2993, %v4608, %v4607
      %v4610 = vsel %vm2996, %v2858, %v4609
      %v4611 = vrot.slane %v2859, 7
      %v4612 = vsel %vm2999, %v4611, %v4610
      %v4613 = vrot.slane %v2860, 6
      %v4614 = vsel %vm3002, %v4613, %v4612
      %v4615 = vrot.slane %v2861, 5
      %v4616 = vsel %vm3005, %v4615, %v4614
      %v4617 = vrot.slane %v2862, 4
      %v4618 = vrot.slane %v2863, 3
      %v4619 = vsel %vm2987, %v4618, %v4617
      %v4620 = vrot.slane %v2864, 2
      %v4621 = vsel %vm2990, %v4620, %v4619
      %v4622 = vrot.slane %v2865, 1
      %v4623 = vsel %vm2993, %v4622, %v4621
      %v4624 = vsel %vm2996, %v2866, %v4623
      %v4625 = vrot.slane %v2867, 7
      %v4626 = vsel %vm2999, %v4625, %v4624
      %v4627 = vrot.slane %v2868, 6
      %v4628 = vsel %vm3002, %v4627, %v4626
      %v4629 = vrot.slane %v2869, 5
      %v4630 = vsel %vm3005, %v4629, %v4628
      %v4631 = vrot.slane %v2870, 4
      %v4632 = vrot.slane %v2871, 3
      %v4633 = vsel %vm2987, %v4632, %v4631
      %v4634 = vrot.slane %v2872, 2
      %v4635 = vsel %vm2990, %v4634, %v4633
      %v4636 = vrot.slane %v2873, 1
      %v4637 = vsel %vm2993, %v4636, %v4635
      %v4638 = vsel %vm2996, %v2874, %v4637
      %v4639 = vrot.slane %v2875, 7
      %v4640 = vsel %vm2999, %v4639, %v4638
      %v4641 = vrot.slane %v2876, 6
      %v4642 = vsel %vm3002, %v4641, %v4640
      %v4643 = vrot.slane %v2877, 5
      %v4644 = vsel %vm3005, %v4643, %v4642
      %v4645 = vrot.slane %v2878, 4
      %v4646 = vrot.slane %v2879, 3
      %v4647 = vsel %vm2987, %v4646, %v4645
      %v4648 = vrot.slane %v2880, 2
      %v4649 = vsel %vm2990, %v4648, %v4647
      %v4650 = vrot.slane %v2881, 1
      %v4651 = vsel %vm2993, %v4650, %v4649
      %v4652 = vsel %vm2996, %v2882, %v4651
      %v4653 = vrot.slane %v2883, 7
      %v4654 = vsel %vm2999, %v4653, %v4652
      %v4655 = vrot.slane %v2884, 6
      %v4656 = vsel %vm3002, %v4655, %v4654
      %v4657 = vrot.slane %v2885, 5
      %v4658 = vsel %vm3005, %v4657, %v4656
      %v4659 = vrot.slane %v2886, 4
      %v4660 = vrot.slane %v2887, 3
      %v4661 = vsel %vm2987, %v4660, %v4659
      %v4662 = vrot.slane %v2888, 2
      %v4663 = vsel %vm2990, %v4662, %v4661
      %v4664 = vrot.slane %v2889, 1
      %v4665 = vsel %vm2993, %v4664, %v4663
      %v4666 = vsel %vm2996, %v2890, %v4665
      %v4667 = vrot.slane %v2891, 7
      %v4668 = vsel %vm2999, %v4667, %v4666
      %v4669 = vrot.slane %v2892, 6
      %v4670 = vsel %vm3002, %v4669, %v4668
      %v4671 = vrot.slane %v2893, 5
      %v4672 = vsel %vm3005, %v4671, %v4670
      %v4673 = vrot.slane %v2894, 4
      %v4674 = vrot.slane %v2895, 3
      %v4675 = vsel %vm2987, %v4674, %v4673
      %v4676 = vrot.slane %v2896, 2
      %v4677 = vsel %vm2990, %v4676, %v4675
      %v4678 = vrot.slane %v2897, 1
      %v4679 = vsel %vm2993, %v4678, %v4677
      %v4680 = vsel %vm2996, %v2898, %v4679
      %v4681 = vrot.slane %v2899, 7
      %v4682 = vsel %vm2999, %v4681, %v4680
      %v4683 = vrot.slane %v2900, 6
      %v4684 = vsel %vm3002, %v4683, %v4682
      %v4685 = vrot.slane %v2901, 5
      %v4686 = vsel %vm3005, %v4685, %v4684
      %v4687 = vrot.slane %v2902, 4
      %v4688 = vrot.slane %v2903, 3
      %v4689 = vsel %vm2987, %v4688, %v4687
      %v4690 = vrot.slane %v2904, 2
      %v4691 = vsel %vm2990, %v4690, %v4689
      %v4692 = vrot.slane %v2905, 1
      %v4693 = vsel %vm2993, %v4692, %v4691
      %v4694 = vsel %vm2996, %v2906, %v4693
      %v4695 = vrot.slane %v2907, 7
      %v4696 = vsel %vm2999, %v4695, %v4694
      %v4697 = vrot.slane %v2908, 6
      %v4698 = vsel %vm3002, %v4697, %v4696
      %v4699 = vrot.slane %v2909, 5
      %v4700 = vsel %vm3005, %v4699, %v4698
      %v4701 = vrot.slane %v2910, 4
      %v4702 = vrot.slane %v2911, 3
      %v4703 = vsel %vm2987, %v4702, %v4701
      %v4704 = vrot.slane %v2912, 2
      %v4705 = vsel %vm2990, %v4704, %v4703
      %v4706 = vrot.slane %v2913, 1
      %v4707 = vsel %vm2993, %v4706, %v4705
      %v4708 = vsel %vm2996, %v2914, %v4707
      %v4709 = vrot.slane %v2915, 7
      %v4710 = vsel %vm2999, %v4709, %v4708
      %v4711 = vrot.slane %v2916, 6
      %v4712 = vsel %vm3002, %v4711, %v4710
      %v4713 = vrot.slane %v2917, 5
      %v4714 = vsel %vm3005, %v4713, %v4712
      %v4715 = vrot.slane %v2918, 4
      %v4716 = vrot.slane %v2919, 3
      %v4717 = vsel %vm2987, %v4716, %v4715
      %v4718 = vrot.slane %v2920, 2
      %v4719 = vsel %vm2990, %v4718, %v4717
      %v4720 = vrot.slane %v2921, 1
      %v4721 = vsel %vm2993, %v4720, %v4719
      %v4722 = vsel %vm2996, %v2922, %v4721
      %v4723 = vrot.slane %v2923, 7
      %v4724 = vsel %vm2999, %v4723, %v4722
      %v4725 = vrot.slane %v2924, 6
      %v4726 = vsel %vm3002, %v4725, %v4724
      %v4727 = vrot.slane %v2925, 5
      %v4728 = vsel %vm3005, %v4727, %v4726
      %v4729 = vrot.slane %v2926, 4
      %v4730 = vrot.slane %v2927, 3
      %v4731 = vsel %vm2987, %v4730, %v4729
      %v4732 = vrot.slane %v2928, 2
      %v4733 = vsel %vm2990, %v4732, %v4731
      %v4734 = vrot.slane %v2929, 1
      %v4735 = vsel %vm2993, %v4734, %v4733
      %v4736 = vsel %vm2996, %v2930, %v4735
      %v4737 = vrot.slane %v2931, 7
      %v4738 = vsel %vm2999, %v4737, %v4736
      %v4739 = vrot.slane %v2932, 6
      %v4740 = vsel %vm3002, %v4739, %v4738
      %v4741 = vrot.slane %v2933, 5
      %v4742 = vsel %vm3005, %v4741, %v4740
      %v4743 = vrot.slane %v2934, 4
      %v4744 = vrot.slane %v2935, 3
      %v4745 = vsel %vm2987, %v4744, %v4743
      %v4746 = vrot.slane %v2936, 2
      %v4747 = vsel %vm2990, %v4746, %v4745
      %v4748 = vrot.slane %v2937, 1
      %v4749 = vsel %vm2993, %v4748, %v4747
      %v4750 = vsel %vm2996, %v2938, %v4749
      %v4751 = vrot.slane %v2939, 7
      %v4752 = vsel %vm2999, %v4751, %v4750
      %v4753 = vrot.slane %v2940, 6
      %v4754 = vsel %vm3002, %v4753, %v4752
      %v4755 = vrot.slane %v2941, 5
      %v4756 = vsel %vm3005, %v4755, %v4754
      %v4757 = vrot.slane %v2942, 4
      %v4758 = vrot.slane %v2943, 3
      %v4759 = vsel %vm2987, %v4758, %v4757
      %v4760 = vrot.slane %v2944, 2
      %v4761 = vsel %vm2990, %v4760, %v4759
      %v4762 = vrot.slane %v2945, 1
      %v4763 = vsel %vm2993, %v4762, %v4761
      %v4764 = vsel %vm2996, %v2946, %v4763
      %v4765 = vrot.slane %v2947, 7
      %v4766 = vsel %vm2999, %v4765, %v4764
      %v4767 = vrot.slane %v2948, 6
      %v4768 = vsel %vm3002, %v4767, %v4766
      %v4769 = vrot.slane %v2949, 5
      %v4770 = vsel %vm3005, %v4769, %v4768
      %v4771 = vrot.slane %v2950, 4
      %v4772 = vrot.slane %v2951, 3
      %v4773 = vsel %vm2987, %v4772, %v4771
      %v4774 = vrot.slane %v2952, 2
      %v4775 = vsel %vm2990, %v4774, %v4773
      %v4776 = vrot.slane %v2953, 1
      %v4777 = vsel %vm2993, %v4776, %v4775
      %v4778 = vsel %vm2996, %v2954, %v4777
      %v4779 = vrot.slane %v2955, 7
      %v4780 = vsel %vm2999, %v4779, %v4778
      %v4781 = vrot.slane %v2956, 6
      %v4782 = vsel %vm3002, %v4781, %v4780
      %v4783 = vrot.slane %v2957, 5
      %v4784 = vsel %vm3005, %v4783, %v4782
      %v4785 = vrot.slane %v2958, 4
      %v4786 = vrot.slane %v2959, 3
      %v4787 = vsel %vm2987, %v4786, %v4785
      %v4788 = vrot.slane %v2960, 2
      %v4789 = vsel %vm2990, %v4788, %v4787
      %v4790 = vrot.slane %v2961, 1
      %v4791 = vsel %vm2993, %v4790, %v4789
      %v4792 = vsel %vm2996, %v2962, %v4791
      %v4793 = vrot.slane %v2963, 7
      %v4794 = vsel %vm2999, %v4793, %v4792
      %v4795 = vrot.slane %v2964, 6
      %v4796 = vsel %vm3002, %v4795, %v4794
      %v4797 = vrot.slane %v2965, 5
      %v4798 = vsel %vm3005, %v4797, %v4796
      %v4799 = vrot.slane %v2966, 4
      %v4800 = vrot.slane %v2967, 3
      %v4801 = vsel %vm2987, %v4800, %v4799
      %v4802 = vrot.slane %v2968, 2
      %v4803 = vsel %vm2990, %v4802, %v4801
      %v4804 = vrot.slane %v2969, 1
      %v4805 = vsel %vm2993, %v4804, %v4803
      %v4806 = vsel %vm2996, %v2970, %v4805
      %v4807 = vrot.slane %v2971, 7
      %v4808 = vsel %vm2999, %v4807, %v4806
      %v4809 = vrot.slane %v2972, 6
      %v4810 = vsel %vm3002, %v4809, %v4808
      %v4811 = vrot.slane %v2973, 5
      %v4812 = vsel %vm3005, %v4811, %v4810
      %v4813 = vrot.slane %v2974, 4
      %v4814 = vrot.slane %v2975, 3
      %v4815 = vsel %vm2987, %v4814, %v4813
      %v4816 = vrot.slane %v2976, 2
      %v4817 = vsel %vm2990, %v4816, %v4815
      %v4818 = vrot.slane %v2977, 1
      %v4819 = vsel %vm2993, %v4818, %v4817
      %v4820 = vsel %vm2996, %v2978, %v4819
      %v4821 = vrot.slane %v2979, 7
      %v4822 = vsel %vm2999, %v4821, %v4820
      %v4823 = vrot.slane %v2980, 6
      %v4824 = vsel %vm3002, %v4823, %v4822
      %v4825 = vrot.slane %v2981, 5
      %v4826 = vsel %vm3005, %v4825, %v4824
      %v4827 = vrot.slane %v2982, 4
      %v4828 = vrot.slane %v2983, 3
      %v4829 = vsel %vm2987, %v4828, %v4827
      %v4830 = vrot.slane %v2984, 2
      %v4831 = vsel %vm2990, %v4830, %v4829
      %v4832 = vrot.slane %v2985, 1
      %v4833 = vsel %vm2993, %v4832, %v4831
      %v4834 = vpack.c.b16 %v4518, %v4504
      %v4835 = vpack.c.b16 %v4546, %v4532
      %v4836 = vpack.c.b16 %v4574, %v4560
      %v4837 = vpack.c.b16 %v4602, %v4588
      %v4838 = vpack.c.b16 %v4630, %v4616
      %v4839 = vpack.c.b16 %v4658, %v4644
      %v4840 = vpack.c.b16 %v4686, %v4672
      %v4841 = vpack.c.b16 %v4714, %v4700
      %v4842 = vpack.c.b16 %v4742, %v4728
      %v4843 = vpack.c.b16 %v4770, %v4756
      %v4844 = vpack.c.b16 %v4798, %v4784
      %v4845 = vpack.c.b16 %v4826, %v4812
      %v4846 = vpack.c.b16 %v4833, %v4833
      %4847 = vrot.lane.b32.xlu0 %v4834, 64
      %v4848 = vpop.permute.xlu0 %4847
      %4849 = vrot.lane.b32.xlu0 %v4835, 64
      %v4850 = vpop.permute.xlu0 %4849
      %4851 = vrot.lane.b32.xlu0 %v4836, 64
      %v4852 = vpop.permute.xlu0 %4851
      %4853 = vrot.lane.b32.xlu0 %v4837, 64
      %v4854 = vpop.permute.xlu0 %4853
      %4855 = vrot.lane.b32.xlu0 %v4838, 64
      %v4856 = vpop.permute.xlu0 %4855
      %4857 = vrot.lane.b32.xlu0 %v4839, 64
      %v4858 = vpop.permute.xlu0 %4857
      %4859 = vrot.lane.b32.xlu0 %v4840, 64
      %v4860 = vpop.permute.xlu0 %4859
      %4861 = vrot.lane.b32.xlu0 %v4841, 64
      %v4862 = vpop.permute.xlu0 %4861
      %4863 = vrot.lane.b32.xlu0 %v4842, 64
      %v4864 = vpop.permute.xlu0 %4863
      %4865 = vrot.lane.b32.xlu0 %v4843, 64
      %v4866 = vpop.permute.xlu0 %4865
      %4867 = vrot.lane.b32.xlu0 %v4844, 64
      %v4868 = vpop.permute.xlu0 %4867
      %4869 = vrot.lane.b32.xlu0 %v4845, 64
      %v4870 = vpop.permute.xlu0 %4869
      %4871 = vrot.lane.b32.xlu0 %v4846, 64
      %v4872 = vpop.permute.xlu0 %4871
      %v4873 = vrot.slane %v2790, 5
      %v4874 = vrot.slane %v2791, 4
      %v4875 = vsel %vm2987, %v4874, %v4873
      %v4876 = vrot.slane %v2792, 3
      %v4877 = vsel %vm2990, %v4876, %v4875
      %v4878 = vrot.slane %v2793, 2
      %v4879 = vsel %vm2993, %v4878, %v4877
      %v4880 = vrot.slane %v2794, 1
      %v4881 = vsel %vm2996, %v4880, %v4879
      %v4882 = vsel %vm2999, %v2795, %v4881
      %v4883 = vrot.slane %v2796, 7
      %v4884 = vsel %vm3002, %v4883, %v4882
      %v4885 = vrot.slane %v2797, 6
      %v4886 = vsel %vm3005, %v4885, %v4884
      %v4887 = vrot.slane %v2798, 5
      %v4888 = vrot.slane %v2799, 4
      %v4889 = vsel %vm2987, %v4888, %v4887
      %v4890 = vrot.slane %v2800, 3
      %v4891 = vsel %vm2990, %v4890, %v4889
      %v4892 = vrot.slane %v2801, 2
      %v4893 = vsel %vm2993, %v4892, %v4891
      %v4894 = vrot.slane %v2802, 1
      %v4895 = vsel %vm2996, %v4894, %v4893
      %v4896 = vsel %vm2999, %v2803, %v4895
      %v4897 = vrot.slane %v2804, 7
      %v4898 = vsel %vm3002, %v4897, %v4896
      %v4899 = vrot.slane %v2805, 6
      %v4900 = vsel %vm3005, %v4899, %v4898
      %v4901 = vrot.slane %v2806, 5
      %v4902 = vrot.slane %v2807, 4
      %v4903 = vsel %vm2987, %v4902, %v4901
      %v4904 = vrot.slane %v2808, 3
      %v4905 = vsel %vm2990, %v4904, %v4903
      %v4906 = vrot.slane %v2809, 2
      %v4907 = vsel %vm2993, %v4906, %v4905
      %v4908 = vrot.slane %v2810, 1
      %v4909 = vsel %vm2996, %v4908, %v4907
      %v4910 = vsel %vm2999, %v2811, %v4909
      %v4911 = vrot.slane %v2812, 7
      %v4912 = vsel %vm3002, %v4911, %v4910
      %v4913 = vrot.slane %v2813, 6
      %v4914 = vsel %vm3005, %v4913, %v4912
      %v4915 = vrot.slane %v2814, 5
      %v4916 = vrot.slane %v2815, 4
      %v4917 = vsel %vm2987, %v4916, %v4915
      %v4918 = vrot.slane %v2816, 3
      %v4919 = vsel %vm2990, %v4918, %v4917
      %v4920 = vrot.slane %v2817, 2
      %v4921 = vsel %vm2993, %v4920, %v4919
      %v4922 = vrot.slane %v2818, 1
      %v4923 = vsel %vm2996, %v4922, %v4921
      %v4924 = vsel %vm2999, %v2819, %v4923
      %v4925 = vrot.slane %v2820, 7
      %v4926 = vsel %vm3002, %v4925, %v4924
      %v4927 = vrot.slane %v2821, 6
      %v4928 = vsel %vm3005, %v4927, %v4926
      %v4929 = vrot.slane %v2822, 5
      %v4930 = vrot.slane %v2823, 4
      %v4931 = vsel %vm2987, %v4930, %v4929
      %v4932 = vrot.slane %v2824, 3
      %v4933 = vsel %vm2990, %v4932, %v4931
      %v4934 = vrot.slane %v2825, 2
      %v4935 = vsel %vm2993, %v4934, %v4933
      %v4936 = vrot.slane %v2826, 1
      %v4937 = vsel %vm2996, %v4936, %v4935
      %v4938 = vsel %vm2999, %v2827, %v4937
      %v4939 = vrot.slane %v2828, 7
      %v4940 = vsel %vm3002, %v4939, %v4938
      %v4941 = vrot.slane %v2829, 6
      %v4942 = vsel %vm3005, %v4941, %v4940
      %v4943 = vrot.slane %v2830, 5
      %v4944 = vrot.slane %v2831, 4
      %v4945 = vsel %vm2987, %v4944, %v4943
      %v4946 = vrot.slane %v2832, 3
      %v4947 = vsel %vm2990, %v4946, %v4945
      %v4948 = vrot.slane %v2833, 2
      %v4949 = vsel %vm2993, %v4948, %v4947
      %v4950 = vrot.slane %v2834, 1
      %v4951 = vsel %vm2996, %v4950, %v4949
      %v4952 = vsel %vm2999, %v2835, %v4951
      %v4953 = vrot.slane %v2836, 7
      %v4954 = vsel %vm3002, %v4953, %v4952
      %v4955 = vrot.slane %v2837, 6
      %v4956 = vsel %vm3005, %v4955, %v4954
      %v4957 = vrot.slane %v2838, 5
      %v4958 = vrot.slane %v2839, 4
      %v4959 = vsel %vm2987, %v4958, %v4957
      %v4960 = vrot.slane %v2840, 3
      %v4961 = vsel %vm2990, %v4960, %v4959
      %v4962 = vrot.slane %v2841, 2
      %v4963 = vsel %vm2993, %v4962, %v4961
      %v4964 = vrot.slane %v2842, 1
      %v4965 = vsel %vm2996, %v4964, %v4963
      %v4966 = vsel %vm2999, %v2843, %v4965
      %v4967 = vrot.slane %v2844, 7
      %v4968 = vsel %vm3002, %v4967, %v4966
      %v4969 = vrot.slane %v2845, 6
      %v4970 = vsel %vm3005, %v4969, %v4968
      %v4971 = vrot.slane %v2846, 5
      %v4972 = vrot.slane %v2847, 4
      %v4973 = vsel %vm2987, %v4972, %v4971
      %v4974 = vrot.slane %v2848, 3
      %v4975 = vsel %vm2990, %v4974, %v4973
      %v4976 = vrot.slane %v2849, 2
      %v4977 = vsel %vm2993, %v4976, %v4975
      %v4978 = vrot.slane %v2850, 1
      %v4979 = vsel %vm2996, %v4978, %v4977
      %v4980 = vsel %vm2999, %v2851, %v4979
      %v4981 = vrot.slane %v2852, 7
      %v4982 = vsel %vm3002, %v4981, %v4980
      %v4983 = vrot.slane %v2853, 6
      %v4984 = vsel %vm3005, %v4983, %v4982
      %v4985 = vrot.slane %v2854, 5
      %v4986 = vrot.slane %v2855, 4
      %v4987 = vsel %vm2987, %v4986, %v4985
      %v4988 = vrot.slane %v2856, 3
      %v4989 = vsel %vm2990, %v4988, %v4987
      %v4990 = vrot.slane %v2857, 2
      %v4991 = vsel %vm2993, %v4990, %v4989
      %v4992 = vrot.slane %v2858, 1
      %v4993 = vsel %vm2996, %v4992, %v4991
      %v4994 = vsel %vm2999, %v2859, %v4993
      %v4995 = vrot.slane %v2860, 7
      %v4996 = vsel %vm3002, %v4995, %v4994
      %v4997 = vrot.slane %v2861, 6
      %v4998 = vsel %vm3005, %v4997, %v4996
      %v4999 = vrot.slane %v2862, 5
      %v5000 = vrot.slane %v2863, 4
      %v5001 = vsel %vm2987, %v5000, %v4999
      %v5002 = vrot.slane %v2864, 3
      %v5003 = vsel %vm2990, %v5002, %v5001
      %v5004 = vrot.slane %v2865, 2
      %v5005 = vsel %vm2993, %v5004, %v5003
      %v5006 = vrot.slane %v2866, 1
      %v5007 = vsel %vm2996, %v5006, %v5005
      %v5008 = vsel %vm2999, %v2867, %v5007
      %v5009 = vrot.slane %v2868, 7
      %v5010 = vsel %vm3002, %v5009, %v5008
      %v5011 = vrot.slane %v2869, 6
      %v5012 = vsel %vm3005, %v5011, %v5010
      %v5013 = vrot.slane %v2870, 5
      %v5014 = vrot.slane %v2871, 4
      %v5015 = vsel %vm2987, %v5014, %v5013
      %v5016 = vrot.slane %v2872, 3
      %v5017 = vsel %vm2990, %v5016, %v5015
      %v5018 = vrot.slane %v2873, 2
      %v5019 = vsel %vm2993, %v5018, %v5017
      %v5020 = vrot.slane %v2874, 1
      %v5021 = vsel %vm2996, %v5020, %v5019
      %v5022 = vsel %vm2999, %v2875, %v5021
      %v5023 = vrot.slane %v2876, 7
      %v5024 = vsel %vm3002, %v5023, %v5022
      %v5025 = vrot.slane %v2877, 6
      %v5026 = vsel %vm3005, %v5025, %v5024
      %v5027 = vrot.slane %v2878, 5
      %v5028 = vrot.slane %v2879, 4
      %v5029 = vsel %vm2987, %v5028, %v5027
      %v5030 = vrot.slane %v2880, 3
      %v5031 = vsel %vm2990, %v5030, %v5029
      %v5032 = vrot.slane %v2881, 2
      %v5033 = vsel %vm2993, %v5032, %v5031
      %v5034 = vrot.slane %v2882, 1
      %v5035 = vsel %vm2996, %v5034, %v5033
      %v5036 = vsel %vm2999, %v2883, %v5035
      %v5037 = vrot.slane %v2884, 7
      %v5038 = vsel %vm3002, %v5037, %v5036
      %v5039 = vrot.slane %v2885, 6
      %v5040 = vsel %vm3005, %v5039, %v5038
      %v5041 = vrot.slane %v2886, 5
      %v5042 = vrot.slane %v2887, 4
      %v5043 = vsel %vm2987, %v5042, %v5041
      %v5044 = vrot.slane %v2888, 3
      %v5045 = vsel %vm2990, %v5044, %v5043
      %v5046 = vrot.slane %v2889, 2
      %v5047 = vsel %vm2993, %v5046, %v5045
      %v5048 = vrot.slane %v2890, 1
      %v5049 = vsel %vm2996, %v5048, %v5047
      %v5050 = vsel %vm2999, %v2891, %v5049
      %v5051 = vrot.slane %v2892, 7
      %v5052 = vsel %vm3002, %v5051, %v5050
      %v5053 = vrot.slane %v2893, 6
      %v5054 = vsel %vm3005, %v5053, %v5052
      %v5055 = vrot.slane %v2894, 5
      %v5056 = vrot.slane %v2895, 4
      %v5057 = vsel %vm2987, %v5056, %v5055
      %v5058 = vrot.slane %v2896, 3
      %v5059 = vsel %vm2990, %v5058, %v5057
      %v5060 = vrot.slane %v2897, 2
      %v5061 = vsel %vm2993, %v5060, %v5059
      %v5062 = vrot.slane %v2898, 1
      %v5063 = vsel %vm2996, %v5062, %v5061
      %v5064 = vsel %vm2999, %v2899, %v5063
      %v5065 = vrot.slane %v2900, 7
      %v5066 = vsel %vm3002, %v5065, %v5064
      %v5067 = vrot.slane %v2901, 6
      %v5068 = vsel %vm3005, %v5067, %v5066
      %v5069 = vrot.slane %v2902, 5
      %v5070 = vrot.slane %v2903, 4
      %v5071 = vsel %vm2987, %v5070, %v5069
      %v5072 = vrot.slane %v2904, 3
      %v5073 = vsel %vm2990, %v5072, %v5071
      %v5074 = vrot.slane %v2905, 2
      %v5075 = vsel %vm2993, %v5074, %v5073
      %v5076 = vrot.slane %v2906, 1
      %v5077 = vsel %vm2996, %v5076, %v5075
      %v5078 = vsel %vm2999, %v2907, %v5077
      %v5079 = vrot.slane %v2908, 7
      %v5080 = vsel %vm3002, %v5079, %v5078
      %v5081 = vrot.slane %v2909, 6
      %v5082 = vsel %vm3005, %v5081, %v5080
      %v5083 = vrot.slane %v2910, 5
      %v5084 = vrot.slane %v2911, 4
      %v5085 = vsel %vm2987, %v5084, %v5083
      %v5086 = vrot.slane %v2912, 3
      %v5087 = vsel %vm2990, %v5086, %v5085
      %v5088 = vrot.slane %v2913, 2
      %v5089 = vsel %vm2993, %v5088, %v5087
      %v5090 = vrot.slane %v2914, 1
      %v5091 = vsel %vm2996, %v5090, %v5089
      %v5092 = vsel %vm2999, %v2915, %v5091
      %v5093 = vrot.slane %v2916, 7
      %v5094 = vsel %vm3002, %v5093, %v5092
      %v5095 = vrot.slane %v2917, 6
      %v5096 = vsel %vm3005, %v5095, %v5094
      %v5097 = vrot.slane %v2918, 5
      %v5098 = vrot.slane %v2919, 4
      %v5099 = vsel %vm2987, %v5098, %v5097
      %v5100 = vrot.slane %v2920, 3
      %v5101 = vsel %vm2990, %v5100, %v5099
      %v5102 = vrot.slane %v2921, 2
      %v5103 = vsel %vm2993, %v5102, %v5101
      %v5104 = vrot.slane %v2922, 1
      %v5105 = vsel %vm2996, %v5104, %v5103
      %v5106 = vsel %vm2999, %v2923, %v5105
      %v5107 = vrot.slane %v2924, 7
      %v5108 = vsel %vm3002, %v5107, %v5106
      %v5109 = vrot.slane %v2925, 6
      %v5110 = vsel %vm3005, %v5109, %v5108
      %v5111 = vrot.slane %v2926, 5
      %v5112 = vrot.slane %v2927, 4
      %v5113 = vsel %vm2987, %v5112, %v5111
      %v5114 = vrot.slane %v2928, 3
      %v5115 = vsel %vm2990, %v5114, %v5113
      %v5116 = vrot.slane %v2929, 2
      %v5117 = vsel %vm2993, %v5116, %v5115
      %v5118 = vrot.slane %v2930, 1
      %v5119 = vsel %vm2996, %v5118, %v5117
      %v5120 = vsel %vm2999, %v2931, %v5119
      %v5121 = vrot.slane %v2932, 7
      %v5122 = vsel %vm3002, %v5121, %v5120
      %v5123 = vrot.slane %v2933, 6
      %v5124 = vsel %vm3005, %v5123, %v5122
      %v5125 = vrot.slane %v2934, 5
      %v5126 = vrot.slane %v2935, 4
      %v5127 = vsel %vm2987, %v5126, %v5125
      %v5128 = vrot.slane %v2936, 3
      %v5129 = vsel %vm2990, %v5128, %v5127
      %v5130 = vrot.slane %v2937, 2
      %v5131 = vsel %vm2993, %v5130, %v5129
      %v5132 = vrot.slane %v2938, 1
      %v5133 = vsel %vm2996, %v5132, %v5131
      %v5134 = vsel %vm2999, %v2939, %v5133
      %v5135 = vrot.slane %v2940, 7
      %v5136 = vsel %vm3002, %v5135, %v5134
      %v5137 = vrot.slane %v2941, 6
      %v5138 = vsel %vm3005, %v5137, %v5136
      %v5139 = vrot.slane %v2942, 5
      %v5140 = vrot.slane %v2943, 4
      %v5141 = vsel %vm2987, %v5140, %v5139
      %v5142 = vrot.slane %v2944, 3
      %v5143 = vsel %vm2990, %v5142, %v5141
      %v5144 = vrot.slane %v2945, 2
      %v5145 = vsel %vm2993, %v5144, %v5143
      %v5146 = vrot.slane %v2946, 1
      %v5147 = vsel %vm2996, %v5146, %v5145
      %v5148 = vsel %vm2999, %v2947, %v5147
      %v5149 = vrot.slane %v2948, 7
      %v5150 = vsel %vm3002, %v5149, %v5148
      %v5151 = vrot.slane %v2949, 6
      %v5152 = vsel %vm3005, %v5151, %v5150
      %v5153 = vrot.slane %v2950, 5
      %v5154 = vrot.slane %v2951, 4
      %v5155 = vsel %vm2987, %v5154, %v5153
      %v5156 = vrot.slane %v2952, 3
      %v5157 = vsel %vm2990, %v5156, %v5155
      %v5158 = vrot.slane %v2953, 2
      %v5159 = vsel %vm2993, %v5158, %v5157
      %v5160 = vrot.slane %v2954, 1
      %v5161 = vsel %vm2996, %v5160, %v5159
      %v5162 = vsel %vm2999, %v2955, %v5161
      %v5163 = vrot.slane %v2956, 7
      %v5164 = vsel %vm3002, %v5163, %v5162
      %v5165 = vrot.slane %v2957, 6
      %v5166 = vsel %vm3005, %v5165, %v5164
      %v5167 = vrot.slane %v2958, 5
      %v5168 = vrot.slane %v2959, 4
      %v5169 = vsel %vm2987, %v5168, %v5167
      %v5170 = vrot.slane %v2960, 3
      %v5171 = vsel %vm2990, %v5170, %v5169
      %v5172 = vrot.slane %v2961, 2
      %v5173 = vsel %vm2993, %v5172, %v5171
      %v5174 = vrot.slane %v2962, 1
      %v5175 = vsel %vm2996, %v5174, %v5173
      %v5176 = vsel %vm2999, %v2963, %v5175
      %v5177 = vrot.slane %v2964, 7
      %v5178 = vsel %vm3002, %v5177, %v5176
      %v5179 = vrot.slane %v2965, 6
      %v5180 = vsel %vm3005, %v5179, %v5178
      %v5181 = vrot.slane %v2966, 5
      %v5182 = vrot.slane %v2967, 4
      %v5183 = vsel %vm2987, %v5182, %v5181
      %v5184 = vrot.slane %v2968, 3
      %v5185 = vsel %vm2990, %v5184, %v5183
      %v5186 = vrot.slane %v2969, 2
      %v5187 = vsel %vm2993, %v5186, %v5185
      %v5188 = vrot.slane %v2970, 1
      %v5189 = vsel %vm2996, %v5188, %v5187
      %v5190 = vsel %vm2999, %v2971, %v5189
      %v5191 = vrot.slane %v2972, 7
      %v5192 = vsel %vm3002, %v5191, %v5190
      %v5193 = vrot.slane %v2973, 6
      %v5194 = vsel %vm3005, %v5193, %v5192
      %v5195 = vrot.slane %v2974, 5
      %v5196 = vrot.slane %v2975, 4
      %v5197 = vsel %vm2987, %v5196, %v5195
      %v5198 = vrot.slane %v2976, 3
      %v5199 = vsel %vm2990, %v5198, %v5197
      %v5200 = vrot.slane %v2977, 2
      %v5201 = vsel %vm2993, %v5200, %v5199
      %v5202 = vrot.slane %v2978, 1
      %v5203 = vsel %vm2996, %v5202, %v5201
      %v5204 = vsel %vm2999, %v2979, %v5203
      %v5205 = vrot.slane %v2980, 7
      %v5206 = vsel %vm3002, %v5205, %v5204
      %v5207 = vrot.slane %v2981, 6
      %v5208 = vsel %vm3005, %v5207, %v5206
      %v5209 = vrot.slane %v2982, 5
      %v5210 = vrot.slane %v2983, 4
      %v5211 = vsel %vm2987, %v5210, %v5209
      %v5212 = vrot.slane %v2984, 3
      %v5213 = vsel %vm2990, %v5212, %v5211
      %v5214 = vrot.slane %v2985, 2
      %v5215 = vsel %vm2993, %v5214, %v5213
      %v5216 = vpack.c.b16 %v4900, %v4886
      %v5217 = vpack.c.b16 %v4928, %v4914
      %v5218 = vpack.c.b16 %v4956, %v4942
      %v5219 = vpack.c.b16 %v4984, %v4970
      %v5220 = vpack.c.b16 %v5012, %v4998
      %v5221 = vpack.c.b16 %v5040, %v5026
      %v5222 = vpack.c.b16 %v5068, %v5054
      %v5223 = vpack.c.b16 %v5096, %v5082
      %v5224 = vpack.c.b16 %v5124, %v5110
      %v5225 = vpack.c.b16 %v5152, %v5138
      %v5226 = vpack.c.b16 %v5180, %v5166
      %v5227 = vpack.c.b16 %v5208, %v5194
      %v5228 = vpack.c.b16 %v5215, %v5215
      %5229 = vrot.lane.b32.xlu0 %v5216, 80
      %v5230 = vpop.permute.xlu0 %5229
      %5231 = vrot.lane.b32.xlu0 %v5217, 80
      %v5232 = vpop.permute.xlu0 %5231
      %5233 = vrot.lane.b32.xlu0 %v5218, 80
      %v5234 = vpop.permute.xlu0 %5233
      %5235 = vrot.lane.b32.xlu0 %v5219, 80
      %v5236 = vpop.permute.xlu0 %5235
      %5237 = vrot.lane.b32.xlu0 %v5220, 80
      %v5238 = vpop.permute.xlu0 %5237
      %5239 = vrot.lane.b32.xlu0 %v5221, 80
      %v5240 = vpop.permute.xlu0 %5239
      %5241 = vrot.lane.b32.xlu0 %v5222, 80
      %v5242 = vpop.permute.xlu0 %5241
      %5243 = vrot.lane.b32.xlu0 %v5223, 80
      %v5244 = vpop.permute.xlu0 %5243
      %5245 = vrot.lane.b32.xlu0 %v5224, 80
      %v5246 = vpop.permute.xlu0 %5245
      %5247 = vrot.lane.b32.xlu0 %v5225, 80
      %v5248 = vpop.permute.xlu0 %5247
      %5249 = vrot.lane.b32.xlu0 %v5226, 80
      %v5250 = vpop.permute.xlu0 %5249
      %5251 = vrot.lane.b32.xlu0 %v5227, 80
      %v5252 = vpop.permute.xlu0 %5251
      %5253 = vrot.lane.b32.xlu0 %v5228, 80
      %v5254 = vpop.permute.xlu0 %5253
      %v5255 = vrot.slane %v2790, 6
      %v5256 = vrot.slane %v2791, 5
      %v5257 = vsel %vm2987, %v5256, %v5255
      %v5258 = vrot.slane %v2792, 4
      %v5259 = vsel %vm2990, %v5258, %v5257
      %v5260 = vrot.slane %v2793, 3
      %v5261 = vsel %vm2993, %v5260, %v5259
      %v5262 = vrot.slane %v2794, 2
      %v5263 = vsel %vm2996, %v5262, %v5261
      %v5264 = vrot.slane %v2795, 1
      %v5265 = vsel %vm2999, %v5264, %v5263
      %v5266 = vsel %vm3002, %v2796, %v5265
      %v5267 = vrot.slane %v2797, 7
      %v5268 = vsel %vm3005, %v5267, %v5266
      %v5269 = vrot.slane %v2798, 6
      %v5270 = vrot.slane %v2799, 5
      %v5271 = vsel %vm2987, %v5270, %v5269
      %v5272 = vrot.slane %v2800, 4
      %v5273 = vsel %vm2990, %v5272, %v5271
      %v5274 = vrot.slane %v2801, 3
      %v5275 = vsel %vm2993, %v5274, %v5273
      %v5276 = vrot.slane %v2802, 2
      %v5277 = vsel %vm2996, %v5276, %v5275
      %v5278 = vrot.slane %v2803, 1
      %v5279 = vsel %vm2999, %v5278, %v5277
      %v5280 = vsel %vm3002, %v2804, %v5279
      %v5281 = vrot.slane %v2805, 7
      %v5282 = vsel %vm3005, %v5281, %v5280
      %v5283 = vrot.slane %v2806, 6
      %v5284 = vrot.slane %v2807, 5
      %v5285 = vsel %vm2987, %v5284, %v5283
      %v5286 = vrot.slane %v2808, 4
      %v5287 = vsel %vm2990, %v5286, %v5285
      %v5288 = vrot.slane %v2809, 3
      %v5289 = vsel %vm2993, %v5288, %v5287
      %v5290 = vrot.slane %v2810, 2
      %v5291 = vsel %vm2996, %v5290, %v5289
      %v5292 = vrot.slane %v2811, 1
      %v5293 = vsel %vm2999, %v5292, %v5291
      %v5294 = vsel %vm3002, %v2812, %v5293
      %v5295 = vrot.slane %v2813, 7
      %v5296 = vsel %vm3005, %v5295, %v5294
      %v5297 = vrot.slane %v2814, 6
      %v5298 = vrot.slane %v2815, 5
      %v5299 = vsel %vm2987, %v5298, %v5297
      %v5300 = vrot.slane %v2816, 4
      %v5301 = vsel %vm2990, %v5300, %v5299
      %v5302 = vrot.slane %v2817, 3
      %v5303 = vsel %vm2993, %v5302, %v5301
      %v5304 = vrot.slane %v2818, 2
      %v5305 = vsel %vm2996, %v5304, %v5303
      %v5306 = vrot.slane %v2819, 1
      %v5307 = vsel %vm2999, %v5306, %v5305
      %v5308 = vsel %vm3002, %v2820, %v5307
      %v5309 = vrot.slane %v2821, 7
      %v5310 = vsel %vm3005, %v5309, %v5308
      %v5311 = vrot.slane %v2822, 6
      %v5312 = vrot.slane %v2823, 5
      %v5313 = vsel %vm2987, %v5312, %v5311
      %v5314 = vrot.slane %v2824, 4
      %v5315 = vsel %vm2990, %v5314, %v5313
      %v5316 = vrot.slane %v2825, 3
      %v5317 = vsel %vm2993, %v5316, %v5315
      %v5318 = vrot.slane %v2826, 2
      %v5319 = vsel %vm2996, %v5318, %v5317
      %v5320 = vrot.slane %v2827, 1
      %v5321 = vsel %vm2999, %v5320, %v5319
      %v5322 = vsel %vm3002, %v2828, %v5321
      %v5323 = vrot.slane %v2829, 7
      %v5324 = vsel %vm3005, %v5323, %v5322
      %v5325 = vrot.slane %v2830, 6
      %v5326 = vrot.slane %v2831, 5
      %v5327 = vsel %vm2987, %v5326, %v5325
      %v5328 = vrot.slane %v2832, 4
      %v5329 = vsel %vm2990, %v5328, %v5327
      %v5330 = vrot.slane %v2833, 3
      %v5331 = vsel %vm2993, %v5330, %v5329
      %v5332 = vrot.slane %v2834, 2
      %v5333 = vsel %vm2996, %v5332, %v5331
      %v5334 = vrot.slane %v2835, 1
      %v5335 = vsel %vm2999, %v5334, %v5333
      %v5336 = vsel %vm3002, %v2836, %v5335
      %v5337 = vrot.slane %v2837, 7
      %v5338 = vsel %vm3005, %v5337, %v5336
      %v5339 = vrot.slane %v2838, 6
      %v5340 = vrot.slane %v2839, 5
      %v5341 = vsel %vm2987, %v5340, %v5339
      %v5342 = vrot.slane %v2840, 4
      %v5343 = vsel %vm2990, %v5342, %v5341
      %v5344 = vrot.slane %v2841, 3
      %v5345 = vsel %vm2993, %v5344, %v5343
      %v5346 = vrot.slane %v2842, 2
      %v5347 = vsel %vm2996, %v5346, %v5345
      %v5348 = vrot.slane %v2843, 1
      %v5349 = vsel %vm2999, %v5348, %v5347
      %v5350 = vsel %vm3002, %v2844, %v5349
      %v5351 = vrot.slane %v2845, 7
      %v5352 = vsel %vm3005, %v5351, %v5350
      %v5353 = vrot.slane %v2846, 6
      %v5354 = vrot.slane %v2847, 5
      %v5355 = vsel %vm2987, %v5354, %v5353
      %v5356 = vrot.slane %v2848, 4
      %v5357 = vsel %vm2990, %v5356, %v5355
      %v5358 = vrot.slane %v2849, 3
      %v5359 = vsel %vm2993, %v5358, %v5357
      %v5360 = vrot.slane %v2850, 2
      %v5361 = vsel %vm2996, %v5360, %v5359
      %v5362 = vrot.slane %v2851, 1
      %v5363 = vsel %vm2999, %v5362, %v5361
      %v5364 = vsel %vm3002, %v2852, %v5363
      %v5365 = vrot.slane %v2853, 7
      %v5366 = vsel %vm3005, %v5365, %v5364
      %v5367 = vrot.slane %v2854, 6
      %v5368 = vrot.slane %v2855, 5
      %v5369 = vsel %vm2987, %v5368, %v5367
      %v5370 = vrot.slane %v2856, 4
      %v5371 = vsel %vm2990, %v5370, %v5369
      %v5372 = vrot.slane %v2857, 3
      %v5373 = vsel %vm2993, %v5372, %v5371
      %v5374 = vrot.slane %v2858, 2
      %v5375 = vsel %vm2996, %v5374, %v5373
      %v5376 = vrot.slane %v2859, 1
      %v5377 = vsel %vm2999, %v5376, %v5375
      %v5378 = vsel %vm3002, %v2860, %v5377
      %v5379 = vrot.slane %v2861, 7
      %v5380 = vsel %vm3005, %v5379, %v5378
      %v5381 = vrot.slane %v2862, 6
      %v5382 = vrot.slane %v2863, 5
      %v5383 = vsel %vm2987, %v5382, %v5381
      %v5384 = vrot.slane %v2864, 4
      %v5385 = vsel %vm2990, %v5384, %v5383
      %v5386 = vrot.slane %v2865, 3
      %v5387 = vsel %vm2993, %v5386, %v5385
      %v5388 = vrot.slane %v2866, 2
      %v5389 = vsel %vm2996, %v5388, %v5387
      %v5390 = vrot.slane %v2867, 1
      %v5391 = vsel %vm2999, %v5390, %v5389
      %v5392 = vsel %vm3002, %v2868, %v5391
      %v5393 = vrot.slane %v2869, 7
      %v5394 = vsel %vm3005, %v5393, %v5392
      %v5395 = vrot.slane %v2870, 6
      %v5396 = vrot.slane %v2871, 5
      %v5397 = vsel %vm2987, %v5396, %v5395
      %v5398 = vrot.slane %v2872, 4
      %v5399 = vsel %vm2990, %v5398, %v5397
      %v5400 = vrot.slane %v2873, 3
      %v5401 = vsel %vm2993, %v5400, %v5399
      %v5402 = vrot.slane %v2874, 2
      %v5403 = vsel %vm2996, %v5402, %v5401
      %v5404 = vrot.slane %v2875, 1
      %v5405 = vsel %vm2999, %v5404, %v5403
      %v5406 = vsel %vm3002, %v2876, %v5405
      %v5407 = vrot.slane %v2877, 7
      %v5408 = vsel %vm3005, %v5407, %v5406
      %v5409 = vrot.slane %v2878, 6
      %v5410 = vrot.slane %v2879, 5
      %v5411 = vsel %vm2987, %v5410, %v5409
      %v5412 = vrot.slane %v2880, 4
      %v5413 = vsel %vm2990, %v5412, %v5411
      %v5414 = vrot.slane %v2881, 3
      %v5415 = vsel %vm2993, %v5414, %v5413
      %v5416 = vrot.slane %v2882, 2
      %v5417 = vsel %vm2996, %v5416, %v5415
      %v5418 = vrot.slane %v2883, 1
      %v5419 = vsel %vm2999, %v5418, %v5417
      %v5420 = vsel %vm3002, %v2884, %v5419
      %v5421 = vrot.slane %v2885, 7
      %v5422 = vsel %vm3005, %v5421, %v5420
      %v5423 = vrot.slane %v2886, 6
      %v5424 = vrot.slane %v2887, 5
      %v5425 = vsel %vm2987, %v5424, %v5423
      %v5426 = vrot.slane %v2888, 4
      %v5427 = vsel %vm2990, %v5426, %v5425
      %v5428 = vrot.slane %v2889, 3
      %v5429 = vsel %vm2993, %v5428, %v5427
      %v5430 = vrot.slane %v2890, 2
      %v5431 = vsel %vm2996, %v5430, %v5429
      %v5432 = vrot.slane %v2891, 1
      %v5433 = vsel %vm2999, %v5432, %v5431
      %v5434 = vsel %vm3002, %v2892, %v5433
      %v5435 = vrot.slane %v2893, 7
      %v5436 = vsel %vm3005, %v5435, %v5434
      %v5437 = vrot.slane %v2894, 6
      %v5438 = vrot.slane %v2895, 5
      %v5439 = vsel %vm2987, %v5438, %v5437
      %v5440 = vrot.slane %v2896, 4
      %v5441 = vsel %vm2990, %v5440, %v5439
      %v5442 = vrot.slane %v2897, 3
      %v5443 = vsel %vm2993, %v5442, %v5441
      %v5444 = vrot.slane %v2898, 2
      %v5445 = vsel %vm2996, %v5444, %v5443
      %v5446 = vrot.slane %v2899, 1
      %v5447 = vsel %vm2999, %v5446, %v5445
      %v5448 = vsel %vm3002, %v2900, %v5447
      %v5449 = vrot.slane %v2901, 7
      %v5450 = vsel %vm3005, %v5449, %v5448
      %v5451 = vrot.slane %v2902, 6
      %v5452 = vrot.slane %v2903, 5
      %v5453 = vsel %vm2987, %v5452, %v5451
      %v5454 = vrot.slane %v2904, 4
      %v5455 = vsel %vm2990, %v5454, %v5453
      %v5456 = vrot.slane %v2905, 3
      %v5457 = vsel %vm2993, %v5456, %v5455
      %v5458 = vrot.slane %v2906, 2
      %v5459 = vsel %vm2996, %v5458, %v5457
      %v5460 = vrot.slane %v2907, 1
      %v5461 = vsel %vm2999, %v5460, %v5459
      %v5462 = vsel %vm3002, %v2908, %v5461
      %v5463 = vrot.slane %v2909, 7
      %v5464 = vsel %vm3005, %v5463, %v5462
      %v5465 = vrot.slane %v2910, 6
      %v5466 = vrot.slane %v2911, 5
      %v5467 = vsel %vm2987, %v5466, %v5465
      %v5468 = vrot.slane %v2912, 4
      %v5469 = vsel %vm2990, %v5468, %v5467
      %v5470 = vrot.slane %v2913, 3
      %v5471 = vsel %vm2993, %v5470, %v5469
      %v5472 = vrot.slane %v2914, 2
      %v5473 = vsel %vm2996, %v5472, %v5471
      %v5474 = vrot.slane %v2915, 1
      %v5475 = vsel %vm2999, %v5474, %v5473
      %v5476 = vsel %vm3002, %v2916, %v5475
      %v5477 = vrot.slane %v2917, 7
      %v5478 = vsel %vm3005, %v5477, %v5476
      %v5479 = vrot.slane %v2918, 6
      %v5480 = vrot.slane %v2919, 5
      %v5481 = vsel %vm2987, %v5480, %v5479
      %v5482 = vrot.slane %v2920, 4
      %v5483 = vsel %vm2990, %v5482, %v5481
      %v5484 = vrot.slane %v2921, 3
      %v5485 = vsel %vm2993, %v5484, %v5483
      %v5486 = vrot.slane %v2922, 2
      %v5487 = vsel %vm2996, %v5486, %v5485
      %v5488 = vrot.slane %v2923, 1
      %v5489 = vsel %vm2999, %v5488, %v5487
      %v5490 = vsel %vm3002, %v2924, %v5489
      %v5491 = vrot.slane %v2925, 7
      %v5492 = vsel %vm3005, %v5491, %v5490
      %v5493 = vrot.slane %v2926, 6
      %v5494 = vrot.slane %v2927, 5
      %v5495 = vsel %vm2987, %v5494, %v5493
      %v5496 = vrot.slane %v2928, 4
      %v5497 = vsel %vm2990, %v5496, %v5495
      %v5498 = vrot.slane %v2929, 3
      %v5499 = vsel %vm2993, %v5498, %v5497
      %v5500 = vrot.slane %v2930, 2
      %v5501 = vsel %vm2996, %v5500, %v5499
      %v5502 = vrot.slane %v2931, 1
      %v5503 = vsel %vm2999, %v5502, %v5501
      %v5504 = vsel %vm3002, %v2932, %v5503
      %v5505 = vrot.slane %v2933, 7
      %v5506 = vsel %vm3005, %v5505, %v5504
      %v5507 = vrot.slane %v2934, 6
      %v5508 = vrot.slane %v2935, 5
      %v5509 = vsel %vm2987, %v5508, %v5507
      %v5510 = vrot.slane %v2936, 4
      %v5511 = vsel %vm2990, %v5510, %v5509
      %v5512 = vrot.slane %v2937, 3
      %v5513 = vsel %vm2993, %v5512, %v5511
      %v5514 = vrot.slane %v2938, 2
      %v5515 = vsel %vm2996, %v5514, %v5513
      %v5516 = vrot.slane %v2939, 1
      %v5517 = vsel %vm2999, %v5516, %v5515
      %v5518 = vsel %vm3002, %v2940, %v5517
      %v5519 = vrot.slane %v2941, 7
      %v5520 = vsel %vm3005, %v5519, %v5518
      %v5521 = vrot.slane %v2942, 6
      %v5522 = vrot.slane %v2943, 5
      %v5523 = vsel %vm2987, %v5522, %v5521
      %v5524 = vrot.slane %v2944, 4
      %v5525 = vsel %vm2990, %v5524, %v5523
      %v5526 = vrot.slane %v2945, 3
      %v5527 = vsel %vm2993, %v5526, %v5525
      %v5528 = vrot.slane %v2946, 2
      %v5529 = vsel %vm2996, %v5528, %v5527
      %v5530 = vrot.slane %v2947, 1
      %v5531 = vsel %vm2999, %v5530, %v5529
      %v5532 = vsel %vm3002, %v2948, %v5531
      %v5533 = vrot.slane %v2949, 7
      %v5534 = vsel %vm3005, %v5533, %v5532
      %v5535 = vrot.slane %v2950, 6
      %v5536 = vrot.slane %v2951, 5
      %v5537 = vsel %vm2987, %v5536, %v5535
      %v5538 = vrot.slane %v2952, 4
      %v5539 = vsel %vm2990, %v5538, %v5537
      %v5540 = vrot.slane %v2953, 3
      %v5541 = vsel %vm2993, %v5540, %v5539
      %v5542 = vrot.slane %v2954, 2
      %v5543 = vsel %vm2996, %v5542, %v5541
      %v5544 = vrot.slane %v2955, 1
      %v5545 = vsel %vm2999, %v5544, %v5543
      %v5546 = vsel %vm3002, %v2956, %v5545
      %v5547 = vrot.slane %v2957, 7
      %v5548 = vsel %vm3005, %v5547, %v5546
      %v5549 = vrot.slane %v2958, 6
      %v5550 = vrot.slane %v2959, 5
      %v5551 = vsel %vm2987, %v5550, %v5549
      %v5552 = vrot.slane %v2960, 4
      %v5553 = vsel %vm2990, %v5552, %v5551
      %v5554 = vrot.slane %v2961, 3
      %v5555 = vsel %vm2993, %v5554, %v5553
      %v5556 = vrot.slane %v2962, 2
      %v5557 = vsel %vm2996, %v5556, %v5555
      %v5558 = vrot.slane %v2963, 1
      %v5559 = vsel %vm2999, %v5558, %v5557
      %v5560 = vsel %vm3002, %v2964, %v5559
      %v5561 = vrot.slane %v2965, 7
      %v5562 = vsel %vm3005, %v5561, %v5560
      %v5563 = vrot.slane %v2966, 6
      %v5564 = vrot.slane %v2967, 5
      %v5565 = vsel %vm2987, %v5564, %v5563
      %v5566 = vrot.slane %v2968, 4
      %v5567 = vsel %vm2990, %v5566, %v5565
      %v5568 = vrot.slane %v2969, 3
      %v5569 = vsel %vm2993, %v5568, %v5567
      %v5570 = vrot.slane %v2970, 2
      %v5571 = vsel %vm2996, %v5570, %v5569
      %v5572 = vrot.slane %v2971, 1
      %v5573 = vsel %vm2999, %v5572, %v5571
      %v5574 = vsel %vm3002, %v2972, %v5573
      %v5575 = vrot.slane %v2973, 7
      %v5576 = vsel %vm3005, %v5575, %v5574
      %v5577 = vrot.slane %v2974, 6
      %v5578 = vrot.slane %v2975, 5
      %v5579 = vsel %vm2987, %v5578, %v5577
      %v5580 = vrot.slane %v2976, 4
      %v5581 = vsel %vm2990, %v5580, %v5579
      %v5582 = vrot.slane %v2977, 3
      %v5583 = vsel %vm2993, %v5582, %v5581
      %v5584 = vrot.slane %v2978, 2
      %v5585 = vsel %vm2996, %v5584, %v5583
      %v5586 = vrot.slane %v2979, 1
      %v5587 = vsel %vm2999, %v5586, %v5585
      %v5588 = vsel %vm3002, %v2980, %v5587
      %v5589 = vrot.slane %v2981, 7
      %v5590 = vsel %vm3005, %v5589, %v5588
      %v5591 = vrot.slane %v2982, 6
      %v5592 = vrot.slane %v2983, 5
      %v5593 = vsel %vm2987, %v5592, %v5591
      %v5594 = vrot.slane %v2984, 4
      %v5595 = vsel %vm2990, %v5594, %v5593
      %v5596 = vrot.slane %v2985, 3
      %v5597 = vsel %vm2993, %v5596, %v5595
      %v5598 = vpack.c.b16 %v5282, %v5268
      %v5599 = vpack.c.b16 %v5310, %v5296
      %v5600 = vpack.c.b16 %v5338, %v5324
      %v5601 = vpack.c.b16 %v5366, %v5352
      %v5602 = vpack.c.b16 %v5394, %v5380
      %v5603 = vpack.c.b16 %v5422, %v5408
      %v5604 = vpack.c.b16 %v5450, %v5436
      %v5605 = vpack.c.b16 %v5478, %v5464
      %v5606 = vpack.c.b16 %v5506, %v5492
      %v5607 = vpack.c.b16 %v5534, %v5520
      %v5608 = vpack.c.b16 %v5562, %v5548
      %v5609 = vpack.c.b16 %v5590, %v5576
      %v5610 = vpack.c.b16 %v5597, %v5597
      %5611 = vrot.lane.b32.xlu0 %v5598, 96
      %v5612 = vpop.permute.xlu0 %5611
      %5613 = vrot.lane.b32.xlu0 %v5599, 96
      %v5614 = vpop.permute.xlu0 %5613
      %5615 = vrot.lane.b32.xlu0 %v5600, 96
      %v5616 = vpop.permute.xlu0 %5615
      %5617 = vrot.lane.b32.xlu0 %v5601, 96
      %v5618 = vpop.permute.xlu0 %5617
      %5619 = vrot.lane.b32.xlu0 %v5602, 96
      %v5620 = vpop.permute.xlu0 %5619
      %5621 = vrot.lane.b32.xlu0 %v5603, 96
      %v5622 = vpop.permute.xlu0 %5621
      %5623 = vrot.lane.b32.xlu0 %v5604, 96
      %v5624 = vpop.permute.xlu0 %5623
      %5625 = vrot.lane.b32.xlu0 %v5605, 96
      %v5626 = vpop.permute.xlu0 %5625
      %5627 = vrot.lane.b32.xlu0 %v5606, 96
      %v5628 = vpop.permute.xlu0 %5627
      %5629 = vrot.lane.b32.xlu0 %v5607, 96
      %v5630 = vpop.permute.xlu0 %5629
      %5631 = vrot.lane.b32.xlu0 %v5608, 96
      %v5632 = vpop.permute.xlu0 %5631
      %5633 = vrot.lane.b32.xlu0 %v5609, 96
      %v5634 = vpop.permute.xlu0 %5633
      %5635 = vrot.lane.b32.xlu0 %v5610, 96
      %v5636 = vpop.permute.xlu0 %5635
      %v5637 = vrot.slane %v2790, 7
      %v5638 = vrot.slane %v2791, 6
      %v5639 = vsel %vm2987, %v5638, %v5637
      %v5640 = vrot.slane %v2792, 5
      %v5641 = vsel %vm2990, %v5640, %v5639
      %v5642 = vrot.slane %v2793, 4
      %v5643 = vsel %vm2993, %v5642, %v5641
      %v5644 = vrot.slane %v2794, 3
      %v5645 = vsel %vm2996, %v5644, %v5643
      %v5646 = vrot.slane %v2795, 2
      %v5647 = vsel %vm2999, %v5646, %v5645
      %v5648 = vrot.slane %v2796, 1
      %v5649 = vsel %vm3002, %v5648, %v5647
      %v5650 = vsel %vm3005, %v2797, %v5649
      %v5651 = vrot.slane %v2798, 7
      %v5652 = vrot.slane %v2799, 6
      %v5653 = vsel %vm2987, %v5652, %v5651
      %v5654 = vrot.slane %v2800, 5
      %v5655 = vsel %vm2990, %v5654, %v5653
      %v5656 = vrot.slane %v2801, 4
      %v5657 = vsel %vm2993, %v5656, %v5655
      %v5658 = vrot.slane %v2802, 3
      %v5659 = vsel %vm2996, %v5658, %v5657
      %v5660 = vrot.slane %v2803, 2
      %v5661 = vsel %vm2999, %v5660, %v5659
      %v5662 = vrot.slane %v2804, 1
      %v5663 = vsel %vm3002, %v5662, %v5661
      %v5664 = vsel %vm3005, %v2805, %v5663
      %v5665 = vrot.slane %v2806, 7
      %v5666 = vrot.slane %v2807, 6
      %v5667 = vsel %vm2987, %v5666, %v5665
      %v5668 = vrot.slane %v2808, 5
      %v5669 = vsel %vm2990, %v5668, %v5667
      %v5670 = vrot.slane %v2809, 4
      %v5671 = vsel %vm2993, %v5670, %v5669
      %v5672 = vrot.slane %v2810, 3
      %v5673 = vsel %vm2996, %v5672, %v5671
      %v5674 = vrot.slane %v2811, 2
      %v5675 = vsel %vm2999, %v5674, %v5673
      %v5676 = vrot.slane %v2812, 1
      %v5677 = vsel %vm3002, %v5676, %v5675
      %v5678 = vsel %vm3005, %v2813, %v5677
      %v5679 = vrot.slane %v2814, 7
      %v5680 = vrot.slane %v2815, 6
      %v5681 = vsel %vm2987, %v5680, %v5679
      %v5682 = vrot.slane %v2816, 5
      %v5683 = vsel %vm2990, %v5682, %v5681
      %v5684 = vrot.slane %v2817, 4
      %v5685 = vsel %vm2993, %v5684, %v5683
      %v5686 = vrot.slane %v2818, 3
      %v5687 = vsel %vm2996, %v5686, %v5685
      %v5688 = vrot.slane %v2819, 2
      %v5689 = vsel %vm2999, %v5688, %v5687
      %v5690 = vrot.slane %v2820, 1
      %v5691 = vsel %vm3002, %v5690, %v5689
      %v5692 = vsel %vm3005, %v2821, %v5691
      %v5693 = vrot.slane %v2822, 7
      %v5694 = vrot.slane %v2823, 6
      %v5695 = vsel %vm2987, %v5694, %v5693
      %v5696 = vrot.slane %v2824, 5
      %v5697 = vsel %vm2990, %v5696, %v5695
      %v5698 = vrot.slane %v2825, 4
      %v5699 = vsel %vm2993, %v5698, %v5697
      %v5700 = vrot.slane %v2826, 3
      %v5701 = vsel %vm2996, %v5700, %v5699
      %v5702 = vrot.slane %v2827, 2
      %v5703 = vsel %vm2999, %v5702, %v5701
      %v5704 = vrot.slane %v2828, 1
      %v5705 = vsel %vm3002, %v5704, %v5703
      %v5706 = vsel %vm3005, %v2829, %v5705
      %v5707 = vrot.slane %v2830, 7
      %v5708 = vrot.slane %v2831, 6
      %v5709 = vsel %vm2987, %v5708, %v5707
      %v5710 = vrot.slane %v2832, 5
      %v5711 = vsel %vm2990, %v5710, %v5709
      %v5712 = vrot.slane %v2833, 4
      %v5713 = vsel %vm2993, %v5712, %v5711
      %v5714 = vrot.slane %v2834, 3
      %v5715 = vsel %vm2996, %v5714, %v5713
      %v5716 = vrot.slane %v2835, 2
      %v5717 = vsel %vm2999, %v5716, %v5715
      %v5718 = vrot.slane %v2836, 1
      %v5719 = vsel %vm3002, %v5718, %v5717
      %v5720 = vsel %vm3005, %v2837, %v5719
      %v5721 = vrot.slane %v2838, 7
      %v5722 = vrot.slane %v2839, 6
      %v5723 = vsel %vm2987, %v5722, %v5721
      %v5724 = vrot.slane %v2840, 5
      %v5725 = vsel %vm2990, %v5724, %v5723
      %v5726 = vrot.slane %v2841, 4
      %v5727 = vsel %vm2993, %v5726, %v5725
      %v5728 = vrot.slane %v2842, 3
      %v5729 = vsel %vm2996, %v5728, %v5727
      %v5730 = vrot.slane %v2843, 2
      %v5731 = vsel %vm2999, %v5730, %v5729
      %v5732 = vrot.slane %v2844, 1
      %v5733 = vsel %vm3002, %v5732, %v5731
      %v5734 = vsel %vm3005, %v2845, %v5733
      %v5735 = vrot.slane %v2846, 7
      %v5736 = vrot.slane %v2847, 6
      %v5737 = vsel %vm2987, %v5736, %v5735
      %v5738 = vrot.slane %v2848, 5
      %v5739 = vsel %vm2990, %v5738, %v5737
      %v5740 = vrot.slane %v2849, 4
      %v5741 = vsel %vm2993, %v5740, %v5739
      %v5742 = vrot.slane %v2850, 3
      %v5743 = vsel %vm2996, %v5742, %v5741
      %v5744 = vrot.slane %v2851, 2
      %v5745 = vsel %vm2999, %v5744, %v5743
      %v5746 = vrot.slane %v2852, 1
      %v5747 = vsel %vm3002, %v5746, %v5745
      %v5748 = vsel %vm3005, %v2853, %v5747
      %v5749 = vrot.slane %v2854, 7
      %v5750 = vrot.slane %v2855, 6
      %v5751 = vsel %vm2987, %v5750, %v5749
      %v5752 = vrot.slane %v2856, 5
      %v5753 = vsel %vm2990, %v5752, %v5751
      %v5754 = vrot.slane %v2857, 4
      %v5755 = vsel %vm2993, %v5754, %v5753
      %v5756 = vrot.slane %v2858, 3
      %v5757 = vsel %vm2996, %v5756, %v5755
      %v5758 = vrot.slane %v2859, 2
      %v5759 = vsel %vm2999, %v5758, %v5757
      %v5760 = vrot.slane %v2860, 1
      %v5761 = vsel %vm3002, %v5760, %v5759
      %v5762 = vsel %vm3005, %v2861, %v5761
      %v5763 = vrot.slane %v2862, 7
      %v5764 = vrot.slane %v2863, 6
      %v5765 = vsel %vm2987, %v5764, %v5763
      %v5766 = vrot.slane %v2864, 5
      %v5767 = vsel %vm2990, %v5766, %v5765
      %v5768 = vrot.slane %v2865, 4
      %v5769 = vsel %vm2993, %v5768, %v5767
      %v5770 = vrot.slane %v2866, 3
      %v5771 = vsel %vm2996, %v5770, %v5769
      %v5772 = vrot.slane %v2867, 2
      %v5773 = vsel %vm2999, %v5772, %v5771
      %v5774 = vrot.slane %v2868, 1
      %v5775 = vsel %vm3002, %v5774, %v5773
      %v5776 = vsel %vm3005, %v2869, %v5775
      %v5777 = vrot.slane %v2870, 7
      %v5778 = vrot.slane %v2871, 6
      %v5779 = vsel %vm2987, %v5778, %v5777
      %v5780 = vrot.slane %v2872, 5
      %v5781 = vsel %vm2990, %v5780, %v5779
      %v5782 = vrot.slane %v2873, 4
      %v5783 = vsel %vm2993, %v5782, %v5781
      %v5784 = vrot.slane %v2874, 3
      %v5785 = vsel %vm2996, %v5784, %v5783
      %v5786 = vrot.slane %v2875, 2
      %v5787 = vsel %vm2999, %v5786, %v5785
      %v5788 = vrot.slane %v2876, 1
      %v5789 = vsel %vm3002, %v5788, %v5787
      %v5790 = vsel %vm3005, %v2877, %v5789
      %v5791 = vrot.slane %v2878, 7
      %v5792 = vrot.slane %v2879, 6
      %v5793 = vsel %vm2987, %v5792, %v5791
      %v5794 = vrot.slane %v2880, 5
      %v5795 = vsel %vm2990, %v5794, %v5793
      %v5796 = vrot.slane %v2881, 4
      %v5797 = vsel %vm2993, %v5796, %v5795
      %v5798 = vrot.slane %v2882, 3
      %v5799 = vsel %vm2996, %v5798, %v5797
      %v5800 = vrot.slane %v2883, 2
      %v5801 = vsel %vm2999, %v5800, %v5799
      %v5802 = vrot.slane %v2884, 1
      %v5803 = vsel %vm3002, %v5802, %v5801
      %v5804 = vsel %vm3005, %v2885, %v5803
      %v5805 = vrot.slane %v2886, 7
      %v5806 = vrot.slane %v2887, 6
      %v5807 = vsel %vm2987, %v5806, %v5805
      %v5808 = vrot.slane %v2888, 5
      %v5809 = vsel %vm2990, %v5808, %v5807
      %v5810 = vrot.slane %v2889, 4
      %v5811 = vsel %vm2993, %v5810, %v5809
      %v5812 = vrot.slane %v2890, 3
      %v5813 = vsel %vm2996, %v5812, %v5811
      %v5814 = vrot.slane %v2891, 2
      %v5815 = vsel %vm2999, %v5814, %v5813
      %v5816 = vrot.slane %v2892, 1
      %v5817 = vsel %vm3002, %v5816, %v5815
      %v5818 = vsel %vm3005, %v2893, %v5817
      %v5819 = vrot.slane %v2894, 7
      %v5820 = vrot.slane %v2895, 6
      %v5821 = vsel %vm2987, %v5820, %v5819
      %v5822 = vrot.slane %v2896, 5
      %v5823 = vsel %vm2990, %v5822, %v5821
      %v5824 = vrot.slane %v2897, 4
      %v5825 = vsel %vm2993, %v5824, %v5823
      %v5826 = vrot.slane %v2898, 3
      %v5827 = vsel %vm2996, %v5826, %v5825
      %v5828 = vrot.slane %v2899, 2
      %v5829 = vsel %vm2999, %v5828, %v5827
      %v5830 = vrot.slane %v2900, 1
      %v5831 = vsel %vm3002, %v5830, %v5829
      %v5832 = vsel %vm3005, %v2901, %v5831
      %v5833 = vrot.slane %v2902, 7
      %v5834 = vrot.slane %v2903, 6
      %v5835 = vsel %vm2987, %v5834, %v5833
      %v5836 = vrot.slane %v2904, 5
      %v5837 = vsel %vm2990, %v5836, %v5835
      %v5838 = vrot.slane %v2905, 4
      %v5839 = vsel %vm2993, %v5838, %v5837
      %v5840 = vrot.slane %v2906, 3
      %v5841 = vsel %vm2996, %v5840, %v5839
      %v5842 = vrot.slane %v2907, 2
      %v5843 = vsel %vm2999, %v5842, %v5841
      %v5844 = vrot.slane %v2908, 1
      %v5845 = vsel %vm3002, %v5844, %v5843
      %v5846 = vsel %vm3005, %v2909, %v5845
      %v5847 = vrot.slane %v2910, 7
      %v5848 = vrot.slane %v2911, 6
      %v5849 = vsel %vm2987, %v5848, %v5847
      %v5850 = vrot.slane %v2912, 5
      %v5851 = vsel %vm2990, %v5850, %v5849
      %v5852 = vrot.slane %v2913, 4
      %v5853 = vsel %vm2993, %v5852, %v5851
      %v5854 = vrot.slane %v2914, 3
      %v5855 = vsel %vm2996, %v5854, %v5853
      %v5856 = vrot.slane %v2915, 2
      %v5857 = vsel %vm2999, %v5856, %v5855
      %v5858 = vrot.slane %v2916, 1
      %v5859 = vsel %vm3002, %v5858, %v5857
      %v5860 = vsel %vm3005, %v2917, %v5859
      %v5861 = vrot.slane %v2918, 7
      %v5862 = vrot.slane %v2919, 6
      %v5863 = vsel %vm2987, %v5862, %v5861
      %v5864 = vrot.slane %v2920, 5
      %v5865 = vsel %vm2990, %v5864, %v5863
      %v5866 = vrot.slane %v2921, 4
      %v5867 = vsel %vm2993, %v5866, %v5865
      %v5868 = vrot.slane %v2922, 3
      %v5869 = vsel %vm2996, %v5868, %v5867
      %v5870 = vrot.slane %v2923, 2
      %v5871 = vsel %vm2999, %v5870, %v5869
      %v5872 = vrot.slane %v2924, 1
      %v5873 = vsel %vm3002, %v5872, %v5871
      %v5874 = vsel %vm3005, %v2925, %v5873
      %v5875 = vrot.slane %v2926, 7
      %v5876 = vrot.slane %v2927, 6
      %v5877 = vsel %vm2987, %v5876, %v5875
      %v5878 = vrot.slane %v2928, 5
      %v5879 = vsel %vm2990, %v5878, %v5877
      %v5880 = vrot.slane %v2929, 4
      %v5881 = vsel %vm2993, %v5880, %v5879
      %v5882 = vrot.slane %v2930, 3
      %v5883 = vsel %vm2996, %v5882, %v5881
      %v5884 = vrot.slane %v2931, 2
      %v5885 = vsel %vm2999, %v5884, %v5883
      %v5886 = vrot.slane %v2932, 1
      %v5887 = vsel %vm3002, %v5886, %v5885
      %v5888 = vsel %vm3005, %v2933, %v5887
      %v5889 = vrot.slane %v2934, 7
      %v5890 = vrot.slane %v2935, 6
      %v5891 = vsel %vm2987, %v5890, %v5889
      %v5892 = vrot.slane %v2936, 5
      %v5893 = vsel %vm2990, %v5892, %v5891
      %v5894 = vrot.slane %v2937, 4
      %v5895 = vsel %vm2993, %v5894, %v5893
      %v5896 = vrot.slane %v2938, 3
      %v5897 = vsel %vm2996, %v5896, %v5895
      %v5898 = vrot.slane %v2939, 2
      %v5899 = vsel %vm2999, %v5898, %v5897
      %v5900 = vrot.slane %v2940, 1
      %v5901 = vsel %vm3002, %v5900, %v5899
      %v5902 = vsel %vm3005, %v2941, %v5901
      %v5903 = vrot.slane %v2942, 7
      %v5904 = vrot.slane %v2943, 6
      %v5905 = vsel %vm2987, %v5904, %v5903
      %v5906 = vrot.slane %v2944, 5
      %v5907 = vsel %vm2990, %v5906, %v5905
      %v5908 = vrot.slane %v2945, 4
      %v5909 = vsel %vm2993, %v5908, %v5907
      %v5910 = vrot.slane %v2946, 3
      %v5911 = vsel %vm2996, %v5910, %v5909
      %v5912 = vrot.slane %v2947, 2
      %v5913 = vsel %vm2999, %v5912, %v5911
      %v5914 = vrot.slane %v2948, 1
      %v5915 = vsel %vm3002, %v5914, %v5913
      %v5916 = vsel %vm3005, %v2949, %v5915
      %v5917 = vrot.slane %v2950, 7
      %v5918 = vrot.slane %v2951, 6
      %v5919 = vsel %vm2987, %v5918, %v5917
      %v5920 = vrot.slane %v2952, 5
      %v5921 = vsel %vm2990, %v5920, %v5919
      %v5922 = vrot.slane %v2953, 4
      %v5923 = vsel %vm2993, %v5922, %v5921
      %v5924 = vrot.slane %v2954, 3
      %v5925 = vsel %vm2996, %v5924, %v5923
      %v5926 = vrot.slane %v2955, 2
      %v5927 = vsel %vm2999, %v5926, %v5925
      %v5928 = vrot.slane %v2956, 1
      %v5929 = vsel %vm3002, %v5928, %v5927
      %v5930 = vsel %vm3005, %v2957, %v5929
      %v5931 = vrot.slane %v2958, 7
      %v5932 = vrot.slane %v2959, 6
      %v5933 = vsel %vm2987, %v5932, %v5931
      %v5934 = vrot.slane %v2960, 5
      %v5935 = vsel %vm2990, %v5934, %v5933
      %v5936 = vrot.slane %v2961, 4
      %v5937 = vsel %vm2993, %v5936, %v5935
      %v5938 = vrot.slane %v2962, 3
      %v5939 = vsel %vm2996, %v5938, %v5937
      %v5940 = vrot.slane %v2963, 2
      %v5941 = vsel %vm2999, %v5940, %v5939
      %v5942 = vrot.slane %v2964, 1
      %v5943 = vsel %vm3002, %v5942, %v5941
      %v5944 = vsel %vm3005, %v2965, %v5943
      %v5945 = vrot.slane %v2966, 7
      %v5946 = vrot.slane %v2967, 6
      %v5947 = vsel %vm2987, %v5946, %v5945
      %v5948 = vrot.slane %v2968, 5
      %v5949 = vsel %vm2990, %v5948, %v5947
      %v5950 = vrot.slane %v2969, 4
      %v5951 = vsel %vm2993, %v5950, %v5949
      %v5952 = vrot.slane %v2970, 3
      %v5953 = vsel %vm2996, %v5952, %v5951
      %v5954 = vrot.slane %v2971, 2
      %v5955 = vsel %vm2999, %v5954, %v5953
      %v5956 = vrot.slane %v2972, 1
      %v5957 = vsel %vm3002, %v5956, %v5955
      %v5958 = vsel %vm3005, %v2973, %v5957
      %v5959 = vrot.slane %v2974, 7
      %v5960 = vrot.slane %v2975, 6
      %v5961 = vsel %vm2987, %v5960, %v5959
      %v5962 = vrot.slane %v2976, 5
      %v5963 = vsel %vm2990, %v5962, %v5961
      %v5964 = vrot.slane %v2977, 4
      %v5965 = vsel %vm2993, %v5964, %v5963
      %v5966 = vrot.slane %v2978, 3
      %v5967 = vsel %vm2996, %v5966, %v5965
      %v5968 = vrot.slane %v2979, 2
      %v5969 = vsel %vm2999, %v5968, %v5967
      %v5970 = vrot.slane %v2980, 1
      %v5971 = vsel %vm3002, %v5970, %v5969
      %v5972 = vsel %vm3005, %v2981, %v5971
      %v5973 = vrot.slane %v2982, 7
      %v5974 = vrot.slane %v2983, 6
      %v5975 = vsel %vm2987, %v5974, %v5973
      %v5976 = vrot.slane %v2984, 5
      %v5977 = vsel %vm2990, %v5976, %v5975
      %v5978 = vrot.slane %v2985, 4
      %v5979 = vsel %vm2993, %v5978, %v5977
      %v5980 = vpack.c.b16 %v5664, %v5650
      %v5981 = vpack.c.b16 %v5692, %v5678
      %v5982 = vpack.c.b16 %v5720, %v5706
      %v5983 = vpack.c.b16 %v5748, %v5734
      %v5984 = vpack.c.b16 %v5776, %v5762
      %v5985 = vpack.c.b16 %v5804, %v5790
      %v5986 = vpack.c.b16 %v5832, %v5818
      %v5987 = vpack.c.b16 %v5860, %v5846
      %v5988 = vpack.c.b16 %v5888, %v5874
      %v5989 = vpack.c.b16 %v5916, %v5902
      %v5990 = vpack.c.b16 %v5944, %v5930
      %v5991 = vpack.c.b16 %v5972, %v5958
      %v5992 = vpack.c.b16 %v5979, %v5979
      %5993 = vrot.lane.b32.xlu0 %v5980, 112
      %v5994 = vpop.permute.xlu0 %5993
      %5995 = vrot.lane.b32.xlu0 %v5981, 112
      %v5996 = vpop.permute.xlu0 %5995
      %5997 = vrot.lane.b32.xlu0 %v5982, 112
      %v5998 = vpop.permute.xlu0 %5997
      %5999 = vrot.lane.b32.xlu0 %v5983, 112
      %v6000 = vpop.permute.xlu0 %5999
      %6001 = vrot.lane.b32.xlu0 %v5984, 112
      %v6002 = vpop.permute.xlu0 %6001
      %6003 = vrot.lane.b32.xlu0 %v5985, 112
      %v6004 = vpop.permute.xlu0 %6003
      %6005 = vrot.lane.b32.xlu0 %v5986, 112
      %v6006 = vpop.permute.xlu0 %6005
      %6007 = vrot.lane.b32.xlu0 %v5987, 112
      %v6008 = vpop.permute.xlu0 %6007
      %6009 = vrot.lane.b32.xlu0 %v5988, 112
      %v6010 = vpop.permute.xlu0 %6009
      %6011 = vrot.lane.b32.xlu0 %v5989, 112
      %v6012 = vpop.permute.xlu0 %6011
      %6013 = vrot.lane.b32.xlu0 %v5990, 112
      %v6014 = vpop.permute.xlu0 %6013
      %6015 = vrot.lane.b32.xlu0 %v5991, 112
      %v6016 = vpop.permute.xlu0 %6015
      %6017 = vrot.lane.b32.xlu0 %v5992, 112
      %v6018 = vpop.permute.xlu0 %6017
      %v6019 = vunpack.c.l.b16 %v169
      %v6020 = vunpack.c.l.b16 %v172
      %v6021 = vunpack.c.l.b16 %v175
      %v6022 = vunpack.c.l.b16 %v178
      %v6023 = vunpack.c.l.b16 %v195
      %v6024 = vunpack.c.l.b16 %v201
      %v6025 = vunpack.c.l.b16 %v207
      %v6026 = vunpack.c.l.b16 %v213
      %v6027 = vunpack.c.l.b16 %v219
      %v6028 = vunpack.c.l.b16 %v225
      %v6029 = vunpack.c.l.b16 %v231
      %v6030 = vunpack.c.l.b16 %v237
      %v6031 = vunpack.c.l.b16 %v243
      %v6032 = vunpack.c.l.b16 %v249
      %v6033 = vunpack.c.l.b16 %v255
      %v6034 = vunpack.c.l.b16 %v261
      %v6035 = vunpack.c.l.b16 %v267
      %v6036 = vunpack.c.l.b16 %v273
      %v6037 = vunpack.c.l.b16 %v279
      %v6038 = vunpack.c.l.b16 %v285
      %v6039 = vunpack.c.l.b16 %v291
      %v6040 = vunpack.c.l.b16 %v297
      %v6041 = vunpack.c.l.b16 %v303
      %v6042 = vunpack.c.l.b16 %v309
      %v6043 = vunpack.c.l.b16 %v315
      %v6044 = vunpack.c.l.b16 %v321
      %v6045 = vunpack.c.l.b16 %v327
      %v6046 = vunpack.c.l.b16 %v333
      %v6047 = vunpack.c.l.b16 %v362
      %v6048 = vunpack.c.l.b16 %v386
      %v6049 = vunpack.c.l.b16 %v410
      %v6050 = vunpack.c.l.b16 %v434
      %v6051 = vunpack.c.l.b16 %v458
      %v6052 = vunpack.c.l.b16 %v482
      %v6053 = vunpack.c.l.b16 %v506
      %v6054 = vunpack.c.l.b16 %v530
      %v6055 = vunpack.c.l.b16 %v554
      %v6056 = vunpack.c.l.b16 %v578
      %v6057 = vunpack.c.l.b16 %v602
      %v6058 = vunpack.c.l.b16 %v626
      %v6059 = vunpack.c.l.b16 %v650
      %v6060 = vunpack.c.l.b16 %v674
      %v6061 = vunpack.c.l.b16 %v698
      %v6062 = vunpack.c.l.b16 %v722
      %v6063 = vunpack.c.l.b16 %v746
      %v6064 = vunpack.c.l.b16 %v770
      %v6065 = vunpack.c.l.b16 %v794
      %v6066 = vunpack.c.l.b16 %v818
      %v6067 = vunpack.c.l.b16 %v842
      %v6068 = vunpack.c.l.b16 %v866
      %v6069 = vunpack.c.l.b16 %v890
      %v6070 = vunpack.c.l.b16 %v914
      %v6071 = vunpack.c.l.b16 %v938
      %v6072 = vunpack.c.l.b16 %v962
      %v6073 = vunpack.c.l.b16 %v986
      %v6074 = vunpack.c.l.b16 %v1010
      %v6075 = vunpack.c.l.b16 %v1020
      %v6076 = vunpack.c.l.b16 %v1027
      %v6077 = vunpack.c.l.b16 %v1034
      %v6078 = vunpack.c.l.b16 %v1041
      %v6079 = vunpack.c.l.b16 %v1048
      %v6080 = vunpack.c.l.b16 %v1055
      %v6081 = vunpack.c.l.b16 %v1062
      %v6082 = vunpack.c.l.b16 %v1069
      %v6083 = vunpack.c.l.b16 %v1076
      %v6084 = vunpack.c.l.b16 %v1083
      %v6085 = vunpack.c.l.b16 %v1090
      %v6086 = vunpack.c.l.b16 %v1097
      %v6087 = vunpack.c.l.b16 %v1104
      %v6088 = vunpack.c.l.b16 %v1111
      %v6089 = vunpack.c.l.b16 %v1118
      %v6090 = vunpack.c.l.b16 %v1125
      %v6091 = vunpack.c.l.b16 %v1132
      %v6092 = vunpack.c.l.b16 %v1139
      %v6093 = vunpack.c.l.b16 %v1146
      %v6094 = vunpack.c.l.b16 %v1153
      %v6095 = vunpack.c.l.b16 %v1160
      %v6096 = vunpack.c.l.b16 %v1167
      %v6097 = vunpack.c.l.b16 %v1174
      %v6098 = vunpack.c.l.b16 %v1181
      %v6099 = vunpack.c.l.b16 %v1188
      %v6100 = vunpack.c.l.b16 %v1195
      %v6101 = vunpack.c.l.b16 %v1202
      %v6102 = vunpack.c.l.b16 %v1209
      %v6103 = vunpack.c.l.b16 %v1227
      %v6104 = vunpack.c.l.b16 %v1242
      %v6105 = vunpack.c.l.b16 %v1257
      %v6106 = vunpack.c.l.b16 %v1272
      %v6107 = vunpack.c.l.b16 %v1287
      %v6108 = vunpack.c.l.b16 %v1302
      %v6109 = vunpack.c.l.b16 %v1317
      %v6110 = vunpack.c.l.b16 %v1332
      %v6111 = vunpack.c.l.b16 %v1347
      %v6112 = vunpack.c.l.b16 %v1362
      %v6113 = vunpack.c.l.b16 %v1377
      %v6114 = vunpack.c.l.b16 %v1392
      %v6115 = vunpack.c.l.b16 %v1407
      %v6116 = vunpack.c.l.b16 %v1422
      %v6117 = vunpack.c.l.b16 %v1437
      %v6118 = vunpack.c.l.b16 %v1452
      %v6119 = vunpack.c.l.b16 %v1467
      %v6120 = vunpack.c.l.b16 %v1482
      %v6121 = vunpack.c.l.b16 %v1497
      %v6122 = vunpack.c.l.b16 %v1512
      %v6123 = vunpack.c.l.b16 %v1527
      %v6124 = vunpack.c.l.b16 %v1542
      %v6125 = vunpack.c.l.b16 %v1557
      %v6126 = vunpack.c.l.b16 %v1572
      %v6127 = vunpack.c.l.b16 %v1587
      %v6128 = vunpack.c.l.b16 %v1602
      %v6129 = vunpack.c.l.b16 %v1617
      %v6130 = vunpack.c.l.b16 %v1632
      %v6131 = vunpack.c.l.b16 %v1642
      %v6132 = vunpack.c.l.b16 %v1649
      %v6133 = vunpack.c.l.b16 %v1656
      %v6134 = vunpack.c.l.b16 %v1663
      %v6135 = vunpack.c.l.b16 %v1670
      %v6136 = vunpack.c.l.b16 %v1677
      %v6137 = vunpack.c.l.b16 %v1684
      %v6138 = vunpack.c.l.b16 %v1691
      %v6139 = vunpack.c.l.b16 %v1698
      %v6140 = vunpack.c.l.b16 %v1705
      %v6141 = vunpack.c.l.b16 %v1712
      %v6142 = vunpack.c.l.b16 %v1719
      %v6143 = vunpack.c.l.b16 %v1726
      %v6144 = vunpack.c.l.b16 %v1733
      %v6145 = vunpack.c.l.b16 %v1740
      %v6146 = vunpack.c.l.b16 %v1747
      %v6147 = vunpack.c.l.b16 %v1754
      %v6148 = vunpack.c.l.b16 %v1761
      %v6149 = vunpack.c.l.b16 %v1768
      %v6150 = vunpack.c.l.b16 %v1775
      %v6151 = vunpack.c.l.b16 %v1782
      %v6152 = vunpack.c.l.b16 %v1789
      %v6153 = vunpack.c.l.b16 %v1796
      %v6154 = vunpack.c.l.b16 %v1803
      %v6155 = vunpack.c.l.b16 %v1810
      %v6156 = vunpack.c.l.b16 %v1817
      %v6157 = vunpack.c.l.b16 %v1824
      %v6158 = vunpack.c.l.b16 %v1831
      %v6159 = vunpack.c.l.b16 %v1847
      %v6160 = vunpack.c.l.b16 %v1860
      %v6161 = vunpack.c.l.b16 %v1873
      %v6162 = vunpack.c.l.b16 %v1886
      %v6163 = vunpack.c.l.b16 %v1899
      %v6164 = vunpack.c.l.b16 %v1912
      %v6165 = vunpack.c.l.b16 %v1925
      %v6166 = vunpack.c.l.b16 %v1938
      %v6167 = vunpack.c.l.b16 %v1951
      %v6168 = vunpack.c.l.b16 %v1964
      %v6169 = vunpack.c.l.b16 %v1977
      %v6170 = vunpack.c.l.b16 %v1990
      %v6171 = vunpack.c.l.b16 %v2003
      %v6172 = vunpack.c.l.b16 %v2016
      %v6173 = vunpack.c.l.b16 %v2029
      %v6174 = vunpack.c.l.b16 %v2042
      %v6175 = vunpack.c.l.b16 %v2055
      %v6176 = vunpack.c.l.b16 %v2068
      %v6177 = vunpack.c.l.b16 %v2081
      %v6178 = vunpack.c.l.b16 %v2094
      %v6179 = vunpack.c.l.b16 %v2107
      %v6180 = vunpack.c.l.b16 %v2120
      %v6181 = vunpack.c.l.b16 %v2133
      %v6182 = vunpack.c.l.b16 %v2146
      %v6183 = vunpack.c.l.b16 %v2159
      %v6184 = vunpack.c.l.b16 %v2172
      %v6185 = vunpack.c.l.b16 %v2185
      %v6186 = vunpack.c.l.b16 %v2198
      %v6187 = vunpack.c.l.b16 %v2208
      %v6188 = vunpack.c.l.b16 %v2215
      %v6189 = vunpack.c.l.b16 %v2222
      %v6190 = vunpack.c.l.b16 %v2229
      %v6191 = vunpack.c.l.b16 %v2236
      %v6192 = vunpack.c.l.b16 %v2243
      %v6193 = vunpack.c.l.b16 %v2250
      %v6194 = vunpack.c.l.b16 %v2257
      %v6195 = vunpack.c.l.b16 %v2264
      %v6196 = vunpack.c.l.b16 %v2271
      %v6197 = vunpack.c.l.b16 %v2278
      %v6198 = vunpack.c.l.b16 %v2285
      %v6199 = vunpack.c.l.b16 %v2292
      %v6200 = vunpack.c.l.b16 %v2299
      %v6201 = vunpack.c.l.b16 %v2306
      %v6202 = vunpack.c.l.b16 %v2313
      %v6203 = vunpack.c.l.b16 %v2320
      %v6204 = vunpack.c.l.b16 %v2327
      %v6205 = vunpack.c.l.b16 %v2334
      %v6206 = vunpack.c.l.b16 %v2341
      %v6207 = vunpack.c.l.b16 %v2348
      %v6208 = vunpack.c.l.b16 %v2355
      %v6209 = vunpack.c.l.b16 %v2362
      %v6210 = vunpack.c.l.b16 %v2369
      %v6211 = vunpack.c.l.b16 %v2376
      %v6212 = vunpack.c.l.b16 %v2383
      %v6213 = vunpack.c.l.b16 %v2390
      %v6214 = vunpack.c.l.b16 %v2397
      %v6215 = vpack.c.b16 %v6019, %v6019
      %v6216 = vpack.c.b16 %v6020, %v6020
      %v6217 = vpack.c.b16 %v6021, %v6021
      %v6218 = vpack.c.b16 %v6022, %v6022
      %v6219 = vpack.c.b16 %v6023, %v6023
      %v6220 = vpack.c.b16 %v6024, %v6024
      %v6221 = vpack.c.b16 %v6025, %v6025
      %v6222 = vpack.c.b16 %v6026, %v6026
      %v6223 = vpack.c.b16 %v6027, %v6027
      %v6224 = vpack.c.b16 %v6028, %v6028
      %v6225 = vpack.c.b16 %v6029, %v6029
      %v6226 = vpack.c.b16 %v6030, %v6030
      %v6227 = vpack.c.b16 %v6031, %v6031
      %v6228 = vpack.c.b16 %v6032, %v6032
      %v6229 = vpack.c.b16 %v6033, %v6033
      %v6230 = vpack.c.b16 %v6034, %v6034
      %v6231 = vpack.c.b16 %v6035, %v6035
      %v6232 = vpack.c.b16 %v6036, %v6036
      %v6233 = vpack.c.b16 %v6037, %v6037
      %v6234 = vpack.c.b16 %v6038, %v6038
      %v6235 = vpack.c.b16 %v6039, %v6039
      %v6236 = vpack.c.b16 %v6040, %v6040
      %v6237 = vpack.c.b16 %v6041, %v6041
      %v6238 = vpack.c.b16 %v6042, %v6042
      %v6239 = vpack.c.b16 %v6043, %v6043
      %v6240 = vpack.c.b16 %v6044, %v6044
      %v6241 = vpack.c.b16 %v6045, %v6045
      %v6242 = vpack.c.b16 %v6046, %v6046
      %v6243 = vpack.c.b16 %v6047, %v6047
      %v6244 = vpack.c.b16 %v6048, %v6048
      %v6245 = vpack.c.b16 %v6049, %v6049
      %v6246 = vpack.c.b16 %v6050, %v6050
      %v6247 = vpack.c.b16 %v6051, %v6051
      %v6248 = vpack.c.b16 %v6052, %v6052
      %v6249 = vpack.c.b16 %v6053, %v6053
      %v6250 = vpack.c.b16 %v6054, %v6054
      %v6251 = vpack.c.b16 %v6055, %v6055
      %v6252 = vpack.c.b16 %v6056, %v6056
      %v6253 = vpack.c.b16 %v6057, %v6057
      %v6254 = vpack.c.b16 %v6058, %v6058
      %v6255 = vpack.c.b16 %v6059, %v6059
      %v6256 = vpack.c.b16 %v6060, %v6060
      %v6257 = vpack.c.b16 %v6061, %v6061
      %v6258 = vpack.c.b16 %v6062, %v6062
      %v6259 = vpack.c.b16 %v6063, %v6063
      %v6260 = vpack.c.b16 %v6064, %v6064
      %v6261 = vpack.c.b16 %v6065, %v6065
      %v6262 = vpack.c.b16 %v6066, %v6066
      %v6263 = vpack.c.b16 %v6067, %v6067
      %v6264 = vpack.c.b16 %v6068, %v6068
      %v6265 = vpack.c.b16 %v6069, %v6069
      %v6266 = vpack.c.b16 %v6070, %v6070
      %v6267 = vpack.c.b16 %v6071, %v6071
      %v6268 = vpack.c.b16 %v6072, %v6072
      %v6269 = vpack.c.b16 %v6073, %v6073
      %v6270 = vpack.c.b16 %v6074, %v6074
      %v6271 = vpack.c.b16 %v6075, %v6075
      %v6272 = vpack.c.b16 %v6076, %v6076
      %v6273 = vpack.c.b16 %v6077, %v6077
      %v6274 = vpack.c.b16 %v6078, %v6078
      %v6275 = vpack.c.b16 %v6079, %v6079
      %v6276 = vpack.c.b16 %v6080, %v6080
      %v6277 = vpack.c.b16 %v6081, %v6081
      %v6278 = vpack.c.b16 %v6082, %v6082
      %v6279 = vpack.c.b16 %v6083, %v6083
      %v6280 = vpack.c.b16 %v6084, %v6084
      %v6281 = vpack.c.b16 %v6085, %v6085
      %v6282 = vpack.c.b16 %v6086, %v6086
      %v6283 = vpack.c.b16 %v6087, %v6087
      %v6284 = vpack.c.b16 %v6088, %v6088
      %v6285 = vpack.c.b16 %v6089, %v6089
      %v6286 = vpack.c.b16 %v6090, %v6090
      %v6287 = vpack.c.b16 %v6091, %v6091
      %v6288 = vpack.c.b16 %v6092, %v6092
      %v6289 = vpack.c.b16 %v6093, %v6093
      %v6290 = vpack.c.b16 %v6094, %v6094
      %v6291 = vpack.c.b16 %v6095, %v6095
      %v6292 = vpack.c.b16 %v6096, %v6096
      %v6293 = vpack.c.b16 %v6097, %v6097
      %v6294 = vpack.c.b16 %v6098, %v6098
      %v6295 = vpack.c.b16 %v6099, %v6099
      %v6296 = vpack.c.b16 %v6100, %v6100
      %v6297 = vpack.c.b16 %v6101, %v6101
      %v6298 = vpack.c.b16 %v6102, %v6102
      %v6299 = vpack.c.b16 %v6103, %v6103
      %v6300 = vpack.c.b16 %v6104, %v6104
      %v6301 = vpack.c.b16 %v6105, %v6105
      %v6302 = vpack.c.b16 %v6106, %v6106
      %v6303 = vpack.c.b16 %v6107, %v6107
      %v6304 = vpack.c.b16 %v6108, %v6108
      %v6305 = vpack.c.b16 %v6109, %v6109
      %v6306 = vpack.c.b16 %v6110, %v6110
      %v6307 = vpack.c.b16 %v6111, %v6111
      %v6308 = vpack.c.b16 %v6112, %v6112
      %v6309 = vpack.c.b16 %v6113, %v6113
      %v6310 = vpack.c.b16 %v6114, %v6114
      %v6311 = vpack.c.b16 %v6115, %v6115
      %v6312 = vpack.c.b16 %v6116, %v6116
      %v6313 = vpack.c.b16 %v6117, %v6117
      %v6314 = vpack.c.b16 %v6118, %v6118
      %v6315 = vpack.c.b16 %v6119, %v6119
      %v6316 = vpack.c.b16 %v6120, %v6120
      %v6317 = vpack.c.b16 %v6121, %v6121
      %v6318 = vpack.c.b16 %v6122, %v6122
      %v6319 = vpack.c.b16 %v6123, %v6123
      %v6320 = vpack.c.b16 %v6124, %v6124
      %v6321 = vpack.c.b16 %v6125, %v6125
      %v6322 = vpack.c.b16 %v6126, %v6126
      %v6323 = vpack.c.b16 %v6127, %v6127
      %v6324 = vpack.c.b16 %v6128, %v6128
      %v6325 = vpack.c.b16 %v6129, %v6129
      %v6326 = vpack.c.b16 %v6130, %v6130
      %v6327 = vpack.c.b16 %v6131, %v6131
      %v6328 = vpack.c.b16 %v6132, %v6132
      %v6329 = vpack.c.b16 %v6133, %v6133
      %v6330 = vpack.c.b16 %v6134, %v6134
      %v6331 = vpack.c.b16 %v6135, %v6135
      %v6332 = vpack.c.b16 %v6136, %v6136
      %v6333 = vpack.c.b16 %v6137, %v6137
      %v6334 = vpack.c.b16 %v6138, %v6138
      %v6335 = vpack.c.b16 %v6139, %v6139
      %v6336 = vpack.c.b16 %v6140, %v6140
      %v6337 = vpack.c.b16 %v6141, %v6141
      %v6338 = vpack.c.b16 %v6142, %v6142
      %v6339 = vpack.c.b16 %v6143, %v6143
      %v6340 = vpack.c.b16 %v6144, %v6144
      %v6341 = vpack.c.b16 %v6145, %v6145
      %v6342 = vpack.c.b16 %v6146, %v6146
      %v6343 = vpack.c.b16 %v6147, %v6147
      %v6344 = vpack.c.b16 %v6148, %v6148
      %v6345 = vpack.c.b16 %v6149, %v6149
      %v6346 = vpack.c.b16 %v6150, %v6150
      %v6347 = vpack.c.b16 %v6151, %v6151
      %v6348 = vpack.c.b16 %v6152, %v6152
      %v6349 = vpack.c.b16 %v6153, %v6153
      %v6350 = vpack.c.b16 %v6154, %v6154
      %v6351 = vpack.c.b16 %v6155, %v6155
      %v6352 = vpack.c.b16 %v6156, %v6156
      %v6353 = vpack.c.b16 %v6157, %v6157
      %v6354 = vpack.c.b16 %v6158, %v6158
      %v6355 = vpack.c.b16 %v6159, %v6159
      %v6356 = vpack.c.b16 %v6160, %v6160
      %v6357 = vpack.c.b16 %v6161, %v6161
      %v6358 = vpack.c.b16 %v6162, %v6162
      %v6359 = vpack.c.b16 %v6163, %v6163
      %v6360 = vpack.c.b16 %v6164, %v6164
      %v6361 = vpack.c.b16 %v6165, %v6165
      %v6362 = vpack.c.b16 %v6166, %v6166
      %v6363 = vpack.c.b16 %v6167, %v6167
      %v6364 = vpack.c.b16 %v6168, %v6168
      %v6365 = vpack.c.b16 %v6169, %v6169
      %v6366 = vpack.c.b16 %v6170, %v6170
      %v6367 = vpack.c.b16 %v6171, %v6171
      %v6368 = vpack.c.b16 %v6172, %v6172
      %v6369 = vpack.c.b16 %v6173, %v6173
      %v6370 = vpack.c.b16 %v6174, %v6174
      %v6371 = vpack.c.b16 %v6175, %v6175
      %v6372 = vpack.c.b16 %v6176, %v6176
      %v6373 = vpack.c.b16 %v6177, %v6177
      %v6374 = vpack.c.b16 %v6178, %v6178
      %v6375 = vpack.c.b16 %v6179, %v6179
      %v6376 = vpack.c.b16 %v6180, %v6180
      %v6377 = vpack.c.b16 %v6181, %v6181
      %v6378 = vpack.c.b16 %v6182, %v6182
      %v6379 = vpack.c.b16 %v6183, %v6183
      %v6380 = vpack.c.b16 %v6184, %v6184
      %v6381 = vpack.c.b16 %v6185, %v6185
      %v6382 = vpack.c.b16 %v6186, %v6186
      %v6383 = vpack.c.b16 %v6187, %v6187
      %v6384 = vpack.c.b16 %v6188, %v6188
      %v6385 = vpack.c.b16 %v6189, %v6189
      %v6386 = vpack.c.b16 %v6190, %v6190
      %v6387 = vpack.c.b16 %v6191, %v6191
      %v6388 = vpack.c.b16 %v6192, %v6192
      %v6389 = vpack.c.b16 %v6193, %v6193
      %v6390 = vpack.c.b16 %v6194, %v6194
      %v6391 = vpack.c.b16 %v6195, %v6195
      %v6392 = vpack.c.b16 %v6196, %v6196
      %v6393 = vpack.c.b16 %v6197, %v6197
      %v6394 = vpack.c.b16 %v6198, %v6198
      %v6395 = vpack.c.b16 %v6199, %v6199
      %v6396 = vpack.c.b16 %v6200, %v6200
      %v6397 = vpack.c.b16 %v6201, %v6201
      %v6398 = vpack.c.b16 %v6202, %v6202
      %v6399 = vpack.c.b16 %v6203, %v6203
      %v6400 = vpack.c.b16 %v6204, %v6204
      %v6401 = vpack.c.b16 %v6205, %v6205
      %v6402 = vpack.c.b16 %v6206, %v6206
      %v6403 = vpack.c.b16 %v6207, %v6207
      %v6404 = vpack.c.b16 %v6208, %v6208
      %v6405 = vpack.c.b16 %v6209, %v6209
      %v6406 = vpack.c.b16 %v6210, %v6210
      %v6407 = vpack.c.b16 %v6211, %v6211
      %v6408 = vpack.c.b16 %v6212, %v6212
      %v6409 = vpack.c.b16 %v6213, %v6213
      %v6410 = vpack.c.b16 %v6214, %v6214
      %v6411 = vunpack.c.l.b16 %v6215
      %v6412 = vunpack.c.l.b16 %v6216
      %v6413 = vunpack.c.l.b16 %v6217
      %v6414 = vunpack.c.l.b16 %v6218
      %v6415 = vunpack.c.l.b16 %v6219
      %v6416 = vunpack.c.l.b16 %v6220
      %v6417 = vunpack.c.l.b16 %v6221
      %v6418 = vunpack.c.l.b16 %v6222
      %v6419 = vunpack.c.l.b16 %v6223
      %v6420 = vunpack.c.l.b16 %v6224
      %v6421 = vunpack.c.l.b16 %v6225
      %v6422 = vunpack.c.l.b16 %v6226
      %v6423 = vunpack.c.l.b16 %v6227
      %v6424 = vunpack.c.l.b16 %v6228
      %v6425 = vunpack.c.l.b16 %v6229
      %v6426 = vunpack.c.l.b16 %v6230
      %v6427 = vunpack.c.l.b16 %v6231
      %v6428 = vunpack.c.l.b16 %v6232
      %v6429 = vunpack.c.l.b16 %v6233
      %v6430 = vunpack.c.l.b16 %v6234
      %v6431 = vunpack.c.l.b16 %v6235
      %v6432 = vunpack.c.l.b16 %v6236
      %v6433 = vunpack.c.l.b16 %v6237
      %v6434 = vunpack.c.l.b16 %v6238
      %v6435 = vunpack.c.l.b16 %v6239
      %v6436 = vunpack.c.l.b16 %v6240
      %v6437 = vunpack.c.l.b16 %v6241
      %v6438 = vunpack.c.l.b16 %v6242
      %v6439 = vunpack.c.l.b16 %v6243
      %v6440 = vunpack.c.l.b16 %v6244
      %v6441 = vunpack.c.l.b16 %v6245
      %v6442 = vunpack.c.l.b16 %v6246
      %v6443 = vunpack.c.l.b16 %v6247
      %v6444 = vunpack.c.l.b16 %v6248
      %v6445 = vunpack.c.l.b16 %v6249
      %v6446 = vunpack.c.l.b16 %v6250
      %v6447 = vunpack.c.l.b16 %v6251
      %v6448 = vunpack.c.l.b16 %v6252
      %v6449 = vunpack.c.l.b16 %v6253
      %v6450 = vunpack.c.l.b16 %v6254
      %v6451 = vunpack.c.l.b16 %v6255
      %v6452 = vunpack.c.l.b16 %v6256
      %v6453 = vunpack.c.l.b16 %v6257
      %v6454 = vunpack.c.l.b16 %v6258
      %v6455 = vunpack.c.l.b16 %v6259
      %v6456 = vunpack.c.l.b16 %v6260
      %v6457 = vunpack.c.l.b16 %v6261
      %v6458 = vunpack.c.l.b16 %v6262
      %v6459 = vunpack.c.l.b16 %v6263
      %v6460 = vunpack.c.l.b16 %v6264
      %v6461 = vunpack.c.l.b16 %v6265
      %v6462 = vunpack.c.l.b16 %v6266
      %v6463 = vunpack.c.l.b16 %v6267
      %v6464 = vunpack.c.l.b16 %v6268
      %v6465 = vunpack.c.l.b16 %v6269
      %v6466 = vunpack.c.l.b16 %v6270
      %v6467 = vunpack.c.l.b16 %v6271
      %v6468 = vunpack.c.l.b16 %v6272
      %v6469 = vunpack.c.l.b16 %v6273
      %v6470 = vunpack.c.l.b16 %v6274
      %v6471 = vunpack.c.l.b16 %v6275
      %v6472 = vunpack.c.l.b16 %v6276
      %v6473 = vunpack.c.l.b16 %v6277
      %v6474 = vunpack.c.l.b16 %v6278
      %v6475 = vunpack.c.l.b16 %v6279
      %v6476 = vunpack.c.l.b16 %v6280
      %v6477 = vunpack.c.l.b16 %v6281
      %v6478 = vunpack.c.l.b16 %v6282
      %v6479 = vunpack.c.l.b16 %v6283
      %v6480 = vunpack.c.l.b16 %v6284
      %v6481 = vunpack.c.l.b16 %v6285
      %v6482 = vunpack.c.l.b16 %v6286
      %v6483 = vunpack.c.l.b16 %v6287
      %v6484 = vunpack.c.l.b16 %v6288
      %v6485 = vunpack.c.l.b16 %v6289
      %v6486 = vunpack.c.l.b16 %v6290
      %v6487 = vunpack.c.l.b16 %v6291
      %v6488 = vunpack.c.l.b16 %v6292
      %v6489 = vunpack.c.l.b16 %v6293
      %v6490 = vunpack.c.l.b16 %v6294
      %v6491 = vunpack.c.l.b16 %v6295
      %v6492 = vunpack.c.l.b16 %v6296
      %v6493 = vunpack.c.l.b16 %v6297
      %v6494 = vunpack.c.l.b16 %v6298
      %v6495 = vunpack.c.l.b16 %v6299
      %v6496 = vunpack.c.l.b16 %v6300
      %v6497 = vunpack.c.l.b16 %v6301
      %v6498 = vunpack.c.l.b16 %v6302
      %v6499 = vunpack.c.l.b16 %v6303
      %v6500 = vunpack.c.l.b16 %v6304
      %v6501 = vunpack.c.l.b16 %v6305
      %v6502 = vunpack.c.l.b16 %v6306
      %v6503 = vunpack.c.l.b16 %v6307
      %v6504 = vunpack.c.l.b16 %v6308
      %v6505 = vunpack.c.l.b16 %v6309
      %v6506 = vunpack.c.l.b16 %v6310
      %v6507 = vunpack.c.l.b16 %v6311
      %v6508 = vunpack.c.l.b16 %v6312
      %v6509 = vunpack.c.l.b16 %v6313
      %v6510 = vunpack.c.l.b16 %v6314
      %v6511 = vunpack.c.l.b16 %v6315
      %v6512 = vunpack.c.l.b16 %v6316
      %v6513 = vunpack.c.l.b16 %v6317
      %v6514 = vunpack.c.l.b16 %v6318
      %v6515 = vunpack.c.l.b16 %v6319
      %v6516 = vunpack.c.l.b16 %v6320
      %v6517 = vunpack.c.l.b16 %v6321
      %v6518 = vunpack.c.l.b16 %v6322
      %v6519 = vunpack.c.l.b16 %v6323
      %v6520 = vunpack.c.l.b16 %v6324
      %v6521 = vunpack.c.l.b16 %v6325
      %v6522 = vunpack.c.l.b16 %v6326
      %v6523 = vunpack.c.l.b16 %v6327
      %v6524 = vunpack.c.l.b16 %v6328
      %v6525 = vunpack.c.l.b16 %v6329
      %v6526 = vunpack.c.l.b16 %v6330
      %v6527 = vunpack.c.l.b16 %v6331
      %v6528 = vunpack.c.l.b16 %v6332
      %v6529 = vunpack.c.l.b16 %v6333
      %v6530 = vunpack.c.l.b16 %v6334
      %v6531 = vunpack.c.l.b16 %v6335
      %v6532 = vunpack.c.l.b16 %v6336
      %v6533 = vunpack.c.l.b16 %v6337
      %v6534 = vunpack.c.l.b16 %v6338
      %v6535 = vunpack.c.l.b16 %v6339
      %v6536 = vunpack.c.l.b16 %v6340
      %v6537 = vunpack.c.l.b16 %v6341
      %v6538 = vunpack.c.l.b16 %v6342
      %v6539 = vunpack.c.l.b16 %v6343
      %v6540 = vunpack.c.l.b16 %v6344
      %v6541 = vunpack.c.l.b16 %v6345
      %v6542 = vunpack.c.l.b16 %v6346
      %v6543 = vunpack.c.l.b16 %v6347
      %v6544 = vunpack.c.l.b16 %v6348
      %v6545 = vunpack.c.l.b16 %v6349
      %v6546 = vunpack.c.l.b16 %v6350
      %v6547 = vunpack.c.l.b16 %v6351
      %v6548 = vunpack.c.l.b16 %v6352
      %v6549 = vunpack.c.l.b16 %v6353
      %v6550 = vunpack.c.l.b16 %v6354
      %v6551 = vunpack.c.l.b16 %v6355
      %v6552 = vunpack.c.l.b16 %v6356
      %v6553 = vunpack.c.l.b16 %v6357
      %v6554 = vunpack.c.l.b16 %v6358
      %v6555 = vunpack.c.l.b16 %v6359
      %v6556 = vunpack.c.l.b16 %v6360
      %v6557 = vunpack.c.l.b16 %v6361
      %v6558 = vunpack.c.l.b16 %v6362
      %v6559 = vunpack.c.l.b16 %v6363
      %v6560 = vunpack.c.l.b16 %v6364
      %v6561 = vunpack.c.l.b16 %v6365
      %v6562 = vunpack.c.l.b16 %v6366
      %v6563 = vunpack.c.l.b16 %v6367
      %v6564 = vunpack.c.l.b16 %v6368
      %v6565 = vunpack.c.l.b16 %v6369
      %v6566 = vunpack.c.l.b16 %v6370
      %v6567 = vunpack.c.l.b16 %v6371
      %v6568 = vunpack.c.l.b16 %v6372
      %v6569 = vunpack.c.l.b16 %v6373
      %v6570 = vunpack.c.l.b16 %v6374
      %v6571 = vunpack.c.l.b16 %v6375
      %v6572 = vunpack.c.l.b16 %v6376
      %v6573 = vunpack.c.l.b16 %v6377
      %v6574 = vunpack.c.l.b16 %v6378
      %v6575 = vunpack.c.l.b16 %v6379
      %v6576 = vunpack.c.l.b16 %v6380
      %v6577 = vunpack.c.l.b16 %v6381
      %v6578 = vunpack.c.l.b16 %v6382
      %v6579 = vunpack.c.l.b16 %v6383
      %v6580 = vunpack.c.l.b16 %v6384
      %v6581 = vunpack.c.l.b16 %v6385
      %v6582 = vunpack.c.l.b16 %v6386
      %v6583 = vunpack.c.l.b16 %v6387
      %v6584 = vunpack.c.l.b16 %v6388
      %v6585 = vunpack.c.l.b16 %v6389
      %v6586 = vunpack.c.l.b16 %v6390
      %v6587 = vunpack.c.l.b16 %v6391
      %v6588 = vunpack.c.l.b16 %v6392
      %v6589 = vunpack.c.l.b16 %v6393
      %v6590 = vunpack.c.l.b16 %v6394
      %v6591 = vunpack.c.l.b16 %v6395
      %v6592 = vunpack.c.l.b16 %v6396
      %v6593 = vunpack.c.l.b16 %v6397
      %v6594 = vunpack.c.l.b16 %v6398
      %v6595 = vunpack.c.l.b16 %v6399
      %v6596 = vunpack.c.l.b16 %v6400
      %v6597 = vunpack.c.l.b16 %v6401
      %v6598 = vunpack.c.l.b16 %v6402
      %v6599 = vunpack.c.l.b16 %v6403
      %v6600 = vunpack.c.l.b16 %v6404
      %v6601 = vunpack.c.l.b16 %v6405
      %v6602 = vunpack.c.l.b16 %v6406
      %v6603 = vunpack.c.l.b16 %v6407
      %v6604 = vunpack.c.l.b16 %v6408
      %v6605 = vunpack.c.l.b16 %v6409
      %v6606 = vunpack.c.l.b16 %v6410
      %v6607 = vrot.slane %v6412, 7
      %v6608 = vsel %vm2987, %v6607, %v6411
      %v6609 = vrot.slane %v6413, 6
      %v6610 = vsel %vm2990, %v6609, %v6608
      %v6611 = vrot.slane %v6414, 5
      %v6612 = vsel %vm2993, %v6611, %v6610
      %v6613 = vrot.slane %v6415, 4
      %v6614 = vsel %vm2996, %v6613, %v6612
      %v6615 = vrot.slane %v6416, 3
      %v6616 = vsel %vm2999, %v6615, %v6614
      %v6617 = vrot.slane %v6417, 2
      %v6618 = vsel %vm3002, %v6617, %v6616
      %v6619 = vrot.slane %v6418, 1
      %v6620 = vsel %vm3005, %v6619, %v6618
      %v6621 = vrot.slane %v6420, 7
      %v6622 = vsel %vm2987, %v6621, %v6419
      %v6623 = vrot.slane %v6421, 6
      %v6624 = vsel %vm2990, %v6623, %v6622
      %v6625 = vrot.slane %v6422, 5
      %v6626 = vsel %vm2993, %v6625, %v6624
      %v6627 = vrot.slane %v6423, 4
      %v6628 = vsel %vm2996, %v6627, %v6626
      %v6629 = vrot.slane %v6424, 3
      %v6630 = vsel %vm2999, %v6629, %v6628
      %v6631 = vrot.slane %v6425, 2
      %v6632 = vsel %vm3002, %v6631, %v6630
      %v6633 = vrot.slane %v6426, 1
      %v6634 = vsel %vm3005, %v6633, %v6632
      %v6635 = vrot.slane %v6428, 7
      %v6636 = vsel %vm2987, %v6635, %v6427
      %v6637 = vrot.slane %v6429, 6
      %v6638 = vsel %vm2990, %v6637, %v6636
      %v6639 = vrot.slane %v6430, 5
      %v6640 = vsel %vm2993, %v6639, %v6638
      %v6641 = vrot.slane %v6431, 4
      %v6642 = vsel %vm2996, %v6641, %v6640
      %v6643 = vrot.slane %v6432, 3
      %v6644 = vsel %vm2999, %v6643, %v6642
      %v6645 = vrot.slane %v6433, 2
      %v6646 = vsel %vm3002, %v6645, %v6644
      %v6647 = vrot.slane %v6434, 1
      %v6648 = vsel %vm3005, %v6647, %v6646
      %v6649 = vrot.slane %v6436, 7
      %v6650 = vsel %vm2987, %v6649, %v6435
      %v6651 = vrot.slane %v6437, 6
      %v6652 = vsel %vm2990, %v6651, %v6650
      %v6653 = vrot.slane %v6438, 5
      %v6654 = vsel %vm2993, %v6653, %v6652
      %v6655 = vrot.slane %v6439, 4
      %v6656 = vsel %vm2996, %v6655, %v6654
      %v6657 = vrot.slane %v6440, 3
      %v6658 = vsel %vm2999, %v6657, %v6656
      %v6659 = vrot.slane %v6441, 2
      %v6660 = vsel %vm3002, %v6659, %v6658
      %v6661 = vrot.slane %v6442, 1
      %v6662 = vsel %vm3005, %v6661, %v6660
      %v6663 = vrot.slane %v6444, 7
      %v6664 = vsel %vm2987, %v6663, %v6443
      %v6665 = vrot.slane %v6445, 6
      %v6666 = vsel %vm2990, %v6665, %v6664
      %v6667 = vrot.slane %v6446, 5
      %v6668 = vsel %vm2993, %v6667, %v6666
      %v6669 = vrot.slane %v6447, 4
      %v6670 = vsel %vm2996, %v6669, %v6668
      %v6671 = vrot.slane %v6448, 3
      %v6672 = vsel %vm2999, %v6671, %v6670
      %v6673 = vrot.slane %v6449, 2
      %v6674 = vsel %vm3002, %v6673, %v6672
      %v6675 = vrot.slane %v6450, 1
      %v6676 = vsel %vm3005, %v6675, %v6674
      %v6677 = vrot.slane %v6452, 7
      %v6678 = vsel %vm2987, %v6677, %v6451
      %v6679 = vrot.slane %v6453, 6
      %v6680 = vsel %vm2990, %v6679, %v6678
      %v6681 = vrot.slane %v6454, 5
      %v6682 = vsel %vm2993, %v6681, %v6680
      %v6683 = vrot.slane %v6455, 4
      %v6684 = vsel %vm2996, %v6683, %v6682
      %v6685 = vrot.slane %v6456, 3
      %v6686 = vsel %vm2999, %v6685, %v6684
      %v6687 = vrot.slane %v6457, 2
      %v6688 = vsel %vm3002, %v6687, %v6686
      %v6689 = vrot.slane %v6458, 1
      %v6690 = vsel %vm3005, %v6689, %v6688
      %v6691 = vrot.slane %v6460, 7
      %v6692 = vsel %vm2987, %v6691, %v6459
      %v6693 = vrot.slane %v6461, 6
      %v6694 = vsel %vm2990, %v6693, %v6692
      %v6695 = vrot.slane %v6462, 5
      %v6696 = vsel %vm2993, %v6695, %v6694
      %v6697 = vrot.slane %v6463, 4
      %v6698 = vsel %vm2996, %v6697, %v6696
      %v6699 = vrot.slane %v6464, 3
      %v6700 = vsel %vm2999, %v6699, %v6698
      %v6701 = vrot.slane %v6465, 2
      %v6702 = vsel %vm3002, %v6701, %v6700
      %v6703 = vrot.slane %v6466, 1
      %v6704 = vsel %vm3005, %v6703, %v6702
      %v6705 = vrot.slane %v6468, 7
      %v6706 = vsel %vm2987, %v6705, %v6467
      %v6707 = vrot.slane %v6469, 6
      %v6708 = vsel %vm2990, %v6707, %v6706
      %v6709 = vrot.slane %v6470, 5
      %v6710 = vsel %vm2993, %v6709, %v6708
      %v6711 = vrot.slane %v6471, 4
      %v6712 = vsel %vm2996, %v6711, %v6710
      %v6713 = vrot.slane %v6472, 3
      %v6714 = vsel %vm2999, %v6713, %v6712
      %v6715 = vrot.slane %v6473, 2
      %v6716 = vsel %vm3002, %v6715, %v6714
      %v6717 = vrot.slane %v6474, 1
      %v6718 = vsel %vm3005, %v6717, %v6716
      %v6719 = vrot.slane %v6476, 7
      %v6720 = vsel %vm2987, %v6719, %v6475
      %v6721 = vrot.slane %v6477, 6
      %v6722 = vsel %vm2990, %v6721, %v6720
      %v6723 = vrot.slane %v6478, 5
      %v6724 = vsel %vm2993, %v6723, %v6722
      %v6725 = vrot.slane %v6479, 4
      %v6726 = vsel %vm2996, %v6725, %v6724
      %v6727 = vrot.slane %v6480, 3
      %v6728 = vsel %vm2999, %v6727, %v6726
      %v6729 = vrot.slane %v6481, 2
      %v6730 = vsel %vm3002, %v6729, %v6728
      %v6731 = vrot.slane %v6482, 1
      %v6732 = vsel %vm3005, %v6731, %v6730
      %v6733 = vrot.slane %v6484, 7
      %v6734 = vsel %vm2987, %v6733, %v6483
      %v6735 = vrot.slane %v6485, 6
      %v6736 = vsel %vm2990, %v6735, %v6734
      %v6737 = vrot.slane %v6486, 5
      %v6738 = vsel %vm2993, %v6737, %v6736
      %v6739 = vrot.slane %v6487, 4
      %v6740 = vsel %vm2996, %v6739, %v6738
      %v6741 = vrot.slane %v6488, 3
      %v6742 = vsel %vm2999, %v6741, %v6740
      %v6743 = vrot.slane %v6489, 2
      %v6744 = vsel %vm3002, %v6743, %v6742
      %v6745 = vrot.slane %v6490, 1
      %v6746 = vsel %vm3005, %v6745, %v6744
      %v6747 = vrot.slane %v6492, 7
      %v6748 = vsel %vm2987, %v6747, %v6491
      %v6749 = vrot.slane %v6493, 6
      %v6750 = vsel %vm2990, %v6749, %v6748
      %v6751 = vrot.slane %v6494, 5
      %v6752 = vsel %vm2993, %v6751, %v6750
      %v6753 = vrot.slane %v6495, 4
      %v6754 = vsel %vm2996, %v6753, %v6752
      %v6755 = vrot.slane %v6496, 3
      %v6756 = vsel %vm2999, %v6755, %v6754
      %v6757 = vrot.slane %v6497, 2
      %v6758 = vsel %vm3002, %v6757, %v6756
      %v6759 = vrot.slane %v6498, 1
      %v6760 = vsel %vm3005, %v6759, %v6758
      %v6761 = vrot.slane %v6500, 7
      %v6762 = vsel %vm2987, %v6761, %v6499
      %v6763 = vrot.slane %v6501, 6
      %v6764 = vsel %vm2990, %v6763, %v6762
      %v6765 = vrot.slane %v6502, 5
      %v6766 = vsel %vm2993, %v6765, %v6764
      %v6767 = vrot.slane %v6503, 4
      %v6768 = vsel %vm2996, %v6767, %v6766
      %v6769 = vrot.slane %v6504, 3
      %v6770 = vsel %vm2999, %v6769, %v6768
      %v6771 = vrot.slane %v6505, 2
      %v6772 = vsel %vm3002, %v6771, %v6770
      %v6773 = vrot.slane %v6506, 1
      %v6774 = vsel %vm3005, %v6773, %v6772
      %v6775 = vrot.slane %v6508, 7
      %v6776 = vsel %vm2987, %v6775, %v6507
      %v6777 = vrot.slane %v6509, 6
      %v6778 = vsel %vm2990, %v6777, %v6776
      %v6779 = vrot.slane %v6510, 5
      %v6780 = vsel %vm2993, %v6779, %v6778
      %v6781 = vrot.slane %v6511, 4
      %v6782 = vsel %vm2996, %v6781, %v6780
      %v6783 = vrot.slane %v6512, 3
      %v6784 = vsel %vm2999, %v6783, %v6782
      %v6785 = vrot.slane %v6513, 2
      %v6786 = vsel %vm3002, %v6785, %v6784
      %v6787 = vrot.slane %v6514, 1
      %v6788 = vsel %vm3005, %v6787, %v6786
      %v6789 = vrot.slane %v6516, 7
      %v6790 = vsel %vm2987, %v6789, %v6515
      %v6791 = vrot.slane %v6517, 6
      %v6792 = vsel %vm2990, %v6791, %v6790
      %v6793 = vrot.slane %v6518, 5
      %v6794 = vsel %vm2993, %v6793, %v6792
      %v6795 = vrot.slane %v6519, 4
      %v6796 = vsel %vm2996, %v6795, %v6794
      %v6797 = vrot.slane %v6520, 3
      %v6798 = vsel %vm2999, %v6797, %v6796
      %v6799 = vrot.slane %v6521, 2
      %v6800 = vsel %vm3002, %v6799, %v6798
      %v6801 = vrot.slane %v6522, 1
      %v6802 = vsel %vm3005, %v6801, %v6800
      %v6803 = vrot.slane %v6524, 7
      %v6804 = vsel %vm2987, %v6803, %v6523
      %v6805 = vrot.slane %v6525, 6
      %v6806 = vsel %vm2990, %v6805, %v6804
      %v6807 = vrot.slane %v6526, 5
      %v6808 = vsel %vm2993, %v6807, %v6806
      %v6809 = vrot.slane %v6527, 4
      %v6810 = vsel %vm2996, %v6809, %v6808
      %v6811 = vrot.slane %v6528, 3
      %v6812 = vsel %vm2999, %v6811, %v6810
      %v6813 = vrot.slane %v6529, 2
      %v6814 = vsel %vm3002, %v6813, %v6812
      %v6815 = vrot.slane %v6530, 1
      %v6816 = vsel %vm3005, %v6815, %v6814
      %v6817 = vrot.slane %v6532, 7
      %v6818 = vsel %vm2987, %v6817, %v6531
      %v6819 = vrot.slane %v6533, 6
      %v6820 = vsel %vm2990, %v6819, %v6818
      %v6821 = vrot.slane %v6534, 5
      %v6822 = vsel %vm2993, %v6821, %v6820
      %v6823 = vrot.slane %v6535, 4
      %v6824 = vsel %vm2996, %v6823, %v6822
      %v6825 = vrot.slane %v6536, 3
      %v6826 = vsel %vm2999, %v6825, %v6824
      %v6827 = vrot.slane %v6537, 2
      %v6828 = vsel %vm3002, %v6827, %v6826
      %v6829 = vrot.slane %v6538, 1
      %v6830 = vsel %vm3005, %v6829, %v6828
      %v6831 = vrot.slane %v6540, 7
      %v6832 = vsel %vm2987, %v6831, %v6539
      %v6833 = vrot.slane %v6541, 6
      %v6834 = vsel %vm2990, %v6833, %v6832
      %v6835 = vrot.slane %v6542, 5
      %v6836 = vsel %vm2993, %v6835, %v6834
      %v6837 = vrot.slane %v6543, 4
      %v6838 = vsel %vm2996, %v6837, %v6836
      %v6839 = vrot.slane %v6544, 3
      %v6840 = vsel %vm2999, %v6839, %v6838
      %v6841 = vrot.slane %v6545, 2
      %v6842 = vsel %vm3002, %v6841, %v6840
      %v6843 = vrot.slane %v6546, 1
      %v6844 = vsel %vm3005, %v6843, %v6842
      %v6845 = vrot.slane %v6548, 7
      %v6846 = vsel %vm2987, %v6845, %v6547
      %v6847 = vrot.slane %v6549, 6
      %v6848 = vsel %vm2990, %v6847, %v6846
      %v6849 = vrot.slane %v6550, 5
      %v6850 = vsel %vm2993, %v6849, %v6848
      %v6851 = vrot.slane %v6551, 4
      %v6852 = vsel %vm2996, %v6851, %v6850
      %v6853 = vrot.slane %v6552, 3
      %v6854 = vsel %vm2999, %v6853, %v6852
      %v6855 = vrot.slane %v6553, 2
      %v6856 = vsel %vm3002, %v6855, %v6854
      %v6857 = vrot.slane %v6554, 1
      %v6858 = vsel %vm3005, %v6857, %v6856
      %v6859 = vrot.slane %v6556, 7
      %v6860 = vsel %vm2987, %v6859, %v6555
      %v6861 = vrot.slane %v6557, 6
      %v6862 = vsel %vm2990, %v6861, %v6860
      %v6863 = vrot.slane %v6558, 5
      %v6864 = vsel %vm2993, %v6863, %v6862
      %v6865 = vrot.slane %v6559, 4
      %v6866 = vsel %vm2996, %v6865, %v6864
      %v6867 = vrot.slane %v6560, 3
      %v6868 = vsel %vm2999, %v6867, %v6866
      %v6869 = vrot.slane %v6561, 2
      %v6870 = vsel %vm3002, %v6869, %v6868
      %v6871 = vrot.slane %v6562, 1
      %v6872 = vsel %vm3005, %v6871, %v6870
      %v6873 = vrot.slane %v6564, 7
      %v6874 = vsel %vm2987, %v6873, %v6563
      %v6875 = vrot.slane %v6565, 6
      %v6876 = vsel %vm2990, %v6875, %v6874
      %v6877 = vrot.slane %v6566, 5
      %v6878 = vsel %vm2993, %v6877, %v6876
      %v6879 = vrot.slane %v6567, 4
      %v6880 = vsel %vm2996, %v6879, %v6878
      %v6881 = vrot.slane %v6568, 3
      %v6882 = vsel %vm2999, %v6881, %v6880
      %v6883 = vrot.slane %v6569, 2
      %v6884 = vsel %vm3002, %v6883, %v6882
      %v6885 = vrot.slane %v6570, 1
      %v6886 = vsel %vm3005, %v6885, %v6884
      %v6887 = vrot.slane %v6572, 7
      %v6888 = vsel %vm2987, %v6887, %v6571
      %v6889 = vrot.slane %v6573, 6
      %v6890 = vsel %vm2990, %v6889, %v6888
      %v6891 = vrot.slane %v6574, 5
      %v6892 = vsel %vm2993, %v6891, %v6890
      %v6893 = vrot.slane %v6575, 4
      %v6894 = vsel %vm2996, %v6893, %v6892
      %v6895 = vrot.slane %v6576, 3
      %v6896 = vsel %vm2999, %v6895, %v6894
      %v6897 = vrot.slane %v6577, 2
      %v6898 = vsel %vm3002, %v6897, %v6896
      %v6899 = vrot.slane %v6578, 1
      %v6900 = vsel %vm3005, %v6899, %v6898
      %v6901 = vrot.slane %v6580, 7
      %v6902 = vsel %vm2987, %v6901, %v6579
      %v6903 = vrot.slane %v6581, 6
      %v6904 = vsel %vm2990, %v6903, %v6902
      %v6905 = vrot.slane %v6582, 5
      %v6906 = vsel %vm2993, %v6905, %v6904
      %v6907 = vrot.slane %v6583, 4
      %v6908 = vsel %vm2996, %v6907, %v6906
      %v6909 = vrot.slane %v6584, 3
      %v6910 = vsel %vm2999, %v6909, %v6908
      %v6911 = vrot.slane %v6585, 2
      %v6912 = vsel %vm3002, %v6911, %v6910
      %v6913 = vrot.slane %v6586, 1
      %v6914 = vsel %vm3005, %v6913, %v6912
      %v6915 = vrot.slane %v6588, 7
      %v6916 = vsel %vm2987, %v6915, %v6587
      %v6917 = vrot.slane %v6589, 6
      %v6918 = vsel %vm2990, %v6917, %v6916
      %v6919 = vrot.slane %v6590, 5
      %v6920 = vsel %vm2993, %v6919, %v6918
      %v6921 = vrot.slane %v6591, 4
      %v6922 = vsel %vm2996, %v6921, %v6920
      %v6923 = vrot.slane %v6592, 3
      %v6924 = vsel %vm2999, %v6923, %v6922
      %v6925 = vrot.slane %v6593, 2
      %v6926 = vsel %vm3002, %v6925, %v6924
      %v6927 = vrot.slane %v6594, 1
      %v6928 = vsel %vm3005, %v6927, %v6926
      %v6929 = vrot.slane %v6596, 7
      %v6930 = vsel %vm2987, %v6929, %v6595
      %v6931 = vrot.slane %v6597, 6
      %v6932 = vsel %vm2990, %v6931, %v6930
      %v6933 = vrot.slane %v6598, 5
      %v6934 = vsel %vm2993, %v6933, %v6932
      %v6935 = vrot.slane %v6599, 4
      %v6936 = vsel %vm2996, %v6935, %v6934
      %v6937 = vrot.slane %v6600, 3
      %v6938 = vsel %vm2999, %v6937, %v6936
      %v6939 = vrot.slane %v6601, 2
      %v6940 = vsel %vm3002, %v6939, %v6938
      %v6941 = vrot.slane %v6602, 1
      %v6942 = vsel %vm3005, %v6941, %v6940
      %v6943 = vrot.slane %v6604, 7
      %v6944 = vsel %vm2987, %v6943, %v6603
      %v6945 = vrot.slane %v6605, 6
      %v6946 = vsel %vm2990, %v6945, %v6944
      %v6947 = vrot.slane %v6606, 5
      %v6948 = vsel %vm2993, %v6947, %v6946
      %v6949 = vpack.c.b16 %v6634, %v6620
      %v6950 = vpack.c.b16 %v6662, %v6648
      %v6951 = vpack.c.b16 %v6690, %v6676
      %v6952 = vpack.c.b16 %v6718, %v6704
      %v6953 = vpack.c.b16 %v6746, %v6732
      %v6954 = vpack.c.b16 %v6774, %v6760
      %v6955 = vpack.c.b16 %v6802, %v6788
      %v6956 = vpack.c.b16 %v6830, %v6816
      %v6957 = vpack.c.b16 %v6858, %v6844
      %v6958 = vpack.c.b16 %v6886, %v6872
      %v6959 = vpack.c.b16 %v6914, %v6900
      %v6960 = vpack.c.b16 %v6942, %v6928
      %v6961 = vpack.c.b16 %v6948, %v6948
      %v6962 = vrot.slane %v6411, 1
      %v6963 = vsel %vm2987, %v6412, %v6962
      %v6964 = vrot.slane %v6413, 7
      %v6965 = vsel %vm2990, %v6964, %v6963
      %v6966 = vrot.slane %v6414, 6
      %v6967 = vsel %vm2993, %v6966, %v6965
      %v6968 = vrot.slane %v6415, 5
      %v6969 = vsel %vm2996, %v6968, %v6967
      %v6970 = vrot.slane %v6416, 4
      %v6971 = vsel %vm2999, %v6970, %v6969
      %v6972 = vrot.slane %v6417, 3
      %v6973 = vsel %vm3002, %v6972, %v6971
      %v6974 = vrot.slane %v6418, 2
      %v6975 = vsel %vm3005, %v6974, %v6973
      %v6976 = vrot.slane %v6419, 1
      %v6977 = vsel %vm2987, %v6420, %v6976
      %v6978 = vrot.slane %v6421, 7
      %v6979 = vsel %vm2990, %v6978, %v6977
      %v6980 = vrot.slane %v6422, 6
      %v6981 = vsel %vm2993, %v6980, %v6979
      %v6982 = vrot.slane %v6423, 5
      %v6983 = vsel %vm2996, %v6982, %v6981
      %v6984 = vrot.slane %v6424, 4
      %v6985 = vsel %vm2999, %v6984, %v6983
      %v6986 = vrot.slane %v6425, 3
      %v6987 = vsel %vm3002, %v6986, %v6985
      %v6988 = vrot.slane %v6426, 2
      %v6989 = vsel %vm3005, %v6988, %v6987
      %v6990 = vrot.slane %v6427, 1
      %v6991 = vsel %vm2987, %v6428, %v6990
      %v6992 = vrot.slane %v6429, 7
      %v6993 = vsel %vm2990, %v6992, %v6991
      %v6994 = vrot.slane %v6430, 6
      %v6995 = vsel %vm2993, %v6994, %v6993
      %v6996 = vrot.slane %v6431, 5
      %v6997 = vsel %vm2996, %v6996, %v6995
      %v6998 = vrot.slane %v6432, 4
      %v6999 = vsel %vm2999, %v6998, %v6997
      %v7000 = vrot.slane %v6433, 3
      %v7001 = vsel %vm3002, %v7000, %v6999
      %v7002 = vrot.slane %v6434, 2
      %v7003 = vsel %vm3005, %v7002, %v7001
      %v7004 = vrot.slane %v6435, 1
      %v7005 = vsel %vm2987, %v6436, %v7004
      %v7006 = vrot.slane %v6437, 7
      %v7007 = vsel %vm2990, %v7006, %v7005
      %v7008 = vrot.slane %v6438, 6
      %v7009 = vsel %vm2993, %v7008, %v7007
      %v7010 = vrot.slane %v6439, 5
      %v7011 = vsel %vm2996, %v7010, %v7009
      %v7012 = vrot.slane %v6440, 4
      %v7013 = vsel %vm2999, %v7012, %v7011
      %v7014 = vrot.slane %v6441, 3
      %v7015 = vsel %vm3002, %v7014, %v7013
      %v7016 = vrot.slane %v6442, 2
      %v7017 = vsel %vm3005, %v7016, %v7015
      %v7018 = vrot.slane %v6443, 1
      %v7019 = vsel %vm2987, %v6444, %v7018
      %v7020 = vrot.slane %v6445, 7
      %v7021 = vsel %vm2990, %v7020, %v7019
      %v7022 = vrot.slane %v6446, 6
      %v7023 = vsel %vm2993, %v7022, %v7021
      %v7024 = vrot.slane %v6447, 5
      %v7025 = vsel %vm2996, %v7024, %v7023
      %v7026 = vrot.slane %v6448, 4
      %v7027 = vsel %vm2999, %v7026, %v7025
      %v7028 = vrot.slane %v6449, 3
      %v7029 = vsel %vm3002, %v7028, %v7027
      %v7030 = vrot.slane %v6450, 2
      %v7031 = vsel %vm3005, %v7030, %v7029
      %v7032 = vrot.slane %v6451, 1
      %v7033 = vsel %vm2987, %v6452, %v7032
      %v7034 = vrot.slane %v6453, 7
      %v7035 = vsel %vm2990, %v7034, %v7033
      %v7036 = vrot.slane %v6454, 6
      %v7037 = vsel %vm2993, %v7036, %v7035
      %v7038 = vrot.slane %v6455, 5
      %v7039 = vsel %vm2996, %v7038, %v7037
      %v7040 = vrot.slane %v6456, 4
      %v7041 = vsel %vm2999, %v7040, %v7039
      %v7042 = vrot.slane %v6457, 3
      %v7043 = vsel %vm3002, %v7042, %v7041
      %v7044 = vrot.slane %v6458, 2
      %v7045 = vsel %vm3005, %v7044, %v7043
      %v7046 = vrot.slane %v6459, 1
      %v7047 = vsel %vm2987, %v6460, %v7046
      %v7048 = vrot.slane %v6461, 7
      %v7049 = vsel %vm2990, %v7048, %v7047
      %v7050 = vrot.slane %v6462, 6
      %v7051 = vsel %vm2993, %v7050, %v7049
      %v7052 = vrot.slane %v6463, 5
      %v7053 = vsel %vm2996, %v7052, %v7051
      %v7054 = vrot.slane %v6464, 4
      %v7055 = vsel %vm2999, %v7054, %v7053
      %v7056 = vrot.slane %v6465, 3
      %v7057 = vsel %vm3002, %v7056, %v7055
      %v7058 = vrot.slane %v6466, 2
      %v7059 = vsel %vm3005, %v7058, %v7057
      %v7060 = vrot.slane %v6467, 1
      %v7061 = vsel %vm2987, %v6468, %v7060
      %v7062 = vrot.slane %v6469, 7
      %v7063 = vsel %vm2990, %v7062, %v7061
      %v7064 = vrot.slane %v6470, 6
      %v7065 = vsel %vm2993, %v7064, %v7063
      %v7066 = vrot.slane %v6471, 5
      %v7067 = vsel %vm2996, %v7066, %v7065
      %v7068 = vrot.slane %v6472, 4
      %v7069 = vsel %vm2999, %v7068, %v7067
      %v7070 = vrot.slane %v6473, 3
      %v7071 = vsel %vm3002, %v7070, %v7069
      %v7072 = vrot.slane %v6474, 2
      %v7073 = vsel %vm3005, %v7072, %v7071
      %v7074 = vrot.slane %v6475, 1
      %v7075 = vsel %vm2987, %v6476, %v7074
      %v7076 = vrot.slane %v6477, 7
      %v7077 = vsel %vm2990, %v7076, %v7075
      %v7078 = vrot.slane %v6478, 6
      %v7079 = vsel %vm2993, %v7078, %v7077
      %v7080 = vrot.slane %v6479, 5
      %v7081 = vsel %vm2996, %v7080, %v7079
      %v7082 = vrot.slane %v6480, 4
      %v7083 = vsel %vm2999, %v7082, %v7081
      %v7084 = vrot.slane %v6481, 3
      %v7085 = vsel %vm3002, %v7084, %v7083
      %v7086 = vrot.slane %v6482, 2
      %v7087 = vsel %vm3005, %v7086, %v7085
      %v7088 = vrot.slane %v6483, 1
      %v7089 = vsel %vm2987, %v6484, %v7088
      %v7090 = vrot.slane %v6485, 7
      %v7091 = vsel %vm2990, %v7090, %v7089
      %v7092 = vrot.slane %v6486, 6
      %v7093 = vsel %vm2993, %v7092, %v7091
      %v7094 = vrot.slane %v6487, 5
      %v7095 = vsel %vm2996, %v7094, %v7093
      %v7096 = vrot.slane %v6488, 4
      %v7097 = vsel %vm2999, %v7096, %v7095
      %v7098 = vrot.slane %v6489, 3
      %v7099 = vsel %vm3002, %v7098, %v7097
      %v7100 = vrot.slane %v6490, 2
      %v7101 = vsel %vm3005, %v7100, %v7099
      %v7102 = vrot.slane %v6491, 1
      %v7103 = vsel %vm2987, %v6492, %v7102
      %v7104 = vrot.slane %v6493, 7
      %v7105 = vsel %vm2990, %v7104, %v7103
      %v7106 = vrot.slane %v6494, 6
      %v7107 = vsel %vm2993, %v7106, %v7105
      %v7108 = vrot.slane %v6495, 5
      %v7109 = vsel %vm2996, %v7108, %v7107
      %v7110 = vrot.slane %v6496, 4
      %v7111 = vsel %vm2999, %v7110, %v7109
      %v7112 = vrot.slane %v6497, 3
      %v7113 = vsel %vm3002, %v7112, %v7111
      %v7114 = vrot.slane %v6498, 2
      %v7115 = vsel %vm3005, %v7114, %v7113
      %v7116 = vrot.slane %v6499, 1
      %v7117 = vsel %vm2987, %v6500, %v7116
      %v7118 = vrot.slane %v6501, 7
      %v7119 = vsel %vm2990, %v7118, %v7117
      %v7120 = vrot.slane %v6502, 6
      %v7121 = vsel %vm2993, %v7120, %v7119
      %v7122 = vrot.slane %v6503, 5
      %v7123 = vsel %vm2996, %v7122, %v7121
      %v7124 = vrot.slane %v6504, 4
      %v7125 = vsel %vm2999, %v7124, %v7123
      %v7126 = vrot.slane %v6505, 3
      %v7127 = vsel %vm3002, %v7126, %v7125
      %v7128 = vrot.slane %v6506, 2
      %v7129 = vsel %vm3005, %v7128, %v7127
      %v7130 = vrot.slane %v6507, 1
      %v7131 = vsel %vm2987, %v6508, %v7130
      %v7132 = vrot.slane %v6509, 7
      %v7133 = vsel %vm2990, %v7132, %v7131
      %v7134 = vrot.slane %v6510, 6
      %v7135 = vsel %vm2993, %v7134, %v7133
      %v7136 = vrot.slane %v6511, 5
      %v7137 = vsel %vm2996, %v7136, %v7135
      %v7138 = vrot.slane %v6512, 4
      %v7139 = vsel %vm2999, %v7138, %v7137
      %v7140 = vrot.slane %v6513, 3
      %v7141 = vsel %vm3002, %v7140, %v7139
      %v7142 = vrot.slane %v6514, 2
      %v7143 = vsel %vm3005, %v7142, %v7141
      %v7144 = vrot.slane %v6515, 1
      %v7145 = vsel %vm2987, %v6516, %v7144
      %v7146 = vrot.slane %v6517, 7
      %v7147 = vsel %vm2990, %v7146, %v7145
      %v7148 = vrot.slane %v6518, 6
      %v7149 = vsel %vm2993, %v7148, %v7147
      %v7150 = vrot.slane %v6519, 5
      %v7151 = vsel %vm2996, %v7150, %v7149
      %v7152 = vrot.slane %v6520, 4
      %v7153 = vsel %vm2999, %v7152, %v7151
      %v7154 = vrot.slane %v6521, 3
      %v7155 = vsel %vm3002, %v7154, %v7153
      %v7156 = vrot.slane %v6522, 2
      %v7157 = vsel %vm3005, %v7156, %v7155
      %v7158 = vrot.slane %v6523, 1
      %v7159 = vsel %vm2987, %v6524, %v7158
      %v7160 = vrot.slane %v6525, 7
      %v7161 = vsel %vm2990, %v7160, %v7159
      %v7162 = vrot.slane %v6526, 6
      %v7163 = vsel %vm2993, %v7162, %v7161
      %v7164 = vrot.slane %v6527, 5
      %v7165 = vsel %vm2996, %v7164, %v7163
      %v7166 = vrot.slane %v6528, 4
      %v7167 = vsel %vm2999, %v7166, %v7165
      %v7168 = vrot.slane %v6529, 3
      %v7169 = vsel %vm3002, %v7168, %v7167
      %v7170 = vrot.slane %v6530, 2
      %v7171 = vsel %vm3005, %v7170, %v7169
      %v7172 = vrot.slane %v6531, 1
      %v7173 = vsel %vm2987, %v6532, %v7172
      %v7174 = vrot.slane %v6533, 7
      %v7175 = vsel %vm2990, %v7174, %v7173
      %v7176 = vrot.slane %v6534, 6
      %v7177 = vsel %vm2993, %v7176, %v7175
      %v7178 = vrot.slane %v6535, 5
      %v7179 = vsel %vm2996, %v7178, %v7177
      %v7180 = vrot.slane %v6536, 4
      %v7181 = vsel %vm2999, %v7180, %v7179
      %v7182 = vrot.slane %v6537, 3
      %v7183 = vsel %vm3002, %v7182, %v7181
      %v7184 = vrot.slane %v6538, 2
      %v7185 = vsel %vm3005, %v7184, %v7183
      %v7186 = vrot.slane %v6539, 1
      %v7187 = vsel %vm2987, %v6540, %v7186
      %v7188 = vrot.slane %v6541, 7
      %v7189 = vsel %vm2990, %v7188, %v7187
      %v7190 = vrot.slane %v6542, 6
      %v7191 = vsel %vm2993, %v7190, %v7189
      %v7192 = vrot.slane %v6543, 5
      %v7193 = vsel %vm2996, %v7192, %v7191
      %v7194 = vrot.slane %v6544, 4
      %v7195 = vsel %vm2999, %v7194, %v7193
      %v7196 = vrot.slane %v6545, 3
      %v7197 = vsel %vm3002, %v7196, %v7195
      %v7198 = vrot.slane %v6546, 2
      %v7199 = vsel %vm3005, %v7198, %v7197
      %v7200 = vrot.slane %v6547, 1
      %v7201 = vsel %vm2987, %v6548, %v7200
      %v7202 = vrot.slane %v6549, 7
      %v7203 = vsel %vm2990, %v7202, %v7201
      %v7204 = vrot.slane %v6550, 6
      %v7205 = vsel %vm2993, %v7204, %v7203
      %v7206 = vrot.slane %v6551, 5
      %v7207 = vsel %vm2996, %v7206, %v7205
      %v7208 = vrot.slane %v6552, 4
      %v7209 = vsel %vm2999, %v7208, %v7207
      %v7210 = vrot.slane %v6553, 3
      %v7211 = vsel %vm3002, %v7210, %v7209
      %v7212 = vrot.slane %v6554, 2
      %v7213 = vsel %vm3005, %v7212, %v7211
      %v7214 = vrot.slane %v6555, 1
      %v7215 = vsel %vm2987, %v6556, %v7214
      %v7216 = vrot.slane %v6557, 7
      %v7217 = vsel %vm2990, %v7216, %v7215
      %v7218 = vrot.slane %v6558, 6
      %v7219 = vsel %vm2993, %v7218, %v7217
      %v7220 = vrot.slane %v6559, 5
      %v7221 = vsel %vm2996, %v7220, %v7219
      %v7222 = vrot.slane %v6560, 4
      %v7223 = vsel %vm2999, %v7222, %v7221
      %v7224 = vrot.slane %v6561, 3
      %v7225 = vsel %vm3002, %v7224, %v7223
      %v7226 = vrot.slane %v6562, 2
      %v7227 = vsel %vm3005, %v7226, %v7225
      %v7228 = vrot.slane %v6563, 1
      %v7229 = vsel %vm2987, %v6564, %v7228
      %v7230 = vrot.slane %v6565, 7
      %v7231 = vsel %vm2990, %v7230, %v7229
      %v7232 = vrot.slane %v6566, 6
      %v7233 = vsel %vm2993, %v7232, %v7231
      %v7234 = vrot.slane %v6567, 5
      %v7235 = vsel %vm2996, %v7234, %v7233
      %v7236 = vrot.slane %v6568, 4
      %v7237 = vsel %vm2999, %v7236, %v7235
      %v7238 = vrot.slane %v6569, 3
      %v7239 = vsel %vm3002, %v7238, %v7237
      %v7240 = vrot.slane %v6570, 2
      %v7241 = vsel %vm3005, %v7240, %v7239
      %v7242 = vrot.slane %v6571, 1
      %v7243 = vsel %vm2987, %v6572, %v7242
      %v7244 = vrot.slane %v6573, 7
      %v7245 = vsel %vm2990, %v7244, %v7243
      %v7246 = vrot.slane %v6574, 6
      %v7247 = vsel %vm2993, %v7246, %v7245
      %v7248 = vrot.slane %v6575, 5
      %v7249 = vsel %vm2996, %v7248, %v7247
      %v7250 = vrot.slane %v6576, 4
      %v7251 = vsel %vm2999, %v7250, %v7249
      %v7252 = vrot.slane %v6577, 3
      %v7253 = vsel %vm3002, %v7252, %v7251
      %v7254 = vrot.slane %v6578, 2
      %v7255 = vsel %vm3005, %v7254, %v7253
      %v7256 = vrot.slane %v6579, 1
      %v7257 = vsel %vm2987, %v6580, %v7256
      %v7258 = vrot.slane %v6581, 7
      %v7259 = vsel %vm2990, %v7258, %v7257
      %v7260 = vrot.slane %v6582, 6
      %v7261 = vsel %vm2993, %v7260, %v7259
      %v7262 = vrot.slane %v6583, 5
      %v7263 = vsel %vm2996, %v7262, %v7261
      %v7264 = vrot.slane %v6584, 4
      %v7265 = vsel %vm2999, %v7264, %v7263
      %v7266 = vrot.slane %v6585, 3
      %v7267 = vsel %vm3002, %v7266, %v7265
      %v7268 = vrot.slane %v6586, 2
      %v7269 = vsel %vm3005, %v7268, %v7267
      %v7270 = vrot.slane %v6587, 1
      %v7271 = vsel %vm2987, %v6588, %v7270
      %v7272 = vrot.slane %v6589, 7
      %v7273 = vsel %vm2990, %v7272, %v7271
      %v7274 = vrot.slane %v6590, 6
      %v7275 = vsel %vm2993, %v7274, %v7273
      %v7276 = vrot.slane %v6591, 5
      %v7277 = vsel %vm2996, %v7276, %v7275
      %v7278 = vrot.slane %v6592, 4
      %v7279 = vsel %vm2999, %v7278, %v7277
      %v7280 = vrot.slane %v6593, 3
      %v7281 = vsel %vm3002, %v7280, %v7279
      %v7282 = vrot.slane %v6594, 2
      %v7283 = vsel %vm3005, %v7282, %v7281
      %v7284 = vrot.slane %v6595, 1
      %v7285 = vsel %vm2987, %v6596, %v7284
      %v7286 = vrot.slane %v6597, 7
      %v7287 = vsel %vm2990, %v7286, %v7285
      %v7288 = vrot.slane %v6598, 6
      %v7289 = vsel %vm2993, %v7288, %v7287
      %v7290 = vrot.slane %v6599, 5
      %v7291 = vsel %vm2996, %v7290, %v7289
      %v7292 = vrot.slane %v6600, 4
      %v7293 = vsel %vm2999, %v7292, %v7291
      %v7294 = vrot.slane %v6601, 3
      %v7295 = vsel %vm3002, %v7294, %v7293
      %v7296 = vrot.slane %v6602, 2
      %v7297 = vsel %vm3005, %v7296, %v7295
      %v7298 = vrot.slane %v6603, 1
      %v7299 = vsel %vm2987, %v6604, %v7298
      %v7300 = vrot.slane %v6605, 7
      %v7301 = vsel %vm2990, %v7300, %v7299
      %v7302 = vrot.slane %v6606, 6
      %v7303 = vsel %vm2993, %v7302, %v7301
      %v7304 = vpack.c.b16 %v6989, %v6975
      %v7305 = vpack.c.b16 %v7017, %v7003
      %v7306 = vpack.c.b16 %v7045, %v7031
      %v7307 = vpack.c.b16 %v7073, %v7059
      %v7308 = vpack.c.b16 %v7101, %v7087
      %v7309 = vpack.c.b16 %v7129, %v7115
      %v7310 = vpack.c.b16 %v7157, %v7143
      %v7311 = vpack.c.b16 %v7185, %v7171
      %v7312 = vpack.c.b16 %v7213, %v7199
      %v7313 = vpack.c.b16 %v7241, %v7227
      %v7314 = vpack.c.b16 %v7269, %v7255
      %v7315 = vpack.c.b16 %v7297, %v7283
      %v7316 = vpack.c.b16 %v7303, %v7303
      %7317 = vrot.lane.b32.xlu0 %v7304, 16
      %v7318 = vpop.permute.xlu0 %7317
      %7319 = vrot.lane.b32.xlu0 %v7305, 16
      %v7320 = vpop.permute.xlu0 %7319
      %7321 = vrot.lane.b32.xlu0 %v7306, 16
      %v7322 = vpop.permute.xlu0 %7321
      %7323 = vrot.lane.b32.xlu0 %v7307, 16
      %v7324 = vpop.permute.xlu0 %7323
      %7325 = vrot.lane.b32.xlu0 %v7308, 16
      %v7326 = vpop.permute.xlu0 %7325
      %7327 = vrot.lane.b32.xlu0 %v7309, 16
      %v7328 = vpop.permute.xlu0 %7327
      %7329 = vrot.lane.b32.xlu0 %v7310, 16
      %v7330 = vpop.permute.xlu0 %7329
      %7331 = vrot.lane.b32.xlu0 %v7311, 16
      %v7332 = vpop.permute.xlu0 %7331
      %7333 = vrot.lane.b32.xlu0 %v7312, 16
      %v7334 = vpop.permute.xlu0 %7333
      %7335 = vrot.lane.b32.xlu0 %v7313, 16
      %v7336 = vpop.permute.xlu0 %7335
      %7337 = vrot.lane.b32.xlu0 %v7314, 16
      %v7338 = vpop.permute.xlu0 %7337
      %7339 = vrot.lane.b32.xlu0 %v7315, 16
      %v7340 = vpop.permute.xlu0 %7339
      %7341 = vrot.lane.b32.xlu0 %v7316, 16
      %v7342 = vpop.permute.xlu0 %7341
      %v7343 = vrot.slane %v6411, 2
      %v7344 = vrot.slane %v6412, 1
      %v7345 = vsel %vm2987, %v7344, %v7343
      %v7346 = vsel %vm2990, %v6413, %v7345
      %v7347 = vrot.slane %v6414, 7
      %v7348 = vsel %vm2993, %v7347, %v7346
      %v7349 = vrot.slane %v6415, 6
      %v7350 = vsel %vm2996, %v7349, %v7348
      %v7351 = vrot.slane %v6416, 5
      %v7352 = vsel %vm2999, %v7351, %v7350
      %v7353 = vrot.slane %v6417, 4
      %v7354 = vsel %vm3002, %v7353, %v7352
      %v7355 = vrot.slane %v6418, 3
      %v7356 = vsel %vm3005, %v7355, %v7354
      %v7357 = vrot.slane %v6419, 2
      %v7358 = vrot.slane %v6420, 1
      %v7359 = vsel %vm2987, %v7358, %v7357
      %v7360 = vsel %vm2990, %v6421, %v7359
      %v7361 = vrot.slane %v6422, 7
      %v7362 = vsel %vm2993, %v7361, %v7360
      %v7363 = vrot.slane %v6423, 6
      %v7364 = vsel %vm2996, %v7363, %v7362
      %v7365 = vrot.slane %v6424, 5
      %v7366 = vsel %vm2999, %v7365, %v7364
      %v7367 = vrot.slane %v6425, 4
      %v7368 = vsel %vm3002, %v7367, %v7366
      %v7369 = vrot.slane %v6426, 3
      %v7370 = vsel %vm3005, %v7369, %v7368
      %v7371 = vrot.slane %v6427, 2
      %v7372 = vrot.slane %v6428, 1
      %v7373 = vsel %vm2987, %v7372, %v7371
      %v7374 = vsel %vm2990, %v6429, %v7373
      %v7375 = vrot.slane %v6430, 7
      %v7376 = vsel %vm2993, %v7375, %v7374
      %v7377 = vrot.slane %v6431, 6
      %v7378 = vsel %vm2996, %v7377, %v7376
      %v7379 = vrot.slane %v6432, 5
      %v7380 = vsel %vm2999, %v7379, %v7378
      %v7381 = vrot.slane %v6433, 4
      %v7382 = vsel %vm3002, %v7381, %v7380
      %v7383 = vrot.slane %v6434, 3
      %v7384 = vsel %vm3005, %v7383, %v7382
      %v7385 = vrot.slane %v6435, 2
      %v7386 = vrot.slane %v6436, 1
      %v7387 = vsel %vm2987, %v7386, %v7385
      %v7388 = vsel %vm2990, %v6437, %v7387
      %v7389 = vrot.slane %v6438, 7
      %v7390 = vsel %vm2993, %v7389, %v7388
      %v7391 = vrot.slane %v6439, 6
      %v7392 = vsel %vm2996, %v7391, %v7390
      %v7393 = vrot.slane %v6440, 5
      %v7394 = vsel %vm2999, %v7393, %v7392
      %v7395 = vrot.slane %v6441, 4
      %v7396 = vsel %vm3002, %v7395, %v7394
      %v7397 = vrot.slane %v6442, 3
      %v7398 = vsel %vm3005, %v7397, %v7396
      %v7399 = vrot.slane %v6443, 2
      %v7400 = vrot.slane %v6444, 1
      %v7401 = vsel %vm2987, %v7400, %v7399
      %v7402 = vsel %vm2990, %v6445, %v7401
      %v7403 = vrot.slane %v6446, 7
      %v7404 = vsel %vm2993, %v7403, %v7402
      %v7405 = vrot.slane %v6447, 6
      %v7406 = vsel %vm2996, %v7405, %v7404
      %v7407 = vrot.slane %v6448, 5
      %v7408 = vsel %vm2999, %v7407, %v7406
      %v7409 = vrot.slane %v6449, 4
      %v7410 = vsel %vm3002, %v7409, %v7408
      %v7411 = vrot.slane %v6450, 3
      %v7412 = vsel %vm3005, %v7411, %v7410
      %v7413 = vrot.slane %v6451, 2
      %v7414 = vrot.slane %v6452, 1
      %v7415 = vsel %vm2987, %v7414, %v7413
      %v7416 = vsel %vm2990, %v6453, %v7415
      %v7417 = vrot.slane %v6454, 7
      %v7418 = vsel %vm2993, %v7417, %v7416
      %v7419 = vrot.slane %v6455, 6
      %v7420 = vsel %vm2996, %v7419, %v7418
      %v7421 = vrot.slane %v6456, 5
      %v7422 = vsel %vm2999, %v7421, %v7420
      %v7423 = vrot.slane %v6457, 4
      %v7424 = vsel %vm3002, %v7423, %v7422
      %v7425 = vrot.slane %v6458, 3
      %v7426 = vsel %vm3005, %v7425, %v7424
      %v7427 = vrot.slane %v6459, 2
      %v7428 = vrot.slane %v6460, 1
      %v7429 = vsel %vm2987, %v7428, %v7427
      %v7430 = vsel %vm2990, %v6461, %v7429
      %v7431 = vrot.slane %v6462, 7
      %v7432 = vsel %vm2993, %v7431, %v7430
      %v7433 = vrot.slane %v6463, 6
      %v7434 = vsel %vm2996, %v7433, %v7432
      %v7435 = vrot.slane %v6464, 5
      %v7436 = vsel %vm2999, %v7435, %v7434
      %v7437 = vrot.slane %v6465, 4
      %v7438 = vsel %vm3002, %v7437, %v7436
      %v7439 = vrot.slane %v6466, 3
      %v7440 = vsel %vm3005, %v7439, %v7438
      %v7441 = vrot.slane %v6467, 2
      %v7442 = vrot.slane %v6468, 1
      %v7443 = vsel %vm2987, %v7442, %v7441
      %v7444 = vsel %vm2990, %v6469, %v7443
      %v7445 = vrot.slane %v6470, 7
      %v7446 = vsel %vm2993, %v7445, %v7444
      %v7447 = vrot.slane %v6471, 6
      %v7448 = vsel %vm2996, %v7447, %v7446
      %v7449 = vrot.slane %v6472, 5
      %v7450 = vsel %vm2999, %v7449, %v7448
      %v7451 = vrot.slane %v6473, 4
      %v7452 = vsel %vm3002, %v7451, %v7450
      %v7453 = vrot.slane %v6474, 3
      %v7454 = vsel %vm3005, %v7453, %v7452
      %v7455 = vrot.slane %v6475, 2
      %v7456 = vrot.slane %v6476, 1
      %v7457 = vsel %vm2987, %v7456, %v7455
      %v7458 = vsel %vm2990, %v6477, %v7457
      %v7459 = vrot.slane %v6478, 7
      %v7460 = vsel %vm2993, %v7459, %v7458
      %v7461 = vrot.slane %v6479, 6
      %v7462 = vsel %vm2996, %v7461, %v7460
      %v7463 = vrot.slane %v6480, 5
      %v7464 = vsel %vm2999, %v7463, %v7462
      %v7465 = vrot.slane %v6481, 4
      %v7466 = vsel %vm3002, %v7465, %v7464
      %v7467 = vrot.slane %v6482, 3
      %v7468 = vsel %vm3005, %v7467, %v7466
      %v7469 = vrot.slane %v6483, 2
      %v7470 = vrot.slane %v6484, 1
      %v7471 = vsel %vm2987, %v7470, %v7469
      %v7472 = vsel %vm2990, %v6485, %v7471
      %v7473 = vrot.slane %v6486, 7
      %v7474 = vsel %vm2993, %v7473, %v7472
      %v7475 = vrot.slane %v6487, 6
      %v7476 = vsel %vm2996, %v7475, %v7474
      %v7477 = vrot.slane %v6488, 5
      %v7478 = vsel %vm2999, %v7477, %v7476
      %v7479 = vrot.slane %v6489, 4
      %v7480 = vsel %vm3002, %v7479, %v7478
      %v7481 = vrot.slane %v6490, 3
      %v7482 = vsel %vm3005, %v7481, %v7480
      %v7483 = vrot.slane %v6491, 2
      %v7484 = vrot.slane %v6492, 1
      %v7485 = vsel %vm2987, %v7484, %v7483
      %v7486 = vsel %vm2990, %v6493, %v7485
      %v7487 = vrot.slane %v6494, 7
      %v7488 = vsel %vm2993, %v7487, %v7486
      %v7489 = vrot.slane %v6495, 6
      %v7490 = vsel %vm2996, %v7489, %v7488
      %v7491 = vrot.slane %v6496, 5
      %v7492 = vsel %vm2999, %v7491, %v7490
      %v7493 = vrot.slane %v6497, 4
      %v7494 = vsel %vm3002, %v7493, %v7492
      %v7495 = vrot.slane %v6498, 3
      %v7496 = vsel %vm3005, %v7495, %v7494
      %v7497 = vrot.slane %v6499, 2
      %v7498 = vrot.slane %v6500, 1
      %v7499 = vsel %vm2987, %v7498, %v7497
      %v7500 = vsel %vm2990, %v6501, %v7499
      %v7501 = vrot.slane %v6502, 7
      %v7502 = vsel %vm2993, %v7501, %v7500
      %v7503 = vrot.slane %v6503, 6
      %v7504 = vsel %vm2996, %v7503, %v7502
      %v7505 = vrot.slane %v6504, 5
      %v7506 = vsel %vm2999, %v7505, %v7504
      %v7507 = vrot.slane %v6505, 4
      %v7508 = vsel %vm3002, %v7507, %v7506
      %v7509 = vrot.slane %v6506, 3
      %v7510 = vsel %vm3005, %v7509, %v7508
      %v7511 = vrot.slane %v6507, 2
      %v7512 = vrot.slane %v6508, 1
      %v7513 = vsel %vm2987, %v7512, %v7511
      %v7514 = vsel %vm2990, %v6509, %v7513
      %v7515 = vrot.slane %v6510, 7
      %v7516 = vsel %vm2993, %v7515, %v7514
      %v7517 = vrot.slane %v6511, 6
      %v7518 = vsel %vm2996, %v7517, %v7516
      %v7519 = vrot.slane %v6512, 5
      %v7520 = vsel %vm2999, %v7519, %v7518
      %v7521 = vrot.slane %v6513, 4
      %v7522 = vsel %vm3002, %v7521, %v7520
      %v7523 = vrot.slane %v6514, 3
      %v7524 = vsel %vm3005, %v7523, %v7522
      %v7525 = vrot.slane %v6515, 2
      %v7526 = vrot.slane %v6516, 1
      %v7527 = vsel %vm2987, %v7526, %v7525
      %v7528 = vsel %vm2990, %v6517, %v7527
      %v7529 = vrot.slane %v6518, 7
      %v7530 = vsel %vm2993, %v7529, %v7528
      %v7531 = vrot.slane %v6519, 6
      %v7532 = vsel %vm2996, %v7531, %v7530
      %v7533 = vrot.slane %v6520, 5
      %v7534 = vsel %vm2999, %v7533, %v7532
      %v7535 = vrot.slane %v6521, 4
      %v7536 = vsel %vm3002, %v7535, %v7534
      %v7537 = vrot.slane %v6522, 3
      %v7538 = vsel %vm3005, %v7537, %v7536
      %v7539 = vrot.slane %v6523, 2
      %v7540 = vrot.slane %v6524, 1
      %v7541 = vsel %vm2987, %v7540, %v7539
      %v7542 = vsel %vm2990, %v6525, %v7541
      %v7543 = vrot.slane %v6526, 7
      %v7544 = vsel %vm2993, %v7543, %v7542
      %v7545 = vrot.slane %v6527, 6
      %v7546 = vsel %vm2996, %v7545, %v7544
      %v7547 = vrot.slane %v6528, 5
      %v7548 = vsel %vm2999, %v7547, %v7546
      %v7549 = vrot.slane %v6529, 4
      %v7550 = vsel %vm3002, %v7549, %v7548
      %v7551 = vrot.slane %v6530, 3
      %v7552 = vsel %vm3005, %v7551, %v7550
      %v7553 = vrot.slane %v6531, 2
      %v7554 = vrot.slane %v6532, 1
      %v7555 = vsel %vm2987, %v7554, %v7553
      %v7556 = vsel %vm2990, %v6533, %v7555
      %v7557 = vrot.slane %v6534, 7
      %v7558 = vsel %vm2993, %v7557, %v7556
      %v7559 = vrot.slane %v6535, 6
      %v7560 = vsel %vm2996, %v7559, %v7558
      %v7561 = vrot.slane %v6536, 5
      %v7562 = vsel %vm2999, %v7561, %v7560
      %v7563 = vrot.slane %v6537, 4
      %v7564 = vsel %vm3002, %v7563, %v7562
      %v7565 = vrot.slane %v6538, 3
      %v7566 = vsel %vm3005, %v7565, %v7564
      %v7567 = vrot.slane %v6539, 2
      %v7568 = vrot.slane %v6540, 1
      %v7569 = vsel %vm2987, %v7568, %v7567
      %v7570 = vsel %vm2990, %v6541, %v7569
      %v7571 = vrot.slane %v6542, 7
      %v7572 = vsel %vm2993, %v7571, %v7570
      %v7573 = vrot.slane %v6543, 6
      %v7574 = vsel %vm2996, %v7573, %v7572
      %v7575 = vrot.slane %v6544, 5
      %v7576 = vsel %vm2999, %v7575, %v7574
      %v7577 = vrot.slane %v6545, 4
      %v7578 = vsel %vm3002, %v7577, %v7576
      %v7579 = vrot.slane %v6546, 3
      %v7580 = vsel %vm3005, %v7579, %v7578
      %v7581 = vrot.slane %v6547, 2
      %v7582 = vrot.slane %v6548, 1
      %v7583 = vsel %vm2987, %v7582, %v7581
      %v7584 = vsel %vm2990, %v6549, %v7583
      %v7585 = vrot.slane %v6550, 7
      %v7586 = vsel %vm2993, %v7585, %v7584
      %v7587 = vrot.slane %v6551, 6
      %v7588 = vsel %vm2996, %v7587, %v7586
      %v7589 = vrot.slane %v6552, 5
      %v7590 = vsel %vm2999, %v7589, %v7588
      %v7591 = vrot.slane %v6553, 4
      %v7592 = vsel %vm3002, %v7591, %v7590
      %v7593 = vrot.slane %v6554, 3
      %v7594 = vsel %vm3005, %v7593, %v7592
      %v7595 = vrot.slane %v6555, 2
      %v7596 = vrot.slane %v6556, 1
      %v7597 = vsel %vm2987, %v7596, %v7595
      %v7598 = vsel %vm2990, %v6557, %v7597
      %v7599 = vrot.slane %v6558, 7
      %v7600 = vsel %vm2993, %v7599, %v7598
      %v7601 = vrot.slane %v6559, 6
      %v7602 = vsel %vm2996, %v7601, %v7600
      %v7603 = vrot.slane %v6560, 5
      %v7604 = vsel %vm2999, %v7603, %v7602
      %v7605 = vrot.slane %v6561, 4
      %v7606 = vsel %vm3002, %v7605, %v7604
      %v7607 = vrot.slane %v6562, 3
      %v7608 = vsel %vm3005, %v7607, %v7606
      %v7609 = vrot.slane %v6563, 2
      %v7610 = vrot.slane %v6564, 1
      %v7611 = vsel %vm2987, %v7610, %v7609
      %v7612 = vsel %vm2990, %v6565, %v7611
      %v7613 = vrot.slane %v6566, 7
      %v7614 = vsel %vm2993, %v7613, %v7612
      %v7615 = vrot.slane %v6567, 6
      %v7616 = vsel %vm2996, %v7615, %v7614
      %v7617 = vrot.slane %v6568, 5
      %v7618 = vsel %vm2999, %v7617, %v7616
      %v7619 = vrot.slane %v6569, 4
      %v7620 = vsel %vm3002, %v7619, %v7618
      %v7621 = vrot.slane %v6570, 3
      %v7622 = vsel %vm3005, %v7621, %v7620
      %v7623 = vrot.slane %v6571, 2
      %v7624 = vrot.slane %v6572, 1
      %v7625 = vsel %vm2987, %v7624, %v7623
      %v7626 = vsel %vm2990, %v6573, %v7625
      %v7627 = vrot.slane %v6574, 7
      %v7628 = vsel %vm2993, %v7627, %v7626
      %v7629 = vrot.slane %v6575, 6
      %v7630 = vsel %vm2996, %v7629, %v7628
      %v7631 = vrot.slane %v6576, 5
      %v7632 = vsel %vm2999, %v7631, %v7630
      %v7633 = vrot.slane %v6577, 4
      %v7634 = vsel %vm3002, %v7633, %v7632
      %v7635 = vrot.slane %v6578, 3
      %v7636 = vsel %vm3005, %v7635, %v7634
      %v7637 = vrot.slane %v6579, 2
      %v7638 = vrot.slane %v6580, 1
      %v7639 = vsel %vm2987, %v7638, %v7637
      %v7640 = vsel %vm2990, %v6581, %v7639
      %v7641 = vrot.slane %v6582, 7
      %v7642 = vsel %vm2993, %v7641, %v7640
      %v7643 = vrot.slane %v6583, 6
      %v7644 = vsel %vm2996, %v7643, %v7642
      %v7645 = vrot.slane %v6584, 5
      %v7646 = vsel %vm2999, %v7645, %v7644
      %v7647 = vrot.slane %v6585, 4
      %v7648 = vsel %vm3002, %v7647, %v7646
      %v7649 = vrot.slane %v6586, 3
      %v7650 = vsel %vm3005, %v7649, %v7648
      %v7651 = vrot.slane %v6587, 2
      %v7652 = vrot.slane %v6588, 1
      %v7653 = vsel %vm2987, %v7652, %v7651
      %v7654 = vsel %vm2990, %v6589, %v7653
      %v7655 = vrot.slane %v6590, 7
      %v7656 = vsel %vm2993, %v7655, %v7654
      %v7657 = vrot.slane %v6591, 6
      %v7658 = vsel %vm2996, %v7657, %v7656
      %v7659 = vrot.slane %v6592, 5
      %v7660 = vsel %vm2999, %v7659, %v7658
      %v7661 = vrot.slane %v6593, 4
      %v7662 = vsel %vm3002, %v7661, %v7660
      %v7663 = vrot.slane %v6594, 3
      %v7664 = vsel %vm3005, %v7663, %v7662
      %v7665 = vrot.slane %v6595, 2
      %v7666 = vrot.slane %v6596, 1
      %v7667 = vsel %vm2987, %v7666, %v7665
      %v7668 = vsel %vm2990, %v6597, %v7667
      %v7669 = vrot.slane %v6598, 7
      %v7670 = vsel %vm2993, %v7669, %v7668
      %v7671 = vrot.slane %v6599, 6
      %v7672 = vsel %vm2996, %v7671, %v7670
      %v7673 = vrot.slane %v6600, 5
      %v7674 = vsel %vm2999, %v7673, %v7672
      %v7675 = vrot.slane %v6601, 4
      %v7676 = vsel %vm3002, %v7675, %v7674
      %v7677 = vrot.slane %v6602, 3
      %v7678 = vsel %vm3005, %v7677, %v7676
      %v7679 = vrot.slane %v6603, 2
      %v7680 = vrot.slane %v6604, 1
      %v7681 = vsel %vm2987, %v7680, %v7679
      %v7682 = vsel %vm2990, %v6605, %v7681
      %v7683 = vrot.slane %v6606, 7
      %v7684 = vsel %vm2993, %v7683, %v7682
      %v7685 = vpack.c.b16 %v7370, %v7356
      %v7686 = vpack.c.b16 %v7398, %v7384
      %v7687 = vpack.c.b16 %v7426, %v7412
      %v7688 = vpack.c.b16 %v7454, %v7440
      %v7689 = vpack.c.b16 %v7482, %v7468
      %v7690 = vpack.c.b16 %v7510, %v7496
      %v7691 = vpack.c.b16 %v7538, %v7524
      %v7692 = vpack.c.b16 %v7566, %v7552
      %v7693 = vpack.c.b16 %v7594, %v7580
      %v7694 = vpack.c.b16 %v7622, %v7608
      %v7695 = vpack.c.b16 %v7650, %v7636
      %v7696 = vpack.c.b16 %v7678, %v7664
      %v7697 = vpack.c.b16 %v7684, %v7684
      %7698 = vrot.lane.b32.xlu0 %v7685, 32
      %v7699 = vpop.permute.xlu0 %7698
      %7700 = vrot.lane.b32.xlu0 %v7686, 32
      %v7701 = vpop.permute.xlu0 %7700
      %7702 = vrot.lane.b32.xlu0 %v7687, 32
      %v7703 = vpop.permute.xlu0 %7702
      %7704 = vrot.lane.b32.xlu0 %v7688, 32
      %v7705 = vpop.permute.xlu0 %7704
      %7706 = vrot.lane.b32.xlu0 %v7689, 32
      %v7707 = vpop.permute.xlu0 %7706
      %7708 = vrot.lane.b32.xlu0 %v7690, 32
      %v7709 = vpop.permute.xlu0 %7708
      %7710 = vrot.lane.b32.xlu0 %v7691, 32
      %v7711 = vpop.permute.xlu0 %7710
      %7712 = vrot.lane.b32.xlu0 %v7692, 32
      %v7713 = vpop.permute.xlu0 %7712
      %7714 = vrot.lane.b32.xlu0 %v7693, 32
      %v7715 = vpop.permute.xlu0 %7714
      %7716 = vrot.lane.b32.xlu0 %v7694, 32
      %v7717 = vpop.permute.xlu0 %7716
      %7718 = vrot.lane.b32.xlu0 %v7695, 32
      %v7719 = vpop.permute.xlu0 %7718
      %7720 = vrot.lane.b32.xlu0 %v7696, 32
      %v7721 = vpop.permute.xlu0 %7720
      %7722 = vrot.lane.b32.xlu0 %v7697, 32
      %v7723 = vpop.permute.xlu0 %7722
      %v7724 = vrot.slane %v6411, 3
      %v7725 = vrot.slane %v6412, 2
      %v7726 = vsel %vm2987, %v7725, %v7724
      %v7727 = vrot.slane %v6413, 1
      %v7728 = vsel %vm2990, %v7727, %v7726
      %v7729 = vsel %vm2993, %v6414, %v7728
      %v7730 = vrot.slane %v6415, 7
      %v7731 = vsel %vm2996, %v7730, %v7729
      %v7732 = vrot.slane %v6416, 6
      %v7733 = vsel %vm2999, %v7732, %v7731
      %v7734 = vrot.slane %v6417, 5
      %v7735 = vsel %vm3002, %v7734, %v7733
      %v7736 = vrot.slane %v6418, 4
      %v7737 = vsel %vm3005, %v7736, %v7735
      %v7738 = vrot.slane %v6419, 3
      %v7739 = vrot.slane %v6420, 2
      %v7740 = vsel %vm2987, %v7739, %v7738
      %v7741 = vrot.slane %v6421, 1
      %v7742 = vsel %vm2990, %v7741, %v7740
      %v7743 = vsel %vm2993, %v6422, %v7742
      %v7744 = vrot.slane %v6423, 7
      %v7745 = vsel %vm2996, %v7744, %v7743
      %v7746 = vrot.slane %v6424, 6
      %v7747 = vsel %vm2999, %v7746, %v7745
      %v7748 = vrot.slane %v6425, 5
      %v7749 = vsel %vm3002, %v7748, %v7747
      %v7750 = vrot.slane %v6426, 4
      %v7751 = vsel %vm3005, %v7750, %v7749
      %v7752 = vrot.slane %v6427, 3
      %v7753 = vrot.slane %v6428, 2
      %v7754 = vsel %vm2987, %v7753, %v7752
      %v7755 = vrot.slane %v6429, 1
      %v7756 = vsel %vm2990, %v7755, %v7754
      %v7757 = vsel %vm2993, %v6430, %v7756
      %v7758 = vrot.slane %v6431, 7
      %v7759 = vsel %vm2996, %v7758, %v7757
      %v7760 = vrot.slane %v6432, 6
      %v7761 = vsel %vm2999, %v7760, %v7759
      %v7762 = vrot.slane %v6433, 5
      %v7763 = vsel %vm3002, %v7762, %v7761
      %v7764 = vrot.slane %v6434, 4
      %v7765 = vsel %vm3005, %v7764, %v7763
      %v7766 = vrot.slane %v6435, 3
      %v7767 = vrot.slane %v6436, 2
      %v7768 = vsel %vm2987, %v7767, %v7766
      %v7769 = vrot.slane %v6437, 1
      %v7770 = vsel %vm2990, %v7769, %v7768
      %v7771 = vsel %vm2993, %v6438, %v7770
      %v7772 = vrot.slane %v6439, 7
      %v7773 = vsel %vm2996, %v7772, %v7771
      %v7774 = vrot.slane %v6440, 6
      %v7775 = vsel %vm2999, %v7774, %v7773
      %v7776 = vrot.slane %v6441, 5
      %v7777 = vsel %vm3002, %v7776, %v7775
      %v7778 = vrot.slane %v6442, 4
      %v7779 = vsel %vm3005, %v7778, %v7777
      %v7780 = vrot.slane %v6443, 3
      %v7781 = vrot.slane %v6444, 2
      %v7782 = vsel %vm2987, %v7781, %v7780
      %v7783 = vrot.slane %v6445, 1
      %v7784 = vsel %vm2990, %v7783, %v7782
      %v7785 = vsel %vm2993, %v6446, %v7784
      %v7786 = vrot.slane %v6447, 7
      %v7787 = vsel %vm2996, %v7786, %v7785
      %v7788 = vrot.slane %v6448, 6
      %v7789 = vsel %vm2999, %v7788, %v7787
      %v7790 = vrot.slane %v6449, 5
      %v7791 = vsel %vm3002, %v7790, %v7789
      %v7792 = vrot.slane %v6450, 4
      %v7793 = vsel %vm3005, %v7792, %v7791
      %v7794 = vrot.slane %v6451, 3
      %v7795 = vrot.slane %v6452, 2
      %v7796 = vsel %vm2987, %v7795, %v7794
      %v7797 = vrot.slane %v6453, 1
      %v7798 = vsel %vm2990, %v7797, %v7796
      %v7799 = vsel %vm2993, %v6454, %v7798
      %v7800 = vrot.slane %v6455, 7
      %v7801 = vsel %vm2996, %v7800, %v7799
      %v7802 = vrot.slane %v6456, 6
      %v7803 = vsel %vm2999, %v7802, %v7801
      %v7804 = vrot.slane %v6457, 5
      %v7805 = vsel %vm3002, %v7804, %v7803
      %v7806 = vrot.slane %v6458, 4
      %v7807 = vsel %vm3005, %v7806, %v7805
      %v7808 = vrot.slane %v6459, 3
      %v7809 = vrot.slane %v6460, 2
      %v7810 = vsel %vm2987, %v7809, %v7808
      %v7811 = vrot.slane %v6461, 1
      %v7812 = vsel %vm2990, %v7811, %v7810
      %v7813 = vsel %vm2993, %v6462, %v7812
      %v7814 = vrot.slane %v6463, 7
      %v7815 = vsel %vm2996, %v7814, %v7813
      %v7816 = vrot.slane %v6464, 6
      %v7817 = vsel %vm2999, %v7816, %v7815
      %v7818 = vrot.slane %v6465, 5
      %v7819 = vsel %vm3002, %v7818, %v7817
      %v7820 = vrot.slane %v6466, 4
      %v7821 = vsel %vm3005, %v7820, %v7819
      %v7822 = vrot.slane %v6467, 3
      %v7823 = vrot.slane %v6468, 2
      %v7824 = vsel %vm2987, %v7823, %v7822
      %v7825 = vrot.slane %v6469, 1
      %v7826 = vsel %vm2990, %v7825, %v7824
      %v7827 = vsel %vm2993, %v6470, %v7826
      %v7828 = vrot.slane %v6471, 7
      %v7829 = vsel %vm2996, %v7828, %v7827
      %v7830 = vrot.slane %v6472, 6
      %v7831 = vsel %vm2999, %v7830, %v7829
      %v7832 = vrot.slane %v6473, 5
      %v7833 = vsel %vm3002, %v7832, %v7831
      %v7834 = vrot.slane %v6474, 4
      %v7835 = vsel %vm3005, %v7834, %v7833
      %v7836 = vrot.slane %v6475, 3
      %v7837 = vrot.slane %v6476, 2
      %v7838 = vsel %vm2987, %v7837, %v7836
      %v7839 = vrot.slane %v6477, 1
      %v7840 = vsel %vm2990, %v7839, %v7838
      %v7841 = vsel %vm2993, %v6478, %v7840
      %v7842 = vrot.slane %v6479, 7
      %v7843 = vsel %vm2996, %v7842, %v7841
      %v7844 = vrot.slane %v6480, 6
      %v7845 = vsel %vm2999, %v7844, %v7843
      %v7846 = vrot.slane %v6481, 5
      %v7847 = vsel %vm3002, %v7846, %v7845
      %v7848 = vrot.slane %v6482, 4
      %v7849 = vsel %vm3005, %v7848, %v7847
      %v7850 = vrot.slane %v6483, 3
      %v7851 = vrot.slane %v6484, 2
      %v7852 = vsel %vm2987, %v7851, %v7850
      %v7853 = vrot.slane %v6485, 1
      %v7854 = vsel %vm2990, %v7853, %v7852
      %v7855 = vsel %vm2993, %v6486, %v7854
      %v7856 = vrot.slane %v6487, 7
      %v7857 = vsel %vm2996, %v7856, %v7855
      %v7858 = vrot.slane %v6488, 6
      %v7859 = vsel %vm2999, %v7858, %v7857
      %v7860 = vrot.slane %v6489, 5
      %v7861 = vsel %vm3002, %v7860, %v7859
      %v7862 = vrot.slane %v6490, 4
      %v7863 = vsel %vm3005, %v7862, %v7861
      %v7864 = vrot.slane %v6491, 3
      %v7865 = vrot.slane %v6492, 2
      %v7866 = vsel %vm2987, %v7865, %v7864
      %v7867 = vrot.slane %v6493, 1
      %v7868 = vsel %vm2990, %v7867, %v7866
      %v7869 = vsel %vm2993, %v6494, %v7868
      %v7870 = vrot.slane %v6495, 7
      %v7871 = vsel %vm2996, %v7870, %v7869
      %v7872 = vrot.slane %v6496, 6
      %v7873 = vsel %vm2999, %v7872, %v7871
      %v7874 = vrot.slane %v6497, 5
      %v7875 = vsel %vm3002, %v7874, %v7873
      %v7876 = vrot.slane %v6498, 4
      %v7877 = vsel %vm3005, %v7876, %v7875
      %v7878 = vrot.slane %v6499, 3
      %v7879 = vrot.slane %v6500, 2
      %v7880 = vsel %vm2987, %v7879, %v7878
      %v7881 = vrot.slane %v6501, 1
      %v7882 = vsel %vm2990, %v7881, %v7880
      %v7883 = vsel %vm2993, %v6502, %v7882
      %v7884 = vrot.slane %v6503, 7
      %v7885 = vsel %vm2996, %v7884, %v7883
      %v7886 = vrot.slane %v6504, 6
      %v7887 = vsel %vm2999, %v7886, %v7885
      %v7888 = vrot.slane %v6505, 5
      %v7889 = vsel %vm3002, %v7888, %v7887
      %v7890 = vrot.slane %v6506, 4
      %v7891 = vsel %vm3005, %v7890, %v7889
      %v7892 = vrot.slane %v6507, 3
      %v7893 = vrot.slane %v6508, 2
      %v7894 = vsel %vm2987, %v7893, %v7892
      %v7895 = vrot.slane %v6509, 1
      %v7896 = vsel %vm2990, %v7895, %v7894
      %v7897 = vsel %vm2993, %v6510, %v7896
      %v7898 = vrot.slane %v6511, 7
      %v7899 = vsel %vm2996, %v7898, %v7897
      %v7900 = vrot.slane %v6512, 6
      %v7901 = vsel %vm2999, %v7900, %v7899
      %v7902 = vrot.slane %v6513, 5
      %v7903 = vsel %vm3002, %v7902, %v7901
      %v7904 = vrot.slane %v6514, 4
      %v7905 = vsel %vm3005, %v7904, %v7903
      %v7906 = vrot.slane %v6515, 3
      %v7907 = vrot.slane %v6516, 2
      %v7908 = vsel %vm2987, %v7907, %v7906
      %v7909 = vrot.slane %v6517, 1
      %v7910 = vsel %vm2990, %v7909, %v7908
      %v7911 = vsel %vm2993, %v6518, %v7910
      %v7912 = vrot.slane %v6519, 7
      %v7913 = vsel %vm2996, %v7912, %v7911
      %v7914 = vrot.slane %v6520, 6
      %v7915 = vsel %vm2999, %v7914, %v7913
      %v7916 = vrot.slane %v6521, 5
      %v7917 = vsel %vm3002, %v7916, %v7915
      %v7918 = vrot.slane %v6522, 4
      %v7919 = vsel %vm3005, %v7918, %v7917
      %v7920 = vrot.slane %v6523, 3
      %v7921 = vrot.slane %v6524, 2
      %v7922 = vsel %vm2987, %v7921, %v7920
      %v7923 = vrot.slane %v6525, 1
      %v7924 = vsel %vm2990, %v7923, %v7922
      %v7925 = vsel %vm2993, %v6526, %v7924
      %v7926 = vrot.slane %v6527, 7
      %v7927 = vsel %vm2996, %v7926, %v7925
      %v7928 = vrot.slane %v6528, 6
      %v7929 = vsel %vm2999, %v7928, %v7927
      %v7930 = vrot.slane %v6529, 5
      %v7931 = vsel %vm3002, %v7930, %v7929
      %v7932 = vrot.slane %v6530, 4
      %v7933 = vsel %vm3005, %v7932, %v7931
      %v7934 = vrot.slane %v6531, 3
      %v7935 = vrot.slane %v6532, 2
      %v7936 = vsel %vm2987, %v7935, %v7934
      %v7937 = vrot.slane %v6533, 1
      %v7938 = vsel %vm2990, %v7937, %v7936
      %v7939 = vsel %vm2993, %v6534, %v7938
      %v7940 = vrot.slane %v6535, 7
      %v7941 = vsel %vm2996, %v7940, %v7939
      %v7942 = vrot.slane %v6536, 6
      %v7943 = vsel %vm2999, %v7942, %v7941
      %v7944 = vrot.slane %v6537, 5
      %v7945 = vsel %vm3002, %v7944, %v7943
      %v7946 = vrot.slane %v6538, 4
      %v7947 = vsel %vm3005, %v7946, %v7945
      %v7948 = vrot.slane %v6539, 3
      %v7949 = vrot.slane %v6540, 2
      %v7950 = vsel %vm2987, %v7949, %v7948
      %v7951 = vrot.slane %v6541, 1
      %v7952 = vsel %vm2990, %v7951, %v7950
      %v7953 = vsel %vm2993, %v6542, %v7952
      %v7954 = vrot.slane %v6543, 7
      %v7955 = vsel %vm2996, %v7954, %v7953
      %v7956 = vrot.slane %v6544, 6
      %v7957 = vsel %vm2999, %v7956, %v7955
      %v7958 = vrot.slane %v6545, 5
      %v7959 = vsel %vm3002, %v7958, %v7957
      %v7960 = vrot.slane %v6546, 4
      %v7961 = vsel %vm3005, %v7960, %v7959
      %v7962 = vrot.slane %v6547, 3
      %v7963 = vrot.slane %v6548, 2
      %v7964 = vsel %vm2987, %v7963, %v7962
      %v7965 = vrot.slane %v6549, 1
      %v7966 = vsel %vm2990, %v7965, %v7964
      %v7967 = vsel %vm2993, %v6550, %v7966
      %v7968 = vrot.slane %v6551, 7
      %v7969 = vsel %vm2996, %v7968, %v7967
      %v7970 = vrot.slane %v6552, 6
      %v7971 = vsel %vm2999, %v7970, %v7969
      %v7972 = vrot.slane %v6553, 5
      %v7973 = vsel %vm3002, %v7972, %v7971
      %v7974 = vrot.slane %v6554, 4
      %v7975 = vsel %vm3005, %v7974, %v7973
      %v7976 = vrot.slane %v6555, 3
      %v7977 = vrot.slane %v6556, 2
      %v7978 = vsel %vm2987, %v7977, %v7976
      %v7979 = vrot.slane %v6557, 1
      %v7980 = vsel %vm2990, %v7979, %v7978
      %v7981 = vsel %vm2993, %v6558, %v7980
      %v7982 = vrot.slane %v6559, 7
      %v7983 = vsel %vm2996, %v7982, %v7981
      %v7984 = vrot.slane %v6560, 6
      %v7985 = vsel %vm2999, %v7984, %v7983
      %v7986 = vrot.slane %v6561, 5
      %v7987 = vsel %vm3002, %v7986, %v7985
      %v7988 = vrot.slane %v6562, 4
      %v7989 = vsel %vm3005, %v7988, %v7987
      %v7990 = vrot.slane %v6563, 3
      %v7991 = vrot.slane %v6564, 2
      %v7992 = vsel %vm2987, %v7991, %v7990
      %v7993 = vrot.slane %v6565, 1
      %v7994 = vsel %vm2990, %v7993, %v7992
      %v7995 = vsel %vm2993, %v6566, %v7994
      %v7996 = vrot.slane %v6567, 7
      %v7997 = vsel %vm2996, %v7996, %v7995
      %v7998 = vrot.slane %v6568, 6
      %v7999 = vsel %vm2999, %v7998, %v7997
      %v8000 = vrot.slane %v6569, 5
      %v8001 = vsel %vm3002, %v8000, %v7999
      %v8002 = vrot.slane %v6570, 4
      %v8003 = vsel %vm3005, %v8002, %v8001
      %v8004 = vrot.slane %v6571, 3
      %v8005 = vrot.slane %v6572, 2
      %v8006 = vsel %vm2987, %v8005, %v8004
      %v8007 = vrot.slane %v6573, 1
      %v8008 = vsel %vm2990, %v8007, %v8006
      %v8009 = vsel %vm2993, %v6574, %v8008
      %v8010 = vrot.slane %v6575, 7
      %v8011 = vsel %vm2996, %v8010, %v8009
      %v8012 = vrot.slane %v6576, 6
      %v8013 = vsel %vm2999, %v8012, %v8011
      %v8014 = vrot.slane %v6577, 5
      %v8015 = vsel %vm3002, %v8014, %v8013
      %v8016 = vrot.slane %v6578, 4
      %v8017 = vsel %vm3005, %v8016, %v8015
      %v8018 = vrot.slane %v6579, 3
      %v8019 = vrot.slane %v6580, 2
      %v8020 = vsel %vm2987, %v8019, %v8018
      %v8021 = vrot.slane %v6581, 1
      %v8022 = vsel %vm2990, %v8021, %v8020
      %v8023 = vsel %vm2993, %v6582, %v8022
      %v8024 = vrot.slane %v6583, 7
      %v8025 = vsel %vm2996, %v8024, %v8023
      %v8026 = vrot.slane %v6584, 6
      %v8027 = vsel %vm2999, %v8026, %v8025
      %v8028 = vrot.slane %v6585, 5
      %v8029 = vsel %vm3002, %v8028, %v8027
      %v8030 = vrot.slane %v6586, 4
      %v8031 = vsel %vm3005, %v8030, %v8029
      %v8032 = vrot.slane %v6587, 3
      %v8033 = vrot.slane %v6588, 2
      %v8034 = vsel %vm2987, %v8033, %v8032
      %v8035 = vrot.slane %v6589, 1
      %v8036 = vsel %vm2990, %v8035, %v8034
      %v8037 = vsel %vm2993, %v6590, %v8036
      %v8038 = vrot.slane %v6591, 7
      %v8039 = vsel %vm2996, %v8038, %v8037
      %v8040 = vrot.slane %v6592, 6
      %v8041 = vsel %vm2999, %v8040, %v8039
      %v8042 = vrot.slane %v6593, 5
      %v8043 = vsel %vm3002, %v8042, %v8041
      %v8044 = vrot.slane %v6594, 4
      %v8045 = vsel %vm3005, %v8044, %v8043
      %v8046 = vrot.slane %v6595, 3
      %v8047 = vrot.slane %v6596, 2
      %v8048 = vsel %vm2987, %v8047, %v8046
      %v8049 = vrot.slane %v6597, 1
      %v8050 = vsel %vm2990, %v8049, %v8048
      %v8051 = vsel %vm2993, %v6598, %v8050
      %v8052 = vrot.slane %v6599, 7
      %v8053 = vsel %vm2996, %v8052, %v8051
      %v8054 = vrot.slane %v6600, 6
      %v8055 = vsel %vm2999, %v8054, %v8053
      %v8056 = vrot.slane %v6601, 5
      %v8057 = vsel %vm3002, %v8056, %v8055
      %v8058 = vrot.slane %v6602, 4
      %v8059 = vsel %vm3005, %v8058, %v8057
      %v8060 = vrot.slane %v6603, 3
      %v8061 = vrot.slane %v6604, 2
      %v8062 = vsel %vm2987, %v8061, %v8060
      %v8063 = vrot.slane %v6605, 1
      %v8064 = vsel %vm2990, %v8063, %v8062
      %v8065 = vsel %vm2993, %v6606, %v8064
      %v8066 = vpack.c.b16 %v7751, %v7737
      %v8067 = vpack.c.b16 %v7779, %v7765
      %v8068 = vpack.c.b16 %v7807, %v7793
      %v8069 = vpack.c.b16 %v7835, %v7821
      %v8070 = vpack.c.b16 %v7863, %v7849
      %v8071 = vpack.c.b16 %v7891, %v7877
      %v8072 = vpack.c.b16 %v7919, %v7905
      %v8073 = vpack.c.b16 %v7947, %v7933
      %v8074 = vpack.c.b16 %v7975, %v7961
      %v8075 = vpack.c.b16 %v8003, %v7989
      %v8076 = vpack.c.b16 %v8031, %v8017
      %v8077 = vpack.c.b16 %v8059, %v8045
      %v8078 = vpack.c.b16 %v8065, %v8065
      %8079 = vrot.lane.b32.xlu0 %v8066, 48
      %v8080 = vpop.permute.xlu0 %8079
      %8081 = vrot.lane.b32.xlu0 %v8067, 48
      %v8082 = vpop.permute.xlu0 %8081
      %8083 = vrot.lane.b32.xlu0 %v8068, 48
      %v8084 = vpop.permute.xlu0 %8083
      %8085 = vrot.lane.b32.xlu0 %v8069, 48
      %v8086 = vpop.permute.xlu0 %8085
      %8087 = vrot.lane.b32.xlu0 %v8070, 48
      %v8088 = vpop.permute.xlu0 %8087
      %8089 = vrot.lane.b32.xlu0 %v8071, 48
      %v8090 = vpop.permute.xlu0 %8089
      %8091 = vrot.lane.b32.xlu0 %v8072, 48
      %v8092 = vpop.permute.xlu0 %8091
      %8093 = vrot.lane.b32.xlu0 %v8073, 48
      %v8094 = vpop.permute.xlu0 %8093
      %8095 = vrot.lane.b32.xlu0 %v8074, 48
      %v8096 = vpop.permute.xlu0 %8095
      %8097 = vrot.lane.b32.xlu0 %v8075, 48
      %v8098 = vpop.permute.xlu0 %8097
      %8099 = vrot.lane.b32.xlu0 %v8076, 48
      %v8100 = vpop.permute.xlu0 %8099
      %8101 = vrot.lane.b32.xlu0 %v8077, 48
      %v8102 = vpop.permute.xlu0 %8101
      %8103 = vrot.lane.b32.xlu0 %v8078, 48
      %v8104 = vpop.permute.xlu0 %8103
      %v8105 = vrot.slane %v6411, 4
      %v8106 = vrot.slane %v6412, 3
      %v8107 = vsel %vm2987, %v8106, %v8105
      %v8108 = vrot.slane %v6413, 2
      %v8109 = vsel %vm2990, %v8108, %v8107
      %v8110 = vrot.slane %v6414, 1
      %v8111 = vsel %vm2993, %v8110, %v8109
      %v8112 = vsel %vm2996, %v6415, %v8111
      %v8113 = vrot.slane %v6416, 7
      %v8114 = vsel %vm2999, %v8113, %v8112
      %v8115 = vrot.slane %v6417, 6
      %v8116 = vsel %vm3002, %v8115, %v8114
      %v8117 = vrot.slane %v6418, 5
      %v8118 = vsel %vm3005, %v8117, %v8116
      %v8119 = vrot.slane %v6419, 4
      %v8120 = vrot.slane %v6420, 3
      %v8121 = vsel %vm2987, %v8120, %v8119
      %v8122 = vrot.slane %v6421, 2
      %v8123 = vsel %vm2990, %v8122, %v8121
      %v8124 = vrot.slane %v6422, 1
      %v8125 = vsel %vm2993, %v8124, %v8123
      %v8126 = vsel %vm2996, %v6423, %v8125
      %v8127 = vrot.slane %v6424, 7
      %v8128 = vsel %vm2999, %v8127, %v8126
      %v8129 = vrot.slane %v6425, 6
      %v8130 = vsel %vm3002, %v8129, %v8128
      %v8131 = vrot.slane %v6426, 5
      %v8132 = vsel %vm3005, %v8131, %v8130
      %v8133 = vrot.slane %v6427, 4
      %v8134 = vrot.slane %v6428, 3
      %v8135 = vsel %vm2987, %v8134, %v8133
      %v8136 = vrot.slane %v6429, 2
      %v8137 = vsel %vm2990, %v8136, %v8135
      %v8138 = vrot.slane %v6430, 1
      %v8139 = vsel %vm2993, %v8138, %v8137
      %v8140 = vsel %vm2996, %v6431, %v8139
      %v8141 = vrot.slane %v6432, 7
      %v8142 = vsel %vm2999, %v8141, %v8140
      %v8143 = vrot.slane %v6433, 6
      %v8144 = vsel %vm3002, %v8143, %v8142
      %v8145 = vrot.slane %v6434, 5
      %v8146 = vsel %vm3005, %v8145, %v8144
      %v8147 = vrot.slane %v6435, 4
      %v8148 = vrot.slane %v6436, 3
      %v8149 = vsel %vm2987, %v8148, %v8147
      %v8150 = vrot.slane %v6437, 2
      %v8151 = vsel %vm2990, %v8150, %v8149
      %v8152 = vrot.slane %v6438, 1
      %v8153 = vsel %vm2993, %v8152, %v8151
      %v8154 = vsel %vm2996, %v6439, %v8153
      %v8155 = vrot.slane %v6440, 7
      %v8156 = vsel %vm2999, %v8155, %v8154
      %v8157 = vrot.slane %v6441, 6
      %v8158 = vsel %vm3002, %v8157, %v8156
      %v8159 = vrot.slane %v6442, 5
      %v8160 = vsel %vm3005, %v8159, %v8158
      %v8161 = vrot.slane %v6443, 4
      %v8162 = vrot.slane %v6444, 3
      %v8163 = vsel %vm2987, %v8162, %v8161
      %v8164 = vrot.slane %v6445, 2
      %v8165 = vsel %vm2990, %v8164, %v8163
      %v8166 = vrot.slane %v6446, 1
      %v8167 = vsel %vm2993, %v8166, %v8165
      %v8168 = vsel %vm2996, %v6447, %v8167
      %v8169 = vrot.slane %v6448, 7
      %v8170 = vsel %vm2999, %v8169, %v8168
      %v8171 = vrot.slane %v6449, 6
      %v8172 = vsel %vm3002, %v8171, %v8170
      %v8173 = vrot.slane %v6450, 5
      %v8174 = vsel %vm3005, %v8173, %v8172
      %v8175 = vrot.slane %v6451, 4
      %v8176 = vrot.slane %v6452, 3
      %v8177 = vsel %vm2987, %v8176, %v8175
      %v8178 = vrot.slane %v6453, 2
      %v8179 = vsel %vm2990, %v8178, %v8177
      %v8180 = vrot.slane %v6454, 1
      %v8181 = vsel %vm2993, %v8180, %v8179
      %v8182 = vsel %vm2996, %v6455, %v8181
      %v8183 = vrot.slane %v6456, 7
      %v8184 = vsel %vm2999, %v8183, %v8182
      %v8185 = vrot.slane %v6457, 6
      %v8186 = vsel %vm3002, %v8185, %v8184
      %v8187 = vrot.slane %v6458, 5
      %v8188 = vsel %vm3005, %v8187, %v8186
      %v8189 = vrot.slane %v6459, 4
      %v8190 = vrot.slane %v6460, 3
      %v8191 = vsel %vm2987, %v8190, %v8189
      %v8192 = vrot.slane %v6461, 2
      %v8193 = vsel %vm2990, %v8192, %v8191
      %v8194 = vrot.slane %v6462, 1
      %v8195 = vsel %vm2993, %v8194, %v8193
      %v8196 = vsel %vm2996, %v6463, %v8195
      %v8197 = vrot.slane %v6464, 7
      %v8198 = vsel %vm2999, %v8197, %v8196
      %v8199 = vrot.slane %v6465, 6
      %v8200 = vsel %vm3002, %v8199, %v8198
      %v8201 = vrot.slane %v6466, 5
      %v8202 = vsel %vm3005, %v8201, %v8200
      %v8203 = vrot.slane %v6467, 4
      %v8204 = vrot.slane %v6468, 3
      %v8205 = vsel %vm2987, %v8204, %v8203
      %v8206 = vrot.slane %v6469, 2
      %v8207 = vsel %vm2990, %v8206, %v8205
      %v8208 = vrot.slane %v6470, 1
      %v8209 = vsel %vm2993, %v8208, %v8207
      %v8210 = vsel %vm2996, %v6471, %v8209
      %v8211 = vrot.slane %v6472, 7
      %v8212 = vsel %vm2999, %v8211, %v8210
      %v8213 = vrot.slane %v6473, 6
      %v8214 = vsel %vm3002, %v8213, %v8212
      %v8215 = vrot.slane %v6474, 5
      %v8216 = vsel %vm3005, %v8215, %v8214
      %v8217 = vrot.slane %v6475, 4
      %v8218 = vrot.slane %v6476, 3
      %v8219 = vsel %vm2987, %v8218, %v8217
      %v8220 = vrot.slane %v6477, 2
      %v8221 = vsel %vm2990, %v8220, %v8219
      %v8222 = vrot.slane %v6478, 1
      %v8223 = vsel %vm2993, %v8222, %v8221
      %v8224 = vsel %vm2996, %v6479, %v8223
      %v8225 = vrot.slane %v6480, 7
      %v8226 = vsel %vm2999, %v8225, %v8224
      %v8227 = vrot.slane %v6481, 6
      %v8228 = vsel %vm3002, %v8227, %v8226
      %v8229 = vrot.slane %v6482, 5
      %v8230 = vsel %vm3005, %v8229, %v8228
      %v8231 = vrot.slane %v6483, 4
      %v8232 = vrot.slane %v6484, 3
      %v8233 = vsel %vm2987, %v8232, %v8231
      %v8234 = vrot.slane %v6485, 2
      %v8235 = vsel %vm2990, %v8234, %v8233
      %v8236 = vrot.slane %v6486, 1
      %v8237 = vsel %vm2993, %v8236, %v8235
      %v8238 = vsel %vm2996, %v6487, %v8237
      %v8239 = vrot.slane %v6488, 7
      %v8240 = vsel %vm2999, %v8239, %v8238
      %v8241 = vrot.slane %v6489, 6
      %v8242 = vsel %vm3002, %v8241, %v8240
      %v8243 = vrot.slane %v6490, 5
      %v8244 = vsel %vm3005, %v8243, %v8242
      %v8245 = vrot.slane %v6491, 4
      %v8246 = vrot.slane %v6492, 3
      %v8247 = vsel %vm2987, %v8246, %v8245
      %v8248 = vrot.slane %v6493, 2
      %v8249 = vsel %vm2990, %v8248, %v8247
      %v8250 = vrot.slane %v6494, 1
      %v8251 = vsel %vm2993, %v8250, %v8249
      %v8252 = vsel %vm2996, %v6495, %v8251
      %v8253 = vrot.slane %v6496, 7
      %v8254 = vsel %vm2999, %v8253, %v8252
      %v8255 = vrot.slane %v6497, 6
      %v8256 = vsel %vm3002, %v8255, %v8254
      %v8257 = vrot.slane %v6498, 5
      %v8258 = vsel %vm3005, %v8257, %v8256
      %v8259 = vrot.slane %v6499, 4
      %v8260 = vrot.slane %v6500, 3
      %v8261 = vsel %vm2987, %v8260, %v8259
      %v8262 = vrot.slane %v6501, 2
      %v8263 = vsel %vm2990, %v8262, %v8261
      %v8264 = vrot.slane %v6502, 1
      %v8265 = vsel %vm2993, %v8264, %v8263
      %v8266 = vsel %vm2996, %v6503, %v8265
      %v8267 = vrot.slane %v6504, 7
      %v8268 = vsel %vm2999, %v8267, %v8266
      %v8269 = vrot.slane %v6505, 6
      %v8270 = vsel %vm3002, %v8269, %v8268
      %v8271 = vrot.slane %v6506, 5
      %v8272 = vsel %vm3005, %v8271, %v8270
      %v8273 = vrot.slane %v6507, 4
      %v8274 = vrot.slane %v6508, 3
      %v8275 = vsel %vm2987, %v8274, %v8273
      %v8276 = vrot.slane %v6509, 2
      %v8277 = vsel %vm2990, %v8276, %v8275
      %v8278 = vrot.slane %v6510, 1
      %v8279 = vsel %vm2993, %v8278, %v8277
      %v8280 = vsel %vm2996, %v6511, %v8279
      %v8281 = vrot.slane %v6512, 7
      %v8282 = vsel %vm2999, %v8281, %v8280
      %v8283 = vrot.slane %v6513, 6
      %v8284 = vsel %vm3002, %v8283, %v8282
      %v8285 = vrot.slane %v6514, 5
      %v8286 = vsel %vm3005, %v8285, %v8284
      %v8287 = vrot.slane %v6515, 4
      %v8288 = vrot.slane %v6516, 3
      %v8289 = vsel %vm2987, %v8288, %v8287
      %v8290 = vrot.slane %v6517, 2
      %v8291 = vsel %vm2990, %v8290, %v8289
      %v8292 = vrot.slane %v6518, 1
      %v8293 = vsel %vm2993, %v8292, %v8291
      %v8294 = vsel %vm2996, %v6519, %v8293
      %v8295 = vrot.slane %v6520, 7
      %v8296 = vsel %vm2999, %v8295, %v8294
      %v8297 = vrot.slane %v6521, 6
      %v8298 = vsel %vm3002, %v8297, %v8296
      %v8299 = vrot.slane %v6522, 5
      %v8300 = vsel %vm3005, %v8299, %v8298
      %v8301 = vrot.slane %v6523, 4
      %v8302 = vrot.slane %v6524, 3
      %v8303 = vsel %vm2987, %v8302, %v8301
      %v8304 = vrot.slane %v6525, 2
      %v8305 = vsel %vm2990, %v8304, %v8303
      %v8306 = vrot.slane %v6526, 1
      %v8307 = vsel %vm2993, %v8306, %v8305
      %v8308 = vsel %vm2996, %v6527, %v8307
      %v8309 = vrot.slane %v6528, 7
      %v8310 = vsel %vm2999, %v8309, %v8308
      %v8311 = vrot.slane %v6529, 6
      %v8312 = vsel %vm3002, %v8311, %v8310
      %v8313 = vrot.slane %v6530, 5
      %v8314 = vsel %vm3005, %v8313, %v8312
      %v8315 = vrot.slane %v6531, 4
      %v8316 = vrot.slane %v6532, 3
      %v8317 = vsel %vm2987, %v8316, %v8315
      %v8318 = vrot.slane %v6533, 2
      %v8319 = vsel %vm2990, %v8318, %v8317
      %v8320 = vrot.slane %v6534, 1
      %v8321 = vsel %vm2993, %v8320, %v8319
      %v8322 = vsel %vm2996, %v6535, %v8321
      %v8323 = vrot.slane %v6536, 7
      %v8324 = vsel %vm2999, %v8323, %v8322
      %v8325 = vrot.slane %v6537, 6
      %v8326 = vsel %vm3002, %v8325, %v8324
      %v8327 = vrot.slane %v6538, 5
      %v8328 = vsel %vm3005, %v8327, %v8326
      %v8329 = vrot.slane %v6539, 4
      %v8330 = vrot.slane %v6540, 3
      %v8331 = vsel %vm2987, %v8330, %v8329
      %v8332 = vrot.slane %v6541, 2
      %v8333 = vsel %vm2990, %v8332, %v8331
      %v8334 = vrot.slane %v6542, 1
      %v8335 = vsel %vm2993, %v8334, %v8333
      %v8336 = vsel %vm2996, %v6543, %v8335
      %v8337 = vrot.slane %v6544, 7
      %v8338 = vsel %vm2999, %v8337, %v8336
      %v8339 = vrot.slane %v6545, 6
      %v8340 = vsel %vm3002, %v8339, %v8338
      %v8341 = vrot.slane %v6546, 5
      %v8342 = vsel %vm3005, %v8341, %v8340
      %v8343 = vrot.slane %v6547, 4
      %v8344 = vrot.slane %v6548, 3
      %v8345 = vsel %vm2987, %v8344, %v8343
      %v8346 = vrot.slane %v6549, 2
      %v8347 = vsel %vm2990, %v8346, %v8345
      %v8348 = vrot.slane %v6550, 1
      %v8349 = vsel %vm2993, %v8348, %v8347
      %v8350 = vsel %vm2996, %v6551, %v8349
      %v8351 = vrot.slane %v6552, 7
      %v8352 = vsel %vm2999, %v8351, %v8350
      %v8353 = vrot.slane %v6553, 6
      %v8354 = vsel %vm3002, %v8353, %v8352
      %v8355 = vrot.slane %v6554, 5
      %v8356 = vsel %vm3005, %v8355, %v8354
      %v8357 = vrot.slane %v6555, 4
      %v8358 = vrot.slane %v6556, 3
      %v8359 = vsel %vm2987, %v8358, %v8357
      %v8360 = vrot.slane %v6557, 2
      %v8361 = vsel %vm2990, %v8360, %v8359
      %v8362 = vrot.slane %v6558, 1
      %v8363 = vsel %vm2993, %v8362, %v8361
      %v8364 = vsel %vm2996, %v6559, %v8363
      %v8365 = vrot.slane %v6560, 7
      %v8366 = vsel %vm2999, %v8365, %v8364
      %v8367 = vrot.slane %v6561, 6
      %v8368 = vsel %vm3002, %v8367, %v8366
      %v8369 = vrot.slane %v6562, 5
      %v8370 = vsel %vm3005, %v8369, %v8368
      %v8371 = vrot.slane %v6563, 4
      %v8372 = vrot.slane %v6564, 3
      %v8373 = vsel %vm2987, %v8372, %v8371
      %v8374 = vrot.slane %v6565, 2
      %v8375 = vsel %vm2990, %v8374, %v8373
      %v8376 = vrot.slane %v6566, 1
      %v8377 = vsel %vm2993, %v8376, %v8375
      %v8378 = vsel %vm2996, %v6567, %v8377
      %v8379 = vrot.slane %v6568, 7
      %v8380 = vsel %vm2999, %v8379, %v8378
      %v8381 = vrot.slane %v6569, 6
      %v8382 = vsel %vm3002, %v8381, %v8380
      %v8383 = vrot.slane %v6570, 5
      %v8384 = vsel %vm3005, %v8383, %v8382
      %v8385 = vrot.slane %v6571, 4
      %v8386 = vrot.slane %v6572, 3
      %v8387 = vsel %vm2987, %v8386, %v8385
      %v8388 = vrot.slane %v6573, 2
      %v8389 = vsel %vm2990, %v8388, %v8387
      %v8390 = vrot.slane %v6574, 1
      %v8391 = vsel %vm2993, %v8390, %v8389
      %v8392 = vsel %vm2996, %v6575, %v8391
      %v8393 = vrot.slane %v6576, 7
      %v8394 = vsel %vm2999, %v8393, %v8392
      %v8395 = vrot.slane %v6577, 6
      %v8396 = vsel %vm3002, %v8395, %v8394
      %v8397 = vrot.slane %v6578, 5
      %v8398 = vsel %vm3005, %v8397, %v8396
      %v8399 = vrot.slane %v6579, 4
      %v8400 = vrot.slane %v6580, 3
      %v8401 = vsel %vm2987, %v8400, %v8399
      %v8402 = vrot.slane %v6581, 2
      %v8403 = vsel %vm2990, %v8402, %v8401
      %v8404 = vrot.slane %v6582, 1
      %v8405 = vsel %vm2993, %v8404, %v8403
      %v8406 = vsel %vm2996, %v6583, %v8405
      %v8407 = vrot.slane %v6584, 7
      %v8408 = vsel %vm2999, %v8407, %v8406
      %v8409 = vrot.slane %v6585, 6
      %v8410 = vsel %vm3002, %v8409, %v8408
      %v8411 = vrot.slane %v6586, 5
      %v8412 = vsel %vm3005, %v8411, %v8410
      %v8413 = vrot.slane %v6587, 4
      %v8414 = vrot.slane %v6588, 3
      %v8415 = vsel %vm2987, %v8414, %v8413
      %v8416 = vrot.slane %v6589, 2
      %v8417 = vsel %vm2990, %v8416, %v8415
      %v8418 = vrot.slane %v6590, 1
      %v8419 = vsel %vm2993, %v8418, %v8417
      %v8420 = vsel %vm2996, %v6591, %v8419
      %v8421 = vrot.slane %v6592, 7
      %v8422 = vsel %vm2999, %v8421, %v8420
      %v8423 = vrot.slane %v6593, 6
      %v8424 = vsel %vm3002, %v8423, %v8422
      %v8425 = vrot.slane %v6594, 5
      %v8426 = vsel %vm3005, %v8425, %v8424
      %v8427 = vrot.slane %v6595, 4
      %v8428 = vrot.slane %v6596, 3
      %v8429 = vsel %vm2987, %v8428, %v8427
      %v8430 = vrot.slane %v6597, 2
      %v8431 = vsel %vm2990, %v8430, %v8429
      %v8432 = vrot.slane %v6598, 1
      %v8433 = vsel %vm2993, %v8432, %v8431
      %v8434 = vsel %vm2996, %v6599, %v8433
      %v8435 = vrot.slane %v6600, 7
      %v8436 = vsel %vm2999, %v8435, %v8434
      %v8437 = vrot.slane %v6601, 6
      %v8438 = vsel %vm3002, %v8437, %v8436
      %v8439 = vrot.slane %v6602, 5
      %v8440 = vsel %vm3005, %v8439, %v8438
      %v8441 = vrot.slane %v6603, 4
      %v8442 = vrot.slane %v6604, 3
      %v8443 = vsel %vm2987, %v8442, %v8441
      %v8444 = vrot.slane %v6605, 2
      %v8445 = vsel %vm2990, %v8444, %v8443
      %v8446 = vrot.slane %v6606, 1
      %v8447 = vsel %vm2993, %v8446, %v8445
      %v8448 = vpack.c.b16 %v8132, %v8118
      %v8449 = vpack.c.b16 %v8160, %v8146
      %v8450 = vpack.c.b16 %v8188, %v8174
      %v8451 = vpack.c.b16 %v8216, %v8202
      %v8452 = vpack.c.b16 %v8244, %v8230
      %v8453 = vpack.c.b16 %v8272, %v8258
      %v8454 = vpack.c.b16 %v8300, %v8286
      %v8455 = vpack.c.b16 %v8328, %v8314
      %v8456 = vpack.c.b16 %v8356, %v8342
      %v8457 = vpack.c.b16 %v8384, %v8370
      %v8458 = vpack.c.b16 %v8412, %v8398
      %v8459 = vpack.c.b16 %v8440, %v8426
      %v8460 = vpack.c.b16 %v8447, %v8447
      %8461 = vrot.lane.b32.xlu0 %v8448, 64
      %v8462 = vpop.permute.xlu0 %8461
      %8463 = vrot.lane.b32.xlu0 %v8449, 64
      %v8464 = vpop.permute.xlu0 %8463
      %8465 = vrot.lane.b32.xlu0 %v8450, 64
      %v8466 = vpop.permute.xlu0 %8465
      %8467 = vrot.lane.b32.xlu0 %v8451, 64
      %v8468 = vpop.permute.xlu0 %8467
      %8469 = vrot.lane.b32.xlu0 %v8452, 64
      %v8470 = vpop.permute.xlu0 %8469
      %8471 = vrot.lane.b32.xlu0 %v8453, 64
      %v8472 = vpop.permute.xlu0 %8471
      %8473 = vrot.lane.b32.xlu0 %v8454, 64
      %v8474 = vpop.permute.xlu0 %8473
      %8475 = vrot.lane.b32.xlu0 %v8455, 64
      %v8476 = vpop.permute.xlu0 %8475
      %8477 = vrot.lane.b32.xlu0 %v8456, 64
      %v8478 = vpop.permute.xlu0 %8477
      %8479 = vrot.lane.b32.xlu0 %v8457, 64
      %v8480 = vpop.permute.xlu0 %8479
      %8481 = vrot.lane.b32.xlu0 %v8458, 64
      %v8482 = vpop.permute.xlu0 %8481
      %8483 = vrot.lane.b32.xlu0 %v8459, 64
      %v8484 = vpop.permute.xlu0 %8483
      %8485 = vrot.lane.b32.xlu0 %v8460, 64
      %v8486 = vpop.permute.xlu0 %8485
      %v8487 = vrot.slane %v6411, 5
      %v8488 = vrot.slane %v6412, 4
      %v8489 = vsel %vm2987, %v8488, %v8487
      %v8490 = vrot.slane %v6413, 3
      %v8491 = vsel %vm2990, %v8490, %v8489
      %v8492 = vrot.slane %v6414, 2
      %v8493 = vsel %vm2993, %v8492, %v8491
      %v8494 = vrot.slane %v6415, 1
      %v8495 = vsel %vm2996, %v8494, %v8493
      %v8496 = vsel %vm2999, %v6416, %v8495
      %v8497 = vrot.slane %v6417, 7
      %v8498 = vsel %vm3002, %v8497, %v8496
      %v8499 = vrot.slane %v6418, 6
      %v8500 = vsel %vm3005, %v8499, %v8498
      %v8501 = vrot.slane %v6419, 5
      %v8502 = vrot.slane %v6420, 4
      %v8503 = vsel %vm2987, %v8502, %v8501
      %v8504 = vrot.slane %v6421, 3
      %v8505 = vsel %vm2990, %v8504, %v8503
      %v8506 = vrot.slane %v6422, 2
      %v8507 = vsel %vm2993, %v8506, %v8505
      %v8508 = vrot.slane %v6423, 1
      %v8509 = vsel %vm2996, %v8508, %v8507
      %v8510 = vsel %vm2999, %v6424, %v8509
      %v8511 = vrot.slane %v6425, 7
      %v8512 = vsel %vm3002, %v8511, %v8510
      %v8513 = vrot.slane %v6426, 6
      %v8514 = vsel %vm3005, %v8513, %v8512
      %v8515 = vrot.slane %v6427, 5
      %v8516 = vrot.slane %v6428, 4
      %v8517 = vsel %vm2987, %v8516, %v8515
      %v8518 = vrot.slane %v6429, 3
      %v8519 = vsel %vm2990, %v8518, %v8517
      %v8520 = vrot.slane %v6430, 2
      %v8521 = vsel %vm2993, %v8520, %v8519
      %v8522 = vrot.slane %v6431, 1
      %v8523 = vsel %vm2996, %v8522, %v8521
      %v8524 = vsel %vm2999, %v6432, %v8523
      %v8525 = vrot.slane %v6433, 7
      %v8526 = vsel %vm3002, %v8525, %v8524
      %v8527 = vrot.slane %v6434, 6
      %v8528 = vsel %vm3005, %v8527, %v8526
      %v8529 = vrot.slane %v6435, 5
      %v8530 = vrot.slane %v6436, 4
      %v8531 = vsel %vm2987, %v8530, %v8529
      %v8532 = vrot.slane %v6437, 3
      %v8533 = vsel %vm2990, %v8532, %v8531
      %v8534 = vrot.slane %v6438, 2
      %v8535 = vsel %vm2993, %v8534, %v8533
      %v8536 = vrot.slane %v6439, 1
      %v8537 = vsel %vm2996, %v8536, %v8535
      %v8538 = vsel %vm2999, %v6440, %v8537
      %v8539 = vrot.slane %v6441, 7
      %v8540 = vsel %vm3002, %v8539, %v8538
      %v8541 = vrot.slane %v6442, 6
      %v8542 = vsel %vm3005, %v8541, %v8540
      %v8543 = vrot.slane %v6443, 5
      %v8544 = vrot.slane %v6444, 4
      %v8545 = vsel %vm2987, %v8544, %v8543
      %v8546 = vrot.slane %v6445, 3
      %v8547 = vsel %vm2990, %v8546, %v8545
      %v8548 = vrot.slane %v6446, 2
      %v8549 = vsel %vm2993, %v8548, %v8547
      %v8550 = vrot.slane %v6447, 1
      %v8551 = vsel %vm2996, %v8550, %v8549
      %v8552 = vsel %vm2999, %v6448, %v8551
      %v8553 = vrot.slane %v6449, 7
      %v8554 = vsel %vm3002, %v8553, %v8552
      %v8555 = vrot.slane %v6450, 6
      %v8556 = vsel %vm3005, %v8555, %v8554
      %v8557 = vrot.slane %v6451, 5
      %v8558 = vrot.slane %v6452, 4
      %v8559 = vsel %vm2987, %v8558, %v8557
      %v8560 = vrot.slane %v6453, 3
      %v8561 = vsel %vm2990, %v8560, %v8559
      %v8562 = vrot.slane %v6454, 2
      %v8563 = vsel %vm2993, %v8562, %v8561
      %v8564 = vrot.slane %v6455, 1
      %v8565 = vsel %vm2996, %v8564, %v8563
      %v8566 = vsel %vm2999, %v6456, %v8565
      %v8567 = vrot.slane %v6457, 7
      %v8568 = vsel %vm3002, %v8567, %v8566
      %v8569 = vrot.slane %v6458, 6
      %v8570 = vsel %vm3005, %v8569, %v8568
      %v8571 = vrot.slane %v6459, 5
      %v8572 = vrot.slane %v6460, 4
      %v8573 = vsel %vm2987, %v8572, %v8571
      %v8574 = vrot.slane %v6461, 3
      %v8575 = vsel %vm2990, %v8574, %v8573
      %v8576 = vrot.slane %v6462, 2
      %v8577 = vsel %vm2993, %v8576, %v8575
      %v8578 = vrot.slane %v6463, 1
      %v8579 = vsel %vm2996, %v8578, %v8577
      %v8580 = vsel %vm2999, %v6464, %v8579
      %v8581 = vrot.slane %v6465, 7
      %v8582 = vsel %vm3002, %v8581, %v8580
      %v8583 = vrot.slane %v6466, 6
      %v8584 = vsel %vm3005, %v8583, %v8582
      %v8585 = vrot.slane %v6467, 5
      %v8586 = vrot.slane %v6468, 4
      %v8587 = vsel %vm2987, %v8586, %v8585
      %v8588 = vrot.slane %v6469, 3
      %v8589 = vsel %vm2990, %v8588, %v8587
      %v8590 = vrot.slane %v6470, 2
      %v8591 = vsel %vm2993, %v8590, %v8589
      %v8592 = vrot.slane %v6471, 1
      %v8593 = vsel %vm2996, %v8592, %v8591
      %v8594 = vsel %vm2999, %v6472, %v8593
      %v8595 = vrot.slane %v6473, 7
      %v8596 = vsel %vm3002, %v8595, %v8594
      %v8597 = vrot.slane %v6474, 6
      %v8598 = vsel %vm3005, %v8597, %v8596
      %v8599 = vrot.slane %v6475, 5
      %v8600 = vrot.slane %v6476, 4
      %v8601 = vsel %vm2987, %v8600, %v8599
      %v8602 = vrot.slane %v6477, 3
      %v8603 = vsel %vm2990, %v8602, %v8601
      %v8604 = vrot.slane %v6478, 2
      %v8605 = vsel %vm2993, %v8604, %v8603
      %v8606 = vrot.slane %v6479, 1
      %v8607 = vsel %vm2996, %v8606, %v8605
      %v8608 = vsel %vm2999, %v6480, %v8607
      %v8609 = vrot.slane %v6481, 7
      %v8610 = vsel %vm3002, %v8609, %v8608
      %v8611 = vrot.slane %v6482, 6
      %v8612 = vsel %vm3005, %v8611, %v8610
      %v8613 = vrot.slane %v6483, 5
      %v8614 = vrot.slane %v6484, 4
      %v8615 = vsel %vm2987, %v8614, %v8613
      %v8616 = vrot.slane %v6485, 3
      %v8617 = vsel %vm2990, %v8616, %v8615
      %v8618 = vrot.slane %v6486, 2
      %v8619 = vsel %vm2993, %v8618, %v8617
      %v8620 = vrot.slane %v6487, 1
      %v8621 = vsel %vm2996, %v8620, %v8619
      %v8622 = vsel %vm2999, %v6488, %v8621
      %v8623 = vrot.slane %v6489, 7
      %v8624 = vsel %vm3002, %v8623, %v8622
      %v8625 = vrot.slane %v6490, 6
      %v8626 = vsel %vm3005, %v8625, %v8624
      %v8627 = vrot.slane %v6491, 5
      %v8628 = vrot.slane %v6492, 4
      %v8629 = vsel %vm2987, %v8628, %v8627
      %v8630 = vrot.slane %v6493, 3
      %v8631 = vsel %vm2990, %v8630, %v8629
      %v8632 = vrot.slane %v6494, 2
      %v8633 = vsel %vm2993, %v8632, %v8631
      %v8634 = vrot.slane %v6495, 1
      %v8635 = vsel %vm2996, %v8634, %v8633
      %v8636 = vsel %vm2999, %v6496, %v8635
      %v8637 = vrot.slane %v6497, 7
      %v8638 = vsel %vm3002, %v8637, %v8636
      %v8639 = vrot.slane %v6498, 6
      %v8640 = vsel %vm3005, %v8639, %v8638
      %v8641 = vrot.slane %v6499, 5
      %v8642 = vrot.slane %v6500, 4
      %v8643 = vsel %vm2987, %v8642, %v8641
      %v8644 = vrot.slane %v6501, 3
      %v8645 = vsel %vm2990, %v8644, %v8643
      %v8646 = vrot.slane %v6502, 2
      %v8647 = vsel %vm2993, %v8646, %v8645
      %v8648 = vrot.slane %v6503, 1
      %v8649 = vsel %vm2996, %v8648, %v8647
      %v8650 = vsel %vm2999, %v6504, %v8649
      %v8651 = vrot.slane %v6505, 7
      %v8652 = vsel %vm3002, %v8651, %v8650
      %v8653 = vrot.slane %v6506, 6
      %v8654 = vsel %vm3005, %v8653, %v8652
      %v8655 = vrot.slane %v6507, 5
      %v8656 = vrot.slane %v6508, 4
      %v8657 = vsel %vm2987, %v8656, %v8655
      %v8658 = vrot.slane %v6509, 3
      %v8659 = vsel %vm2990, %v8658, %v8657
      %v8660 = vrot.slane %v6510, 2
      %v8661 = vsel %vm2993, %v8660, %v8659
      %v8662 = vrot.slane %v6511, 1
      %v8663 = vsel %vm2996, %v8662, %v8661
      %v8664 = vsel %vm2999, %v6512, %v8663
      %v8665 = vrot.slane %v6513, 7
      %v8666 = vsel %vm3002, %v8665, %v8664
      %v8667 = vrot.slane %v6514, 6
      %v8668 = vsel %vm3005, %v8667, %v8666
      %v8669 = vrot.slane %v6515, 5
      %v8670 = vrot.slane %v6516, 4
      %v8671 = vsel %vm2987, %v8670, %v8669
      %v8672 = vrot.slane %v6517, 3
      %v8673 = vsel %vm2990, %v8672, %v8671
      %v8674 = vrot.slane %v6518, 2
      %v8675 = vsel %vm2993, %v8674, %v8673
      %v8676 = vrot.slane %v6519, 1
      %v8677 = vsel %vm2996, %v8676, %v8675
      %v8678 = vsel %vm2999, %v6520, %v8677
      %v8679 = vrot.slane %v6521, 7
      %v8680 = vsel %vm3002, %v8679, %v8678
      %v8681 = vrot.slane %v6522, 6
      %v8682 = vsel %vm3005, %v8681, %v8680
      %v8683 = vrot.slane %v6523, 5
      %v8684 = vrot.slane %v6524, 4
      %v8685 = vsel %vm2987, %v8684, %v8683
      %v8686 = vrot.slane %v6525, 3
      %v8687 = vsel %vm2990, %v8686, %v8685
      %v8688 = vrot.slane %v6526, 2
      %v8689 = vsel %vm2993, %v8688, %v8687
      %v8690 = vrot.slane %v6527, 1
      %v8691 = vsel %vm2996, %v8690, %v8689
      %v8692 = vsel %vm2999, %v6528, %v8691
      %v8693 = vrot.slane %v6529, 7
      %v8694 = vsel %vm3002, %v8693, %v8692
      %v8695 = vrot.slane %v6530, 6
      %v8696 = vsel %vm3005, %v8695, %v8694
      %v8697 = vrot.slane %v6531, 5
      %v8698 = vrot.slane %v6532, 4
      %v8699 = vsel %vm2987, %v8698, %v8697
      %v8700 = vrot.slane %v6533, 3
      %v8701 = vsel %vm2990, %v8700, %v8699
      %v8702 = vrot.slane %v6534, 2
      %v8703 = vsel %vm2993, %v8702, %v8701
      %v8704 = vrot.slane %v6535, 1
      %v8705 = vsel %vm2996, %v8704, %v8703
      %v8706 = vsel %vm2999, %v6536, %v8705
      %v8707 = vrot.slane %v6537, 7
      %v8708 = vsel %vm3002, %v8707, %v8706
      %v8709 = vrot.slane %v6538, 6
      %v8710 = vsel %vm3005, %v8709, %v8708
      %v8711 = vrot.slane %v6539, 5
      %v8712 = vrot.slane %v6540, 4
      %v8713 = vsel %vm2987, %v8712, %v8711
      %v8714 = vrot.slane %v6541, 3
      %v8715 = vsel %vm2990, %v8714, %v8713
      %v8716 = vrot.slane %v6542, 2
      %v8717 = vsel %vm2993, %v8716, %v8715
      %v8718 = vrot.slane %v6543, 1
      %v8719 = vsel %vm2996, %v8718, %v8717
      %v8720 = vsel %vm2999, %v6544, %v8719
      %v8721 = vrot.slane %v6545, 7
      %v8722 = vsel %vm3002, %v8721, %v8720
      %v8723 = vrot.slane %v6546, 6
      %v8724 = vsel %vm3005, %v8723, %v8722
      %v8725 = vrot.slane %v6547, 5
      %v8726 = vrot.slane %v6548, 4
      %v8727 = vsel %vm2987, %v8726, %v8725
      %v8728 = vrot.slane %v6549, 3
      %v8729 = vsel %vm2990, %v8728, %v8727
      %v8730 = vrot.slane %v6550, 2
      %v8731 = vsel %vm2993, %v8730, %v8729
      %v8732 = vrot.slane %v6551, 1
      %v8733 = vsel %vm2996, %v8732, %v8731
      %v8734 = vsel %vm2999, %v6552, %v8733
      %v8735 = vrot.slane %v6553, 7
      %v8736 = vsel %vm3002, %v8735, %v8734
      %v8737 = vrot.slane %v6554, 6
      %v8738 = vsel %vm3005, %v8737, %v8736
      %v8739 = vrot.slane %v6555, 5
      %v8740 = vrot.slane %v6556, 4
      %v8741 = vsel %vm2987, %v8740, %v8739
      %v8742 = vrot.slane %v6557, 3
      %v8743 = vsel %vm2990, %v8742, %v8741
      %v8744 = vrot.slane %v6558, 2
      %v8745 = vsel %vm2993, %v8744, %v8743
      %v8746 = vrot.slane %v6559, 1
      %v8747 = vsel %vm2996, %v8746, %v8745
      %v8748 = vsel %vm2999, %v6560, %v8747
      %v8749 = vrot.slane %v6561, 7
      %v8750 = vsel %vm3002, %v8749, %v8748
      %v8751 = vrot.slane %v6562, 6
      %v8752 = vsel %vm3005, %v8751, %v8750
      %v8753 = vrot.slane %v6563, 5
      %v8754 = vrot.slane %v6564, 4
      %v8755 = vsel %vm2987, %v8754, %v8753
      %v8756 = vrot.slane %v6565, 3
      %v8757 = vsel %vm2990, %v8756, %v8755
      %v8758 = vrot.slane %v6566, 2
      %v8759 = vsel %vm2993, %v8758, %v8757
      %v8760 = vrot.slane %v6567, 1
      %v8761 = vsel %vm2996, %v8760, %v8759
      %v8762 = vsel %vm2999, %v6568, %v8761
      %v8763 = vrot.slane %v6569, 7
      %v8764 = vsel %vm3002, %v8763, %v8762
      %v8765 = vrot.slane %v6570, 6
      %v8766 = vsel %vm3005, %v8765, %v8764
      %v8767 = vrot.slane %v6571, 5
      %v8768 = vrot.slane %v6572, 4
      %v8769 = vsel %vm2987, %v8768, %v8767
      %v8770 = vrot.slane %v6573, 3
      %v8771 = vsel %vm2990, %v8770, %v8769
      %v8772 = vrot.slane %v6574, 2
      %v8773 = vsel %vm2993, %v8772, %v8771
      %v8774 = vrot.slane %v6575, 1
      %v8775 = vsel %vm2996, %v8774, %v8773
      %v8776 = vsel %vm2999, %v6576, %v8775
      %v8777 = vrot.slane %v6577, 7
      %v8778 = vsel %vm3002, %v8777, %v8776
      %v8779 = vrot.slane %v6578, 6
      %v8780 = vsel %vm3005, %v8779, %v8778
      %v8781 = vrot.slane %v6579, 5
      %v8782 = vrot.slane %v6580, 4
      %v8783 = vsel %vm2987, %v8782, %v8781
      %v8784 = vrot.slane %v6581, 3
      %v8785 = vsel %vm2990, %v8784, %v8783
      %v8786 = vrot.slane %v6582, 2
      %v8787 = vsel %vm2993, %v8786, %v8785
      %v8788 = vrot.slane %v6583, 1
      %v8789 = vsel %vm2996, %v8788, %v8787
      %v8790 = vsel %vm2999, %v6584, %v8789
      %v8791 = vrot.slane %v6585, 7
      %v8792 = vsel %vm3002, %v8791, %v8790
      %v8793 = vrot.slane %v6586, 6
      %v8794 = vsel %vm3005, %v8793, %v8792
      %v8795 = vrot.slane %v6587, 5
      %v8796 = vrot.slane %v6588, 4
      %v8797 = vsel %vm2987, %v8796, %v8795
      %v8798 = vrot.slane %v6589, 3
      %v8799 = vsel %vm2990, %v8798, %v8797
      %v8800 = vrot.slane %v6590, 2
      %v8801 = vsel %vm2993, %v8800, %v8799
      %v8802 = vrot.slane %v6591, 1
      %v8803 = vsel %vm2996, %v8802, %v8801
      %v8804 = vsel %vm2999, %v6592, %v8803
      %v8805 = vrot.slane %v6593, 7
      %v8806 = vsel %vm3002, %v8805, %v8804
      %v8807 = vrot.slane %v6594, 6
      %v8808 = vsel %vm3005, %v8807, %v8806
      %v8809 = vrot.slane %v6595, 5
      %v8810 = vrot.slane %v6596, 4
      %v8811 = vsel %vm2987, %v8810, %v8809
      %v8812 = vrot.slane %v6597, 3
      %v8813 = vsel %vm2990, %v8812, %v8811
      %v8814 = vrot.slane %v6598, 2
      %v8815 = vsel %vm2993, %v8814, %v8813
      %v8816 = vrot.slane %v6599, 1
      %v8817 = vsel %vm2996, %v8816, %v8815
      %v8818 = vsel %vm2999, %v6600, %v8817
      %v8819 = vrot.slane %v6601, 7
      %v8820 = vsel %vm3002, %v8819, %v8818
      %v8821 = vrot.slane %v6602, 6
      %v8822 = vsel %vm3005, %v8821, %v8820
      %v8823 = vrot.slane %v6603, 5
      %v8824 = vrot.slane %v6604, 4
      %v8825 = vsel %vm2987, %v8824, %v8823
      %v8826 = vrot.slane %v6605, 3
      %v8827 = vsel %vm2990, %v8826, %v8825
      %v8828 = vrot.slane %v6606, 2
      %v8829 = vsel %vm2993, %v8828, %v8827
      %v8830 = vpack.c.b16 %v8514, %v8500
      %v8831 = vpack.c.b16 %v8542, %v8528
      %v8832 = vpack.c.b16 %v8570, %v8556
      %v8833 = vpack.c.b16 %v8598, %v8584
      %v8834 = vpack.c.b16 %v8626, %v8612
      %v8835 = vpack.c.b16 %v8654, %v8640
      %v8836 = vpack.c.b16 %v8682, %v8668
      %v8837 = vpack.c.b16 %v8710, %v8696
      %v8838 = vpack.c.b16 %v8738, %v8724
      %v8839 = vpack.c.b16 %v8766, %v8752
      %v8840 = vpack.c.b16 %v8794, %v8780
      %v8841 = vpack.c.b16 %v8822, %v8808
      %v8842 = vpack.c.b16 %v8829, %v8829
      %8843 = vrot.lane.b32.xlu0 %v8830, 80
      %v8844 = vpop.permute.xlu0 %8843
      %8845 = vrot.lane.b32.xlu0 %v8831, 80
      %v8846 = vpop.permute.xlu0 %8845
      %8847 = vrot.lane.b32.xlu0 %v8832, 80
      %v8848 = vpop.permute.xlu0 %8847
      %8849 = vrot.lane.b32.xlu0 %v8833, 80
      %v8850 = vpop.permute.xlu0 %8849
      %8851 = vrot.lane.b32.xlu0 %v8834, 80
      %v8852 = vpop.permute.xlu0 %8851
      %8853 = vrot.lane.b32.xlu0 %v8835, 80
      %v8854 = vpop.permute.xlu0 %8853
      %8855 = vrot.lane.b32.xlu0 %v8836, 80
      %v8856 = vpop.permute.xlu0 %8855
      %8857 = vrot.lane.b32.xlu0 %v8837, 80
      %v8858 = vpop.permute.xlu0 %8857
      %8859 = vrot.lane.b32.xlu0 %v8838, 80
      %v8860 = vpop.permute.xlu0 %8859
      %8861 = vrot.lane.b32.xlu0 %v8839, 80
      %v8862 = vpop.permute.xlu0 %8861
      %8863 = vrot.lane.b32.xlu0 %v8840, 80
      %v8864 = vpop.permute.xlu0 %8863
      %8865 = vrot.lane.b32.xlu0 %v8841, 80
      %v8866 = vpop.permute.xlu0 %8865
      %8867 = vrot.lane.b32.xlu0 %v8842, 80
      %v8868 = vpop.permute.xlu0 %8867
      %v8869 = vrot.slane %v6411, 6
      %v8870 = vrot.slane %v6412, 5
      %v8871 = vsel %vm2987, %v8870, %v8869
      %v8872 = vrot.slane %v6413, 4
      %v8873 = vsel %vm2990, %v8872, %v8871
      %v8874 = vrot.slane %v6414, 3
      %v8875 = vsel %vm2993, %v8874, %v8873
      %v8876 = vrot.slane %v6415, 2
      %v8877 = vsel %vm2996, %v8876, %v8875
      %v8878 = vrot.slane %v6416, 1
      %v8879 = vsel %vm2999, %v8878, %v8877
      %v8880 = vsel %vm3002, %v6417, %v8879
      %v8881 = vrot.slane %v6418, 7
      %v8882 = vsel %vm3005, %v8881, %v8880
      %v8883 = vrot.slane %v6419, 6
      %v8884 = vrot.slane %v6420, 5
      %v8885 = vsel %vm2987, %v8884, %v8883
      %v8886 = vrot.slane %v6421, 4
      %v8887 = vsel %vm2990, %v8886, %v8885
      %v8888 = vrot.slane %v6422, 3
      %v8889 = vsel %vm2993, %v8888, %v8887
      %v8890 = vrot.slane %v6423, 2
      %v8891 = vsel %vm2996, %v8890, %v8889
      %v8892 = vrot.slane %v6424, 1
      %v8893 = vsel %vm2999, %v8892, %v8891
      %v8894 = vsel %vm3002, %v6425, %v8893
      %v8895 = vrot.slane %v6426, 7
      %v8896 = vsel %vm3005, %v8895, %v8894
      %v8897 = vrot.slane %v6427, 6
      %v8898 = vrot.slane %v6428, 5
      %v8899 = vsel %vm2987, %v8898, %v8897
      %v8900 = vrot.slane %v6429, 4
      %v8901 = vsel %vm2990, %v8900, %v8899
      %v8902 = vrot.slane %v6430, 3
      %v8903 = vsel %vm2993, %v8902, %v8901
      %v8904 = vrot.slane %v6431, 2
      %v8905 = vsel %vm2996, %v8904, %v8903
      %v8906 = vrot.slane %v6432, 1
      %v8907 = vsel %vm2999, %v8906, %v8905
      %v8908 = vsel %vm3002, %v6433, %v8907
      %v8909 = vrot.slane %v6434, 7
      %v8910 = vsel %vm3005, %v8909, %v8908
      %v8911 = vrot.slane %v6435, 6
      %v8912 = vrot.slane %v6436, 5
      %v8913 = vsel %vm2987, %v8912, %v8911
      %v8914 = vrot.slane %v6437, 4
      %v8915 = vsel %vm2990, %v8914, %v8913
      %v8916 = vrot.slane %v6438, 3
      %v8917 = vsel %vm2993, %v8916, %v8915
      %v8918 = vrot.slane %v6439, 2
      %v8919 = vsel %vm2996, %v8918, %v8917
      %v8920 = vrot.slane %v6440, 1
      %v8921 = vsel %vm2999, %v8920, %v8919
      %v8922 = vsel %vm3002, %v6441, %v8921
      %v8923 = vrot.slane %v6442, 7
      %v8924 = vsel %vm3005, %v8923, %v8922
      %v8925 = vrot.slane %v6443, 6
      %v8926 = vrot.slane %v6444, 5
      %v8927 = vsel %vm2987, %v8926, %v8925
      %v8928 = vrot.slane %v6445, 4
      %v8929 = vsel %vm2990, %v8928, %v8927
      %v8930 = vrot.slane %v6446, 3
      %v8931 = vsel %vm2993, %v8930, %v8929
      %v8932 = vrot.slane %v6447, 2
      %v8933 = vsel %vm2996, %v8932, %v8931
      %v8934 = vrot.slane %v6448, 1
      %v8935 = vsel %vm2999, %v8934, %v8933
      %v8936 = vsel %vm3002, %v6449, %v8935
      %v8937 = vrot.slane %v6450, 7
      %v8938 = vsel %vm3005, %v8937, %v8936
      %v8939 = vrot.slane %v6451, 6
      %v8940 = vrot.slane %v6452, 5
      %v8941 = vsel %vm2987, %v8940, %v8939
      %v8942 = vrot.slane %v6453, 4
      %v8943 = vsel %vm2990, %v8942, %v8941
      %v8944 = vrot.slane %v6454, 3
      %v8945 = vsel %vm2993, %v8944, %v8943
      %v8946 = vrot.slane %v6455, 2
      %v8947 = vsel %vm2996, %v8946, %v8945
      %v8948 = vrot.slane %v6456, 1
      %v8949 = vsel %vm2999, %v8948, %v8947
      %v8950 = vsel %vm3002, %v6457, %v8949
      %v8951 = vrot.slane %v6458, 7
      %v8952 = vsel %vm3005, %v8951, %v8950
      %v8953 = vrot.slane %v6459, 6
      %v8954 = vrot.slane %v6460, 5
      %v8955 = vsel %vm2987, %v8954, %v8953
      %v8956 = vrot.slane %v6461, 4
      %v8957 = vsel %vm2990, %v8956, %v8955
      %v8958 = vrot.slane %v6462, 3
      %v8959 = vsel %vm2993, %v8958, %v8957
      %v8960 = vrot.slane %v6463, 2
      %v8961 = vsel %vm2996, %v8960, %v8959
      %v8962 = vrot.slane %v6464, 1
      %v8963 = vsel %vm2999, %v8962, %v8961
      %v8964 = vsel %vm3002, %v6465, %v8963
      %v8965 = vrot.slane %v6466, 7
      %v8966 = vsel %vm3005, %v8965, %v8964
      %v8967 = vrot.slane %v6467, 6
      %v8968 = vrot.slane %v6468, 5
      %v8969 = vsel %vm2987, %v8968, %v8967
      %v8970 = vrot.slane %v6469, 4
      %v8971 = vsel %vm2990, %v8970, %v8969
      %v8972 = vrot.slane %v6470, 3
      %v8973 = vsel %vm2993, %v8972, %v8971
      %v8974 = vrot.slane %v6471, 2
      %v8975 = vsel %vm2996, %v8974, %v8973
      %v8976 = vrot.slane %v6472, 1
      %v8977 = vsel %vm2999, %v8976, %v8975
      %v8978 = vsel %vm3002, %v6473, %v8977
      %v8979 = vrot.slane %v6474, 7
      %v8980 = vsel %vm3005, %v8979, %v8978
      %v8981 = vrot.slane %v6475, 6
      %v8982 = vrot.slane %v6476, 5
      %v8983 = vsel %vm2987, %v8982, %v8981
      %v8984 = vrot.slane %v6477, 4
      %v8985 = vsel %vm2990, %v8984, %v8983
      %v8986 = vrot.slane %v6478, 3
      %v8987 = vsel %vm2993, %v8986, %v8985
      %v8988 = vrot.slane %v6479, 2
      %v8989 = vsel %vm2996, %v8988, %v8987
      %v8990 = vrot.slane %v6480, 1
      %v8991 = vsel %vm2999, %v8990, %v8989
      %v8992 = vsel %vm3002, %v6481, %v8991
      %v8993 = vrot.slane %v6482, 7
      %v8994 = vsel %vm3005, %v8993, %v8992
      %v8995 = vrot.slane %v6483, 6
      %v8996 = vrot.slane %v6484, 5
      %v8997 = vsel %vm2987, %v8996, %v8995
      %v8998 = vrot.slane %v6485, 4
      %v8999 = vsel %vm2990, %v8998, %v8997
      %v9000 = vrot.slane %v6486, 3
      %v9001 = vsel %vm2993, %v9000, %v8999
      %v9002 = vrot.slane %v6487, 2
      %v9003 = vsel %vm2996, %v9002, %v9001
      %v9004 = vrot.slane %v6488, 1
      %v9005 = vsel %vm2999, %v9004, %v9003
      %v9006 = vsel %vm3002, %v6489, %v9005
      %v9007 = vrot.slane %v6490, 7
      %v9008 = vsel %vm3005, %v9007, %v9006
      %v9009 = vrot.slane %v6491, 6
      %v9010 = vrot.slane %v6492, 5
      %v9011 = vsel %vm2987, %v9010, %v9009
      %v9012 = vrot.slane %v6493, 4
      %v9013 = vsel %vm2990, %v9012, %v9011
      %v9014 = vrot.slane %v6494, 3
      %v9015 = vsel %vm2993, %v9014, %v9013
      %v9016 = vrot.slane %v6495, 2
      %v9017 = vsel %vm2996, %v9016, %v9015
      %v9018 = vrot.slane %v6496, 1
      %v9019 = vsel %vm2999, %v9018, %v9017
      %v9020 = vsel %vm3002, %v6497, %v9019
      %v9021 = vrot.slane %v6498, 7
      %v9022 = vsel %vm3005, %v9021, %v9020
      %v9023 = vrot.slane %v6499, 6
      %v9024 = vrot.slane %v6500, 5
      %v9025 = vsel %vm2987, %v9024, %v9023
      %v9026 = vrot.slane %v6501, 4
      %v9027 = vsel %vm2990, %v9026, %v9025
      %v9028 = vrot.slane %v6502, 3
      %v9029 = vsel %vm2993, %v9028, %v9027
      %v9030 = vrot.slane %v6503, 2
      %v9031 = vsel %vm2996, %v9030, %v9029
      %v9032 = vrot.slane %v6504, 1
      %v9033 = vsel %vm2999, %v9032, %v9031
      %v9034 = vsel %vm3002, %v6505, %v9033
      %v9035 = vrot.slane %v6506, 7
      %v9036 = vsel %vm3005, %v9035, %v9034
      %v9037 = vrot.slane %v6507, 6
      %v9038 = vrot.slane %v6508, 5
      %v9039 = vsel %vm2987, %v9038, %v9037
      %v9040 = vrot.slane %v6509, 4
      %v9041 = vsel %vm2990, %v9040, %v9039
      %v9042 = vrot.slane %v6510, 3
      %v9043 = vsel %vm2993, %v9042, %v9041
      %v9044 = vrot.slane %v6511, 2
      %v9045 = vsel %vm2996, %v9044, %v9043
      %v9046 = vrot.slane %v6512, 1
      %v9047 = vsel %vm2999, %v9046, %v9045
      %v9048 = vsel %vm3002, %v6513, %v9047
      %v9049 = vrot.slane %v6514, 7
      %v9050 = vsel %vm3005, %v9049, %v9048
      %v9051 = vrot.slane %v6515, 6
      %v9052 = vrot.slane %v6516, 5
      %v9053 = vsel %vm2987, %v9052, %v9051
      %v9054 = vrot.slane %v6517, 4
      %v9055 = vsel %vm2990, %v9054, %v9053
      %v9056 = vrot.slane %v6518, 3
      %v9057 = vsel %vm2993, %v9056, %v9055
      %v9058 = vrot.slane %v6519, 2
      %v9059 = vsel %vm2996, %v9058, %v9057
      %v9060 = vrot.slane %v6520, 1
      %v9061 = vsel %vm2999, %v9060, %v9059
      %v9062 = vsel %vm3002, %v6521, %v9061
      %v9063 = vrot.slane %v6522, 7
      %v9064 = vsel %vm3005, %v9063, %v9062
      %v9065 = vrot.slane %v6523, 6
      %v9066 = vrot.slane %v6524, 5
      %v9067 = vsel %vm2987, %v9066, %v9065
      %v9068 = vrot.slane %v6525, 4
      %v9069 = vsel %vm2990, %v9068, %v9067
      %v9070 = vrot.slane %v6526, 3
      %v9071 = vsel %vm2993, %v9070, %v9069
      %v9072 = vrot.slane %v6527, 2
      %v9073 = vsel %vm2996, %v9072, %v9071
      %v9074 = vrot.slane %v6528, 1
      %v9075 = vsel %vm2999, %v9074, %v9073
      %v9076 = vsel %vm3002, %v6529, %v9075
      %v9077 = vrot.slane %v6530, 7
      %v9078 = vsel %vm3005, %v9077, %v9076
      %v9079 = vrot.slane %v6531, 6
      %v9080 = vrot.slane %v6532, 5
      %v9081 = vsel %vm2987, %v9080, %v9079
      %v9082 = vrot.slane %v6533, 4
      %v9083 = vsel %vm2990, %v9082, %v9081
      %v9084 = vrot.slane %v6534, 3
      %v9085 = vsel %vm2993, %v9084, %v9083
      %v9086 = vrot.slane %v6535, 2
      %v9087 = vsel %vm2996, %v9086, %v9085
      %v9088 = vrot.slane %v6536, 1
      %v9089 = vsel %vm2999, %v9088, %v9087
      %v9090 = vsel %vm3002, %v6537, %v9089
      %v9091 = vrot.slane %v6538, 7
      %v9092 = vsel %vm3005, %v9091, %v9090
      %v9093 = vrot.slane %v6539, 6
      %v9094 = vrot.slane %v6540, 5
      %v9095 = vsel %vm2987, %v9094, %v9093
      %v9096 = vrot.slane %v6541, 4
      %v9097 = vsel %vm2990, %v9096, %v9095
      %v9098 = vrot.slane %v6542, 3
      %v9099 = vsel %vm2993, %v9098, %v9097
      %v9100 = vrot.slane %v6543, 2
      %v9101 = vsel %vm2996, %v9100, %v9099
      %v9102 = vrot.slane %v6544, 1
      %v9103 = vsel %vm2999, %v9102, %v9101
      %v9104 = vsel %vm3002, %v6545, %v9103
      %v9105 = vrot.slane %v6546, 7
      %v9106 = vsel %vm3005, %v9105, %v9104
      %v9107 = vrot.slane %v6547, 6
      %v9108 = vrot.slane %v6548, 5
      %v9109 = vsel %vm2987, %v9108, %v9107
      %v9110 = vrot.slane %v6549, 4
      %v9111 = vsel %vm2990, %v9110, %v9109
      %v9112 = vrot.slane %v6550, 3
      %v9113 = vsel %vm2993, %v9112, %v9111
      %v9114 = vrot.slane %v6551, 2
      %v9115 = vsel %vm2996, %v9114, %v9113
      %v9116 = vrot.slane %v6552, 1
      %v9117 = vsel %vm2999, %v9116, %v9115
      %v9118 = vsel %vm3002, %v6553, %v9117
      %v9119 = vrot.slane %v6554, 7
      %v9120 = vsel %vm3005, %v9119, %v9118
      %v9121 = vrot.slane %v6555, 6
      %v9122 = vrot.slane %v6556, 5
      %v9123 = vsel %vm2987, %v9122, %v9121
      %v9124 = vrot.slane %v6557, 4
      %v9125 = vsel %vm2990, %v9124, %v9123
      %v9126 = vrot.slane %v6558, 3
      %v9127 = vsel %vm2993, %v9126, %v9125
      %v9128 = vrot.slane %v6559, 2
      %v9129 = vsel %vm2996, %v9128, %v9127
      %v9130 = vrot.slane %v6560, 1
      %v9131 = vsel %vm2999, %v9130, %v9129
      %v9132 = vsel %vm3002, %v6561, %v9131
      %v9133 = vrot.slane %v6562, 7
      %v9134 = vsel %vm3005, %v9133, %v9132
      %v9135 = vrot.slane %v6563, 6
      %v9136 = vrot.slane %v6564, 5
      %v9137 = vsel %vm2987, %v9136, %v9135
      %v9138 = vrot.slane %v6565, 4
      %v9139 = vsel %vm2990, %v9138, %v9137
      %v9140 = vrot.slane %v6566, 3
      %v9141 = vsel %vm2993, %v9140, %v9139
      %v9142 = vrot.slane %v6567, 2
      %v9143 = vsel %vm2996, %v9142, %v9141
      %v9144 = vrot.slane %v6568, 1
      %v9145 = vsel %vm2999, %v9144, %v9143
      %v9146 = vsel %vm3002, %v6569, %v9145
      %v9147 = vrot.slane %v6570, 7
      %v9148 = vsel %vm3005, %v9147, %v9146
      %v9149 = vrot.slane %v6571, 6
      %v9150 = vrot.slane %v6572, 5
      %v9151 = vsel %vm2987, %v9150, %v9149
      %v9152 = vrot.slane %v6573, 4
      %v9153 = vsel %vm2990, %v9152, %v9151
      %v9154 = vrot.slane %v6574, 3
      %v9155 = vsel %vm2993, %v9154, %v9153
      %v9156 = vrot.slane %v6575, 2
      %v9157 = vsel %vm2996, %v9156, %v9155
      %v9158 = vrot.slane %v6576, 1
      %v9159 = vsel %vm2999, %v9158, %v9157
      %v9160 = vsel %vm3002, %v6577, %v9159
      %v9161 = vrot.slane %v6578, 7
      %v9162 = vsel %vm3005, %v9161, %v9160
      %v9163 = vrot.slane %v6579, 6
      %v9164 = vrot.slane %v6580, 5
      %v9165 = vsel %vm2987, %v9164, %v9163
      %v9166 = vrot.slane %v6581, 4
      %v9167 = vsel %vm2990, %v9166, %v9165
      %v9168 = vrot.slane %v6582, 3
      %v9169 = vsel %vm2993, %v9168, %v9167
      %v9170 = vrot.slane %v6583, 2
      %v9171 = vsel %vm2996, %v9170, %v9169
      %v9172 = vrot.slane %v6584, 1
      %v9173 = vsel %vm2999, %v9172, %v9171
      %v9174 = vsel %vm3002, %v6585, %v9173
      %v9175 = vrot.slane %v6586, 7
      %v9176 = vsel %vm3005, %v9175, %v9174
      %v9177 = vrot.slane %v6587, 6
      %v9178 = vrot.slane %v6588, 5
      %v9179 = vsel %vm2987, %v9178, %v9177
      %v9180 = vrot.slane %v6589, 4
      %v9181 = vsel %vm2990, %v9180, %v9179
      %v9182 = vrot.slane %v6590, 3
      %v9183 = vsel %vm2993, %v9182, %v9181
      %v9184 = vrot.slane %v6591, 2
      %v9185 = vsel %vm2996, %v9184, %v9183
      %v9186 = vrot.slane %v6592, 1
      %v9187 = vsel %vm2999, %v9186, %v9185
      %v9188 = vsel %vm3002, %v6593, %v9187
      %v9189 = vrot.slane %v6594, 7
      %v9190 = vsel %vm3005, %v9189, %v9188
      %v9191 = vrot.slane %v6595, 6
      %v9192 = vrot.slane %v6596, 5
      %v9193 = vsel %vm2987, %v9192, %v9191
      %v9194 = vrot.slane %v6597, 4
      %v9195 = vsel %vm2990, %v9194, %v9193
      %v9196 = vrot.slane %v6598, 3
      %v9197 = vsel %vm2993, %v9196, %v9195
      %v9198 = vrot.slane %v6599, 2
      %v9199 = vsel %vm2996, %v9198, %v9197
      %v9200 = vrot.slane %v6600, 1
      %v9201 = vsel %vm2999, %v9200, %v9199
      %v9202 = vsel %vm3002, %v6601, %v9201
      %v9203 = vrot.slane %v6602, 7
      %v9204 = vsel %vm3005, %v9203, %v9202
      %v9205 = vrot.slane %v6603, 6
      %v9206 = vrot.slane %v6604, 5
      %v9207 = vsel %vm2987, %v9206, %v9205
      %v9208 = vrot.slane %v6605, 4
      %v9209 = vsel %vm2990, %v9208, %v9207
      %v9210 = vrot.slane %v6606, 3
      %v9211 = vsel %vm2993, %v9210, %v9209
      %v9212 = vpack.c.b16 %v8896, %v8882
      %v9213 = vpack.c.b16 %v8924, %v8910
      %v9214 = vpack.c.b16 %v8952, %v8938
      %v9215 = vpack.c.b16 %v8980, %v8966
      %v9216 = vpack.c.b16 %v9008, %v8994
      %v9217 = vpack.c.b16 %v9036, %v9022
      %v9218 = vpack.c.b16 %v9064, %v9050
      %v9219 = vpack.c.b16 %v9092, %v9078
      %v9220 = vpack.c.b16 %v9120, %v9106
      %v9221 = vpack.c.b16 %v9148, %v9134
      %v9222 = vpack.c.b16 %v9176, %v9162
      %v9223 = vpack.c.b16 %v9204, %v9190
      %v9224 = vpack.c.b16 %v9211, %v9211
      %9225 = vrot.lane.b32.xlu0 %v9212, 96
      %v9226 = vpop.permute.xlu0 %9225
      %9227 = vrot.lane.b32.xlu0 %v9213, 96
      %v9228 = vpop.permute.xlu0 %9227
      %9229 = vrot.lane.b32.xlu0 %v9214, 96
      %v9230 = vpop.permute.xlu0 %9229
      %9231 = vrot.lane.b32.xlu0 %v9215, 96
      %v9232 = vpop.permute.xlu0 %9231
      %9233 = vrot.lane.b32.xlu0 %v9216, 96
      %v9234 = vpop.permute.xlu0 %9233
      %9235 = vrot.lane.b32.xlu0 %v9217, 96
      %v9236 = vpop.permute.xlu0 %9235
      %9237 = vrot.lane.b32.xlu0 %v9218, 96
      %v9238 = vpop.permute.xlu0 %9237
      %9239 = vrot.lane.b32.xlu0 %v9219, 96
      %v9240 = vpop.permute.xlu0 %9239
      %9241 = vrot.lane.b32.xlu0 %v9220, 96
      %v9242 = vpop.permute.xlu0 %9241
      %9243 = vrot.lane.b32.xlu0 %v9221, 96
      %v9244 = vpop.permute.xlu0 %9243
      %9245 = vrot.lane.b32.xlu0 %v9222, 96
      %v9246 = vpop.permute.xlu0 %9245
      %9247 = vrot.lane.b32.xlu0 %v9223, 96
      %v9248 = vpop.permute.xlu0 %9247
      %9249 = vrot.lane.b32.xlu0 %v9224, 96
      %v9250 = vpop.permute.xlu0 %9249
      %v9251 = vrot.slane %v6411, 7
      %v9252 = vrot.slane %v6412, 6
      %v9253 = vsel %vm2987, %v9252, %v9251
      %v9254 = vrot.slane %v6413, 5
      %v9255 = vsel %vm2990, %v9254, %v9253
      %v9256 = vrot.slane %v6414, 4
      %v9257 = vsel %vm2993, %v9256, %v9255
      %v9258 = vrot.slane %v6415, 3
      %v9259 = vsel %vm2996, %v9258, %v9257
      %v9260 = vrot.slane %v6416, 2
      %v9261 = vsel %vm2999, %v9260, %v9259
      %v9262 = vrot.slane %v6417, 1
      %v9263 = vsel %vm3002, %v9262, %v9261
      %v9264 = vsel %vm3005, %v6418, %v9263
      %v9265 = vrot.slane %v6419, 7
      %v9266 = vrot.slane %v6420, 6
      %v9267 = vsel %vm2987, %v9266, %v9265
      %v9268 = vrot.slane %v6421, 5
      %v9269 = vsel %vm2990, %v9268, %v9267
      %v9270 = vrot.slane %v6422, 4
      %v9271 = vsel %vm2993, %v9270, %v9269
      %v9272 = vrot.slane %v6423, 3
      %v9273 = vsel %vm2996, %v9272, %v9271
      %v9274 = vrot.slane %v6424, 2
      %v9275 = vsel %vm2999, %v9274, %v9273
      %v9276 = vrot.slane %v6425, 1
      %v9277 = vsel %vm3002, %v9276, %v9275
      %v9278 = vsel %vm3005, %v6426, %v9277
      %v9279 = vrot.slane %v6427, 7
      %v9280 = vrot.slane %v6428, 6
      %v9281 = vsel %vm2987, %v9280, %v9279
      %v9282 = vrot.slane %v6429, 5
      %v9283 = vsel %vm2990, %v9282, %v9281
      %v9284 = vrot.slane %v6430, 4
      %v9285 = vsel %vm2993, %v9284, %v9283
      %v9286 = vrot.slane %v6431, 3
      %v9287 = vsel %vm2996, %v9286, %v9285
      %v9288 = vrot.slane %v6432, 2
      %v9289 = vsel %vm2999, %v9288, %v9287
      %v9290 = vrot.slane %v6433, 1
      %v9291 = vsel %vm3002, %v9290, %v9289
      %v9292 = vsel %vm3005, %v6434, %v9291
      %v9293 = vrot.slane %v6435, 7
      %v9294 = vrot.slane %v6436, 6
      %v9295 = vsel %vm2987, %v9294, %v9293
      %v9296 = vrot.slane %v6437, 5
      %v9297 = vsel %vm2990, %v9296, %v9295
      %v9298 = vrot.slane %v6438, 4
      %v9299 = vsel %vm2993, %v9298, %v9297
      %v9300 = vrot.slane %v6439, 3
      %v9301 = vsel %vm2996, %v9300, %v9299
      %v9302 = vrot.slane %v6440, 2
      %v9303 = vsel %vm2999, %v9302, %v9301
      %v9304 = vrot.slane %v6441, 1
      %v9305 = vsel %vm3002, %v9304, %v9303
      %v9306 = vsel %vm3005, %v6442, %v9305
      %v9307 = vrot.slane %v6443, 7
      %v9308 = vrot.slane %v6444, 6
      %v9309 = vsel %vm2987, %v9308, %v9307
      %v9310 = vrot.slane %v6445, 5
      %v9311 = vsel %vm2990, %v9310, %v9309
      %v9312 = vrot.slane %v6446, 4
      %v9313 = vsel %vm2993, %v9312, %v9311
      %v9314 = vrot.slane %v6447, 3
      %v9315 = vsel %vm2996, %v9314, %v9313
      %v9316 = vrot.slane %v6448, 2
      %v9317 = vsel %vm2999, %v9316, %v9315
      %v9318 = vrot.slane %v6449, 1
      %v9319 = vsel %vm3002, %v9318, %v9317
      %v9320 = vsel %vm3005, %v6450, %v9319
      %v9321 = vrot.slane %v6451, 7
      %v9322 = vrot.slane %v6452, 6
      %v9323 = vsel %vm2987, %v9322, %v9321
      %v9324 = vrot.slane %v6453, 5
      %v9325 = vsel %vm2990, %v9324, %v9323
      %v9326 = vrot.slane %v6454, 4
      %v9327 = vsel %vm2993, %v9326, %v9325
      %v9328 = vrot.slane %v6455, 3
      %v9329 = vsel %vm2996, %v9328, %v9327
      %v9330 = vrot.slane %v6456, 2
      %v9331 = vsel %vm2999, %v9330, %v9329
      %v9332 = vrot.slane %v6457, 1
      %v9333 = vsel %vm3002, %v9332, %v9331
      %v9334 = vsel %vm3005, %v6458, %v9333
      %v9335 = vrot.slane %v6459, 7
      %v9336 = vrot.slane %v6460, 6
      %v9337 = vsel %vm2987, %v9336, %v9335
      %v9338 = vrot.slane %v6461, 5
      %v9339 = vsel %vm2990, %v9338, %v9337
      %v9340 = vrot.slane %v6462, 4
      %v9341 = vsel %vm2993, %v9340, %v9339
      %v9342 = vrot.slane %v6463, 3
      %v9343 = vsel %vm2996, %v9342, %v9341
      %v9344 = vrot.slane %v6464, 2
      %v9345 = vsel %vm2999, %v9344, %v9343
      %v9346 = vrot.slane %v6465, 1
      %v9347 = vsel %vm3002, %v9346, %v9345
      %v9348 = vsel %vm3005, %v6466, %v9347
      %v9349 = vrot.slane %v6467, 7
      %v9350 = vrot.slane %v6468, 6
      %v9351 = vsel %vm2987, %v9350, %v9349
      %v9352 = vrot.slane %v6469, 5
      %v9353 = vsel %vm2990, %v9352, %v9351
      %v9354 = vrot.slane %v6470, 4
      %v9355 = vsel %vm2993, %v9354, %v9353
      %v9356 = vrot.slane %v6471, 3
      %v9357 = vsel %vm2996, %v9356, %v9355
      %v9358 = vrot.slane %v6472, 2
      %v9359 = vsel %vm2999, %v9358, %v9357
      %v9360 = vrot.slane %v6473, 1
      %v9361 = vsel %vm3002, %v9360, %v9359
      %v9362 = vsel %vm3005, %v6474, %v9361
      %v9363 = vrot.slane %v6475, 7
      %v9364 = vrot.slane %v6476, 6
      %v9365 = vsel %vm2987, %v9364, %v9363
      %v9366 = vrot.slane %v6477, 5
      %v9367 = vsel %vm2990, %v9366, %v9365
      %v9368 = vrot.slane %v6478, 4
      %v9369 = vsel %vm2993, %v9368, %v9367
      %v9370 = vrot.slane %v6479, 3
      %v9371 = vsel %vm2996, %v9370, %v9369
      %v9372 = vrot.slane %v6480, 2
      %v9373 = vsel %vm2999, %v9372, %v9371
      %v9374 = vrot.slane %v6481, 1
      %v9375 = vsel %vm3002, %v9374, %v9373
      %v9376 = vsel %vm3005, %v6482, %v9375
      %v9377 = vrot.slane %v6483, 7
      %v9378 = vrot.slane %v6484, 6
      %v9379 = vsel %vm2987, %v9378, %v9377
      %v9380 = vrot.slane %v6485, 5
      %v9381 = vsel %vm2990, %v9380, %v9379
      %v9382 = vrot.slane %v6486, 4
      %v9383 = vsel %vm2993, %v9382, %v9381
      %v9384 = vrot.slane %v6487, 3
      %v9385 = vsel %vm2996, %v9384, %v9383
      %v9386 = vrot.slane %v6488, 2
      %v9387 = vsel %vm2999, %v9386, %v9385
      %v9388 = vrot.slane %v6489, 1
      %v9389 = vsel %vm3002, %v9388, %v9387
      %v9390 = vsel %vm3005, %v6490, %v9389
      %v9391 = vrot.slane %v6491, 7
      %v9392 = vrot.slane %v6492, 6
      %v9393 = vsel %vm2987, %v9392, %v9391
      %v9394 = vrot.slane %v6493, 5
      %v9395 = vsel %vm2990, %v9394, %v9393
      %v9396 = vrot.slane %v6494, 4
      %v9397 = vsel %vm2993, %v9396, %v9395
      %v9398 = vrot.slane %v6495, 3
      %v9399 = vsel %vm2996, %v9398, %v9397
      %v9400 = vrot.slane %v6496, 2
      %v9401 = vsel %vm2999, %v9400, %v9399
      %v9402 = vrot.slane %v6497, 1
      %v9403 = vsel %vm3002, %v9402, %v9401
      %v9404 = vsel %vm3005, %v6498, %v9403
      %v9405 = vrot.slane %v6499, 7
      %v9406 = vrot.slane %v6500, 6
      %v9407 = vsel %vm2987, %v9406, %v9405
      %v9408 = vrot.slane %v6501, 5
      %v9409 = vsel %vm2990, %v9408, %v9407
      %v9410 = vrot.slane %v6502, 4
      %v9411 = vsel %vm2993, %v9410, %v9409
      %v9412 = vrot.slane %v6503, 3
      %v9413 = vsel %vm2996, %v9412, %v9411
      %v9414 = vrot.slane %v6504, 2
      %v9415 = vsel %vm2999, %v9414, %v9413
      %v9416 = vrot.slane %v6505, 1
      %v9417 = vsel %vm3002, %v9416, %v9415
      %v9418 = vsel %vm3005, %v6506, %v9417
      %v9419 = vrot.slane %v6507, 7
      %v9420 = vrot.slane %v6508, 6
      %v9421 = vsel %vm2987, %v9420, %v9419
      %v9422 = vrot.slane %v6509, 5
      %v9423 = vsel %vm2990, %v9422, %v9421
      %v9424 = vrot.slane %v6510, 4
      %v9425 = vsel %vm2993, %v9424, %v9423
      %v9426 = vrot.slane %v6511, 3
      %v9427 = vsel %vm2996, %v9426, %v9425
      %v9428 = vrot.slane %v6512, 2
      %v9429 = vsel %vm2999, %v9428, %v9427
      %v9430 = vrot.slane %v6513, 1
      %v9431 = vsel %vm3002, %v9430, %v9429
      %v9432 = vsel %vm3005, %v6514, %v9431
      %v9433 = vrot.slane %v6515, 7
      %v9434 = vrot.slane %v6516, 6
      %v9435 = vsel %vm2987, %v9434, %v9433
      %v9436 = vrot.slane %v6517, 5
      %v9437 = vsel %vm2990, %v9436, %v9435
      %v9438 = vrot.slane %v6518, 4
      %v9439 = vsel %vm2993, %v9438, %v9437
      %v9440 = vrot.slane %v6519, 3
      %v9441 = vsel %vm2996, %v9440, %v9439
      %v9442 = vrot.slane %v6520, 2
      %v9443 = vsel %vm2999, %v9442, %v9441
      %v9444 = vrot.slane %v6521, 1
      %v9445 = vsel %vm3002, %v9444, %v9443
      %v9446 = vsel %vm3005, %v6522, %v9445
      %v9447 = vrot.slane %v6523, 7
      %v9448 = vrot.slane %v6524, 6
      %v9449 = vsel %vm2987, %v9448, %v9447
      %v9450 = vrot.slane %v6525, 5
      %v9451 = vsel %vm2990, %v9450, %v9449
      %v9452 = vrot.slane %v6526, 4
      %v9453 = vsel %vm2993, %v9452, %v9451
      %v9454 = vrot.slane %v6527, 3
      %v9455 = vsel %vm2996, %v9454, %v9453
      %v9456 = vrot.slane %v6528, 2
      %v9457 = vsel %vm2999, %v9456, %v9455
      %v9458 = vrot.slane %v6529, 1
      %v9459 = vsel %vm3002, %v9458, %v9457
      %v9460 = vsel %vm3005, %v6530, %v9459
      %v9461 = vrot.slane %v6531, 7
      %v9462 = vrot.slane %v6532, 6
      %v9463 = vsel %vm2987, %v9462, %v9461
      %v9464 = vrot.slane %v6533, 5
      %v9465 = vsel %vm2990, %v9464, %v9463
      %v9466 = vrot.slane %v6534, 4
      %v9467 = vsel %vm2993, %v9466, %v9465
      %v9468 = vrot.slane %v6535, 3
      %v9469 = vsel %vm2996, %v9468, %v9467
      %v9470 = vrot.slane %v6536, 2
      %v9471 = vsel %vm2999, %v9470, %v9469
      %v9472 = vrot.slane %v6537, 1
      %v9473 = vsel %vm3002, %v9472, %v9471
      %v9474 = vsel %vm3005, %v6538, %v9473
      %v9475 = vrot.slane %v6539, 7
      %v9476 = vrot.slane %v6540, 6
      %v9477 = vsel %vm2987, %v9476, %v9475
      %v9478 = vrot.slane %v6541, 5
      %v9479 = vsel %vm2990, %v9478, %v9477
      %v9480 = vrot.slane %v6542, 4
      %v9481 = vsel %vm2993, %v9480, %v9479
      %v9482 = vrot.slane %v6543, 3
      %v9483 = vsel %vm2996, %v9482, %v9481
      %v9484 = vrot.slane %v6544, 2
      %v9485 = vsel %vm2999, %v9484, %v9483
      %v9486 = vrot.slane %v6545, 1
      %v9487 = vsel %vm3002, %v9486, %v9485
      %v9488 = vsel %vm3005, %v6546, %v9487
      %v9489 = vrot.slane %v6547, 7
      %v9490 = vrot.slane %v6548, 6
      %v9491 = vsel %vm2987, %v9490, %v9489
      %v9492 = vrot.slane %v6549, 5
      %v9493 = vsel %vm2990, %v9492, %v9491
      %v9494 = vrot.slane %v6550, 4
      %v9495 = vsel %vm2993, %v9494, %v9493
      %v9496 = vrot.slane %v6551, 3
      %v9497 = vsel %vm2996, %v9496, %v9495
      %v9498 = vrot.slane %v6552, 2
      %v9499 = vsel %vm2999, %v9498, %v9497
      %v9500 = vrot.slane %v6553, 1
      %v9501 = vsel %vm3002, %v9500, %v9499
      %v9502 = vsel %vm3005, %v6554, %v9501
      %v9503 = vrot.slane %v6555, 7
      %v9504 = vrot.slane %v6556, 6
      %v9505 = vsel %vm2987, %v9504, %v9503
      %v9506 = vrot.slane %v6557, 5
      %v9507 = vsel %vm2990, %v9506, %v9505
      %v9508 = vrot.slane %v6558, 4
      %v9509 = vsel %vm2993, %v9508, %v9507
      %v9510 = vrot.slane %v6559, 3
      %v9511 = vsel %vm2996, %v9510, %v9509
      %v9512 = vrot.slane %v6560, 2
      %v9513 = vsel %vm2999, %v9512, %v9511
      %v9514 = vrot.slane %v6561, 1
      %v9515 = vsel %vm3002, %v9514, %v9513
      %v9516 = vsel %vm3005, %v6562, %v9515
      %v9517 = vrot.slane %v6563, 7
      %v9518 = vrot.slane %v6564, 6
      %v9519 = vsel %vm2987, %v9518, %v9517
      %v9520 = vrot.slane %v6565, 5
      %v9521 = vsel %vm2990, %v9520, %v9519
      %v9522 = vrot.slane %v6566, 4
      %v9523 = vsel %vm2993, %v9522, %v9521
      %v9524 = vrot.slane %v6567, 3
      %v9525 = vsel %vm2996, %v9524, %v9523
      %v9526 = vrot.slane %v6568, 2
      %v9527 = vsel %vm2999, %v9526, %v9525
      %v9528 = vrot.slane %v6569, 1
      %v9529 = vsel %vm3002, %v9528, %v9527
      %v9530 = vsel %vm3005, %v6570, %v9529
      %v9531 = vrot.slane %v6571, 7
      %v9532 = vrot.slane %v6572, 6
      %v9533 = vsel %vm2987, %v9532, %v9531
      %v9534 = vrot.slane %v6573, 5
      %v9535 = vsel %vm2990, %v9534, %v9533
      %v9536 = vrot.slane %v6574, 4
      %v9537 = vsel %vm2993, %v9536, %v9535
      %v9538 = vrot.slane %v6575, 3
      %v9539 = vsel %vm2996, %v9538, %v9537
      %v9540 = vrot.slane %v6576, 2
      %v9541 = vsel %vm2999, %v9540, %v9539
      %v9542 = vrot.slane %v6577, 1
      %v9543 = vsel %vm3002, %v9542, %v9541
      %v9544 = vsel %vm3005, %v6578, %v9543
      %v9545 = vrot.slane %v6579, 7
      %v9546 = vrot.slane %v6580, 6
      %v9547 = vsel %vm2987, %v9546, %v9545
      %v9548 = vrot.slane %v6581, 5
      %v9549 = vsel %vm2990, %v9548, %v9547
      %v9550 = vrot.slane %v6582, 4
      %v9551 = vsel %vm2993, %v9550, %v9549
      %v9552 = vrot.slane %v6583, 3
      %v9553 = vsel %vm2996, %v9552, %v9551
      %v9554 = vrot.slane %v6584, 2
      %v9555 = vsel %vm2999, %v9554, %v9553
      %v9556 = vrot.slane %v6585, 1
      %v9557 = vsel %vm3002, %v9556, %v9555
      %v9558 = vsel %vm3005, %v6586, %v9557
      %v9559 = vrot.slane %v6587, 7
      %v9560 = vrot.slane %v6588, 6
      %v9561 = vsel %vm2987, %v9560, %v9559
      %v9562 = vrot.slane %v6589, 5
      %v9563 = vsel %vm2990, %v9562, %v9561
      %v9564 = vrot.slane %v6590, 4
      %v9565 = vsel %vm2993, %v9564, %v9563
      %v9566 = vrot.slane %v6591, 3
      %v9567 = vsel %vm2996, %v9566, %v9565
      %v9568 = vrot.slane %v6592, 2
      %v9569 = vsel %vm2999, %v9568, %v9567
      %v9570 = vrot.slane %v6593, 1
      %v9571 = vsel %vm3002, %v9570, %v9569
      %v9572 = vsel %vm3005, %v6594, %v9571
      %v9573 = vrot.slane %v6595, 7
      %v9574 = vrot.slane %v6596, 6
      %v9575 = vsel %vm2987, %v9574, %v9573
      %v9576 = vrot.slane %v6597, 5
      %v9577 = vsel %vm2990, %v9576, %v9575
      %v9578 = vrot.slane %v6598, 4
      %v9579 = vsel %vm2993, %v9578, %v9577
      %v9580 = vrot.slane %v6599, 3
      %v9581 = vsel %vm2996, %v9580, %v9579
      %v9582 = vrot.slane %v6600, 2
      %v9583 = vsel %vm2999, %v9582, %v9581
      %v9584 = vrot.slane %v6601, 1
      %v9585 = vsel %vm3002, %v9584, %v9583
      %v9586 = vsel %vm3005, %v6602, %v9585
      %v9587 = vrot.slane %v6603, 7
      %v9588 = vrot.slane %v6604, 6
      %v9589 = vsel %vm2987, %v9588, %v9587
      %v9590 = vrot.slane %v6605, 5
      %v9591 = vsel %vm2990, %v9590, %v9589
      %v9592 = vrot.slane %v6606, 4
      %v9593 = vsel %vm2993, %v9592, %v9591
      %v9594 = vpack.c.b16 %v9278, %v9264
      %v9595 = vpack.c.b16 %v9306, %v9292
      %v9596 = vpack.c.b16 %v9334, %v9320
      %v9597 = vpack.c.b16 %v9362, %v9348
      %v9598 = vpack.c.b16 %v9390, %v9376
      %v9599 = vpack.c.b16 %v9418, %v9404
      %v9600 = vpack.c.b16 %v9446, %v9432
      %v9601 = vpack.c.b16 %v9474, %v9460
      %v9602 = vpack.c.b16 %v9502, %v9488
      %v9603 = vpack.c.b16 %v9530, %v9516
      %v9604 = vpack.c.b16 %v9558, %v9544
      %v9605 = vpack.c.b16 %v9586, %v9572
      %v9606 = vpack.c.b16 %v9593, %v9593
      %9607 = vrot.lane.b32.xlu0 %v9594, 112
      %v9608 = vpop.permute.xlu0 %9607
      %9609 = vrot.lane.b32.xlu0 %v9595, 112
      %v9610 = vpop.permute.xlu0 %9609
      %9611 = vrot.lane.b32.xlu0 %v9596, 112
      %v9612 = vpop.permute.xlu0 %9611
      %9613 = vrot.lane.b32.xlu0 %v9597, 112
      %v9614 = vpop.permute.xlu0 %9613
      %9615 = vrot.lane.b32.xlu0 %v9598, 112
      %v9616 = vpop.permute.xlu0 %9615
      %9617 = vrot.lane.b32.xlu0 %v9599, 112
      %v9618 = vpop.permute.xlu0 %9617
      %9619 = vrot.lane.b32.xlu0 %v9600, 112
      %v9620 = vpop.permute.xlu0 %9619
      %9621 = vrot.lane.b32.xlu0 %v9601, 112
      %v9622 = vpop.permute.xlu0 %9621
      %9623 = vrot.lane.b32.xlu0 %v9602, 112
      %v9624 = vpop.permute.xlu0 %9623
      %9625 = vrot.lane.b32.xlu0 %v9603, 112
      %v9626 = vpop.permute.xlu0 %9625
      %9627 = vrot.lane.b32.xlu0 %v9604, 112
      %v9628 = vpop.permute.xlu0 %9627
      %9629 = vrot.lane.b32.xlu0 %v9605, 112
      %v9630 = vpop.permute.xlu0 %9629
      %9631 = vrot.lane.b32.xlu0 %v9606, 112
      %v9632 = vpop.permute.xlu0 %9631
      %vm9633 = vcmask 130048
      %v9636 = vsel %vm9633, %v3335, %v3704
      %v9639 = vsel %vm9633, %v3336, %v3706
      %v9642 = vsel %vm9633, %v3337, %v3708
      %v9645 = vsel %vm9633, %v3338, %v3710
      %v9648 = vsel %vm9633, %v3339, %v3712
      %v9651 = vsel %vm9633, %v3340, %v3714
      %v9654 = vsel %vm9633, %v3341, %v3716
      %v9657 = vsel %vm9633, %v3342, %v3718
      %v9660 = vsel %vm9633, %v3343, %v3720
      %v9663 = vsel %vm9633, %v3344, %v3722
      %v9666 = vsel %vm9633, %v3345, %v3724
      %v9669 = vsel %vm9633, %v3346, %v3726
      %v9672 = vsel %vm9633, %v3347, %v3728
      %vm9673 = vcmask 261120
      %v9675 = vsel %vm9673, %v9636, %v4085
      %v9677 = vsel %vm9673, %v9639, %v4087
      %v9679 = vsel %vm9673, %v9642, %v4089
      %v9681 = vsel %vm9673, %v9645, %v4091
      %v9683 = vsel %vm9673, %v9648, %v4093
      %v9685 = vsel %vm9673, %v9651, %v4095
      %v9687 = vsel %vm9673, %v9654, %v4097
      %v9689 = vsel %vm9673, %v9657, %v4099
      %v9691 = vsel %vm9673, %v9660, %v4101
      %v9693 = vsel %vm9673, %v9663, %v4103
      %v9695 = vsel %vm9673, %v9666, %v4105
      %v9697 = vsel %vm9673, %v9669, %v4107
      %v9699 = vsel %vm9673, %v9672, %v4109
      %vm9700 = vcmask 392192
      %v9702 = vsel %vm9700, %v9675, %v4466
      %v9704 = vsel %vm9700, %v9677, %v4468
      %v9706 = vsel %vm9700, %v9679, %v4470
      %v9708 = vsel %vm9700, %v9681, %v4472
      %v9710 = vsel %vm9700, %v9683, %v4474
      %v9712 = vsel %vm9700, %v9685, %v4476
      %v9714 = vsel %vm9700, %v9687, %v4478
      %v9716 = vsel %vm9700, %v9689, %v4480
      %v9718 = vsel %vm9700, %v9691, %v4482
      %v9720 = vsel %vm9700, %v9693, %v4484
      %v9722 = vsel %vm9700, %v9695, %v4486
      %v9724 = vsel %vm9700, %v9697, %v4488
      %v9726 = vsel %vm9700, %v9699, %v4490
      %vm9727 = vcmask 523264
      %v9729 = vsel %vm9727, %v9702, %v4848
      %v9731 = vsel %vm9727, %v9704, %v4850
      %v9733 = vsel %vm9727, %v9706, %v4852
      %v9735 = vsel %vm9727, %v9708, %v4854
      %v9737 = vsel %vm9727, %v9710, %v4856
      %v9739 = vsel %vm9727, %v9712, %v4858
      %v9741 = vsel %vm9727, %v9714, %v4860
      %v9743 = vsel %vm9727, %v9716, %v4862
      %v9745 = vsel %vm9727, %v9718, %v4864
      %v9747 = vsel %vm9727, %v9720, %v4866
      %v9749 = vsel %vm9727, %v9722, %v4868
      %v9751 = vsel %vm9727, %v9724, %v4870
      %v9753 = vsel %vm9727, %v9726, %v4872
      %vm9754 = vcmask 654336
      %v9756 = vsel %vm9754, %v9729, %v5230
      %v9758 = vsel %vm9754, %v9731, %v5232
      %v9760 = vsel %vm9754, %v9733, %v5234
      %v9762 = vsel %vm9754, %v9735, %v5236
      %v9764 = vsel %vm9754, %v9737, %v5238
      %v9766 = vsel %vm9754, %v9739, %v5240
      %v9768 = vsel %vm9754, %v9741, %v5242
      %v9770 = vsel %vm9754, %v9743, %v5244
      %v9772 = vsel %vm9754, %v9745, %v5246
      %v9774 = vsel %vm9754, %v9747, %v5248
      %v9776 = vsel %vm9754, %v9749, %v5250
      %v9778 = vsel %vm9754, %v9751, %v5252
      %v9780 = vsel %vm9754, %v9753, %v5254
      %vm9781 = vcmask 785408
      %v9783 = vsel %vm9781, %v9756, %v5612
      %v9785 = vsel %vm9781, %v9758, %v5614
      %v9787 = vsel %vm9781, %v9760, %v5616
      %v9789 = vsel %vm9781, %v9762, %v5618
      %v9791 = vsel %vm9781, %v9764, %v5620
      %v9793 = vsel %vm9781, %v9766, %v5622
      %v9795 = vsel %vm9781, %v9768, %v5624
      %v9797 = vsel %vm9781, %v9770, %v5626
      %v9799 = vsel %vm9781, %v9772, %v5628
      %v9801 = vsel %vm9781, %v9774, %v5630
      %v9803 = vsel %vm9781, %v9776, %v5632
      %v9805 = vsel %vm9781, %v9778, %v5634
      %v9807 = vsel %vm9781, %v9780, %v5636
      %vm9808 = vcmask 916480
      %v9810 = vsel %vm9808, %v9783, %v5994
      %v9813 = vsel %vm9808, %v9785, %v5996
      %v9816 = vsel %vm9808, %v9787, %v5998
      %v9819 = vsel %vm9808, %v9789, %v6000
      %v9822 = vsel %vm9808, %v9791, %v6002
      %v9825 = vsel %vm9808, %v9793, %v6004
      %v9828 = vsel %vm9808, %v9795, %v6006
      %v9831 = vsel %vm9808, %v9797, %v6008
      %v9834 = vsel %vm9808, %v9799, %v6010
      %v9837 = vsel %vm9808, %v9801, %v6012
      %v9840 = vsel %vm9808, %v9803, %v6014
      %v9843 = vsel %vm9808, %v9805, %v6016
      %v9846 = vsel %vm9808, %v9807, %v6018
      %v9849 = vsel %vm9633, %v6949, %v7318
      %v9852 = vsel %vm9633, %v6950, %v7320
      %v9855 = vsel %vm9633, %v6951, %v7322
      %v9858 = vsel %vm9633, %v6952, %v7324
      %v9861 = vsel %vm9633, %v6953, %v7326
      %v9864 = vsel %vm9633, %v6954, %v7328
      %v9867 = vsel %vm9633, %v6955, %v7330
      %v9870 = vsel %vm9633, %v6956, %v7332
      %v9873 = vsel %vm9633, %v6957, %v7334
      %v9876 = vsel %vm9633, %v6958, %v7336
      %v9879 = vsel %vm9633, %v6959, %v7338
      %v9882 = vsel %vm9633, %v6960, %v7340
      %v9885 = vsel %vm9633, %v6961, %v7342
      %v9887 = vsel %vm9673, %v9849, %v7699
      %v9889 = vsel %vm9673, %v9852, %v7701
      %v9891 = vsel %vm9673, %v9855, %v7703
      %v9893 = vsel %vm9673, %v9858, %v7705
      %v9895 = vsel %vm9673, %v9861, %v7707
      %v9897 = vsel %vm9673, %v9864, %v7709
      %v9899 = vsel %vm9673, %v9867, %v7711
      %v9901 = vsel %vm9673, %v9870, %v7713
      %v9903 = vsel %vm9673, %v9873, %v7715
      %v9905 = vsel %vm9673, %v9876, %v7717
      %v9907 = vsel %vm9673, %v9879, %v7719
      %v9909 = vsel %vm9673, %v9882, %v7721
      %v9911 = vsel %vm9673, %v9885, %v7723
      %v9913 = vsel %vm9700, %v9887, %v8080
      %v9915 = vsel %vm9700, %v9889, %v8082
      %v9917 = vsel %vm9700, %v9891, %v8084
      %v9919 = vsel %vm9700, %v9893, %v8086
      %v9921 = vsel %vm9700, %v9895, %v8088
      %v9923 = vsel %vm9700, %v9897, %v8090
      %v9925 = vsel %vm9700, %v9899, %v8092
      %v9927 = vsel %vm9700, %v9901, %v8094
      %v9929 = vsel %vm9700, %v9903, %v8096
      %v9931 = vsel %vm9700, %v9905, %v8098
      %v9933 = vsel %vm9700, %v9907, %v8100
      %v9935 = vsel %vm9700, %v9909, %v8102
      %v9937 = vsel %vm9700, %v9911, %v8104
      %v9939 = vsel %vm9727, %v9913, %v8462
      %v9941 = vsel %vm9727, %v9915, %v8464
      %v9943 = vsel %vm9727, %v9917, %v8466
      %v9945 = vsel %vm9727, %v9919, %v8468
      %v9947 = vsel %vm9727, %v9921, %v8470
      %v9949 = vsel %vm9727, %v9923, %v8472
      %v9951 = vsel %vm9727, %v9925, %v8474
      %v9953 = vsel %vm9727, %v9927, %v8476
      %v9955 = vsel %vm9727, %v9929, %v8478
      %v9957 = vsel %vm9727, %v9931, %v8480
      %v9959 = vsel %vm9727, %v9933, %v8482
      %v9961 = vsel %vm9727, %v9935, %v8484
      %v9963 = vsel %vm9727, %v9937, %v8486
      %v9965 = vsel %vm9754, %v9939, %v8844
      %v9967 = vsel %vm9754, %v9941, %v8846
      %v9969 = vsel %vm9754, %v9943, %v8848
      %v9971 = vsel %vm9754, %v9945, %v8850
      %v9973 = vsel %vm9754, %v9947, %v8852
      %v9975 = vsel %vm9754, %v9949, %v8854
      %v9977 = vsel %vm9754, %v9951, %v8856
      %v9979 = vsel %vm9754, %v9953, %v8858
      %v9981 = vsel %vm9754, %v9955, %v8860
      %v9983 = vsel %vm9754, %v9957, %v8862
      %v9985 = vsel %vm9754, %v9959, %v8864
      %v9987 = vsel %vm9754, %v9961, %v8866
      %v9989 = vsel %vm9754, %v9963, %v8868
      %v9991 = vsel %vm9781, %v9965, %v9226
      %v9993 = vsel %vm9781, %v9967, %v9228
      %v9995 = vsel %vm9781, %v9969, %v9230
      %v9997 = vsel %vm9781, %v9971, %v9232
      %v9999 = vsel %vm9781, %v9973, %v9234
      %v10001 = vsel %vm9781, %v9975, %v9236
      %v10003 = vsel %vm9781, %v9977, %v9238
      %v10005 = vsel %vm9781, %v9979, %v9240
      %v10007 = vsel %vm9781, %v9981, %v9242
      %v10009 = vsel %vm9781, %v9983, %v9244
      %v10011 = vsel %vm9781, %v9985, %v9246
      %v10013 = vsel %vm9781, %v9987, %v9248
      %v10015 = vsel %vm9781, %v9989, %v9250
      %v10017 = vsel %vm9808, %v9991, %v9608
      %v10020 = vsel %vm9808, %v9993, %v9610
      %v10023 = vsel %vm9808, %v9995, %v9612
      %v10026 = vsel %vm9808, %v9997, %v9614
      %v10029 = vsel %vm9808, %v9999, %v9616
      %v10032 = vsel %vm9808, %v10001, %v9618
      %v10035 = vsel %vm9808, %v10003, %v9620
      %v10038 = vsel %vm9808, %v10005, %v9622
      %v10041 = vsel %vm9808, %v10007, %v9624
      %v10044 = vsel %vm9808, %v10009, %v9626
      %v10047 = vsel %vm9808, %v10011, %v9628
      %v10050 = vsel %vm9808, %v10013, %v9630
      %v10053 = vsel %vm9808, %v10015, %v9632
      %v10054 = vld [vmem:[%s1] sm:$0xff]
      %v10056 = vunpack.c.l.b16 %v10054
      %v10057 = vunpack.c.h.b16 %v10054
      %v10058 = vpack.c.b16 %v10056, %v10056
      %v10059 = vpack.c.b16 %v10057, %v10057
      %vm10061 = vcmask 556032
      %v10063 = vsel %vm10061, %v10059, 0
      %vm10065 = vcmask 1041408
      %v10066 = vsel %vm10065, %v9846, 0
      %v10068 = vsel %vm10065, %v10053, 0
      %10070 = vmatprep.subr.bf16.mxu0 %v10017
      %10071 = vmatpush1.bf16.msra.mxu0 %v9810
      %10072 = vmatprep.subr.bf16.mxu0 %v10020
      %10073 = vmatpush1.bf16.msra.mxu0 %v9813
      %10074 = vmatprep.subr.bf16.mxu0 %v10023
      %10075 = vmatpush1.bf16.msra.mxu0 %v9816
      %10076 = vmatprep.subr.bf16.mxu0 %v10026
      %10077 = vmatpush1.bf16.msra.mxu0 %v9819
      %10078 = vmatprep.subr.bf16.mxu0 %v10029
      %10079 = vmatpush1.bf16.msra.mxu0 %v9822
      %10080 = vmatprep.subr.bf16.mxu0 %v10032
      %10081 = vmatpush1.bf16.msra.mxu0 %v9825
      %10082 = vmatprep.subr.bf16.mxu0 %v10035
      %10083 = vmatpush1.bf16.msra.mxu0 %v9828
      %10084 = vmatprep.subr.bf16.mxu0 %v10038
      %10085 = vmatpush1.bf16.msra.mxu0 %v9831
      %10086 = vmatprep.subr.bf16.mxu0 %v10041
      %10087 = vmatpush1.bf16.msra.mxu0 %v9834
      %10088 = vmatprep.subr.bf16.mxu0 %v10044
      %10089 = vmatpush1.bf16.msra.mxu0 %v9837
      %10090 = vmatprep.subr.bf16.mxu0 %v10047
      %10091 = vmatpush1.bf16.msra.mxu0 %v9840
      %10092 = vmatprep.subr.bf16.mxu0 %v10050
      %10093 = vmatpush1.bf16.msra.mxu0 %v9843
      %10094 = vmatprep.subr.bf16.mxu0 %v10068
      %10095 = vmatpush1.bf16.msra.mxu0 %v10066
      %10096 = vmatprep.subr.bf16.mxu0 0
      %10097 = vmatpush1.bf16.msra.mxu0 0
      %10098 = vmatprep.subr.bf16.mxu0 0
      %10099 = vmatpush1.bf16.msra.mxu0 0
      %10100 = vmatprep.subr.bf16.mxu0 0
      %10101 = vmatpush1.bf16.msra.mxu0 0
      %10102 = vmatprep.mubr.bf16.mxu0 %v10063
      %10103 = vmatmul.mubr.bf16.gmra.mrb[0].mxu0 %v10058
      %v10104 = vpop.f32.mrb[0].mxu0
      %v10105 = vadd.f32 0.0, %v10104
      %v10106 = vpop.f32.mrb[0].mxu0
      %v10107 = vadd.f32 0.0, %v10106
      %v10108 = vpop.f32.mrb[0].mxu0
      %v10109 = vpop.f32.mrb[0].mxu0
      %10110 = vdwg.mxu0
      %vm10111 = vcmp.ge.f32.partialorder %v10105, 0.0
      %vm10112 = vcmp.ge.f32.partialorder %v10107, 0.0
      %v10113 = vmul.f32 %v10105, 0.1
      %v10114 = vmul.f32 %v10107, 0.1
      %v10115 = vsel %vm10111, %v10105, %v10113
      %v10116 = vsel %vm10112, %v10107, %v10114
      %10117 = vst [vmem:[%s165] sm:$0xff] %v10115
      %10118 = vst [vmem:[%s165 + $0x8] sm:$0xff] %v10116
      %s10119 = smul.u32 2, %s18
      %p10120 = scmp.lt.s32.totalorder %s17, 1
      %s10121 = scalar_select %p10120, %s17, 1
      %p10122 = scmp.lt.s32.totalorder %s10119, 1
      %s10123 = scalar_select %p10122, %s10119, 1
      %s10124 = smul.addr %s10121, 2
      %s10125 = sadd.s32 %s10123, %s10124
      %s10126 = smul.addr %s10125, 8
      %s10127 = scalar_lea.vmem %s2, %s10126
      // Predicated region
      $region29: #{conv7_block_1_forward.1} parent=27 // pred_check
        %p10128 = pneg %p92
      $region30: #{conv7_block_1_forward.1} parent=27 // pred_check_branch
        %10130 = sbr.rel (%p10128) target = $region32
      $region31: #{conv7_block_1_forward.1} parent=27 // pred_region
        %s10131 = smul.u32 2, %s18
      $region32: #{conv7_block_1_forward.1} parent=27 // pred_fallthru
        _
    $region28: #{conv7_block_1_forward.1} parent=5 // pred_fallthru
      _
    %p10132 = scmp.le.s32.totalorder 2, %s8
    // Predicated region
    $region33: #{conv7_block_1_forward.1} parent=5 // pred_check
      %p10133 = pneg %p10132
    $region34: #{conv7_block_1_forward.1} parent=5 // pred_check_branch
      %10135 = sbr.rel (%p10133) target = $region36
    $region35: #{conv7_block_1_forward.1} parent=5 // pred_region
      %s10136 = ssub.s32 %s8, 2
      // Predicated region
      $region37: #{conv7_block_1_forward.1} parent=35 // pred_check
        %p10137 = pneg %p98
      $region38: #{conv7_block_1_forward.1} parent=35 // pred_check_branch
        %10139 = sbr.rel (%p10137) target = $region40
      $region39: #{conv7_block_1_forward.1} parent=35 // pred_region
        %s10140 = smul.u32 2, %s20
        %p10141 = scmp.lt.s32.totalorder %s19, 1
        %s10142 = scalar_select %p10141, %s19, 1
        %p10143 = scmp.lt.s32.totalorder %s10140, 1
        %s10144 = scalar_select %p10143, %s10140, 1
        %s10145 = smul.addr %s10142, 2
        %s10146 = sadd.s32 %s10144, %s10145
        %s10147 = smul.addr %s10146, 8
        %s10148 = scalar_lea.vmem %s2, %s10147
      $region40: #{conv7_block_1_forward.1} parent=35 // pred_fallthru
        _
    $region36: #{conv7_block_1_forward.1} parent=5 // pred_fallthru
      _
  $region6: #{conv7_block_1_forward.1} parent=0 // loop_footer
    %s12 = sadd.s32 1, %s8
  $region7: #{conv7_block_1_forward.1} parent=0 // loop_footer_branch
    %7 = sbr.rel target = $region3
  $region8: #{conv7_block_1_forward.1} parent=0 // loop_exit
    _

</llo_original>
